<compile_context>
chip_gen: v7x
topology: tpu7x:2x2x1
jax: 0.10.0
libtpu: 0.0.40
codegen_flags: <defaults>
</compile_context>

<pallas_src>
from functools import partial

import numpy as np

import jax
import jax.numpy as jnp
from jax import lax
from jax.experimental import pallas as pl
from jax.experimental.pallas import tpu as pltpu


LANES = 128    # carrier lane width: W*C padded to one full vreg lane group
KTAPS = 4      # conv kernel size along each spatial dim (k=4, s=2, p=1)


def _round_up(v, m):
    return (v + m - 1) // m * m


# -----------------------------------------------------------------------------
# Pallas kernel: the whole 6-layer autoencoder in one grid-less invocation
# -----------------------------------------------------------------------------
def _autoencoder_kernel(x_ref, l_ref, m_ref, p_ref, gb_ref, out_ref, t_ref, *, meta):
    """Packed operands:
      x_ref  : (N*H0, 128) f32      activation carrier A[(n,h),(w,c)], lane-padded
      l_ref  : (6, 32, 128) bf16    per-layer [L_0|L_1|L_2|L_3] (tap blocks at i*rp)
      m_ref  : (6, 128, 512) bf16   per-layer [M_0|M_1|M_2|M_3] (tap blocks at i*128)
      p_ref  : (6, 128, 128) f32    per-channel column-group averaging matrix
      gb_ref : (6, 2, 128) f32      row 0 = gamma, row 1 = beta (lane-padded with 0)
      t_ref  : (128, 128) f32       VMEM scratch holding the tap-stacked T_cat
      meta   : static ((rows_in, rows_out, rp, act), ...) per layer
    """
    # Zero the scratch once so per-layer padding rows can never inject NaN/Inf
    # into the (exact-zero) padded columns of L.
    t_ref[...] = jnp.zeros_like(t_ref)

    a = x_ref[...]                                           # f32 (rows, 128)
    for layer, (rows_in, rows_out, rp, act) in enumerate(meta):
        # ---- Conv / ConvTranspose (k=4, s=2, p=1): two fat matmuls ----------
        t_flat = jnp.dot(a.astype(jnp.bfloat16), m_ref[layer],
                         preferred_element_type=jnp.float32)  # (rows_in, 4*128)
        for i in range(KTAPS):   # lane-block -> sublane-block scatter into scratch
            t_ref[i * rp:i * rp + rows_in, :] = t_flat[:, i * LANES:(i + 1) * LANES]
        l_cat = l_ref[layer][:rows_out, :KTAPS * rp]          # bf16 (rows_out, 4*rp)
        z = jnp.dot(l_cat, t_ref[:KTAPS * rp, :],
                    preferred_element_type=jnp.float32)       # f32 (rows_out, 128)

        # ---- BatchNorm2d (training-mode batch stats) + activation -----------
        # mean and the second moment are independent matmuls (no serialisation);
        # HIGHEST precision keeps the E[Z^2] - mean^2 cancellation in true f32.
        p = p_ref[layer]
        mean_bc = jnp.mean(
            jnp.dot(z, p, precision=lax.Precision.HIGHEST,
                    preferred_element_type=jnp.float32),
            axis=0, keepdims=True)
        ex2_bc = jnp.mean(
            jnp.dot(z * z, p, precision=lax.Precision.HIGHEST,
                    preferred_element_type=jnp.float32),
            axis=0, keepdims=True)
        var_bc = jnp.maximum(ex2_bc - mean_bc * mean_bc, 0.0)

        gb = gb_ref[layer]                                     # f32 (2, 128)
        y = (z - mean_bc) * lax.rsqrt(var_bc + 1e-5) * gb[0:1, :] + gb[1:2, :]
        a = jnp.maximum(y, 0.0) if act == "relu" else jnp.tanh(y)

    out_ref[...] = a


# -----------------------------------------------------------------------------
# Constant-matrix construction (runs once on host, from torch-layout params)
# -----------------------------------------------------------------------------
def _row_selectors(in_size, out_size, transposed):
    """0/1 gather matrices R_i (out_size, in_size) for kernel taps i = 0..3.

    Conv2d          (k=4, s=2, p=1):  R_i[o, h] = 1  iff  h == 2*o + i - 1
    ConvTranspose2d (k=4, s=2, p=1):  R_i[o, h] = 1  iff  2*h == o + i - 2
    Out-of-range rows are simply absent -> implicit zero padding.
    """
    sels = []
    for i in range(KTAPS):
        r = np.zeros((out_size, in_size), np.float32)
        for o in range(out_size):
            if transposed:
                num = o + i - 2
                if num < 0 or num % 2 != 0:
                    continue
                h = num // 2
            else:
                h = 2 * o + i - 1
            if 0 <= h < in_size:
                r[o, h] = 1.0
        sels.append(r)
    return sels


def _build_layer_constants(w, gamma, beta, n, hin, win, transposed, act):
    w = np.asarray(jax.device_get(w), np.float32)
    gamma = np.asarray(jax.device_get(gamma), np.float32)
    beta = np.asarray(jax.device_get(beta), np.float32)

    if transposed:                     # torch ConvTranspose2d weight: (Cin, Cout, kh, kw)
        cin, cout = w.shape[0], w.shape[1]
        hout, wout = 2 * hin, 2 * win

        def w_tap(i, j):               # flipped kernel of the equivalent conv
            return w[:, :, 3 - i, 3 - j]                    # (Cin, Cout)
    else:                              # torch Conv2d weight: (Cout, Cin, kh, kw)
        cout, cin = w.shape[0], w.shape[1]
        hout, wout = hin // 2, win // 2

        def w_tap(i, j):
            return w[:, :, i, j].T                          # (Cin, Cout)

    rows_in, rows_out = n * hin, n * hout
    rp = max(8, _round_up(rows_in, 8))
    assert rows_out <= 32 and KTAPS * rp <= 128
    assert win * cin <= LANES and wout * cout <= LANES

    rs = _row_selectors(hin, hout, transposed)                 # R_i: (hout, hin)
    cs = [r.T for r in _row_selectors(win, wout, transposed)]  # C_j: (win, wout)

    # [L_0|L_1|L_2|L_3]: tap-i block at columns [i*rp, i*rp + rows_in)
    l_cat = np.zeros((32, 128), np.float32)
    for i in range(KTAPS):
        l_cat[:rows_out, i * rp:i * rp + rows_in] = np.kron(
            np.eye(n, dtype=np.float32), rs[i])

    # [M_0|M_1|M_2|M_3]: tap-i block (win*cin, wout*cout) at lane offset i*128
    m_cat = np.zeros((LANES, KTAPS * LANES), np.float32)
    for i in range(KTAPS):
        mi = sum(np.kron(cs[j], w_tap(i, j)) for j in range(KTAPS))
        m_cat[:win * cin, i * LANES:i * LANES + wout * cout] = mi

    # P: per-channel average over the wout column groups (zero in pad region,
    # so padded columns stay exactly 0 through BN and activation)
    p = np.zeros((LANES, LANES), np.float32)
    p[:wout * cout, :wout * cout] = np.kron(
        np.ones((wout, wout), np.float32) / wout, np.eye(cout, dtype=np.float32))

    gb = np.zeros((2, LANES), np.float32)
    gb[0, :wout * cout] = np.tile(gamma, wout)
    gb[1, :wout * cout] = np.tile(beta, wout)

    return dict(l=l_cat, m=m_cat, p=p, gb=gb,
                meta=(rows_in, rows_out, rp, act),
                hout=hout, wout=wout, cout=cout)


def build_network_constants(params, n, height, width):
    layers, hin, win = [], height, width
    for (wt, _bias, g, be) in params["enc"]:       # bias cancelled by train-mode BN
        lc = _build_layer_constants(wt, g, be, n, hin, win, transposed=False, act="relu")
        layers.append(lc)
        hin, win = lc["hout"], lc["wout"]
    for (wt, _bias, g, be), act in zip(params["dec"], ("relu", "relu", "tanh")):
        lc = _build_layer_constants(wt, g, be, n, hin, win, transposed=True, act=act)
        layers.append(lc)
        hin, win = lc["hout"], lc["wout"]

    return dict(
        # L entries are 0/1 and M entries are conv weights -> bf16 storage is
        # exact / matches the MXU's native single bf16 pass.
        L=jnp.asarray(np.stack([lc["l"] for lc in layers]), jnp.bfloat16),
        M=jnp.asarray(np.stack([lc["m"] for lc in layers]), jnp.bfloat16),
        P=jnp.asarray(np.stack([lc["p"] for lc in layers]), jnp.float32),
        GB=jnp.asarray(np.stack([lc["gb"] for lc in layers]), jnp.float32),
        meta=tuple(lc["meta"] for lc in layers),
        out_hw_c=(layers[-1]["hout"], layers[-1]["wout"], layers[-1]["cout"]),
    )


# -----------------------------------------------------------------------------
# Parameters (shapes follow the torch module; biases kept for the reference)
# -----------------------------------------------------------------------------
def init_params(key):
    K = 4
    enc_channels = [(3, 12), (12, 24), (24, 48)]
    dec_channels = [(48, 24), (24, 12), (12, 3)]
    params = {"enc": [], "dec": []}
    for cin, cout in enc_channels:
        key, k1, k2 = jax.random.split(key, 3)
        bound = 1.0 / (cin * K * K) ** 0.5
        w = jax.random.uniform(k1, (cout, cin, K, K), jnp.float32, -bound, bound)
        b = jax.random.uniform(k2, (cout,), jnp.float32, -bound, bound)
        params["enc"].append((w, b, jnp.ones((cout,), jnp.float32),
                              jnp.zeros((cout,), jnp.float32)))
    for cin, cout in dec_channels:
        key, k1, k2 = jax.random.split(key, 3)
        bound = 1.0 / (cout * K * K) ** 0.5
        # torch ConvTranspose2d weight layout: (C_in, C_out, kH, kW)
        w = jax.random.uniform(k1, (cin, cout, K, K), jnp.float32, -bound, bound)
        b = jax.random.uniform(k2, (cout,), jnp.float32, -bound, bound)
        params["dec"].append((w, b, jnp.ones((cout,), jnp.float32),
                              jnp.zeros((cout,), jnp.float32)))
    return params


# -----------------------------------------------------------------------------
# Forward pass: single fused pallas_call (6 DMAs: x, L, M, P, GB, out)
# -----------------------------------------------------------------------------
def conv_autoencoder_forward(x_nchw, packed):
    """NCHW in / NCHW out, like the torch module.  The only out-of-kernel work
    is the tiny (~6 KiB) NCHW <-> carrier layout change at the boundary."""
    n, c, h, w = x_nchw.shape
    a0 = jnp.transpose(x_nchw, (0, 2, 3, 1)).reshape(n * h, w * c)   # (N*H, W*C)
    a0 = jnp.pad(a0, ((0, 0), (0, LANES - w * c)))                   # lane-pad to 128

    oh, ow, oc = packed["out_hw_c"]
    out = pl.pallas_call(
        partial(_autoencoder_kernel, meta=packed["meta"]),
        out_shape=jax.ShapeDtypeStruct((n * oh, LANES), jnp.float32),
        # Single grid-less invocation: every operand is a whole-array VMEM block
        # (total footprint ~1.3 MiB -- far below the scoped VMEM limit).
        in_specs=[pl.BlockSpec(memory_space=pltpu.MemorySpace.VMEM)] * 5,
        out_specs=pl.BlockSpec(memory_space=pltpu.MemorySpace.VMEM),
        scratch_shapes=[pltpu.VMEM((128, LANES), jnp.float32)],
    )(a0, packed["L"], packed["M"], packed["P"], packed["GB"])

    return out[:, :ow * oc].reshape(n, oh, ow, oc).transpose(0, 3, 1, 2)  # NCHW


# -----------------------------------------------------------------------------
# Pure-JAX reference (mirrors the torch module, including the conv biases)
# -----------------------------------------------------------------------------
def _bn_train(h, gamma, beta, eps=1e-5):
    mean = jnp.mean(h, axis=(0, 2, 3), keepdims=True)
    var = jnp.mean((h - mean) ** 2, axis=(0, 2, 3), keepdims=True)
    return ((h - mean) * lax.rsqrt(var + eps) * gamma.reshape(1, -1, 1, 1)
            + beta.reshape(1, -1, 1, 1))


def reference_forward(x, params):
    h = x
    for (w, b, g, be) in params["enc"]:
        h = lax.conv_general_dilated(h, w, (2, 2), ((1, 1), (1, 1)),
                                     dimension_numbers=("NCHW", "OIHW", "NCHW"))
        h = h + b.reshape(1, -1, 1, 1)
        h = jnp.maximum(_bn_train(h, g, be), 0.0)
    for (w, b, g, be), act in zip(params["dec"], ("relu", "relu", "tanh")):
        # ConvTranspose2d == stride-1 conv over x2-dilated, pad-2 input, flipped kernel
        w_f = jnp.transpose(w, (1, 0, 2, 3))[:, :, ::-1, ::-1]
        h = lax.conv_general_dilated(h, w_f, (1, 1), ((2, 2), (2, 2)),
                                     lhs_dilation=(2, 2),
                                     dimension_numbers=("NCHW", "OIHW", "NCHW"))
        h = h + b.reshape(1, -1, 1, 1)
        h = _bn_train(h, g, be)
        h = jnp.maximum(h, 0.0) if act == "relu" else jnp.tanh(h)
    return h


# -----------------------------------------------------------------------------
if __name__ == "__main__":
    key = jax.random.PRNGKey(0)
    key, xkey = jax.random.split(key)
    x = jax.random.normal(xkey, (2, 3, 16, 16), jnp.float32)   # NCHW, like torch

    params = init_params(key)
    packed = build_network_constants(params, n=x.shape[0],
                                     height=x.shape[2], width=x.shape[3])

    fwd = jax.jit(lambda inp: conv_autoencoder_forward(inp, packed))
    y = fwd(x)
    jax.block_until_ready(y)

    assert y.shape == (2, 3, 16, 16), y.shape
    assert bool(jnp.all(jnp.isfinite(y)))
    assert bool(jnp.all(jnp.abs(y) <= 1.0 + 1e-6))   # final Tanh range

    # Cross-check against the pure-JAX (lax.conv) reference of the torch module.
    y_ref = jax.jit(lambda inp: reference_forward(inp, params))(x)
    err = float(jnp.max(jnp.abs(y - y_ref)))
    # Tolerance absorbs the single bf16 MXU pass on the conv matmuls; BN stats
    # are computed at HIGHEST precision so the typical difference is ~1e-3.
    assert err < 5e-2, err

    print("KERNEL_OK")
</pallas_src>

<mosaic_0001>
module attributes {stable_mosaic.version = 11 : i64} {
  func.func @_autoencoder_kernel(%arg0: memref<32x128xf32, #tpu.memory_space<vmem>>, %arg1: memref<6x32x128xbf16, #tpu.memory_space<vmem>>, %arg2: memref<6x128x512xbf16, #tpu.memory_space<vmem>>, %arg3: memref<6x128x128xf32, #tpu.memory_space<vmem>>, %arg4: memref<6x2x128xf32, #tpu.memory_space<vmem>>, %arg5: memref<32x128xf32, #tpu.memory_space<vmem>>, %arg6: memref<128x128xf32, #tpu.memory_space<vmem>>) attributes {dimension_semantics = [], scalar_prefetch = 0 : i64, scratch_operands = 1 : i64, tpu.core_type = #tpu.core_type<tc>} {
    %cst = arith.constant 0.000000e+00 : f32
    %0 = vector.broadcast %cst : f32 to vector<128x128xf32>
    %c0 = arith.constant 0 : index
    %c0_0 = arith.constant 0 : index
    %1 = vector.load %arg6[%c0, %c0_0] : memref<128x128xf32, #tpu.memory_space<vmem>>, vector<128x128xf32>
    tpu.vector_store %arg6[%c0, %c0_0], %0 {strides = array<i32>} : memref<128x128xf32, #tpu.memory_space<vmem>>, vector<128x128xf32>,
    %c0_1 = arith.constant 0 : index
    %c0_2 = arith.constant 0 : index
    %2 = vector.load %arg0[%c0_1, %c0_2] : memref<32x128xf32, #tpu.memory_space<vmem>>, vector<32x128xf32>
    %3 = arith.truncf %2 : vector<32x128xf32> to vector<32x128xbf16>
    %c0_3 = arith.constant 0 : index
    %c0_4 = arith.constant 0 : index
    %c0_5 = arith.constant 0 : index
    %4 = vector.load %arg2[%c0_3, %c0_4, %c0_5] : memref<6x128x512xbf16, #tpu.memory_space<vmem>>, vector<1x128x512xbf16>
    %5 = vector.shape_cast %4 : vector<1x128x512xbf16> to vector<128x512xbf16>
    %cst_6 = arith.constant dense<0.000000e+00> : vector<32x512xf32>
    %6 = tpu.matmul %3, %5, %cst_6 {dimension_numbers = #tpu.dot_dimension_numbers<[1], [0], [0], [1], [0, 0, 1, 1], [], []>} : vector<32x128xbf16>, vector<128x512xbf16>, vector<32x512xf32> -> vector<32x512xf32>
    %7 = vector.extract_strided_slice %6 {offsets = [0, 0], sizes = [32, 128], strides = [1, 1]} : vector<32x512xf32> to vector<32x128xf32>
    %c0_7 = arith.constant 0 : index
    %c0_8 = arith.constant 0 : index
    %8 = vector.load %arg6[%c0_7, %c0_8] : memref<128x128xf32, #tpu.memory_space<vmem>>, vector<32x128xf32>
    tpu.vector_store %arg6[%c0_7, %c0_8], %7 {strides = array<i32>} : memref<128x128xf32, #tpu.memory_space<vmem>>, vector<32x128xf32>,
    %9 = vector.extract_strided_slice %6 {offsets = [0, 128], sizes = [32, 128], strides = [1, 1]} : vector<32x512xf32> to vector<32x128xf32>
    %c32 = arith.constant 32 : index
    %c0_9 = arith.constant 0 : index
    %10 = vector.load %arg6[%c32, %c0_9] : memref<128x128xf32, #tpu.memory_space<vmem>>, vector<32x128xf32>
    tpu.vector_store %arg6[%c32, %c0_9], %9 {strides = array<i32>} : memref<128x128xf32, #tpu.memory_space<vmem>>, vector<32x128xf32>,
    %11 = vector.extract_strided_slice %6 {offsets = [0, 256], sizes = [32, 128], strides = [1, 1]} : vector<32x512xf32> to vector<32x128xf32>
    %c64 = arith.constant 64 : index
    %c0_10 = arith.constant 0 : index
    %12 = vector.load %arg6[%c64, %c0_10] : memref<128x128xf32, #tpu.memory_space<vmem>>, vector<32x128xf32>
    tpu.vector_store %arg6[%c64, %c0_10], %11 {strides = array<i32>} : memref<128x128xf32, #tpu.memory_space<vmem>>, vector<32x128xf32>,
    %13 = vector.extract_strided_slice %6 {offsets = [0, 384], sizes = [32, 128], strides = [1, 1]} : vector<32x512xf32> to vector<32x128xf32>
    %c96 = arith.constant 96 : index
    %c0_11 = arith.constant 0 : index
    %14 = vector.load %arg6[%c96, %c0_11] : memref<128x128xf32, #tpu.memory_space<vmem>>, vector<32x128xf32>
    tpu.vector_store %arg6[%c96, %c0_11], %13 {strides = array<i32>} : memref<128x128xf32, #tpu.memory_space<vmem>>, vector<32x128xf32>,
    %c0_12 = arith.constant 0 : index
    %c0_13 = arith.constant 0 : index
    %c0_14 = arith.constant 0 : index
    %15 = vector.load %arg1[%c0_12, %c0_13, %c0_14] : memref<6x32x128xbf16, #tpu.memory_space<vmem>>, vector<1x32x128xbf16>
    %16 = vector.shape_cast %15 : vector<1x32x128xbf16> to vector<32x128xbf16>
    %17 = vector.extract_strided_slice %16 {offsets = [0, 0], sizes = [16, 128], strides = [1, 1]} : vector<32x128xbf16> to vector<16x128xbf16>
    %c0_15 = arith.constant 0 : index
    %c0_16 = arith.constant 0 : index
    %18 = vector.load %arg6[%c0_15, %c0_16] : memref<128x128xf32, #tpu.memory_space<vmem>>, vector<128x128xf32>
    %cst_17 = arith.constant dense<0.000000e+00> : vector<16x128xf32>
    %19 = tpu.matmul %17, %18, %cst_17 {dimension_numbers = #tpu.dot_dimension_numbers<[1], [0], [0], [1], [0, 0, 1, 1], [], []>} : vector<16x128xbf16>, vector<128x128xf32>, vector<16x128xf32> -> vector<16x128xf32>
    %c0_18 = arith.constant 0 : index
    %c0_19 = arith.constant 0 : index
    %c0_20 = arith.constant 0 : index
    %20 = vector.load %arg3[%c0_18, %c0_19, %c0_20] : memref<6x128x128xf32, #tpu.memory_space<vmem>>, vector<1x128x128xf32>
    %21 = vector.shape_cast %20 : vector<1x128x128xf32> to vector<128x128xf32>
    %cst_21 = arith.constant dense<0.000000e+00> : vector<16x128xf32>
    %22 = tpu.matmul %19, %21, %cst_21 {dimension_numbers = #tpu.dot_dimension_numbers<[1], [0], [0], [1], [0, 0, 1, 1], [], []>, precision = #tpu.contract_precision<fp32>} : vector<16x128xf32>, vector<128x128xf32>, vector<16x128xf32> -> vector<16x128xf32>
    %cst_22 = arith.constant dense<0.000000e+00> : vector<128xf32>
    %23 = vector.multi_reduction <add>, %22, %cst_22 [0] : vector<16x128xf32> to vector<128xf32>
    %24 = vector.shape_cast %23 : vector<128xf32> to vector<1x128xf32>
    %cst_23 = arith.constant 1.600000e+01 : f32
    %25 = vector.broadcast %cst_23 : f32 to vector<1x128xf32>
    %26 = arith.divf %24, %25 : vector<1x128xf32>
    %27 = arith.mulf %19, %19 : vector<16x128xf32>
    %cst_24 = arith.constant dense<0.000000e+00> : vector<16x128xf32>
    %28 = tpu.matmul %27, %21, %cst_24 {dimension_numbers = #tpu.dot_dimension_numbers<[1], [0], [0], [1], [0, 0, 1, 1], [], []>, precision = #tpu.contract_precision<fp32>} : vector<16x128xf32>, vector<128x128xf32>, vector<16x128xf32> -> vector<16x128xf32>
    %cst_25 = arith.constant dense<0.000000e+00> : vector<128xf32>
    %29 = vector.multi_reduction <add>, %28, %cst_25 [0] : vector<16x128xf32> to vector<128xf32>
    %30 = vector.shape_cast %29 : vector<128xf32> to vector<1x128xf32>
    %cst_26 = arith.constant 1.600000e+01 : f32
    %31 = vector.broadcast %cst_26 : f32 to vector<1x128xf32>
    %32 = arith.divf %30, %31 : vector<1x128xf32>
    %33 = arith.mulf %26, %26 : vector<1x128xf32>
    %34 = arith.subf %32, %33 : vector<1x128xf32>
    %cst_27 = arith.constant 0.000000e+00 : f32
    %35 = vector.broadcast %cst_27 : f32 to vector<1x128xf32>
    %36 = arith.maximumf %34, %35 : vector<1x128xf32>
    %c0_28 = arith.constant 0 : index
    %c0_29 = arith.constant 0 : index
    %c0_30 = arith.constant 0 : index
    %37 = vector.load %arg4[%c0_28, %c0_29, %c0_30] : memref<6x2x128xf32, #tpu.memory_space<vmem>>, vector<1x2x128xf32>
    %38 = vector.shape_cast %37 : vector<1x2x128xf32> to vector<2x128xf32>
    %39 = vector.broadcast %26 : vector<1x128xf32> to vector<16x128xf32>
    %40 = arith.subf %19, %39 : vector<16x128xf32>
    %cst_31 = arith.constant 9.99999974E-6 : f32
    %41 = vector.broadcast %cst_31 : f32 to vector<1x128xf32>
    %42 = arith.addf %36, %41 : vector<1x128xf32>
    %43 = math.rsqrt %42 : vector<1x128xf32>
    %44 = vector.broadcast %43 : vector<1x128xf32> to vector<16x128xf32>
    %45 = arith.mulf %40, %44 : vector<16x128xf32>
    %46 = vector.extract_strided_slice %38 {offsets = [0, 0], sizes = [1, 128], strides = [1, 1]} : vector<2x128xf32> to vector<1x128xf32>
    %47 = vector.broadcast %46 : vector<1x128xf32> to vector<16x128xf32>
    %48 = arith.mulf %45, %47 : vector<16x128xf32>
    %49 = vector.extract_strided_slice %38 {offsets = [1, 0], sizes = [1, 128], strides = [1, 1]} : vector<2x128xf32> to vector<1x128xf32>
    %50 = vector.broadcast %49 : vector<1x128xf32> to vector<16x128xf32>
    %51 = arith.addf %48, %50 : vector<16x128xf32>
    %cst_32 = arith.constant 0.000000e+00 : f32
    %52 = vector.broadcast %cst_32 : f32 to vector<16x128xf32>
    %53 = arith.maximumf %51, %52 : vector<16x128xf32>
    %54 = arith.truncf %53 : vector<16x128xf32> to vector<16x128xbf16>
    %c1 = arith.constant 1 : index
    %c0_33 = arith.constant 0 : index
    %c0_34 = arith.constant 0 : index
    %55 = vector.load %arg2[%c1, %c0_33, %c0_34] : memref<6x128x512xbf16, #tpu.memory_space<vmem>>, vector<1x128x512xbf16>
    %56 = vector.shape_cast %55 : vector<1x128x512xbf16> to vector<128x512xbf16>
    %cst_35 = arith.constant dense<0.000000e+00> : vector<16x512xf32>
    %57 = tpu.matmul %54, %56, %cst_35 {dimension_numbers = #tpu.dot_dimension_numbers<[1], [0], [0], [1], [0, 0, 1, 1], [], []>} : vector<16x128xbf16>, vector<128x512xbf16>, vector<16x512xf32> -> vector<16x512xf32>
    %58 = vector.extract_strided_slice %57 {offsets = [0, 0], sizes = [16, 128], strides = [1, 1]} : vector<16x512xf32> to vector<16x128xf32>
    %c0_36 = arith.constant 0 : index
    %c0_37 = arith.constant 0 : index
    %59 = vector.load %arg6[%c0_36, %c0_37] : memref<128x128xf32, #tpu.memory_space<vmem>>, vector<16x128xf32>
    tpu.vector_store %arg6[%c0_36, %c0_37], %58 {strides = array<i32>} : memref<128x128xf32, #tpu.memory_space<vmem>>, vector<16x128xf32>,
    %60 = vector.extract_strided_slice %57 {offsets = [0, 128], sizes = [16, 128], strides = [1, 1]} : vector<16x512xf32> to vector<16x128xf32>
    %c16 = arith.constant 16 : index
    %c0_38 = arith.constant 0 : index
    %61 = vector.load %arg6[%c16, %c0_38] : memref<128x128xf32, #tpu.memory_space<vmem>>, vector<16x128xf32>
    tpu.vector_store %arg6[%c16, %c0_38], %60 {strides = array<i32>} : memref<128x128xf32, #tpu.memory_space<vmem>>, vector<16x128xf32>,
    %62 = vector.extract_strided_slice %57 {offsets = [0, 256], sizes = [16, 128], strides = [1, 1]} : vector<16x512xf32> to vector<16x128xf32>
    %c32_39 = arith.constant 32 : index
    %c0_40 = arith.constant 0 : index
    %63 = vector.load %arg6[%c32_39, %c0_40] : memref<128x128xf32, #tpu.memory_space<vmem>>, vector<16x128xf32>
    tpu.vector_store %arg6[%c32_39, %c0_40], %62 {strides = array<i32>} : memref<128x128xf32, #tpu.memory_space<vmem>>, vector<16x128xf32>,
    %64 = vector.extract_strided_slice %57 {offsets = [0, 384], sizes = [16, 128], strides = [1, 1]} : vector<16x512xf32> to vector<16x128xf32>
    %c48 = arith.constant 48 : index
    %c0_41 = arith.constant 0 : index
    %65 = vector.load %arg6[%c48, %c0_41] : memref<128x128xf32, #tpu.memory_space<vmem>>, vector<16x128xf32>
    tpu.vector_store %arg6[%c48, %c0_41], %64 {strides = array<i32>} : memref<128x128xf32, #tpu.memory_space<vmem>>, vector<16x128xf32>,
    %c1_42 = arith.constant 1 : index
    %c0_43 = arith.constant 0 : index
    %c0_44 = arith.constant 0 : index
    %66 = vector.load %arg1[%c1_42, %c0_43, %c0_44] : memref<6x32x128xbf16, #tpu.memory_space<vmem>>, vector<1x32x128xbf16>
    %67 = vector.shape_cast %66 : vector<1x32x128xbf16> to vector<32x128xbf16>
    %68 = vector.extract_strided_slice %67 {offsets = [0, 0], sizes = [8, 64], strides = [1, 1]} : vector<32x128xbf16> to vector<8x64xbf16>
    %c0_45 = arith.constant 0 : index
    %c0_46 = arith.constant 0 : index
    %69 = vector.load %arg6[%c0_45, %c0_46] : memref<128x128xf32, #tpu.memory_space<vmem>>, vector<64x128xf32>
    %cst_47 = arith.constant dense<0.000000e+00> : vector<8x128xf32>
    %70 = tpu.matmul %68, %69, %cst_47 {dimension_numbers = #tpu.dot_dimension_numbers<[1], [0], [0], [1], [0, 0, 1, 1], [], []>} : vector<8x64xbf16>, vector<64x128xf32>, vector<8x128xf32> -> vector<8x128xf32>
    %c1_48 = arith.constant 1 : index
    %c0_49 = arith.constant 0 : index
    %c0_50 = arith.constant 0 : index
    %71 = vector.load %arg3[%c1_48, %c0_49, %c0_50] : memref<6x128x128xf32, #tpu.memory_space<vmem>>, vector<1x128x128xf32>
    %72 = vector.shape_cast %71 : vector<1x128x128xf32> to vector<128x128xf32>
    %cst_51 = arith.constant dense<0.000000e+00> : vector<8x128xf32>
    %73 = tpu.matmul %70, %72, %cst_51 {dimension_numbers = #tpu.dot_dimension_numbers<[1], [0], [0], [1], [0, 0, 1, 1], [], []>, precision = #tpu.contract_precision<fp32>} : vector<8x128xf32>, vector<128x128xf32>, vector<8x128xf32> -> vector<8x128xf32>
    %cst_52 = arith.constant dense<0.000000e+00> : vector<128xf32>
    %74 = vector.multi_reduction <add>, %73, %cst_52 [0] : vector<8x128xf32> to vector<128xf32>
    %75 = vector.shape_cast %74 : vector<128xf32> to vector<1x128xf32>
    %cst_53 = arith.constant 8.000000e+00 : f32
    %76 = vector.broadcast %cst_53 : f32 to vector<1x128xf32>
    %77 = arith.divf %75, %76 : vector<1x128xf32>
    %78 = arith.mulf %70, %70 : vector<8x128xf32>
    %cst_54 = arith.constant dense<0.000000e+00> : vector<8x128xf32>
    %79 = tpu.matmul %78, %72, %cst_54 {dimension_numbers = #tpu.dot_dimension_numbers<[1], [0], [0], [1], [0, 0, 1, 1], [], []>, precision = #tpu.contract_precision<fp32>} : vector<8x128xf32>, vector<128x128xf32>, vector<8x128xf32> -> vector<8x128xf32>
    %cst_55 = arith.constant dense<0.000000e+00> : vector<128xf32>
    %80 = vector.multi_reduction <add>, %79, %cst_55 [0] : vector<8x128xf32> to vector<128xf32>
    %81 = vector.shape_cast %80 : vector<128xf32> to vector<1x128xf32>
    %cst_56 = arith.constant 8.000000e+00 : f32
    %82 = vector.broadcast %cst_56 : f32 to vector<1x128xf32>
    %83 = arith.divf %81, %82 : vector<1x128xf32>
    %84 = arith.mulf %77, %77 : vector<1x128xf32>
    %85 = arith.subf %83, %84 : vector<1x128xf32>
    %cst_57 = arith.constant 0.000000e+00 : f32
    %86 = vector.broadcast %cst_57 : f32 to vector<1x128xf32>
    %87 = arith.maximumf %85, %86 : vector<1x128xf32>
    %c1_58 = arith.constant 1 : index
    %c0_59 = arith.constant 0 : index
    %c0_60 = arith.constant 0 : index
    %88 = vector.load %arg4[%c1_58, %c0_59, %c0_60] : memref<6x2x128xf32, #tpu.memory_space<vmem>>, vector<1x2x128xf32>
    %89 = vector.shape_cast %88 : vector<1x2x128xf32> to vector<2x128xf32>
    %90 = vector.broadcast %77 : vector<1x128xf32> to vector<8x128xf32>
    %91 = arith.subf %70, %90 : vector<8x128xf32>
    %cst_61 = arith.constant 9.99999974E-6 : f32
    %92 = vector.broadcast %cst_61 : f32 to vector<1x128xf32>
    %93 = arith.addf %87, %92 : vector<1x128xf32>
    %94 = math.rsqrt %93 : vector<1x128xf32>
    %95 = vector.broadcast %94 : vector<1x128xf32> to vector<8x128xf32>
    %96 = arith.mulf %91, %95 : vector<8x128xf32>
    %97 = vector.extract_strided_slice %89 {offsets = [0, 0], sizes = [1, 128], strides = [1, 1]} : vector<2x128xf32> to vector<1x128xf32>
    %98 = vector.broadcast %97 : vector<1x128xf32> to vector<8x128xf32>
    %99 = arith.mulf %96, %98 : vector<8x128xf32>
    %100 = vector.extract_strided_slice %89 {offsets = [1, 0], sizes = [1, 128], strides = [1, 1]} : vector<2x128xf32> to vector<1x128xf32>
    %101 = vector.broadcast %100 : vector<1x128xf32> to vector<8x128xf32>
    %102 = arith.addf %99, %101 : vector<8x128xf32>
    %cst_62 = arith.constant 0.000000e+00 : f32
    %103 = vector.broadcast %cst_62 : f32 to vector<8x128xf32>
    %104 = arith.maximumf %102, %103 : vector<8x128xf32>
    %105 = arith.truncf %104 : vector<8x128xf32> to vector<8x128xbf16>
    %c2 = arith.constant 2 : index
    %c0_63 = arith.constant 0 : index
    %c0_64 = arith.constant 0 : index
    %106 = vector.load %arg2[%c2, %c0_63, %c0_64] : memref<6x128x512xbf16, #tpu.memory_space<vmem>>, vector<1x128x512xbf16>
    %107 = vector.shape_cast %106 : vector<1x128x512xbf16> to vector<128x512xbf16>
    %cst_65 = arith.constant dense<0.000000e+00> : vector<8x512xf32>
    %108 = tpu.matmul %105, %107, %cst_65 {dimension_numbers = #tpu.dot_dimension_numbers<[1], [0], [0], [1], [0, 0, 1, 1], [], []>} : vector<8x128xbf16>, vector<128x512xbf16>, vector<8x512xf32> -> vector<8x512xf32>
    %109 = vector.extract_strided_slice %108 {offsets = [0, 0], sizes = [8, 128], strides = [1, 1]} : vector<8x512xf32> to vector<8x128xf32>
    %c0_66 = arith.constant 0 : index
    %c0_67 = arith.constant 0 : index
    %110 = vector.load %arg6[%c0_66, %c0_67] : memref<128x128xf32, #tpu.memory_space<vmem>>, vector<8x128xf32>
    tpu.vector_store %arg6[%c0_66, %c0_67], %109 {strides = array<i32>} : memref<128x128xf32, #tpu.memory_space<vmem>>, vector<8x128xf32>,
    %111 = vector.extract_strided_slice %108 {offsets = [0, 128], sizes = [8, 128], strides = [1, 1]} : vector<8x512xf32> to vector<8x128xf32>
    %c8 = arith.constant 8 : index
    %c0_68 = arith.constant 0 : index
    %112 = vector.load %arg6[%c8, %c0_68] : memref<128x128xf32, #tpu.memory_space<vmem>>, vector<8x128xf32>
    tpu.vector_store %arg6[%c8, %c0_68], %111 {strides = array<i32>} : memref<128x128xf32, #tpu.memory_space<vmem>>, vector<8x128xf32>,
    %113 = vector.extract_strided_slice %108 {offsets = [0, 256], sizes = [8, 128], strides = [1, 1]} : vector<8x512xf32> to vector<8x128xf32>
    %c16_69 = arith.constant 16 : index
    %c0_70 = arith.constant 0 : index
    %114 = vector.load %arg6[%c16_69, %c0_70] : memref<128x128xf32, #tpu.memory_space<vmem>>, vector<8x128xf32>
    tpu.vector_store %arg6[%c16_69, %c0_70], %113 {strides = array<i32>} : memref<128x128xf32, #tpu.memory_space<vmem>>, vector<8x128xf32>,
    %115 = vector.extract_strided_slice %108 {offsets = [0, 384], sizes = [8, 128], strides = [1, 1]} : vector<8x512xf32> to vector<8x128xf32>
    %c24 = arith.constant 24 : index
    %c0_71 = arith.constant 0 : index
    %116 = vector.load %arg6[%c24, %c0_71] : memref<128x128xf32, #tpu.memory_space<vmem>>, vector<8x128xf32>
    tpu.vector_store %arg6[%c24, %c0_71], %115 {strides = array<i32>} : memref<128x128xf32, #tpu.memory_space<vmem>>, vector<8x128xf32>,
    %c2_72 = arith.constant 2 : index
    %c0_73 = arith.constant 0 : index
    %c0_74 = arith.constant 0 : index
    %117 = vector.load %arg1[%c2_72, %c0_73, %c0_74] : memref<6x32x128xbf16, #tpu.memory_space<vmem>>, vector<1x32x128xbf16>
    %118 = vector.shape_cast %117 : vector<1x32x128xbf16> to vector<32x128xbf16>
    %119 = vector.extract_strided_slice %118 {offsets = [0, 0], sizes = [4, 32], strides = [1, 1]} : vector<32x128xbf16> to vector<4x32xbf16>
    %c0_75 = arith.constant 0 : index
    %c0_76 = arith.constant 0 : index
    %120 = vector.load %arg6[%c0_75, %c0_76] : memref<128x128xf32, #tpu.memory_space<vmem>>, vector<32x128xf32>
    %cst_77 = arith.constant dense<0.000000e+00> : vector<4x128xf32>
    %121 = tpu.matmul %119, %120, %cst_77 {dimension_numbers = #tpu.dot_dimension_numbers<[1], [0], [0], [1], [0, 0, 1, 1], [], []>} : vector<4x32xbf16>, vector<32x128xf32>, vector<4x128xf32> -> vector<4x128xf32>
    %c2_78 = arith.constant 2 : index
    %c0_79 = arith.constant 0 : index
    %c0_80 = arith.constant 0 : index
    %122 = vector.load %arg3[%c2_78, %c0_79, %c0_80] : memref<6x128x128xf32, #tpu.memory_space<vmem>>, vector<1x128x128xf32>
    %123 = vector.shape_cast %122 : vector<1x128x128xf32> to vector<128x128xf32>
    %cst_81 = arith.constant dense<0.000000e+00> : vector<4x128xf32>
    %124 = tpu.matmul %121, %123, %cst_81 {dimension_numbers = #tpu.dot_dimension_numbers<[1], [0], [0], [1], [0, 0, 1, 1], [], []>, precision = #tpu.contract_precision<fp32>} : vector<4x128xf32>, vector<128x128xf32>, vector<4x128xf32> -> vector<4x128xf32>
    %cst_82 = arith.constant dense<0.000000e+00> : vector<128xf32>
    %125 = vector.multi_reduction <add>, %124, %cst_82 [0] : vector<4x128xf32> to vector<128xf32>
    %126 = vector.shape_cast %125 : vector<128xf32> to vector<1x128xf32>
    %cst_83 = arith.constant 4.000000e+00 : f32
    %127 = vector.broadcast %cst_83 : f32 to vector<1x128xf32>
    %128 = arith.divf %126, %127 : vector<1x128xf32>
    %129 = arith.mulf %121, %121 : vector<4x128xf32>
    %cst_84 = arith.constant dense<0.000000e+00> : vector<4x128xf32>
    %130 = tpu.matmul %129, %123, %cst_84 {dimension_numbers = #tpu.dot_dimension_numbers<[1], [0], [0], [1], [0, 0, 1, 1], [], []>, precision = #tpu.contract_precision<fp32>} : vector<4x128xf32>, vector<128x128xf32>, vector<4x128xf32> -> vector<4x128xf32>
    %cst_85 = arith.constant dense<0.000000e+00> : vector<128xf32>
    %131 = vector.multi_reduction <add>, %130, %cst_85 [0] : vector<4x128xf32> to vector<128xf32>
    %132 = vector.shape_cast %131 : vector<128xf32> to vector<1x128xf32>
    %cst_86 = arith.constant 4.000000e+00 : f32
    %133 = vector.broadcast %cst_86 : f32 to vector<1x128xf32>
    %134 = arith.divf %132, %133 : vector<1x128xf32>
    %135 = arith.mulf %128, %128 : vector<1x128xf32>
    %136 = arith.subf %134, %135 : vector<1x128xf32>
    %cst_87 = arith.constant 0.000000e+00 : f32
    %137 = vector.broadcast %cst_87 : f32 to vector<1x128xf32>
    %138 = arith.maximumf %136, %137 : vector<1x128xf32>
    %c2_88 = arith.constant 2 : index
    %c0_89 = arith.constant 0 : index
    %c0_90 = arith.constant 0 : index
    %139 = vector.load %arg4[%c2_88, %c0_89, %c0_90] : memref<6x2x128xf32, #tpu.memory_space<vmem>>, vector<1x2x128xf32>
    %140 = vector.shape_cast %139 : vector<1x2x128xf32> to vector<2x128xf32>
    %141 = vector.broadcast %128 : vector<1x128xf32> to vector<4x128xf32>
    %142 = arith.subf %121, %141 : vector<4x128xf32>
    %cst_91 = arith.constant 9.99999974E-6 : f32
    %143 = vector.broadcast %cst_91 : f32 to vector<1x128xf32>
    %144 = arith.addf %138, %143 : vector<1x128xf32>
    %145 = math.rsqrt %144 : vector<1x128xf32>
    %146 = vector.broadcast %145 : vector<1x128xf32> to vector<4x128xf32>
    %147 = arith.mulf %142, %146 : vector<4x128xf32>
    %148 = vector.extract_strided_slice %140 {offsets = [0, 0], sizes = [1, 128], strides = [1, 1]} : vector<2x128xf32> to vector<1x128xf32>
    %149 = vector.broadcast %148 : vector<1x128xf32> to vector<4x128xf32>
    %150 = arith.mulf %147, %149 : vector<4x128xf32>
    %151 = vector.extract_strided_slice %140 {offsets = [1, 0], sizes = [1, 128], strides = [1, 1]} : vector<2x128xf32> to vector<1x128xf32>
    %152 = vector.broadcast %151 : vector<1x128xf32> to vector<4x128xf32>
    %153 = arith.addf %150, %152 : vector<4x128xf32>
    %cst_92 = arith.constant 0.000000e+00 : f32
    %154 = vector.broadcast %cst_92 : f32 to vector<4x128xf32>
    %155 = arith.maximumf %153, %154 : vector<4x128xf32>
    %156 = arith.truncf %155 : vector<4x128xf32> to vector<4x128xbf16>
    %c3 = arith.constant 3 : index
    %c0_93 = arith.constant 0 : index
    %c0_94 = arith.constant 0 : index
    %157 = vector.load %arg2[%c3, %c0_93, %c0_94] : memref<6x128x512xbf16, #tpu.memory_space<vmem>>, vector<1x128x512xbf16>
    %158 = vector.shape_cast %157 : vector<1x128x512xbf16> to vector<128x512xbf16>
    %cst_95 = arith.constant dense<0.000000e+00> : vector<4x512xf32>
    %159 = tpu.matmul %156, %158, %cst_95 {dimension_numbers = #tpu.dot_dimension_numbers<[1], [0], [0], [1], [0, 0, 1, 1], [], []>} : vector<4x128xbf16>, vector<128x512xbf16>, vector<4x512xf32> -> vector<4x512xf32>
    %160 = vector.extract_strided_slice %159 {offsets = [0, 0], sizes = [4, 128], strides = [1, 1]} : vector<4x512xf32> to vector<4x128xf32>
    %c0_96 = arith.constant 0 : index
    %c0_97 = arith.constant 0 : index
    %161 = vector.load %arg6[%c0_96, %c0_97] : memref<128x128xf32, #tpu.memory_space<vmem>>, vector<4x128xf32>
    tpu.vector_store %arg6[%c0_96, %c0_97], %160 {strides = array<i32>} : memref<128x128xf32, #tpu.memory_space<vmem>>, vector<4x128xf32>,
    %162 = vector.extract_strided_slice %159 {offsets = [0, 128], sizes = [4, 128], strides = [1, 1]} : vector<4x512xf32> to vector<4x128xf32>
    %c8_98 = arith.constant 8 : index
    %c0_99 = arith.constant 0 : index
    %163 = vector.load %arg6[%c8_98, %c0_99] : memref<128x128xf32, #tpu.memory_space<vmem>>, vector<4x128xf32>
    tpu.vector_store %arg6[%c8_98, %c0_99], %162 {strides = array<i32>} : memref<128x128xf32, #tpu.memory_space<vmem>>, vector<4x128xf32>,
    %164 = vector.extract_strided_slice %159 {offsets = [0, 256], sizes = [4, 128], strides = [1, 1]} : vector<4x512xf32> to vector<4x128xf32>
    %c16_100 = arith.constant 16 : index
    %c0_101 = arith.constant 0 : index
    %165 = vector.load %arg6[%c16_100, %c0_101] : memref<128x128xf32, #tpu.memory_space<vmem>>, vector<4x128xf32>
    tpu.vector_store %arg6[%c16_100, %c0_101], %164 {strides = array<i32>} : memref<128x128xf32, #tpu.memory_space<vmem>>, vector<4x128xf32>,
    %166 = vector.extract_strided_slice %159 {offsets = [0, 384], sizes = [4, 128], strides = [1, 1]} : vector<4x512xf32> to vector<4x128xf32>
    %c24_102 = arith.constant 24 : index
    %c0_103 = arith.constant 0 : index
    %167 = vector.load %arg6[%c24_102, %c0_103] : memref<128x128xf32, #tpu.memory_space<vmem>>, vector<4x128xf32>
    tpu.vector_store %arg6[%c24_102, %c0_103], %166 {strides = array<i32>} : memref<128x128xf32, #tpu.memory_space<vmem>>, vector<4x128xf32>,
    %c3_104 = arith.constant 3 : index
    %c0_105 = arith.constant 0 : index
    %c0_106 = arith.constant 0 : index
    %168 = vector.load %arg1[%c3_104, %c0_105, %c0_106] : memref<6x32x128xbf16, #tpu.memory_space<vmem>>, vector<1x32x128xbf16>
    %169 = vector.shape_cast %168 : vector<1x32x128xbf16> to vector<32x128xbf16>
    %170 = vector.extract_strided_slice %169 {offsets = [0, 0], sizes = [8, 32], strides = [1, 1]} : vector<32x128xbf16> to vector<8x32xbf16>
    %c0_107 = arith.constant 0 : index
    %c0_108 = arith.constant 0 : index
    %171 = vector.load %arg6[%c0_107, %c0_108] : memref<128x128xf32, #tpu.memory_space<vmem>>, vector<32x128xf32>
    %cst_109 = arith.constant dense<0.000000e+00> : vector<8x128xf32>
    %172 = tpu.matmul %170, %171, %cst_109 {dimension_numbers = #tpu.dot_dimension_numbers<[1], [0], [0], [1], [0, 0, 1, 1], [], []>} : vector<8x32xbf16>, vector<32x128xf32>, vector<8x128xf32> -> vector<8x128xf32>
    %c3_110 = arith.constant 3 : index
    %c0_111 = arith.constant 0 : index
    %c0_112 = arith.constant 0 : index
    %173 = vector.load %arg3[%c3_110, %c0_111, %c0_112] : memref<6x128x128xf32, #tpu.memory_space<vmem>>, vector<1x128x128xf32>
    %174 = vector.shape_cast %173 : vector<1x128x128xf32> to vector<128x128xf32>
    %cst_113 = arith.constant dense<0.000000e+00> : vector<8x128xf32>
    %175 = tpu.matmul %172, %174, %cst_113 {dimension_numbers = #tpu.dot_dimension_numbers<[1], [0], [0], [1], [0, 0, 1, 1], [], []>, precision = #tpu.contract_precision<fp32>} : vector<8x128xf32>, vector<128x128xf32>, vector<8x128xf32> -> vector<8x128xf32>
    %cst_114 = arith.constant dense<0.000000e+00> : vector<128xf32>
    %176 = vector.multi_reduction <add>, %175, %cst_114 [0] : vector<8x128xf32> to vector<128xf32>
    %177 = vector.shape_cast %176 : vector<128xf32> to vector<1x128xf32>
    %cst_115 = arith.constant 8.000000e+00 : f32
    %178 = vector.broadcast %cst_115 : f32 to vector<1x128xf32>
    %179 = arith.divf %177, %178 : vector<1x128xf32>
    %180 = arith.mulf %172, %172 : vector<8x128xf32>
    %cst_116 = arith.constant dense<0.000000e+00> : vector<8x128xf32>
    %181 = tpu.matmul %180, %174, %cst_116 {dimension_numbers = #tpu.dot_dimension_numbers<[1], [0], [0], [1], [0, 0, 1, 1], [], []>, precision = #tpu.contract_precision<fp32>} : vector<8x128xf32>, vector<128x128xf32>, vector<8x128xf32> -> vector<8x128xf32>
    %cst_117 = arith.constant dense<0.000000e+00> : vector<128xf32>
    %182 = vector.multi_reduction <add>, %181, %cst_117 [0] : vector<8x128xf32> to vector<128xf32>
    %183 = vector.shape_cast %182 : vector<128xf32> to vector<1x128xf32>
    %cst_118 = arith.constant 8.000000e+00 : f32
    %184 = vector.broadcast %cst_118 : f32 to vector<1x128xf32>
    %185 = arith.divf %183, %184 : vector<1x128xf32>
    %186 = arith.mulf %179, %179 : vector<1x128xf32>
    %187 = arith.subf %185, %186 : vector<1x128xf32>
    %cst_119 = arith.constant 0.000000e+00 : f32
    %188 = vector.broadcast %cst_119 : f32 to vector<1x128xf32>
    %189 = arith.maximumf %187, %188 : vector<1x128xf32>
    %c3_120 = arith.constant 3 : index
    %c0_121 = arith.constant 0 : index
    %c0_122 = arith.constant 0 : index
    %190 = vector.load %arg4[%c3_120, %c0_121, %c0_122] : memref<6x2x128xf32, #tpu.memory_space<vmem>>, vector<1x2x128xf32>
    %191 = vector.shape_cast %190 : vector<1x2x128xf32> to vector<2x128xf32>
    %192 = vector.broadcast %179 : vector<1x128xf32> to vector<8x128xf32>
    %193 = arith.subf %172, %192 : vector<8x128xf32>
    %cst_123 = arith.constant 9.99999974E-6 : f32
    %194 = vector.broadcast %cst_123 : f32 to vector<1x128xf32>
    %195 = arith.addf %189, %194 : vector<1x128xf32>
    %196 = math.rsqrt %195 : vector<1x128xf32>
    %197 = vector.broadcast %196 : vector<1x128xf32> to vector<8x128xf32>
    %198 = arith.mulf %193, %197 : vector<8x128xf32>
    %199 = vector.extract_strided_slice %191 {offsets = [0, 0], sizes = [1, 128], strides = [1, 1]} : vector<2x128xf32> to vector<1x128xf32>
    %200 = vector.broadcast %199 : vector<1x128xf32> to vector<8x128xf32>
    %201 = arith.mulf %198, %200 : vector<8x128xf32>
    %202 = vector.extract_strided_slice %191 {offsets = [1, 0], sizes = [1, 128], strides = [1, 1]} : vector<2x128xf32> to vector<1x128xf32>
    %203 = vector.broadcast %202 : vector<1x128xf32> to vector<8x128xf32>
    %204 = arith.addf %201, %203 : vector<8x128xf32>
    %cst_124 = arith.constant 0.000000e+00 : f32
    %205 = vector.broadcast %cst_124 : f32 to vector<8x128xf32>
    %206 = arith.maximumf %204, %205 : vector<8x128xf32>
    %207 = arith.truncf %206 : vector<8x128xf32> to vector<8x128xbf16>
    %c4 = arith.constant 4 : index
    %c0_125 = arith.constant 0 : index
    %c0_126 = arith.constant 0 : index
    %208 = vector.load %arg2[%c4, %c0_125, %c0_126] : memref<6x128x512xbf16, #tpu.memory_space<vmem>>, vector<1x128x512xbf16>
    %209 = vector.shape_cast %208 : vector<1x128x512xbf16> to vector<128x512xbf16>
    %cst_127 = arith.constant dense<0.000000e+00> : vector<8x512xf32>
    %210 = tpu.matmul %207, %209, %cst_127 {dimension_numbers = #tpu.dot_dimension_numbers<[1], [0], [0], [1], [0, 0, 1, 1], [], []>} : vector<8x128xbf16>, vector<128x512xbf16>, vector<8x512xf32> -> vector<8x512xf32>
    %211 = vector.extract_strided_slice %210 {offsets = [0, 0], sizes = [8, 128], strides = [1, 1]} : vector<8x512xf32> to vector<8x128xf32>
    %c0_128 = arith.constant 0 : index
    %c0_129 = arith.constant 0 : index
    %212 = vector.load %arg6[%c0_128, %c0_129] : memref<128x128xf32, #tpu.memory_space<vmem>>, vector<8x128xf32>
    tpu.vector_store %arg6[%c0_128, %c0_129], %211 {strides = array<i32>} : memref<128x128xf32, #tpu.memory_space<vmem>>, vector<8x128xf32>,
    %213 = vector.extract_strided_slice %210 {offsets = [0, 128], sizes = [8, 128], strides = [1, 1]} : vector<8x512xf32> to vector<8x128xf32>
    %c8_130 = arith.constant 8 : index
    %c0_131 = arith.constant 0 : index
    %214 = vector.load %arg6[%c8_130, %c0_131] : memref<128x128xf32, #tpu.memory_space<vmem>>, vector<8x128xf32>
    tpu.vector_store %arg6[%c8_130, %c0_131], %213 {strides = array<i32>} : memref<128x128xf32, #tpu.memory_space<vmem>>, vector<8x128xf32>,
    %215 = vector.extract_strided_slice %210 {offsets = [0, 256], sizes = [8, 128], strides = [1, 1]} : vector<8x512xf32> to vector<8x128xf32>
    %c16_132 = arith.constant 16 : index
    %c0_133 = arith.constant 0 : index
    %216 = vector.load %arg6[%c16_132, %c0_133] : memref<128x128xf32, #tpu.memory_space<vmem>>, vector<8x128xf32>
    tpu.vector_store %arg6[%c16_132, %c0_133], %215 {strides = array<i32>} : memref<128x128xf32, #tpu.memory_space<vmem>>, vector<8x128xf32>,
    %217 = vector.extract_strided_slice %210 {offsets = [0, 384], sizes = [8, 128], strides = [1, 1]} : vector<8x512xf32> to vector<8x128xf32>
    %c24_134 = arith.constant 24 : index
    %c0_135 = arith.constant 0 : index
    %218 = vector.load %arg6[%c24_134, %c0_135] : memref<128x128xf32, #tpu.memory_space<vmem>>, vector<8x128xf32>
    tpu.vector_store %arg6[%c24_134, %c0_135], %217 {strides = array<i32>} : memref<128x128xf32, #tpu.memory_space<vmem>>, vector<8x128xf32>,
    %c4_136 = arith.constant 4 : index
    %c0_137 = arith.constant 0 : index
    %c0_138 = arith.constant 0 : index
    %219 = vector.load %arg1[%c4_136, %c0_137, %c0_138] : memref<6x32x128xbf16, #tpu.memory_space<vmem>>, vector<1x32x128xbf16>
    %220 = vector.shape_cast %219 : vector<1x32x128xbf16> to vector<32x128xbf16>
    %221 = vector.extract_strided_slice %220 {offsets = [0, 0], sizes = [16, 32], strides = [1, 1]} : vector<32x128xbf16> to vector<16x32xbf16>
    %c0_139 = arith.constant 0 : index
    %c0_140 = arith.constant 0 : index
    %222 = vector.load %arg6[%c0_139, %c0_140] : memref<128x128xf32, #tpu.memory_space<vmem>>, vector<32x128xf32>
    %cst_141 = arith.constant dense<0.000000e+00> : vector<16x128xf32>
    %223 = tpu.matmul %221, %222, %cst_141 {dimension_numbers = #tpu.dot_dimension_numbers<[1], [0], [0], [1], [0, 0, 1, 1], [], []>} : vector<16x32xbf16>, vector<32x128xf32>, vector<16x128xf32> -> vector<16x128xf32>
    %c4_142 = arith.constant 4 : index
    %c0_143 = arith.constant 0 : index
    %c0_144 = arith.constant 0 : index
    %224 = vector.load %arg3[%c4_142, %c0_143, %c0_144] : memref<6x128x128xf32, #tpu.memory_space<vmem>>, vector<1x128x128xf32>
    %225 = vector.shape_cast %224 : vector<1x128x128xf32> to vector<128x128xf32>
    %cst_145 = arith.constant dense<0.000000e+00> : vector<16x128xf32>
    %226 = tpu.matmul %223, %225, %cst_145 {dimension_numbers = #tpu.dot_dimension_numbers<[1], [0], [0], [1], [0, 0, 1, 1], [], []>, precision = #tpu.contract_precision<fp32>} : vector<16x128xf32>, vector<128x128xf32>, vector<16x128xf32> -> vector<16x128xf32>
    %cst_146 = arith.constant dense<0.000000e+00> : vector<128xf32>
    %227 = vector.multi_reduction <add>, %226, %cst_146 [0] : vector<16x128xf32> to vector<128xf32>
    %228 = vector.shape_cast %227 : vector<128xf32> to vector<1x128xf32>
    %cst_147 = arith.constant 1.600000e+01 : f32
    %229 = vector.broadcast %cst_147 : f32 to vector<1x128xf32>
    %230 = arith.divf %228, %229 : vector<1x128xf32>
    %231 = arith.mulf %223, %223 : vector<16x128xf32>
    %cst_148 = arith.constant dense<0.000000e+00> : vector<16x128xf32>
    %232 = tpu.matmul %231, %225, %cst_148 {dimension_numbers = #tpu.dot_dimension_numbers<[1], [0], [0], [1], [0, 0, 1, 1], [], []>, precision = #tpu.contract_precision<fp32>} : vector<16x128xf32>, vector<128x128xf32>, vector<16x128xf32> -> vector<16x128xf32>
    %cst_149 = arith.constant dense<0.000000e+00> : vector<128xf32>
    %233 = vector.multi_reduction <add>, %232, %cst_149 [0] : vector<16x128xf32> to vector<128xf32>
    %234 = vector.shape_cast %233 : vector<128xf32> to vector<1x128xf32>
    %cst_150 = arith.constant 1.600000e+01 : f32
    %235 = vector.broadcast %cst_150 : f32 to vector<1x128xf32>
    %236 = arith.divf %234, %235 : vector<1x128xf32>
    %237 = arith.mulf %230, %230 : vector<1x128xf32>
    %238 = arith.subf %236, %237 : vector<1x128xf32>
    %cst_151 = arith.constant 0.000000e+00 : f32
    %239 = vector.broadcast %cst_151 : f32 to vector<1x128xf32>
    %240 = arith.maximumf %238, %239 : vector<1x128xf32>
    %c4_152 = arith.constant 4 : index
    %c0_153 = arith.constant 0 : index
    %c0_154 = arith.constant 0 : index
    %241 = vector.load %arg4[%c4_152, %c0_153, %c0_154] : memref<6x2x128xf32, #tpu.memory_space<vmem>>, vector<1x2x128xf32>
    %242 = vector.shape_cast %241 : vector<1x2x128xf32> to vector<2x128xf32>
    %243 = vector.broadcast %230 : vector<1x128xf32> to vector<16x128xf32>
    %244 = arith.subf %223, %243 : vector<16x128xf32>
    %cst_155 = arith.constant 9.99999974E-6 : f32
    %245 = vector.broadcast %cst_155 : f32 to vector<1x128xf32>
    %246 = arith.addf %240, %245 : vector<1x128xf32>
    %247 = math.rsqrt %246 : vector<1x128xf32>
    %248 = vector.broadcast %247 : vector<1x128xf32> to vector<16x128xf32>
    %249 = arith.mulf %244, %248 : vector<16x128xf32>
    %250 = vector.extract_strided_slice %242 {offsets = [0, 0], sizes = [1, 128], strides = [1, 1]} : vector<2x128xf32> to vector<1x128xf32>
    %251 = vector.broadcast %250 : vector<1x128xf32> to vector<16x128xf32>
    %252 = arith.mulf %249, %251 : vector<16x128xf32>
    %253 = vector.extract_strided_slice %242 {offsets = [1, 0], sizes = [1, 128], strides = [1, 1]} : vector<2x128xf32> to vector<1x128xf32>
    %254 = vector.broadcast %253 : vector<1x128xf32> to vector<16x128xf32>
    %255 = arith.addf %252, %254 : vector<16x128xf32>
    %cst_156 = arith.constant 0.000000e+00 : f32
    %256 = vector.broadcast %cst_156 : f32 to vector<16x128xf32>
    %257 = arith.maximumf %255, %256 : vector<16x128xf32>
    %258 = arith.truncf %257 : vector<16x128xf32> to vector<16x128xbf16>
    %c5 = arith.constant 5 : index
    %c0_157 = arith.constant 0 : index
    %c0_158 = arith.constant 0 : index
    %259 = vector.load %arg2[%c5, %c0_157, %c0_158] : memref<6x128x512xbf16, #tpu.memory_space<vmem>>, vector<1x128x512xbf16>
    %260 = vector.shape_cast %259 : vector<1x128x512xbf16> to vector<128x512xbf16>
    %cst_159 = arith.constant dense<0.000000e+00> : vector<16x512xf32>
    %261 = tpu.matmul %258, %260, %cst_159 {dimension_numbers = #tpu.dot_dimension_numbers<[1], [0], [0], [1], [0, 0, 1, 1], [], []>} : vector<16x128xbf16>, vector<128x512xbf16>, vector<16x512xf32> -> vector<16x512xf32>
    %262 = vector.extract_strided_slice %261 {offsets = [0, 0], sizes = [16, 128], strides = [1, 1]} : vector<16x512xf32> to vector<16x128xf32>
    %c0_160 = arith.constant 0 : index
    %c0_161 = arith.constant 0 : index
    %263 = vector.load %arg6[%c0_160, %c0_161] : memref<128x128xf32, #tpu.memory_space<vmem>>, vector<16x128xf32>
    tpu.vector_store %arg6[%c0_160, %c0_161], %262 {strides = array<i32>} : memref<128x128xf32, #tpu.memory_space<vmem>>, vector<16x128xf32>,
    %264 = vector.extract_strided_slice %261 {offsets = [0, 128], sizes = [16, 128], strides = [1, 1]} : vector<16x512xf32> to vector<16x128xf32>
    %c16_162 = arith.constant 16 : index
    %c0_163 = arith.constant 0 : index
    %265 = vector.load %arg6[%c16_162, %c0_163] : memref<128x128xf32, #tpu.memory_space<vmem>>, vector<16x128xf32>
    tpu.vector_store %arg6[%c16_162, %c0_163], %264 {strides = array<i32>} : memref<128x128xf32, #tpu.memory_space<vmem>>, vector<16x128xf32>,
    %266 = vector.extract_strided_slice %261 {offsets = [0, 256], sizes = [16, 128], strides = [1, 1]} : vector<16x512xf32> to vector<16x128xf32>
    %c32_164 = arith.constant 32 : index
    %c0_165 = arith.constant 0 : index
    %267 = vector.load %arg6[%c32_164, %c0_165] : memref<128x128xf32, #tpu.memory_space<vmem>>, vector<16x128xf32>
    tpu.vector_store %arg6[%c32_164, %c0_165], %266 {strides = array<i32>} : memref<128x128xf32, #tpu.memory_space<vmem>>, vector<16x128xf32>,
    %268 = vector.extract_strided_slice %261 {offsets = [0, 384], sizes = [16, 128], strides = [1, 1]} : vector<16x512xf32> to vector<16x128xf32>
    %c48_166 = arith.constant 48 : index
    %c0_167 = arith.constant 0 : index
    %269 = vector.load %arg6[%c48_166, %c0_167] : memref<128x128xf32, #tpu.memory_space<vmem>>, vector<16x128xf32>
    tpu.vector_store %arg6[%c48_166, %c0_167], %268 {strides = array<i32>} : memref<128x128xf32, #tpu.memory_space<vmem>>, vector<16x128xf32>,
    %c5_168 = arith.constant 5 : index
    %c0_169 = arith.constant 0 : index
    %c0_170 = arith.constant 0 : index
    %270 = vector.load %arg1[%c5_168, %c0_169, %c0_170] : memref<6x32x128xbf16, #tpu.memory_space<vmem>>, vector<1x32x128xbf16>
    %271 = vector.shape_cast %270 : vector<1x32x128xbf16> to vector<32x128xbf16>
    %272 = vector.extract_strided_slice %271 {offsets = [0, 0], sizes = [32, 64], strides = [1, 1]} : vector<32x128xbf16> to vector<32x64xbf16>
    %c0_171 = arith.constant 0 : index
    %c0_172 = arith.constant 0 : index
    %273 = vector.load %arg6[%c0_171, %c0_172] : memref<128x128xf32, #tpu.memory_space<vmem>>, vector<64x128xf32>
    %cst_173 = arith.constant dense<0.000000e+00> : vector<32x128xf32>
    %274 = tpu.matmul %272, %273, %cst_173 {dimension_numbers = #tpu.dot_dimension_numbers<[1], [0], [0], [1], [0, 0, 1, 1], [], []>} : vector<32x64xbf16>, vector<64x128xf32>, vector<32x128xf32> -> vector<32x128xf32>
    %c5_174 = arith.constant 5 : index
    %c0_175 = arith.constant 0 : index
    %c0_176 = arith.constant 0 : index
    %275 = vector.load %arg3[%c5_174, %c0_175, %c0_176] : memref<6x128x128xf32, #tpu.memory_space<vmem>>, vector<1x128x128xf32>
    %276 = vector.shape_cast %275 : vector<1x128x128xf32> to vector<128x128xf32>
    %cst_177 = arith.constant dense<0.000000e+00> : vector<32x128xf32>
    %277 = tpu.matmul %274, %276, %cst_177 {dimension_numbers = #tpu.dot_dimension_numbers<[1], [0], [0], [1], [0, 0, 1, 1], [], []>, precision = #tpu.contract_precision<fp32>} : vector<32x128xf32>, vector<128x128xf32>, vector<32x128xf32> -> vector<32x128xf32>
    %cst_178 = arith.constant dense<0.000000e+00> : vector<128xf32>
    %278 = vector.multi_reduction <add>, %277, %cst_178 [0] : vector<32x128xf32> to vector<128xf32>
    %279 = vector.shape_cast %278 : vector<128xf32> to vector<1x128xf32>
    %cst_179 = arith.constant 3.200000e+01 : f32
    %280 = vector.broadcast %cst_179 : f32 to vector<1x128xf32>
    %281 = arith.divf %279, %280 : vector<1x128xf32>
    %282 = arith.mulf %274, %274 : vector<32x128xf32>
    %cst_180 = arith.constant dense<0.000000e+00> : vector<32x128xf32>
    %283 = tpu.matmul %282, %276, %cst_180 {dimension_numbers = #tpu.dot_dimension_numbers<[1], [0], [0], [1], [0, 0, 1, 1], [], []>, precision = #tpu.contract_precision<fp32>} : vector<32x128xf32>, vector<128x128xf32>, vector<32x128xf32> -> vector<32x128xf32>
    %cst_181 = arith.constant dense<0.000000e+00> : vector<128xf32>
    %284 = vector.multi_reduction <add>, %283, %cst_181 [0] : vector<32x128xf32> to vector<128xf32>
    %285 = vector.shape_cast %284 : vector<128xf32> to vector<1x128xf32>
    %cst_182 = arith.constant 3.200000e+01 : f32
    %286 = vector.broadcast %cst_182 : f32 to vector<1x128xf32>
    %287 = arith.divf %285, %286 : vector<1x128xf32>
    %288 = arith.mulf %281, %281 : vector<1x128xf32>
    %289 = arith.subf %287, %288 : vector<1x128xf32>
    %cst_183 = arith.constant 0.000000e+00 : f32
    %290 = vector.broadcast %cst_183 : f32 to vector<1x128xf32>
    %291 = arith.maximumf %289, %290 : vector<1x128xf32>
    %c5_184 = arith.constant 5 : index
    %c0_185 = arith.constant 0 : index
    %c0_186 = arith.constant 0 : index
    %292 = vector.load %arg4[%c5_184, %c0_185, %c0_186] : memref<6x2x128xf32, #tpu.memory_space<vmem>>, vector<1x2x128xf32>
    %293 = vector.shape_cast %292 : vector<1x2x128xf32> to vector<2x128xf32>
    %294 = vector.broadcast %281 : vector<1x128xf32> to vector<32x128xf32>
    %295 = arith.subf %274, %294 : vector<32x128xf32>
    %cst_187 = arith.constant 9.99999974E-6 : f32
    %296 = vector.broadcast %cst_187 : f32 to vector<1x128xf32>
    %297 = arith.addf %291, %296 : vector<1x128xf32>
    %298 = math.rsqrt %297 : vector<1x128xf32>
    %299 = vector.broadcast %298 : vector<1x128xf32> to vector<32x128xf32>
    %300 = arith.mulf %295, %299 : vector<32x128xf32>
    %301 = vector.extract_strided_slice %293 {offsets = [0, 0], sizes = [1, 128], strides = [1, 1]} : vector<2x128xf32> to vector<1x128xf32>
    %302 = vector.broadcast %301 : vector<1x128xf32> to vector<32x128xf32>
    %303 = arith.mulf %300, %302 : vector<32x128xf32>
    %304 = vector.extract_strided_slice %293 {offsets = [1, 0], sizes = [1, 128], strides = [1, 1]} : vector<2x128xf32> to vector<1x128xf32>
    %305 = vector.broadcast %304 : vector<1x128xf32> to vector<32x128xf32>
    %306 = arith.addf %303, %305 : vector<32x128xf32>
    %307 = math.tanh %306 : vector<32x128xf32>
    %c0_188 = arith.constant 0 : index
    %c0_189 = arith.constant 0 : index
    %308 = vector.load %arg5[%c0_188, %c0_189] : memref<32x128xf32, #tpu.memory_space<vmem>>, vector<32x128xf32>
    tpu.vector_store %arg5[%c0_188, %c0_189], %307 {strides = array<i32>} : memref<32x128xf32, #tpu.memory_space<vmem>>, vector<32x128xf32>,
    return
  }
}

</mosaic_0001>

<llo_original>
// kernel: _lambda_.1
$region0: #{_lambda_.1}
  #allocation0 [shape = 'u32[]', space=smem, size = 0x4, offset = 0x4, fixed_abs, tag = 'smem constant byte address 0x4 - core index']
  #allocation1 [shape = 'u32[144,128]{1,0:T(1,128)}', space=vmem, size = 0x12000, scoped, tag = 'internal scratch']
  #allocation2 [shape = 'f32[128,128]{1,0:T(8,128)}', space=vmem, size = 0x10000, scoped, tag = 'scratch operand']
  %s0 = inlined_call_operand.vmem [shape: f32[32,128], index: 0, kind: input, shape index: {}]
  %s1 = inlined_call_operand.vmem [shape: bf16[6,32,128], index: 1, kind: input, shape index: {}]
  %s2 = inlined_call_operand.vmem [shape: bf16[6,128,512], index: 2, kind: input, shape index: {}]
  %s3 = inlined_call_operand.vmem [shape: f32[6,128,128], index: 3, kind: input, shape index: {}]
  %s4 = inlined_call_operand.vmem [shape: f32[6,2,128], index: 4, kind: input, shape index: {}]
  %s5 = inlined_call_operand.vmem [shape: f32[32,128], index: 5, kind: output, shape index: {}]
  %s6 = sld [smem:[#allocation0]]
  $region30: #{_lambda_.1} parent=0
    _
  %s8 = ssub.s32 1, %s6
  %s9 = scalar_select 0, %s8, %s6
  // Predicated region
  $region2: #{_lambda_.1} parent=0 // pred_check
    _
  $region3: #{_lambda_.1} parent=0 // pred_check_branch
    %11 = sbr.rel (0) target = $region5
  $region4: #{_lambda_.1} parent=0 // pred_region
    _
  $region5: #{_lambda_.1} parent=0 // pred_fallthru
    _
  // Predicated region
  $region6: #{_lambda_.1} parent=0 // pred_check
    _
  $region7: #{_lambda_.1} parent=0 // pred_check_branch
    %13 = sbr.rel (0) target = $region9
  $region8: #{_lambda_.1} parent=0 // pred_region
    _
  $region9: #{_lambda_.1} parent=0 // pred_fallthru
    _
  // Predicated region
  $region10: #{_lambda_.1} parent=0 // pred_check
    _
  $region11: #{_lambda_.1} parent=0 // pred_check_branch
    %15 = sbr.rel (0) target = $region13
  $region12: #{_lambda_.1} parent=0 // pred_region
    _
  $region13: #{_lambda_.1} parent=0 // pred_fallthru
    _
  // Predicated region
  $region14: #{_lambda_.1} parent=0 // pred_check
    _
  $region15: #{_lambda_.1} parent=0 // pred_check_branch
    %17 = sbr.rel (0) target = $region17
  $region16: #{_lambda_.1} parent=0 // pred_region
    _
  $region17: #{_lambda_.1} parent=0 // pred_fallthru
    _
  // Predicated region
  $region18: #{_lambda_.1} parent=0 // pred_check
    _
  $region19: #{_lambda_.1} parent=0 // pred_check_branch
    %19 = sbr.rel (0) target = $region21
  $region20: #{_lambda_.1} parent=0 // pred_region
    _
  $region21: #{_lambda_.1} parent=0 // pred_fallthru
    _
  %21 = vst [vmem:[#allocation2] sm:$0xff] 0.0
  %22 = vst [vmem:[#allocation2 + $0x8] sm:$0xff] 0.0
  %23 = vst [vmem:[#allocation2 + $0x10] sm:$0xff] 0.0
  %24 = vst [vmem:[#allocation2 + $0x18] sm:$0xff] 0.0
  %25 = vst [vmem:[#allocation2 + $0x20] sm:$0xff] 0.0
  %26 = vst [vmem:[#allocation2 + $0x28] sm:$0xff] 0.0
  %27 = vst [vmem:[#allocation2 + $0x30] sm:$0xff] 0.0
  %28 = vst [vmem:[#allocation2 + $0x38] sm:$0xff] 0.0
  %29 = vst [vmem:[#allocation2 + $0x40] sm:$0xff] 0.0
  %30 = vst [vmem:[#allocation2 + $0x48] sm:$0xff] 0.0
  %31 = vst [vmem:[#allocation2 + $0x50] sm:$0xff] 0.0
  %32 = vst [vmem:[#allocation2 + $0x58] sm:$0xff] 0.0
  %33 = vst [vmem:[#allocation2 + $0x60] sm:$0xff] 0.0
  %34 = vst [vmem:[#allocation2 + $0x68] sm:$0xff] 0.0
  %35 = vst [vmem:[#allocation2 + $0x70] sm:$0xff] 0.0
  %36 = vst [vmem:[#allocation2 + $0x78] sm:$0xff] 0.0
  %v37 = vld [vmem:[%s0] sm:$0xff]
  %v38 = vld [vmem:[%s0 + $0x8] sm:$0xff]
  %v39 = vld [vmem:[%s0 + $0x10] sm:$0xff]
  %v40 = vld [vmem:[%s0 + $0x18] sm:$0xff]
  %v41 = vpack.c.bf16 %v38, %v37
  %v42 = vpack.c.bf16 %v40, %v39
  %v43 = vld [vmem:[%s2] sm:$0xff]
  %v44 = vld [vmem:[%s2 + $0x8] sm:$0xff]
  %v45 = vld [vmem:[%s2 + $0x10] sm:$0xff]
  %v46 = vld [vmem:[%s2 + $0x18] sm:$0xff]
  %v47 = vld [vmem:[%s2 + $0x20] sm:$0xff]
  %v48 = vld [vmem:[%s2 + $0x28] sm:$0xff]
  %v49 = vld [vmem:[%s2 + $0x30] sm:$0xff]
  %v50 = vld [vmem:[%s2 + $0x38] sm:$0xff]
  %v51 = vld [vmem:[%s2 + $0x40] sm:$0xff]
  %v52 = vld [vmem:[%s2 + $0x48] sm:$0xff]
  %v53 = vld [vmem:[%s2 + $0x50] sm:$0xff]
  %v54 = vld [vmem:[%s2 + $0x58] sm:$0xff]
  %v55 = vld [vmem:[%s2 + $0x60] sm:$0xff]
  %v56 = vld [vmem:[%s2 + $0x68] sm:$0xff]
  %v57 = vld [vmem:[%s2 + $0x70] sm:$0xff]
  %v58 = vld [vmem:[%s2 + $0x78] sm:$0xff]
  %v59 = vld [vmem:[%s2 + $0x80] sm:$0xff]
  %v60 = vld [vmem:[%s2 + $0x88] sm:$0xff]
  %v61 = vld [vmem:[%s2 + $0x90] sm:$0xff]
  %v62 = vld [vmem:[%s2 + $0x98] sm:$0xff]
  %v63 = vld [vmem:[%s2 + $0xa0] sm:$0xff]
  %v64 = vld [vmem:[%s2 + $0xa8] sm:$0xff]
  %v65 = vld [vmem:[%s2 + $0xb0] sm:$0xff]
  %v66 = vld [vmem:[%s2 + $0xb8] sm:$0xff]
  %v67 = vld [vmem:[%s2 + $0xc0] sm:$0xff]
  %v68 = vld [vmem:[%s2 + $0xc8] sm:$0xff]
  %v69 = vld [vmem:[%s2 + $0xd0] sm:$0xff]
  %v70 = vld [vmem:[%s2 + $0xd8] sm:$0xff]
  %v71 = vld [vmem:[%s2 + $0xe0] sm:$0xff]
  %v72 = vld [vmem:[%s2 + $0xe8] sm:$0xff]
  %v73 = vld [vmem:[%s2 + $0xf0] sm:$0xff]
  %v74 = vld [vmem:[%s2 + $0xf8] sm:$0xff]
  %v107 = vunpack.c.l.b16 %v43
  %v108 = vunpack.c.h.b16 %v43
  %v109 = vunpack.c.l.b16 %v44
  %v110 = vunpack.c.h.b16 %v44
  %v111 = vunpack.c.l.b16 %v45
  %v112 = vunpack.c.h.b16 %v45
  %v113 = vunpack.c.l.b16 %v46
  %v114 = vunpack.c.h.b16 %v46
  %v115 = vunpack.c.l.b16 %v47
  %v116 = vunpack.c.h.b16 %v47
  %v117 = vunpack.c.l.b16 %v48
  %v118 = vunpack.c.h.b16 %v48
  %v119 = vunpack.c.l.b16 %v49
  %v120 = vunpack.c.h.b16 %v49
  %v121 = vunpack.c.l.b16 %v50
  %v122 = vunpack.c.h.b16 %v50
  %v123 = vunpack.c.l.b16 %v51
  %v124 = vunpack.c.h.b16 %v51
  %v125 = vunpack.c.l.b16 %v52
  %v126 = vunpack.c.h.b16 %v52
  %v127 = vunpack.c.l.b16 %v53
  %v128 = vunpack.c.h.b16 %v53
  %v129 = vunpack.c.l.b16 %v54
  %v130 = vunpack.c.h.b16 %v54
  %v131 = vunpack.c.l.b16 %v55
  %v132 = vunpack.c.h.b16 %v55
  %v133 = vunpack.c.l.b16 %v56
  %v134 = vunpack.c.h.b16 %v56
  %v135 = vunpack.c.l.b16 %v57
  %v136 = vunpack.c.h.b16 %v57
  %v137 = vunpack.c.l.b16 %v58
  %v138 = vunpack.c.h.b16 %v58
  %v139 = vunpack.c.l.b16 %v59
  %v140 = vunpack.c.h.b16 %v59
  %v141 = vunpack.c.l.b16 %v60
  %v142 = vunpack.c.h.b16 %v60
  %v143 = vunpack.c.l.b16 %v61
  %v144 = vunpack.c.h.b16 %v61
  %v145 = vunpack.c.l.b16 %v62
  %v146 = vunpack.c.h.b16 %v62
  %v147 = vunpack.c.l.b16 %v63
  %v148 = vunpack.c.h.b16 %v63
  %v149 = vunpack.c.l.b16 %v64
  %v150 = vunpack.c.h.b16 %v64
  %v151 = vunpack.c.l.b16 %v65
  %v152 = vunpack.c.h.b16 %v65
  %v153 = vunpack.c.l.b16 %v66
  %v154 = vunpack.c.h.b16 %v66
  %v155 = vunpack.c.l.b16 %v67
  %v156 = vunpack.c.h.b16 %v67
  %v157 = vunpack.c.l.b16 %v68
  %v158 = vunpack.c.h.b16 %v68
  %v159 = vunpack.c.l.b16 %v69
  %v160 = vunpack.c.h.b16 %v69
  %v161 = vunpack.c.l.b16 %v70
  %v162 = vunpack.c.h.b16 %v70
  %v163 = vunpack.c.l.b16 %v71
  %v164 = vunpack.c.h.b16 %v71
  %v165 = vunpack.c.l.b16 %v72
  %v166 = vunpack.c.h.b16 %v72
  %v167 = vunpack.c.l.b16 %v73
  %v168 = vunpack.c.h.b16 %v73
  %v169 = vunpack.c.l.b16 %v74
  %v170 = vunpack.c.h.b16 %v74
  %v171 = vpack.c.b16 %v111, %v107
  %v172 = vpack.c.b16 %v112, %v108
  %v173 = vpack.c.b16 %v113, %v109
  %v174 = vpack.c.b16 %v114, %v110
  %v175 = vpack.c.b16 %v119, %v115
  %v176 = vpack.c.b16 %v120, %v116
  %v177 = vpack.c.b16 %v121, %v117
  %v178 = vpack.c.b16 %v122, %v118
  %v179 = vpack.c.b16 %v127, %v123
  %v180 = vpack.c.b16 %v128, %v124
  %v181 = vpack.c.b16 %v129, %v125
  %v182 = vpack.c.b16 %v130, %v126
  %v183 = vpack.c.b16 %v135, %v131
  %v184 = vpack.c.b16 %v136, %v132
  %v185 = vpack.c.b16 %v137, %v133
  %v186 = vpack.c.b16 %v138, %v134
  %v187 = vpack.c.b16 %v143, %v139
  %v188 = vpack.c.b16 %v144, %v140
  %v189 = vpack.c.b16 %v145, %v141
  %v190 = vpack.c.b16 %v146, %v142
  %v191 = vpack.c.b16 %v151, %v147
  %v192 = vpack.c.b16 %v152, %v148
  %v193 = vpack.c.b16 %v153, %v149
  %v194 = vpack.c.b16 %v154, %v150
  %v195 = vpack.c.b16 %v159, %v155
  %v196 = vpack.c.b16 %v160, %v156
  %v197 = vpack.c.b16 %v161, %v157
  %v198 = vpack.c.b16 %v162, %v158
  %v199 = vpack.c.b16 %v167, %v163
  %v200 = vpack.c.b16 %v168, %v164
  %v201 = vpack.c.b16 %v169, %v165
  %v202 = vpack.c.b16 %v170, %v166
  %235 = vmatprep.subr.bf16.mxu0 %v172
  %236 = vmatpush1.bf16.msra.mxu0 %v171
  %237 = vmatprep.subr.bf16.mxu0 %v176
  %238 = vmatpush1.bf16.msra.mxu0 %v175
  %239 = vmatprep.subr.bf16.mxu0 %v180
  %240 = vmatpush1.bf16.msra.mxu0 %v179
  %241 = vmatprep.subr.bf16.mxu0 %v184
  %242 = vmatpush1.bf16.msra.mxu0 %v183
  %243 = vmatprep.subr.bf16.mxu0 %v188
  %244 = vmatpush1.bf16.msra.mxu0 %v187
  %245 = vmatprep.subr.bf16.mxu0 %v192
  %246 = vmatpush1.bf16.msra.mxu0 %v191
  %247 = vmatprep.subr.bf16.mxu0 %v196
  %248 = vmatpush1.bf16.msra.mxu0 %v195
  %249 = vmatprep.subr.bf16.mxu0 %v200
  %250 = vmatpush1.bf16.msra.mxu0 %v199
  %251 = vmatprep.subr.bf16.mxu0 0
  %252 = vmatpush1.bf16.msra.mxu0 0
  %253 = vmatprep.subr.bf16.mxu0 0
  %254 = vmatpush1.bf16.msra.mxu0 0
  %255 = vmatprep.subr.bf16.mxu0 0
  %256 = vmatpush1.bf16.msra.mxu0 0
  %257 = vmatprep.subr.bf16.mxu0 0
  %258 = vmatpush1.bf16.msra.mxu0 0
  %259 = vmatprep.subr.bf16.mxu0 0
  %260 = vmatpush1.bf16.msra.mxu0 0
  %261 = vmatprep.subr.bf16.mxu0 0
  %262 = vmatpush1.bf16.msra.mxu0 0
  %263 = vmatprep.subr.bf16.mxu0 0
  %264 = vmatpush1.bf16.msra.mxu0 0
  %265 = vmatprep.subr.bf16.mxu0 0
  %266 = vmatpush1.bf16.msra.mxu0 0
  %267 = vmatprep.mubr.bf16.mxu0 0
  %268 = vmatmul.mubr.bf16.gmra.mrb[0].mxu0 %v41
  %v269 = vpop.f32.mrb[0].mxu0
  %v270 = vadd.f32 0.0, %v269
  %v271 = vpop.f32.mrb[0].mxu0
  %v272 = vadd.f32 0.0, %v271
  %v273 = vpop.f32.mrb[0].mxu0
  %v274 = vadd.f32 0.0, %v273
  %v275 = vpop.f32.mrb[0].mxu0
  %v276 = vadd.f32 0.0, %v275
  %277 = vmatprep.mubr.bf16.mxu0 0
  %278 = vmatmul.mubr.bf16.gmra.mrb[0].mxu0 %v42
  %v279 = vpop.f32.mrb[0].mxu0
  %v280 = vadd.f32 0.0, %v279
  %v281 = vpop.f32.mrb[0].mxu0
  %v282 = vadd.f32 0.0, %v281
  %v283 = vpop.f32.mrb[0].mxu0
  %v284 = vadd.f32 0.0, %v283
  %v285 = vpop.f32.mrb[0].mxu0
  %v286 = vadd.f32 0.0, %v285
  %287 = vdwg.mxu0
  %288 = vmatprep.subr.bf16.mxu0 %v174
  %289 = vmatpush1.bf16.msra.mxu0 %v173
  %290 = vmatprep.subr.bf16.mxu0 %v178
  %291 = vmatpush1.bf16.msra.mxu0 %v177
  %292 = vmatprep.subr.bf16.mxu0 %v182
  %293 = vmatpush1.bf16.msra.mxu0 %v181
  %294 = vmatprep.subr.bf16.mxu0 %v186
  %295 = vmatpush1.bf16.msra.mxu0 %v185
  %296 = vmatprep.subr.bf16.mxu0 %v190
  %297 = vmatpush1.bf16.msra.mxu0 %v189
  %298 = vmatprep.subr.bf16.mxu0 %v194
  %299 = vmatpush1.bf16.msra.mxu0 %v193
  %300 = vmatprep.subr.bf16.mxu0 %v198
  %301 = vmatpush1.bf16.msra.mxu0 %v197
  %302 = vmatprep.subr.bf16.mxu0 %v202
  %303 = vmatpush1.bf16.msra.mxu0 %v201
  %304 = vmatprep.subr.bf16.mxu0 0
  %305 = vmatpush1.bf16.msra.mxu0 0
  %306 = vmatprep.subr.bf16.mxu0 0
  %307 = vmatpush1.bf16.msra.mxu0 0
  %308 = vmatprep.subr.bf16.mxu0 0
  %309 = vmatpush1.bf16.msra.mxu0 0
  %310 = vmatprep.subr.bf16.mxu0 0
  %311 = vmatpush1.bf16.msra.mxu0 0
  %312 = vmatprep.subr.bf16.mxu0 0
  %313 = vmatpush1.bf16.msra.mxu0 0
  %314 = vmatprep.subr.bf16.mxu0 0
  %315 = vmatpush1.bf16.msra.mxu0 0
  %316 = vmatprep.subr.bf16.mxu0 0
  %317 = vmatpush1.bf16.msra.mxu0 0
  %318 = vmatprep.subr.bf16.mxu0 0
  %319 = vmatpush1.bf16.msra.mxu0 0
  %320 = vmatprep.mubr.bf16.mxu0 0
  %321 = vmatmul.mubr.bf16.gmra.mrb[0].mxu0 %v41
  %v322 = vpop.f32.mrb[0].mxu0
  %v323 = vadd.f32 0.0, %v322
  %v324 = vpop.f32.mrb[0].mxu0
  %v325 = vadd.f32 0.0, %v324
  %v326 = vpop.f32.mrb[0].mxu0
  %v327 = vadd.f32 0.0, %v326
  %v328 = vpop.f32.mrb[0].mxu0
  %v329 = vadd.f32 0.0, %v328
  %330 = vmatprep.mubr.bf16.mxu0 0
  %331 = vmatmul.mubr.bf16.gmra.mrb[0].mxu0 %v42
  %v332 = vpop.f32.mrb[0].mxu0
  %v333 = vadd.f32 0.0, %v332
  %v334 = vpop.f32.mrb[0].mxu0
  %v335 = vadd.f32 0.0, %v334
  %v336 = vpop.f32.mrb[0].mxu0
  %v337 = vadd.f32 0.0, %v336
  %v338 = vpop.f32.mrb[0].mxu0
  %v339 = vadd.f32 0.0, %v338
  %340 = vdwg.mxu0
  %341 = vst [vmem:[#allocation2] sm:$0xff] %v270
  %342 = vst [vmem:[#allocation2 + $0x8] sm:$0xff] %v274
  %343 = vst [vmem:[#allocation2 + $0x10] sm:$0xff] %v280
  %344 = vst [vmem:[#allocation2 + $0x18] sm:$0xff] %v284
  %345 = vst [vmem:[#allocation2 + $0x20] sm:$0xff] %v272
  %346 = vst [vmem:[#allocation2 + $0x28] sm:$0xff] %v276
  %347 = vst [vmem:[#allocation2 + $0x30] sm:$0xff] %v282
  %348 = vst [vmem:[#allocation2 + $0x38] sm:$0xff] %v286
  %349 = vst [vmem:[#allocation2 + $0x40] sm:$0xff] %v323
  %350 = vst [vmem:[#allocation2 + $0x48] sm:$0xff] %v327
  %351 = vst [vmem:[#allocation2 + $0x50] sm:$0xff] %v333
  %352 = vst [vmem:[#allocation2 + $0x58] sm:$0xff] %v337
  %353 = vst [vmem:[#allocation2 + $0x60] sm:$0xff] %v325
  %354 = vst [vmem:[#allocation2 + $0x68] sm:$0xff] %v329
  %355 = vst [vmem:[#allocation2 + $0x70] sm:$0xff] %v335
  %356 = vst [vmem:[#allocation2 + $0x78] sm:$0xff] %v339
  %v357 = vld [vmem:[%s1] sm:$0xf]
  %v358 = vld [vmem:[%s1 + $0x4] sm:$0xf]
  %v359 = vld [vmem:[#allocation2] sm:$0xff]
  %v360 = vld [vmem:[#allocation2 + $0x8] sm:$0xff]
  %v361 = vld [vmem:[#allocation2 + $0x10] sm:$0xff]
  %v362 = vld [vmem:[#allocation2 + $0x18] sm:$0xff]
  %v363 = vld [vmem:[#allocation2 + $0x20] sm:$0xff]
  %v364 = vld [vmem:[#allocation2 + $0x28] sm:$0xff]
  %v365 = vld [vmem:[#allocation2 + $0x30] sm:$0xff]
  %v366 = vld [vmem:[#allocation2 + $0x38] sm:$0xff]
  %v367 = vld [vmem:[#allocation2 + $0x40] sm:$0xff]
  %v368 = vld [vmem:[#allocation2 + $0x48] sm:$0xff]
  %v369 = vld [vmem:[#allocation2 + $0x50] sm:$0xff]
  %v370 = vld [vmem:[#allocation2 + $0x58] sm:$0xff]
  %v371 = vld [vmem:[#allocation2 + $0x60] sm:$0xff]
  %v372 = vld [vmem:[#allocation2 + $0x68] sm:$0xff]
  %v373 = vld [vmem:[#allocation2 + $0x70] sm:$0xff]
  %v374 = vld [vmem:[#allocation2 + $0x78] sm:$0xff]
  %v377 = vunpack.c.l.b16 %v357
  %v378 = vunpack.c.l.b16 %v358
  %v379 = vpack.c.b16 %v378, %v377
  %381 = vmatprep.subr.mxu0 0.0
  %382 = vmatpush1.msra.mxu0 %v359
  %383 = vmatprep.subr.mxu0 0.0
  %384 = vmatpush1.msra.mxu0 %v360
  %385 = vmatprep.subr.mxu0 0.0
  %386 = vmatpush1.msra.mxu0 %v361
  %387 = vmatprep.subr.mxu0 0.0
  %388 = vmatpush1.msra.mxu0 %v362
  %389 = vmatprep.subr.mxu0 0.0
  %390 = vmatpush1.msra.mxu0 %v363
  %391 = vmatprep.subr.mxu0 0.0
  %392 = vmatpush1.msra.mxu0 %v364
  %393 = vmatprep.subr.mxu0 0.0
  %394 = vmatpush1.msra.mxu0 %v365
  %395 = vmatprep.subr.mxu0 0.0
  %396 = vmatpush1.msra.mxu0 %v366
  %397 = vmatprep.subr.mxu0 0.0
  %398 = vmatpush1.msra.mxu0 %v367
  %399 = vmatprep.subr.mxu0 0.0
  %400 = vmatpush1.msra.mxu0 %v368
  %401 = vmatprep.subr.mxu0 0.0
  %402 = vmatpush1.msra.mxu0 %v369
  %403 = vmatprep.subr.mxu0 0.0
  %404 = vmatpush1.msra.mxu0 %v370
  %405 = vmatprep.subr.mxu0 0.0
  %406 = vmatpush1.msra.mxu0 %v371
  %407 = vmatprep.subr.mxu0 0.0
  %408 = vmatpush1.msra.mxu0 %v372
  %409 = vmatprep.subr.mxu0 0.0
  %410 = vmatpush1.msra.mxu0 %v373
  %411 = vmatprep.subr.mxu0 0.0
  %412 = vmatpush1.msra.mxu0 %v374
  %413 = vmatprep.subr.mxu0 0.0
  %414 = vmatpush1.msra.mxu0 0.0
  %415 = vmatprep.subr.mxu0 0.0
  %416 = vmatpush1.msra.mxu0 0.0
  %417 = vmatprep.subr.mxu0 0.0
  %418 = vmatpush1.msra.mxu0 0.0
  %419 = vmatprep.subr.mxu0 0.0
  %420 = vmatpush1.msra.mxu0 0.0
  %421 = vmatprep.subr.mxu0 0.0
  %422 = vmatpush1.msra.mxu0 0.0
  %423 = vmatprep.subr.mxu0 0.0
  %424 = vmatpush1.msra.mxu0 0.0
  %425 = vmatprep.subr.mxu0 0.0
  %426 = vmatpush1.msra.mxu0 0.0
  %427 = vmatprep.subr.mxu0 0.0
  %428 = vmatpush1.msra.mxu0 0.0
  %429 = vmatprep.subr.mxu0 0.0
  %430 = vmatpush1.msra.mxu0 0.0
  %431 = vmatprep.subr.mxu0 0.0
  %432 = vmatpush1.msra.mxu0 0.0
  %433 = vmatprep.subr.mxu0 0.0
  %434 = vmatpush1.msra.mxu0 0.0
  %435 = vmatprep.subr.mxu0 0.0
  %436 = vmatpush1.msra.mxu0 0.0
  %437 = vmatprep.subr.mxu0 0.0
  %438 = vmatpush1.msra.mxu0 0.0
  %439 = vmatprep.subr.mxu0 0.0
  %440 = vmatpush1.msra.mxu0 0.0
  %441 = vmatprep.subr.mxu0 0.0
  %442 = vmatpush1.msra.mxu0 0.0
  %443 = vmatprep.subr.mxu0 0.0
  %444 = vmatpush1.msra.mxu0 0.0
  %445 = vmatprep.mubr.bf16.mxu0 0
  %446 = vmatmul.mubr.bf16.gmra.mrb[0].mxu0 %v379
  %v447 = vpop.f32.mrb[0].mxu0
  %v448 = vadd.f32 0.0, %v447
  %v449 = vpop.f32.mrb[0].mxu0
  %v450 = vpop.f32.mrb[0].mxu0
  %v451 = vadd.f32 0.0, %v450
  %v452 = vpop.f32.mrb[0].mxu0
  %453 = vdwg.mxu0
  %v454 = vld [vmem:[%s3] sm:$0xff]
  %v455 = vld [vmem:[%s3 + $0x8] sm:$0xff]
  %v456 = vld [vmem:[%s3 + $0x10] sm:$0xff]
  %v457 = vld [vmem:[%s3 + $0x18] sm:$0xff]
  %v458 = vld [vmem:[%s3 + $0x20] sm:$0xff]
  %v459 = vld [vmem:[%s3 + $0x28] sm:$0xff]
  %v460 = vld [vmem:[%s3 + $0x30] sm:$0xff]
  %v461 = vld [vmem:[%s3 + $0x38] sm:$0xff]
  %v462 = vld [vmem:[%s3 + $0x40] sm:$0xff]
  %v463 = vld [vmem:[%s3 + $0x48] sm:$0xff]
  %v464 = vld [vmem:[%s3 + $0x50] sm:$0xff]
  %v465 = vld [vmem:[%s3 + $0x58] sm:$0xff]
  %v466 = vld [vmem:[%s3 + $0x60] sm:$0xff]
  %v467 = vld [vmem:[%s3 + $0x68] sm:$0xff]
  %v468 = vld [vmem:[%s3 + $0x70] sm:$0xff]
  %v469 = vld [vmem:[%s3 + $0x78] sm:$0xff]
  %470 = vmatprep.subr.mxu0 0.0
  %v471 = vand.u32 %v454, 4294901760
  %472 = vmatpush1.msra.mxu0 %v471
  %473 = vmatprep.subr.mxu0 0.0
  %v474 = vand.u32 %v455, 4294901760
  %475 = vmatpush1.msra.mxu0 %v474
  %476 = vmatprep.subr.mxu0 0.0
  %v477 = vand.u32 %v456, 4294901760
  %478 = vmatpush1.msra.mxu0 %v477
  %479 = vmatprep.subr.mxu0 0.0
  %v480 = vand.u32 %v457, 4294901760
  %481 = vmatpush1.msra.mxu0 %v480
  %482 = vmatprep.subr.mxu0 0.0
  %v483 = vand.u32 %v458, 4294901760
  %484 = vmatpush1.msra.mxu0 %v483
  %485 = vmatprep.subr.mxu0 0.0
  %v486 = vand.u32 %v459, 4294901760
  %487 = vmatpush1.msra.mxu0 %v486
  %488 = vmatprep.subr.mxu0 0.0
  %v489 = vand.u32 %v460, 4294901760
  %490 = vmatpush1.msra.mxu0 %v489
  %491 = vmatprep.subr.mxu0 0.0
  %v492 = vand.u32 %v461, 4294901760
  %493 = vmatpush1.msra.mxu0 %v492
  %494 = vmatprep.subr.mxu0 0.0
  %v495 = vand.u32 %v462, 4294901760
  %496 = vmatpush1.msra.mxu0 %v495
  %497 = vmatprep.subr.mxu0 0.0
  %v498 = vand.u32 %v463, 4294901760
  %499 = vmatpush1.msra.mxu0 %v498
  %500 = vmatprep.subr.mxu0 0.0
  %v501 = vand.u32 %v464, 4294901760
  %502 = vmatpush1.msra.mxu0 %v501
  %503 = vmatprep.subr.mxu0 0.0
  %v504 = vand.u32 %v465, 4294901760
  %505 = vmatpush1.msra.mxu0 %v504
  %506 = vmatprep.subr.mxu0 0.0
  %v507 = vand.u32 %v466, 4294901760
  %508 = vmatpush1.msra.mxu0 %v507
  %509 = vmatprep.subr.mxu0 0.0
  %v510 = vand.u32 %v467, 4294901760
  %511 = vmatpush1.msra.mxu0 %v510
  %512 = vmatprep.subr.mxu0 0.0
  %v513 = vand.u32 %v468, 4294901760
  %514 = vmatpush1.msra.mxu0 %v513
  %515 = vmatprep.subr.mxu0 0.0
  %v516 = vand.u32 %v469, 4294901760
  %517 = vmatpush1.msra.mxu0 %v516
  %518 = vmatprep.subr.mxu0 0.0
  %519 = vmatpush1.msra.mxu0 0.0
  %520 = vmatprep.subr.mxu0 0.0
  %521 = vmatpush1.msra.mxu0 0.0
  %522 = vmatprep.subr.mxu0 0.0
  %523 = vmatpush1.msra.mxu0 0.0
  %524 = vmatprep.subr.mxu0 0.0
  %525 = vmatpush1.msra.mxu0 0.0
  %526 = vmatprep.subr.mxu0 0.0
  %527 = vmatpush1.msra.mxu0 0.0
  %528 = vmatprep.subr.mxu0 0.0
  %529 = vmatpush1.msra.mxu0 0.0
  %530 = vmatprep.subr.mxu0 0.0
  %531 = vmatpush1.msra.mxu0 0.0
  %532 = vmatprep.subr.mxu0 0.0
  %533 = vmatpush1.msra.mxu0 0.0
  %534 = vmatprep.subr.mxu0 0.0
  %535 = vmatpush1.msra.mxu0 0.0
  %536 = vmatprep.subr.mxu0 0.0
  %537 = vmatpush1.msra.mxu0 0.0
  %538 = vmatprep.subr.mxu0 0.0
  %539 = vmatpush1.msra.mxu0 0.0
  %540 = vmatprep.subr.mxu0 0.0
  %541 = vmatpush1.msra.mxu0 0.0
  %542 = vmatprep.subr.mxu0 0.0
  %543 = vmatpush1.msra.mxu0 0.0
  %544 = vmatprep.subr.mxu0 0.0
  %545 = vmatpush1.msra.mxu0 0.0
  %546 = vmatprep.subr.mxu0 0.0
  %547 = vmatpush1.msra.mxu0 0.0
  %548 = vmatprep.subr.mxu0 0.0
  %549 = vmatpush1.msra.mxu0 0.0
  %550 = vmatprep.mubr.f32.mxu0 0.0
  %v551 = vand.u32 %v448, 4294901760
  %v552 = vsub.f32 %v448, %v551
  %v553 = vand.u32 %v552, 4294901760
  %v554 = vsub.f32 %v552, %v553
  %v555 = vand.u32 %v554, 4294901760
  %556 = vmatmul.mubr.f32.gmra.mrb[0].mxu0 %v555
  %v557 = vpop.f32.mrb[0].mxu0
  %v558 = vadd.f32 0.0, %v557
  %v559 = vpop.f32.mrb[0].mxu0
  %560 = vmatprep.mubr.f32.mxu0 0.0
  %v561 = vand.u32 %v451, 4294901760
  %v562 = vsub.f32 %v451, %v561
  %v563 = vand.u32 %v562, 4294901760
  %v564 = vsub.f32 %v562, %v563
  %v565 = vand.u32 %v564, 4294901760
  %566 = vmatmul.mubr.f32.gmra.mrb[0].mxu0 %v565
  %v567 = vpop.f32.mrb[0].mxu0
  %v568 = vadd.f32 0.0, %v567
  %v569 = vpop.f32.mrb[0].mxu0
  %570 = vdwg.mxu0
  %571 = vmatprep.subr.mxu0 0.0
  %v572 = vand.u32 %v454, 4294901760
  %v573 = vsub.f32 %v454, %v572
  %v574 = vand.u32 %v573, 4294901760
  %v575 = vsub.f32 %v573, %v574
  %v576 = vand.u32 %v575, 4294901760
  %577 = vmatpush1.msra.mxu0 %v576
  %578 = vmatprep.subr.mxu0 0.0
  %v579 = vand.u32 %v455, 4294901760
  %v580 = vsub.f32 %v455, %v579
  %v581 = vand.u32 %v580, 4294901760
  %v582 = vsub.f32 %v580, %v581
  %v583 = vand.u32 %v582, 4294901760
  %584 = vmatpush1.msra.mxu0 %v583
  %585 = vmatprep.subr.mxu0 0.0
  %v586 = vand.u32 %v456, 4294901760
  %v587 = vsub.f32 %v456, %v586
  %v588 = vand.u32 %v587, 4294901760
  %v589 = vsub.f32 %v587, %v588
  %v590 = vand.u32 %v589, 4294901760
  %591 = vmatpush1.msra.mxu0 %v590
  %592 = vmatprep.subr.mxu0 0.0
  %v593 = vand.u32 %v457, 4294901760
  %v594 = vsub.f32 %v457, %v593
  %v595 = vand.u32 %v594, 4294901760
  %v596 = vsub.f32 %v594, %v595
  %v597 = vand.u32 %v596, 4294901760
  %598 = vmatpush1.msra.mxu0 %v597
  %599 = vmatprep.subr.mxu0 0.0
  %v600 = vand.u32 %v458, 4294901760
  %v601 = vsub.f32 %v458, %v600
  %v602 = vand.u32 %v601, 4294901760
  %v603 = vsub.f32 %v601, %v602
  %v604 = vand.u32 %v603, 4294901760
  %605 = vmatpush1.msra.mxu0 %v604
  %606 = vmatprep.subr.mxu0 0.0
  %v607 = vand.u32 %v459, 4294901760
  %v608 = vsub.f32 %v459, %v607
  %v609 = vand.u32 %v608, 4294901760
  %v610 = vsub.f32 %v608, %v609
  %v611 = vand.u32 %v610, 4294901760
  %612 = vmatpush1.msra.mxu0 %v611
  %613 = vmatprep.subr.mxu0 0.0
  %v614 = vand.u32 %v460, 4294901760
  %v615 = vsub.f32 %v460, %v614
  %v616 = vand.u32 %v615, 4294901760
  %v617 = vsub.f32 %v615, %v616
  %v618 = vand.u32 %v617, 4294901760
  %619 = vmatpush1.msra.mxu0 %v618
  %620 = vmatprep.subr.mxu0 0.0
  %v621 = vand.u32 %v461, 4294901760
  %v622 = vsub.f32 %v461, %v621
  %v623 = vand.u32 %v622, 4294901760
  %v624 = vsub.f32 %v622, %v623
  %v625 = vand.u32 %v624, 4294901760
  %626 = vmatpush1.msra.mxu0 %v625
  %627 = vmatprep.subr.mxu0 0.0
  %v628 = vand.u32 %v462, 4294901760
  %v629 = vsub.f32 %v462, %v628
  %v630 = vand.u32 %v629, 4294901760
  %v631 = vsub.f32 %v629, %v630
  %v632 = vand.u32 %v631, 4294901760
  %633 = vmatpush1.msra.mxu0 %v632
  %634 = vmatprep.subr.mxu0 0.0
  %v635 = vand.u32 %v463, 4294901760
  %v636 = vsub.f32 %v463, %v635
  %v637 = vand.u32 %v636, 4294901760
  %v638 = vsub.f32 %v636, %v637
  %v639 = vand.u32 %v638, 4294901760
  %640 = vmatpush1.msra.mxu0 %v639
  %641 = vmatprep.subr.mxu0 0.0
  %v642 = vand.u32 %v464, 4294901760
  %v643 = vsub.f32 %v464, %v642
  %v644 = vand.u32 %v643, 4294901760
  %v645 = vsub.f32 %v643, %v644
  %v646 = vand.u32 %v645, 4294901760
  %647 = vmatpush1.msra.mxu0 %v646
  %648 = vmatprep.subr.mxu0 0.0
  %v649 = vand.u32 %v465, 4294901760
  %v650 = vsub.f32 %v465, %v649
  %v651 = vand.u32 %v650, 4294901760
  %v652 = vsub.f32 %v650, %v651
  %v653 = vand.u32 %v652, 4294901760
  %654 = vmatpush1.msra.mxu0 %v653
  %655 = vmatprep.subr.mxu0 0.0
  %v656 = vand.u32 %v466, 4294901760
  %v657 = vsub.f32 %v466, %v656
  %v658 = vand.u32 %v657, 4294901760
  %v659 = vsub.f32 %v657, %v658
  %v660 = vand.u32 %v659, 4294901760
  %661 = vmatpush1.msra.mxu0 %v660
  %662 = vmatprep.subr.mxu0 0.0
  %v663 = vand.u32 %v467, 4294901760
  %v664 = vsub.f32 %v467, %v663
  %v665 = vand.u32 %v664, 4294901760
  %v666 = vsub.f32 %v664, %v665
  %v667 = vand.u32 %v666, 4294901760
  %668 = vmatpush1.msra.mxu0 %v667
  %669 = vmatprep.subr.mxu0 0.0
  %v670 = vand.u32 %v468, 4294901760
  %v671 = vsub.f32 %v468, %v670
  %v672 = vand.u32 %v671, 4294901760
  %v673 = vsub.f32 %v671, %v672
  %v674 = vand.u32 %v673, 4294901760
  %675 = vmatpush1.msra.mxu0 %v674
  %676 = vmatprep.subr.mxu0 0.0
  %v677 = vand.u32 %v469, 4294901760
  %v678 = vsub.f32 %v469, %v677
  %v679 = vand.u32 %v678, 4294901760
  %v680 = vsub.f32 %v678, %v679
  %v681 = vand.u32 %v680, 4294901760
  %682 = vmatpush1.msra.mxu0 %v681
  %683 = vmatprep.subr.mxu0 0.0
  %684 = vmatpush1.msra.mxu0 0.0
  %685 = vmatprep.subr.mxu0 0.0
  %686 = vmatpush1.msra.mxu0 0.0
  %687 = vmatprep.subr.mxu0 0.0
  %688 = vmatpush1.msra.mxu0 0.0
  %689 = vmatprep.subr.mxu0 0.0
  %690 = vmatpush1.msra.mxu0 0.0
  %691 = vmatprep.subr.mxu0 0.0
  %692 = vmatpush1.msra.mxu0 0.0
  %693 = vmatprep.subr.mxu0 0.0
  %694 = vmatpush1.msra.mxu0 0.0
  %695 = vmatprep.subr.mxu0 0.0
  %696 = vmatpush1.msra.mxu0 0.0
  %697 = vmatprep.subr.mxu0 0.0
  %698 = vmatpush1.msra.mxu0 0.0
  %699 = vmatprep.subr.mxu0 0.0
  %700 = vmatpush1.msra.mxu0 0.0
  %701 = vmatprep.subr.mxu0 0.0
  %702 = vmatpush1.msra.mxu0 0.0
  %703 = vmatprep.subr.mxu0 0.0
  %704 = vmatpush1.msra.mxu0 0.0
  %705 = vmatprep.subr.mxu0 0.0
  %706 = vmatpush1.msra.mxu0 0.0
  %707 = vmatprep.subr.mxu0 0.0
  %708 = vmatpush1.msra.mxu0 0.0
  %709 = vmatprep.subr.mxu0 0.0
  %710 = vmatpush1.msra.mxu0 0.0
  %711 = vmatprep.subr.mxu0 0.0
  %712 = vmatpush1.msra.mxu0 0.0
  %713 = vmatprep.subr.mxu0 0.0
  %714 = vmatpush1.msra.mxu0 0.0
  %715 = vmatprep.mubr.f32.mxu0 0.0
  %v716 = vand.u32 %v448, 4294901760
  %717 = vmatmul.mubr.f32.gmra.mrb[0].mxu0 %v716
  %v718 = vpop.f32.mrb[0].mxu0
  %v719 = vadd.f32 %v558, %v718
  %v720 = vpop.f32.mrb[0].mxu0
  %721 = vmatprep.mubr.f32.mxu0 0.0
  %v722 = vand.u32 %v451, 4294901760
  %723 = vmatmul.mubr.f32.gmra.mrb[0].mxu0 %v722
  %v724 = vpop.f32.mrb[0].mxu0
  %v725 = vadd.f32 %v568, %v724
  %v726 = vpop.f32.mrb[0].mxu0
  %727 = vdwg.mxu0
  %728 = vmatprep.subr.mxu0 0.0
  %v729 = vand.u32 %v454, 4294901760
  %v730 = vsub.f32 %v454, %v729
  %731 = vmatpush1.msra.mxu0 %v730
  %732 = vmatprep.subr.mxu0 0.0
  %v733 = vand.u32 %v455, 4294901760
  %v734 = vsub.f32 %v455, %v733
  %735 = vmatpush1.msra.mxu0 %v734
  %736 = vmatprep.subr.mxu0 0.0
  %v737 = vand.u32 %v456, 4294901760
  %v738 = vsub.f32 %v456, %v737
  %739 = vmatpush1.msra.mxu0 %v738
  %740 = vmatprep.subr.mxu0 0.0
  %v741 = vand.u32 %v457, 4294901760
  %v742 = vsub.f32 %v457, %v741
  %743 = vmatpush1.msra.mxu0 %v742
  %744 = vmatprep.subr.mxu0 0.0
  %v745 = vand.u32 %v458, 4294901760
  %v746 = vsub.f32 %v458, %v745
  %747 = vmatpush1.msra.mxu0 %v746
  %748 = vmatprep.subr.mxu0 0.0
  %v749 = vand.u32 %v459, 4294901760
  %v750 = vsub.f32 %v459, %v749
  %751 = vmatpush1.msra.mxu0 %v750
  %752 = vmatprep.subr.mxu0 0.0
  %v753 = vand.u32 %v460, 4294901760
  %v754 = vsub.f32 %v460, %v753
  %755 = vmatpush1.msra.mxu0 %v754
  %756 = vmatprep.subr.mxu0 0.0
  %v757 = vand.u32 %v461, 4294901760
  %v758 = vsub.f32 %v461, %v757
  %759 = vmatpush1.msra.mxu0 %v758
  %760 = vmatprep.subr.mxu0 0.0
  %v761 = vand.u32 %v462, 4294901760
  %v762 = vsub.f32 %v462, %v761
  %763 = vmatpush1.msra.mxu0 %v762
  %764 = vmatprep.subr.mxu0 0.0
  %v765 = vand.u32 %v463, 4294901760
  %v766 = vsub.f32 %v463, %v765
  %767 = vmatpush1.msra.mxu0 %v766
  %768 = vmatprep.subr.mxu0 0.0
  %v769 = vand.u32 %v464, 4294901760
  %v770 = vsub.f32 %v464, %v769
  %771 = vmatpush1.msra.mxu0 %v770
  %772 = vmatprep.subr.mxu0 0.0
  %v773 = vand.u32 %v465, 4294901760
  %v774 = vsub.f32 %v465, %v773
  %775 = vmatpush1.msra.mxu0 %v774
  %776 = vmatprep.subr.mxu0 0.0
  %v777 = vand.u32 %v466, 4294901760
  %v778 = vsub.f32 %v466, %v777
  %779 = vmatpush1.msra.mxu0 %v778
  %780 = vmatprep.subr.mxu0 0.0
  %v781 = vand.u32 %v467, 4294901760
  %v782 = vsub.f32 %v467, %v781
  %783 = vmatpush1.msra.mxu0 %v782
  %784 = vmatprep.subr.mxu0 0.0
  %v785 = vand.u32 %v468, 4294901760
  %v786 = vsub.f32 %v468, %v785
  %787 = vmatpush1.msra.mxu0 %v786
  %788 = vmatprep.subr.mxu0 0.0
  %v789 = vand.u32 %v469, 4294901760
  %v790 = vsub.f32 %v469, %v789
  %791 = vmatpush1.msra.mxu0 %v790
  %792 = vmatprep.subr.mxu0 0.0
  %793 = vmatpush1.msra.mxu0 0.0
  %794 = vmatprep.subr.mxu0 0.0
  %795 = vmatpush1.msra.mxu0 0.0
  %796 = vmatprep.subr.mxu0 0.0
  %797 = vmatpush1.msra.mxu0 0.0
  %798 = vmatprep.subr.mxu0 0.0
  %799 = vmatpush1.msra.mxu0 0.0
  %800 = vmatprep.subr.mxu0 0.0
  %801 = vmatpush1.msra.mxu0 0.0
  %802 = vmatprep.subr.mxu0 0.0
  %803 = vmatpush1.msra.mxu0 0.0
  %804 = vmatprep.subr.mxu0 0.0
  %805 = vmatpush1.msra.mxu0 0.0
  %806 = vmatprep.subr.mxu0 0.0
  %807 = vmatpush1.msra.mxu0 0.0
  %808 = vmatprep.subr.mxu0 0.0
  %809 = vmatpush1.msra.mxu0 0.0
  %810 = vmatprep.subr.mxu0 0.0
  %811 = vmatpush1.msra.mxu0 0.0
  %812 = vmatprep.subr.mxu0 0.0
  %813 = vmatpush1.msra.mxu0 0.0
  %814 = vmatprep.subr.mxu0 0.0
  %815 = vmatpush1.msra.mxu0 0.0
  %816 = vmatprep.subr.mxu0 0.0
  %817 = vmatpush1.msra.mxu0 0.0
  %818 = vmatprep.subr.mxu0 0.0
  %819 = vmatpush1.msra.mxu0 0.0
  %820 = vmatprep.subr.mxu0 0.0
  %821 = vmatpush1.msra.mxu0 0.0
  %822 = vmatprep.subr.mxu0 0.0
  %823 = vmatpush1.msra.mxu0 0.0
  %824 = vmatprep.mubr.f32.mxu0 0.0
  %v825 = vand.u32 %v448, 4294901760
  %v826 = vsub.f32 %v448, %v825
  %827 = vmatmul.mubr.f32.gmra.mrb[0].mxu0 %v826
  %v828 = vpop.f32.mrb[0].mxu0
  %v829 = vadd.f32 %v719, %v828
  %v830 = vpop.f32.mrb[0].mxu0
  %831 = vmatprep.mubr.f32.mxu0 0.0
  %v832 = vand.u32 %v451, 4294901760
  %v833 = vsub.f32 %v451, %v832
  %834 = vmatmul.mubr.f32.gmra.mrb[0].mxu0 %v833
  %v835 = vpop.f32.mrb[0].mxu0
  %v836 = vadd.f32 %v725, %v835
  %v837 = vpop.f32.mrb[0].mxu0
  %838 = vdwg.mxu0
  %839 = vmatprep.subr.mxu0 0.0
  %v840 = vand.u32 %v454, 4294901760
  %841 = vmatpush1.msra.mxu0 %v840
  %842 = vmatprep.subr.mxu0 0.0
  %v843 = vand.u32 %v455, 4294901760
  %844 = vmatpush1.msra.mxu0 %v843
  %845 = vmatprep.subr.mxu0 0.0
  %v846 = vand.u32 %v456, 4294901760
  %847 = vmatpush1.msra.mxu0 %v846
  %848 = vmatprep.subr.mxu0 0.0
  %v849 = vand.u32 %v457, 4294901760
  %850 = vmatpush1.msra.mxu0 %v849
  %851 = vmatprep.subr.mxu0 0.0
  %v852 = vand.u32 %v458, 4294901760
  %853 = vmatpush1.msra.mxu0 %v852
  %854 = vmatprep.subr.mxu0 0.0
  %v855 = vand.u32 %v459, 4294901760
  %856 = vmatpush1.msra.mxu0 %v855
  %857 = vmatprep.subr.mxu0 0.0
  %v858 = vand.u32 %v460, 4294901760
  %859 = vmatpush1.msra.mxu0 %v858
  %860 = vmatprep.subr.mxu0 0.0
  %v861 = vand.u32 %v461, 4294901760
  %862 = vmatpush1.msra.mxu0 %v861
  %863 = vmatprep.subr.mxu0 0.0
  %v864 = vand.u32 %v462, 4294901760
  %865 = vmatpush1.msra.mxu0 %v864
  %866 = vmatprep.subr.mxu0 0.0
  %v867 = vand.u32 %v463, 4294901760
  %868 = vmatpush1.msra.mxu0 %v867
  %869 = vmatprep.subr.mxu0 0.0
  %v870 = vand.u32 %v464, 4294901760
  %871 = vmatpush1.msra.mxu0 %v870
  %872 = vmatprep.subr.mxu0 0.0
  %v873 = vand.u32 %v465, 4294901760
  %874 = vmatpush1.msra.mxu0 %v873
  %875 = vmatprep.subr.mxu0 0.0
  %v876 = vand.u32 %v466, 4294901760
  %877 = vmatpush1.msra.mxu0 %v876
  %878 = vmatprep.subr.mxu0 0.0
  %v879 = vand.u32 %v467, 4294901760
  %880 = vmatpush1.msra.mxu0 %v879
  %881 = vmatprep.subr.mxu0 0.0
  %v882 = vand.u32 %v468, 4294901760
  %883 = vmatpush1.msra.mxu0 %v882
  %884 = vmatprep.subr.mxu0 0.0
  %v885 = vand.u32 %v469, 4294901760
  %886 = vmatpush1.msra.mxu0 %v885
  %887 = vmatprep.subr.mxu0 0.0
  %888 = vmatpush1.msra.mxu0 0.0
  %889 = vmatprep.subr.mxu0 0.0
  %890 = vmatpush1.msra.mxu0 0.0
  %891 = vmatprep.subr.mxu0 0.0
  %892 = vmatpush1.msra.mxu0 0.0
  %893 = vmatprep.subr.mxu0 0.0
  %894 = vmatpush1.msra.mxu0 0.0
  %895 = vmatprep.subr.mxu0 0.0
  %896 = vmatpush1.msra.mxu0 0.0
  %897 = vmatprep.subr.mxu0 0.0
  %898 = vmatpush1.msra.mxu0 0.0
  %899 = vmatprep.subr.mxu0 0.0
  %900 = vmatpush1.msra.mxu0 0.0
  %901 = vmatprep.subr.mxu0 0.0
  %902 = vmatpush1.msra.mxu0 0.0
  %903 = vmatprep.subr.mxu0 0.0
  %904 = vmatpush1.msra.mxu0 0.0
  %905 = vmatprep.subr.mxu0 0.0
  %906 = vmatpush1.msra.mxu0 0.0
  %907 = vmatprep.subr.mxu0 0.0
  %908 = vmatpush1.msra.mxu0 0.0
  %909 = vmatprep.subr.mxu0 0.0
  %910 = vmatpush1.msra.mxu0 0.0
  %911 = vmatprep.subr.mxu0 0.0
  %912 = vmatpush1.msra.mxu0 0.0
  %913 = vmatprep.subr.mxu0 0.0
  %914 = vmatpush1.msra.mxu0 0.0
  %915 = vmatprep.subr.mxu0 0.0
  %916 = vmatpush1.msra.mxu0 0.0
  %917 = vmatprep.subr.mxu0 0.0
  %918 = vmatpush1.msra.mxu0 0.0
  %919 = vmatprep.mubr.f32.mxu0 0.0
  %v920 = vand.u32 %v448, 4294901760
  %v921 = vsub.f32 %v448, %v920
  %v922 = vand.u32 %v921, 4294901760
  %923 = vmatmul.mubr.f32.gmra.mrb[0].mxu0 %v922
  %v924 = vpop.f32.mrb[0].mxu0
  %v925 = vadd.f32 %v829, %v924
  %v926 = vpop.f32.mrb[0].mxu0
  %927 = vmatprep.mubr.f32.mxu0 0.0
  %v928 = vand.u32 %v451, 4294901760
  %v929 = vsub.f32 %v451, %v928
  %v930 = vand.u32 %v929, 4294901760
  %931 = vmatmul.mubr.f32.gmra.mrb[0].mxu0 %v930
  %v932 = vpop.f32.mrb[0].mxu0
  %v933 = vadd.f32 %v836, %v932
  %v934 = vpop.f32.mrb[0].mxu0
  %935 = vdwg.mxu0
  %936 = vmatprep.subr.mxu0 0.0
  %v937 = vand.u32 %v454, 4294901760
  %v938 = vsub.f32 %v454, %v937
  %v939 = vand.u32 %v938, 4294901760
  %940 = vmatpush1.msra.mxu0 %v939
  %941 = vmatprep.subr.mxu0 0.0
  %v942 = vand.u32 %v455, 4294901760
  %v943 = vsub.f32 %v455, %v942
  %v944 = vand.u32 %v943, 4294901760
  %945 = vmatpush1.msra.mxu0 %v944
  %946 = vmatprep.subr.mxu0 0.0
  %v947 = vand.u32 %v456, 4294901760
  %v948 = vsub.f32 %v456, %v947
  %v949 = vand.u32 %v948, 4294901760
  %950 = vmatpush1.msra.mxu0 %v949
  %951 = vmatprep.subr.mxu0 0.0
  %v952 = vand.u32 %v457, 4294901760
  %v953 = vsub.f32 %v457, %v952
  %v954 = vand.u32 %v953, 4294901760
  %955 = vmatpush1.msra.mxu0 %v954
  %956 = vmatprep.subr.mxu0 0.0
  %v957 = vand.u32 %v458, 4294901760
  %v958 = vsub.f32 %v458, %v957
  %v959 = vand.u32 %v958, 4294901760
  %960 = vmatpush1.msra.mxu0 %v959
  %961 = vmatprep.subr.mxu0 0.0
  %v962 = vand.u32 %v459, 4294901760
  %v963 = vsub.f32 %v459, %v962
  %v964 = vand.u32 %v963, 4294901760
  %965 = vmatpush1.msra.mxu0 %v964
  %966 = vmatprep.subr.mxu0 0.0
  %v967 = vand.u32 %v460, 4294901760
  %v968 = vsub.f32 %v460, %v967
  %v969 = vand.u32 %v968, 4294901760
  %970 = vmatpush1.msra.mxu0 %v969
  %971 = vmatprep.subr.mxu0 0.0
  %v972 = vand.u32 %v461, 4294901760
  %v973 = vsub.f32 %v461, %v972
  %v974 = vand.u32 %v973, 4294901760
  %975 = vmatpush1.msra.mxu0 %v974
  %976 = vmatprep.subr.mxu0 0.0
  %v977 = vand.u32 %v462, 4294901760
  %v978 = vsub.f32 %v462, %v977
  %v979 = vand.u32 %v978, 4294901760
  %980 = vmatpush1.msra.mxu0 %v979
  %981 = vmatprep.subr.mxu0 0.0
  %v982 = vand.u32 %v463, 4294901760
  %v983 = vsub.f32 %v463, %v982
  %v984 = vand.u32 %v983, 4294901760
  %985 = vmatpush1.msra.mxu0 %v984
  %986 = vmatprep.subr.mxu0 0.0
  %v987 = vand.u32 %v464, 4294901760
  %v988 = vsub.f32 %v464, %v987
  %v989 = vand.u32 %v988, 4294901760
  %990 = vmatpush1.msra.mxu0 %v989
  %991 = vmatprep.subr.mxu0 0.0
  %v992 = vand.u32 %v465, 4294901760
  %v993 = vsub.f32 %v465, %v992
  %v994 = vand.u32 %v993, 4294901760
  %995 = vmatpush1.msra.mxu0 %v994
  %996 = vmatprep.subr.mxu0 0.0
  %v997 = vand.u32 %v466, 4294901760
  %v998 = vsub.f32 %v466, %v997
  %v999 = vand.u32 %v998, 4294901760
  %1000 = vmatpush1.msra.mxu0 %v999
  %1001 = vmatprep.subr.mxu0 0.0
  %v1002 = vand.u32 %v467, 4294901760
  %v1003 = vsub.f32 %v467, %v1002
  %v1004 = vand.u32 %v1003, 4294901760
  %1005 = vmatpush1.msra.mxu0 %v1004
  %1006 = vmatprep.subr.mxu0 0.0
  %v1007 = vand.u32 %v468, 4294901760
  %v1008 = vsub.f32 %v468, %v1007
  %v1009 = vand.u32 %v1008, 4294901760
  %1010 = vmatpush1.msra.mxu0 %v1009
  %1011 = vmatprep.subr.mxu0 0.0
  %v1012 = vand.u32 %v469, 4294901760
  %v1013 = vsub.f32 %v469, %v1012
  %v1014 = vand.u32 %v1013, 4294901760
  %1015 = vmatpush1.msra.mxu0 %v1014
  %1016 = vmatprep.subr.mxu0 0.0
  %1017 = vmatpush1.msra.mxu0 0.0
  %1018 = vmatprep.subr.mxu0 0.0
  %1019 = vmatpush1.msra.mxu0 0.0
  %1020 = vmatprep.subr.mxu0 0.0
  %1021 = vmatpush1.msra.mxu0 0.0
  %1022 = vmatprep.subr.mxu0 0.0
  %1023 = vmatpush1.msra.mxu0 0.0
  %1024 = vmatprep.subr.mxu0 0.0
  %1025 = vmatpush1.msra.mxu0 0.0
  %1026 = vmatprep.subr.mxu0 0.0
  %1027 = vmatpush1.msra.mxu0 0.0
  %1028 = vmatprep.subr.mxu0 0.0
  %1029 = vmatpush1.msra.mxu0 0.0
  %1030 = vmatprep.subr.mxu0 0.0
  %1031 = vmatpush1.msra.mxu0 0.0
  %1032 = vmatprep.subr.mxu0 0.0
  %1033 = vmatpush1.msra.mxu0 0.0
  %1034 = vmatprep.subr.mxu0 0.0
  %1035 = vmatpush1.msra.mxu0 0.0
  %1036 = vmatprep.subr.mxu0 0.0
  %1037 = vmatpush1.msra.mxu0 0.0
  %1038 = vmatprep.subr.mxu0 0.0
  %1039 = vmatpush1.msra.mxu0 0.0
  %1040 = vmatprep.subr.mxu0 0.0
  %1041 = vmatpush1.msra.mxu0 0.0
  %1042 = vmatprep.subr.mxu0 0.0
  %1043 = vmatpush1.msra.mxu0 0.0
  %1044 = vmatprep.subr.mxu0 0.0
  %1045 = vmatpush1.msra.mxu0 0.0
  %1046 = vmatprep.subr.mxu0 0.0
  %1047 = vmatpush1.msra.mxu0 0.0
  %1048 = vmatprep.mubr.f32.mxu0 0.0
  %v1049 = vand.u32 %v448, 4294901760
  %1050 = vmatmul.mubr.f32.gmra.mrb[0].mxu0 %v1049
  %v1051 = vpop.f32.mrb[0].mxu0
  %v1052 = vadd.f32 %v925, %v1051
  %v1053 = vpop.f32.mrb[0].mxu0
  %1054 = vmatprep.mubr.f32.mxu0 0.0
  %v1055 = vand.u32 %v451, 4294901760
  %1056 = vmatmul.mubr.f32.gmra.mrb[0].mxu0 %v1055
  %v1057 = vpop.f32.mrb[0].mxu0
  %v1058 = vadd.f32 %v933, %v1057
  %v1059 = vpop.f32.mrb[0].mxu0
  %1060 = vdwg.mxu0
  %1061 = vmatprep.subr.mxu0 0.0
  %v1062 = vand.u32 %v454, 4294901760
  %1063 = vmatpush1.msra.mxu0 %v1062
  %1064 = vmatprep.subr.mxu0 0.0
  %v1065 = vand.u32 %v455, 4294901760
  %1066 = vmatpush1.msra.mxu0 %v1065
  %1067 = vmatprep.subr.mxu0 0.0
  %v1068 = vand.u32 %v456, 4294901760
  %1069 = vmatpush1.msra.mxu0 %v1068
  %1070 = vmatprep.subr.mxu0 0.0
  %v1071 = vand.u32 %v457, 4294901760
  %1072 = vmatpush1.msra.mxu0 %v1071
  %1073 = vmatprep.subr.mxu0 0.0
  %v1074 = vand.u32 %v458, 4294901760
  %1075 = vmatpush1.msra.mxu0 %v1074
  %1076 = vmatprep.subr.mxu0 0.0
  %v1077 = vand.u32 %v459, 4294901760
  %1078 = vmatpush1.msra.mxu0 %v1077
  %1079 = vmatprep.subr.mxu0 0.0
  %v1080 = vand.u32 %v460, 4294901760
  %1081 = vmatpush1.msra.mxu0 %v1080
  %1082 = vmatprep.subr.mxu0 0.0
  %v1083 = vand.u32 %v461, 4294901760
  %1084 = vmatpush1.msra.mxu0 %v1083
  %1085 = vmatprep.subr.mxu0 0.0
  %v1086 = vand.u32 %v462, 4294901760
  %1087 = vmatpush1.msra.mxu0 %v1086
  %1088 = vmatprep.subr.mxu0 0.0
  %v1089 = vand.u32 %v463, 4294901760
  %1090 = vmatpush1.msra.mxu0 %v1089
  %1091 = vmatprep.subr.mxu0 0.0
  %v1092 = vand.u32 %v464, 4294901760
  %1093 = vmatpush1.msra.mxu0 %v1092
  %1094 = vmatprep.subr.mxu0 0.0
  %v1095 = vand.u32 %v465, 4294901760
  %1096 = vmatpush1.msra.mxu0 %v1095
  %1097 = vmatprep.subr.mxu0 0.0
  %v1098 = vand.u32 %v466, 4294901760
  %1099 = vmatpush1.msra.mxu0 %v1098
  %1100 = vmatprep.subr.mxu0 0.0
  %v1101 = vand.u32 %v467, 4294901760
  %1102 = vmatpush1.msra.mxu0 %v1101
  %1103 = vmatprep.subr.mxu0 0.0
  %v1104 = vand.u32 %v468, 4294901760
  %1105 = vmatpush1.msra.mxu0 %v1104
  %1106 = vmatprep.subr.mxu0 0.0
  %v1107 = vand.u32 %v469, 4294901760
  %1108 = vmatpush1.msra.mxu0 %v1107
  %1109 = vmatprep.subr.mxu0 0.0
  %1110 = vmatpush1.msra.mxu0 0.0
  %1111 = vmatprep.subr.mxu0 0.0
  %1112 = vmatpush1.msra.mxu0 0.0
  %1113 = vmatprep.subr.mxu0 0.0
  %1114 = vmatpush1.msra.mxu0 0.0
  %1115 = vmatprep.subr.mxu0 0.0
  %1116 = vmatpush1.msra.mxu0 0.0
  %1117 = vmatprep.subr.mxu0 0.0
  %1118 = vmatpush1.msra.mxu0 0.0
  %1119 = vmatprep.subr.mxu0 0.0
  %1120 = vmatpush1.msra.mxu0 0.0
  %1121 = vmatprep.subr.mxu0 0.0
  %1122 = vmatpush1.msra.mxu0 0.0
  %1123 = vmatprep.subr.mxu0 0.0
  %1124 = vmatpush1.msra.mxu0 0.0
  %1125 = vmatprep.subr.mxu0 0.0
  %1126 = vmatpush1.msra.mxu0 0.0
  %1127 = vmatprep.subr.mxu0 0.0
  %1128 = vmatpush1.msra.mxu0 0.0
  %1129 = vmatprep.subr.mxu0 0.0
  %1130 = vmatpush1.msra.mxu0 0.0
  %1131 = vmatprep.subr.mxu0 0.0
  %1132 = vmatpush1.msra.mxu0 0.0
  %1133 = vmatprep.subr.mxu0 0.0
  %1134 = vmatpush1.msra.mxu0 0.0
  %1135 = vmatprep.subr.mxu0 0.0
  %1136 = vmatpush1.msra.mxu0 0.0
  %1137 = vmatprep.subr.mxu0 0.0
  %1138 = vmatpush1.msra.mxu0 0.0
  %1139 = vmatprep.subr.mxu0 0.0
  %1140 = vmatpush1.msra.mxu0 0.0
  %1141 = vmatprep.mubr.f32.mxu0 0.0
  %v1142 = vand.u32 %v448, 4294901760
  %1143 = vmatmul.mubr.f32.gmra.mrb[0].mxu0 %v1142
  %v1144 = vpop.f32.mrb[0].mxu0
  %v1145 = vadd.f32 %v1052, %v1144
  %v1146 = vpop.f32.mrb[0].mxu0
  %1147 = vmatprep.mubr.f32.mxu0 0.0
  %v1148 = vand.u32 %v451, 4294901760
  %1149 = vmatmul.mubr.f32.gmra.mrb[0].mxu0 %v1148
  %v1150 = vpop.f32.mrb[0].mxu0
  %v1151 = vadd.f32 %v1058, %v1150
  %v1152 = vpop.f32.mrb[0].mxu0
  %1153 = vdwg.mxu0
  %v1154 = vadd.f32 %v1145, %v1151
  %v1155 = vrot.slane %v1154, 4
  %v1156 = vadd.f32 %v1154, %v1155
  %v1157 = vrot.slane %v1156, 2
  %v1158 = vadd.f32 %v1156, %v1157
  %v1159 = vrot.slane %v1158, 1
  %v1160 = vadd.f32 %v1158, %v1159
  %v1161 = vrcp.pop 16.0
  %v1162 = vmul.f32 %v1160, %v1161
  %v1163 = vmul.f32 %v448, %v448
  %v1164 = vmul.f32 %v451, %v451
  %1165 = vmatprep.subr.mxu0 0.0
  %v1166 = vand.u32 %v454, 4294901760
  %1167 = vmatpush1.msra.mxu0 %v1166
  %1168 = vmatprep.subr.mxu0 0.0
  %v1169 = vand.u32 %v455, 4294901760
  %1170 = vmatpush1.msra.mxu0 %v1169
  %1171 = vmatprep.subr.mxu0 0.0
  %v1172 = vand.u32 %v456, 4294901760
  %1173 = vmatpush1.msra.mxu0 %v1172
  %1174 = vmatprep.subr.mxu0 0.0
  %v1175 = vand.u32 %v457, 4294901760
  %1176 = vmatpush1.msra.mxu0 %v1175
  %1177 = vmatprep.subr.mxu0 0.0
  %v1178 = vand.u32 %v458, 4294901760
  %1179 = vmatpush1.msra.mxu0 %v1178
  %1180 = vmatprep.subr.mxu0 0.0
  %v1181 = vand.u32 %v459, 4294901760
  %1182 = vmatpush1.msra.mxu0 %v1181
  %1183 = vmatprep.subr.mxu0 0.0
  %v1184 = vand.u32 %v460, 4294901760
  %1185 = vmatpush1.msra.mxu0 %v1184
  %1186 = vmatprep.subr.mxu0 0.0
  %v1187 = vand.u32 %v461, 4294901760
  %1188 = vmatpush1.msra.mxu0 %v1187
  %1189 = vmatprep.subr.mxu0 0.0
  %v1190 = vand.u32 %v462, 4294901760
  %1191 = vmatpush1.msra.mxu0 %v1190
  %1192 = vmatprep.subr.mxu0 0.0
  %v1193 = vand.u32 %v463, 4294901760
  %1194 = vmatpush1.msra.mxu0 %v1193
  %1195 = vmatprep.subr.mxu0 0.0
  %v1196 = vand.u32 %v464, 4294901760
  %1197 = vmatpush1.msra.mxu0 %v1196
  %1198 = vmatprep.subr.mxu0 0.0
  %v1199 = vand.u32 %v465, 4294901760
  %1200 = vmatpush1.msra.mxu0 %v1199
  %1201 = vmatprep.subr.mxu0 0.0
  %v1202 = vand.u32 %v466, 4294901760
  %1203 = vmatpush1.msra.mxu0 %v1202
  %1204 = vmatprep.subr.mxu0 0.0
  %v1205 = vand.u32 %v467, 4294901760
  %1206 = vmatpush1.msra.mxu0 %v1205
  %1207 = vmatprep.subr.mxu0 0.0
  %v1208 = vand.u32 %v468, 4294901760
  %1209 = vmatpush1.msra.mxu0 %v1208
  %1210 = vmatprep.subr.mxu0 0.0
  %v1211 = vand.u32 %v469, 4294901760
  %1212 = vmatpush1.msra.mxu0 %v1211
  %1213 = vmatprep.subr.mxu0 0.0
  %1214 = vmatpush1.msra.mxu0 0.0
  %1215 = vmatprep.subr.mxu0 0.0
  %1216 = vmatpush1.msra.mxu0 0.0
  %1217 = vmatprep.subr.mxu0 0.0
  %1218 = vmatpush1.msra.mxu0 0.0
  %1219 = vmatprep.subr.mxu0 0.0
  %1220 = vmatpush1.msra.mxu0 0.0
  %1221 = vmatprep.subr.mxu0 0.0
  %1222 = vmatpush1.msra.mxu0 0.0
  %1223 = vmatprep.subr.mxu0 0.0
  %1224 = vmatpush1.msra.mxu0 0.0
  %1225 = vmatprep.subr.mxu0 0.0
  %1226 = vmatpush1.msra.mxu0 0.0
  %1227 = vmatprep.subr.mxu0 0.0
  %1228 = vmatpush1.msra.mxu0 0.0
  %1229 = vmatprep.subr.mxu0 0.0
  %1230 = vmatpush1.msra.mxu0 0.0
  %1231 = vmatprep.subr.mxu0 0.0
  %1232 = vmatpush1.msra.mxu0 0.0
  %1233 = vmatprep.subr.mxu0 0.0
  %1234 = vmatpush1.msra.mxu0 0.0
  %1235 = vmatprep.subr.mxu0 0.0
  %1236 = vmatpush1.msra.mxu0 0.0
  %1237 = vmatprep.subr.mxu0 0.0
  %1238 = vmatpush1.msra.mxu0 0.0
  %1239 = vmatprep.subr.mxu0 0.0
  %1240 = vmatpush1.msra.mxu0 0.0
  %1241 = vmatprep.subr.mxu0 0.0
  %1242 = vmatpush1.msra.mxu0 0.0
  %1243 = vmatprep.subr.mxu0 0.0
  %1244 = vmatpush1.msra.mxu0 0.0
  %1245 = vmatprep.mubr.f32.mxu0 0.0
  %v1246 = vand.u32 %v1163, 4294901760
  %v1247 = vsub.f32 %v1163, %v1246
  %v1248 = vand.u32 %v1247, 4294901760
  %v1249 = vsub.f32 %v1247, %v1248
  %v1250 = vand.u32 %v1249, 4294901760
  %1251 = vmatmul.mubr.f32.gmra.mrb[0].mxu0 %v1250
  %v1252 = vpop.f32.mrb[0].mxu0
  %v1253 = vadd.f32 0.0, %v1252
  %v1254 = vpop.f32.mrb[0].mxu0
  %1255 = vmatprep.mubr.f32.mxu0 0.0
  %v1256 = vand.u32 %v1164, 4294901760
  %v1257 = vsub.f32 %v1164, %v1256
  %v1258 = vand.u32 %v1257, 4294901760
  %v1259 = vsub.f32 %v1257, %v1258
  %v1260 = vand.u32 %v1259, 4294901760
  %1261 = vmatmul.mubr.f32.gmra.mrb[0].mxu0 %v1260
  %v1262 = vpop.f32.mrb[0].mxu0
  %v1263 = vadd.f32 0.0, %v1262
  %v1264 = vpop.f32.mrb[0].mxu0
  %1265 = vdwg.mxu0
  %1266 = vmatprep.subr.mxu0 0.0
  %v1267 = vand.u32 %v454, 4294901760
  %v1268 = vsub.f32 %v454, %v1267
  %v1269 = vand.u32 %v1268, 4294901760
  %v1270 = vsub.f32 %v1268, %v1269
  %v1271 = vand.u32 %v1270, 4294901760
  %1272 = vmatpush1.msra.mxu0 %v1271
  %1273 = vmatprep.subr.mxu0 0.0
  %v1274 = vand.u32 %v455, 4294901760
  %v1275 = vsub.f32 %v455, %v1274
  %v1276 = vand.u32 %v1275, 4294901760
  %v1277 = vsub.f32 %v1275, %v1276
  %v1278 = vand.u32 %v1277, 4294901760
  %1279 = vmatpush1.msra.mxu0 %v1278
  %1280 = vmatprep.subr.mxu0 0.0
  %v1281 = vand.u32 %v456, 4294901760
  %v1282 = vsub.f32 %v456, %v1281
  %v1283 = vand.u32 %v1282, 4294901760
  %v1284 = vsub.f32 %v1282, %v1283
  %v1285 = vand.u32 %v1284, 4294901760
  %1286 = vmatpush1.msra.mxu0 %v1285
  %1287 = vmatprep.subr.mxu0 0.0
  %v1288 = vand.u32 %v457, 4294901760
  %v1289 = vsub.f32 %v457, %v1288
  %v1290 = vand.u32 %v1289, 4294901760
  %v1291 = vsub.f32 %v1289, %v1290
  %v1292 = vand.u32 %v1291, 4294901760
  %1293 = vmatpush1.msra.mxu0 %v1292
  %1294 = vmatprep.subr.mxu0 0.0
  %v1295 = vand.u32 %v458, 4294901760
  %v1296 = vsub.f32 %v458, %v1295
  %v1297 = vand.u32 %v1296, 4294901760
  %v1298 = vsub.f32 %v1296, %v1297
  %v1299 = vand.u32 %v1298, 4294901760
  %1300 = vmatpush1.msra.mxu0 %v1299
  %1301 = vmatprep.subr.mxu0 0.0
  %v1302 = vand.u32 %v459, 4294901760
  %v1303 = vsub.f32 %v459, %v1302
  %v1304 = vand.u32 %v1303, 4294901760
  %v1305 = vsub.f32 %v1303, %v1304
  %v1306 = vand.u32 %v1305, 4294901760
  %1307 = vmatpush1.msra.mxu0 %v1306
  %1308 = vmatprep.subr.mxu0 0.0
  %v1309 = vand.u32 %v460, 4294901760
  %v1310 = vsub.f32 %v460, %v1309
  %v1311 = vand.u32 %v1310, 4294901760
  %v1312 = vsub.f32 %v1310, %v1311
  %v1313 = vand.u32 %v1312, 4294901760
  %1314 = vmatpush1.msra.mxu0 %v1313
  %1315 = vmatprep.subr.mxu0 0.0
  %v1316 = vand.u32 %v461, 4294901760
  %v1317 = vsub.f32 %v461, %v1316
  %v1318 = vand.u32 %v1317, 4294901760
  %v1319 = vsub.f32 %v1317, %v1318
  %v1320 = vand.u32 %v1319, 4294901760
  %1321 = vmatpush1.msra.mxu0 %v1320
  %1322 = vmatprep.subr.mxu0 0.0
  %v1323 = vand.u32 %v462, 4294901760
  %v1324 = vsub.f32 %v462, %v1323
  %v1325 = vand.u32 %v1324, 4294901760
  %v1326 = vsub.f32 %v1324, %v1325
  %v1327 = vand.u32 %v1326, 4294901760
  %1328 = vmatpush1.msra.mxu0 %v1327
  %1329 = vmatprep.subr.mxu0 0.0
  %v1330 = vand.u32 %v463, 4294901760
  %v1331 = vsub.f32 %v463, %v1330
  %v1332 = vand.u32 %v1331, 4294901760
  %v1333 = vsub.f32 %v1331, %v1332
  %v1334 = vand.u32 %v1333, 4294901760
  %1335 = vmatpush1.msra.mxu0 %v1334
  %1336 = vmatprep.subr.mxu0 0.0
  %v1337 = vand.u32 %v464, 4294901760
  %v1338 = vsub.f32 %v464, %v1337
  %v1339 = vand.u32 %v1338, 4294901760
  %v1340 = vsub.f32 %v1338, %v1339
  %v1341 = vand.u32 %v1340, 4294901760
  %1342 = vmatpush1.msra.mxu0 %v1341
  %1343 = vmatprep.subr.mxu0 0.0
  %v1344 = vand.u32 %v465, 4294901760
  %v1345 = vsub.f32 %v465, %v1344
  %v1346 = vand.u32 %v1345, 4294901760
  %v1347 = vsub.f32 %v1345, %v1346
  %v1348 = vand.u32 %v1347, 4294901760
  %1349 = vmatpush1.msra.mxu0 %v1348
  %1350 = vmatprep.subr.mxu0 0.0
  %v1351 = vand.u32 %v466, 4294901760
  %v1352 = vsub.f32 %v466, %v1351
  %v1353 = vand.u32 %v1352, 4294901760
  %v1354 = vsub.f32 %v1352, %v1353
  %v1355 = vand.u32 %v1354, 4294901760
  %1356 = vmatpush1.msra.mxu0 %v1355
  %1357 = vmatprep.subr.mxu0 0.0
  %v1358 = vand.u32 %v467, 4294901760
  %v1359 = vsub.f32 %v467, %v1358
  %v1360 = vand.u32 %v1359, 4294901760
  %v1361 = vsub.f32 %v1359, %v1360
  %v1362 = vand.u32 %v1361, 4294901760
  %1363 = vmatpush1.msra.mxu0 %v1362
  %1364 = vmatprep.subr.mxu0 0.0
  %v1365 = vand.u32 %v468, 4294901760
  %v1366 = vsub.f32 %v468, %v1365
  %v1367 = vand.u32 %v1366, 4294901760
  %v1368 = vsub.f32 %v1366, %v1367
  %v1369 = vand.u32 %v1368, 4294901760
  %1370 = vmatpush1.msra.mxu0 %v1369
  %1371 = vmatprep.subr.mxu0 0.0
  %v1372 = vand.u32 %v469, 4294901760
  %v1373 = vsub.f32 %v469, %v1372
  %v1374 = vand.u32 %v1373, 4294901760
  %v1375 = vsub.f32 %v1373, %v1374
  %v1376 = vand.u32 %v1375, 4294901760
  %1377 = vmatpush1.msra.mxu0 %v1376
  %1378 = vmatprep.subr.mxu0 0.0
  %1379 = vmatpush1.msra.mxu0 0.0
  %1380 = vmatprep.subr.mxu0 0.0
  %1381 = vmatpush1.msra.mxu0 0.0
  %1382 = vmatprep.subr.mxu0 0.0
  %1383 = vmatpush1.msra.mxu0 0.0
  %1384 = vmatprep.subr.mxu0 0.0
  %1385 = vmatpush1.msra.mxu0 0.0
  %1386 = vmatprep.subr.mxu0 0.0
  %1387 = vmatpush1.msra.mxu0 0.0
  %1388 = vmatprep.subr.mxu0 0.0
  %1389 = vmatpush1.msra.mxu0 0.0
  %1390 = vmatprep.subr.mxu0 0.0
  %1391 = vmatpush1.msra.mxu0 0.0
  %1392 = vmatprep.subr.mxu0 0.0
  %1393 = vmatpush1.msra.mxu0 0.0
  %1394 = vmatprep.subr.mxu0 0.0
  %1395 = vmatpush1.msra.mxu0 0.0
  %1396 = vmatprep.subr.mxu0 0.0
  %1397 = vmatpush1.msra.mxu0 0.0
  %1398 = vmatprep.subr.mxu0 0.0
  %1399 = vmatpush1.msra.mxu0 0.0
  %1400 = vmatprep.subr.mxu0 0.0
  %1401 = vmatpush1.msra.mxu0 0.0
  %1402 = vmatprep.subr.mxu0 0.0
  %1403 = vmatpush1.msra.mxu0 0.0
  %1404 = vmatprep.subr.mxu0 0.0
  %1405 = vmatpush1.msra.mxu0 0.0
  %1406 = vmatprep.subr.mxu0 0.0
  %1407 = vmatpush1.msra.mxu0 0.0
  %1408 = vmatprep.subr.mxu0 0.0
  %1409 = vmatpush1.msra.mxu0 0.0
  %1410 = vmatprep.mubr.f32.mxu0 0.0
  %v1411 = vand.u32 %v1163, 4294901760
  %1412 = vmatmul.mubr.f32.gmra.mrb[0].mxu0 %v1411
  %v1413 = vpop.f32.mrb[0].mxu0
  %v1414 = vadd.f32 %v1253, %v1413
  %v1415 = vpop.f32.mrb[0].mxu0
  %1416 = vmatprep.mubr.f32.mxu0 0.0
  %v1417 = vand.u32 %v1164, 4294901760
  %1418 = vmatmul.mubr.f32.gmra.mrb[0].mxu0 %v1417
  %v1419 = vpop.f32.mrb[0].mxu0
  %v1420 = vadd.f32 %v1263, %v1419
  %v1421 = vpop.f32.mrb[0].mxu0
  %1422 = vdwg.mxu0
  %1423 = vmatprep.subr.mxu0 0.0
  %v1424 = vand.u32 %v454, 4294901760
  %v1425 = vsub.f32 %v454, %v1424
  %1426 = vmatpush1.msra.mxu0 %v1425
  %1427 = vmatprep.subr.mxu0 0.0
  %v1428 = vand.u32 %v455, 4294901760
  %v1429 = vsub.f32 %v455, %v1428
  %1430 = vmatpush1.msra.mxu0 %v1429
  %1431 = vmatprep.subr.mxu0 0.0
  %v1432 = vand.u32 %v456, 4294901760
  %v1433 = vsub.f32 %v456, %v1432
  %1434 = vmatpush1.msra.mxu0 %v1433
  %1435 = vmatprep.subr.mxu0 0.0
  %v1436 = vand.u32 %v457, 4294901760
  %v1437 = vsub.f32 %v457, %v1436
  %1438 = vmatpush1.msra.mxu0 %v1437
  %1439 = vmatprep.subr.mxu0 0.0
  %v1440 = vand.u32 %v458, 4294901760
  %v1441 = vsub.f32 %v458, %v1440
  %1442 = vmatpush1.msra.mxu0 %v1441
  %1443 = vmatprep.subr.mxu0 0.0
  %v1444 = vand.u32 %v459, 4294901760
  %v1445 = vsub.f32 %v459, %v1444
  %1446 = vmatpush1.msra.mxu0 %v1445
  %1447 = vmatprep.subr.mxu0 0.0
  %v1448 = vand.u32 %v460, 4294901760
  %v1449 = vsub.f32 %v460, %v1448
  %1450 = vmatpush1.msra.mxu0 %v1449
  %1451 = vmatprep.subr.mxu0 0.0
  %v1452 = vand.u32 %v461, 4294901760
  %v1453 = vsub.f32 %v461, %v1452
  %1454 = vmatpush1.msra.mxu0 %v1453
  %1455 = vmatprep.subr.mxu0 0.0
  %v1456 = vand.u32 %v462, 4294901760
  %v1457 = vsub.f32 %v462, %v1456
  %1458 = vmatpush1.msra.mxu0 %v1457
  %1459 = vmatprep.subr.mxu0 0.0
  %v1460 = vand.u32 %v463, 4294901760
  %v1461 = vsub.f32 %v463, %v1460
  %1462 = vmatpush1.msra.mxu0 %v1461
  %1463 = vmatprep.subr.mxu0 0.0
  %v1464 = vand.u32 %v464, 4294901760
  %v1465 = vsub.f32 %v464, %v1464
  %1466 = vmatpush1.msra.mxu0 %v1465
  %1467 = vmatprep.subr.mxu0 0.0
  %v1468 = vand.u32 %v465, 4294901760
  %v1469 = vsub.f32 %v465, %v1468
  %1470 = vmatpush1.msra.mxu0 %v1469
  %1471 = vmatprep.subr.mxu0 0.0
  %v1472 = vand.u32 %v466, 4294901760
  %v1473 = vsub.f32 %v466, %v1472
  %1474 = vmatpush1.msra.mxu0 %v1473
  %1475 = vmatprep.subr.mxu0 0.0
  %v1476 = vand.u32 %v467, 4294901760
  %v1477 = vsub.f32 %v467, %v1476
  %1478 = vmatpush1.msra.mxu0 %v1477
  %1479 = vmatprep.subr.mxu0 0.0
  %v1480 = vand.u32 %v468, 4294901760
  %v1481 = vsub.f32 %v468, %v1480
  %1482 = vmatpush1.msra.mxu0 %v1481
  %1483 = vmatprep.subr.mxu0 0.0
  %v1484 = vand.u32 %v469, 4294901760
  %v1485 = vsub.f32 %v469, %v1484
  %1486 = vmatpush1.msra.mxu0 %v1485
  %1487 = vmatprep.subr.mxu0 0.0
  %1488 = vmatpush1.msra.mxu0 0.0
  %1489 = vmatprep.subr.mxu0 0.0
  %1490 = vmatpush1.msra.mxu0 0.0
  %1491 = vmatprep.subr.mxu0 0.0
  %1492 = vmatpush1.msra.mxu0 0.0
  %1493 = vmatprep.subr.mxu0 0.0
  %1494 = vmatpush1.msra.mxu0 0.0
  %1495 = vmatprep.subr.mxu0 0.0
  %1496 = vmatpush1.msra.mxu0 0.0
  %1497 = vmatprep.subr.mxu0 0.0
  %1498 = vmatpush1.msra.mxu0 0.0
  %1499 = vmatprep.subr.mxu0 0.0
  %1500 = vmatpush1.msra.mxu0 0.0
  %1501 = vmatprep.subr.mxu0 0.0
  %1502 = vmatpush1.msra.mxu0 0.0
  %1503 = vmatprep.subr.mxu0 0.0
  %1504 = vmatpush1.msra.mxu0 0.0
  %1505 = vmatprep.subr.mxu0 0.0
  %1506 = vmatpush1.msra.mxu0 0.0
  %1507 = vmatprep.subr.mxu0 0.0
  %1508 = vmatpush1.msra.mxu0 0.0
  %1509 = vmatprep.subr.mxu0 0.0
  %1510 = vmatpush1.msra.mxu0 0.0
  %1511 = vmatprep.subr.mxu0 0.0
  %1512 = vmatpush1.msra.mxu0 0.0
  %1513 = vmatprep.subr.mxu0 0.0
  %1514 = vmatpush1.msra.mxu0 0.0
  %1515 = vmatprep.subr.mxu0 0.0
  %1516 = vmatpush1.msra.mxu0 0.0
  %1517 = vmatprep.subr.mxu0 0.0
  %1518 = vmatpush1.msra.mxu0 0.0
  %1519 = vmatprep.mubr.f32.mxu0 0.0
  %v1520 = vand.u32 %v1163, 4294901760
  %v1521 = vsub.f32 %v1163, %v1520
  %1522 = vmatmul.mubr.f32.gmra.mrb[0].mxu0 %v1521
  %v1523 = vpop.f32.mrb[0].mxu0
  %v1524 = vadd.f32 %v1414, %v1523
  %v1525 = vpop.f32.mrb[0].mxu0
  %1526 = vmatprep.mubr.f32.mxu0 0.0
  %v1527 = vand.u32 %v1164, 4294901760
  %v1528 = vsub.f32 %v1164, %v1527
  %1529 = vmatmul.mubr.f32.gmra.mrb[0].mxu0 %v1528
  %v1530 = vpop.f32.mrb[0].mxu0
  %v1531 = vadd.f32 %v1420, %v1530
  %v1532 = vpop.f32.mrb[0].mxu0
  %1533 = vdwg.mxu0
  %1534 = vmatprep.subr.mxu0 0.0
  %v1535 = vand.u32 %v454, 4294901760
  %1536 = vmatpush1.msra.mxu0 %v1535
  %1537 = vmatprep.subr.mxu0 0.0
  %v1538 = vand.u32 %v455, 4294901760
  %1539 = vmatpush1.msra.mxu0 %v1538
  %1540 = vmatprep.subr.mxu0 0.0
  %v1541 = vand.u32 %v456, 4294901760
  %1542 = vmatpush1.msra.mxu0 %v1541
  %1543 = vmatprep.subr.mxu0 0.0
  %v1544 = vand.u32 %v457, 4294901760
  %1545 = vmatpush1.msra.mxu0 %v1544
  %1546 = vmatprep.subr.mxu0 0.0
  %v1547 = vand.u32 %v458, 4294901760
  %1548 = vmatpush1.msra.mxu0 %v1547
  %1549 = vmatprep.subr.mxu0 0.0
  %v1550 = vand.u32 %v459, 4294901760
  %1551 = vmatpush1.msra.mxu0 %v1550
  %1552 = vmatprep.subr.mxu0 0.0
  %v1553 = vand.u32 %v460, 4294901760
  %1554 = vmatpush1.msra.mxu0 %v1553
  %1555 = vmatprep.subr.mxu0 0.0
  %v1556 = vand.u32 %v461, 4294901760
  %1557 = vmatpush1.msra.mxu0 %v1556
  %1558 = vmatprep.subr.mxu0 0.0
  %v1559 = vand.u32 %v462, 4294901760
  %1560 = vmatpush1.msra.mxu0 %v1559
  %1561 = vmatprep.subr.mxu0 0.0
  %v1562 = vand.u32 %v463, 4294901760
  %1563 = vmatpush1.msra.mxu0 %v1562
  %1564 = vmatprep.subr.mxu0 0.0
  %v1565 = vand.u32 %v464, 4294901760
  %1566 = vmatpush1.msra.mxu0 %v1565
  %1567 = vmatprep.subr.mxu0 0.0
  %v1568 = vand.u32 %v465, 4294901760
  %1569 = vmatpush1.msra.mxu0 %v1568
  %1570 = vmatprep.subr.mxu0 0.0
  %v1571 = vand.u32 %v466, 4294901760
  %1572 = vmatpush1.msra.mxu0 %v1571
  %1573 = vmatprep.subr.mxu0 0.0
  %v1574 = vand.u32 %v467, 4294901760
  %1575 = vmatpush1.msra.mxu0 %v1574
  %1576 = vmatprep.subr.mxu0 0.0
  %v1577 = vand.u32 %v468, 4294901760
  %1578 = vmatpush1.msra.mxu0 %v1577
  %1579 = vmatprep.subr.mxu0 0.0
  %v1580 = vand.u32 %v469, 4294901760
  %1581 = vmatpush1.msra.mxu0 %v1580
  %1582 = vmatprep.subr.mxu0 0.0
  %1583 = vmatpush1.msra.mxu0 0.0
  %1584 = vmatprep.subr.mxu0 0.0
  %1585 = vmatpush1.msra.mxu0 0.0
  %1586 = vmatprep.subr.mxu0 0.0
  %1587 = vmatpush1.msra.mxu0 0.0
  %1588 = vmatprep.subr.mxu0 0.0
  %1589 = vmatpush1.msra.mxu0 0.0
  %1590 = vmatprep.subr.mxu0 0.0
  %1591 = vmatpush1.msra.mxu0 0.0
  %1592 = vmatprep.subr.mxu0 0.0
  %1593 = vmatpush1.msra.mxu0 0.0
  %1594 = vmatprep.subr.mxu0 0.0
  %1595 = vmatpush1.msra.mxu0 0.0
  %1596 = vmatprep.subr.mxu0 0.0
  %1597 = vmatpush1.msra.mxu0 0.0
  %1598 = vmatprep.subr.mxu0 0.0
  %1599 = vmatpush1.msra.mxu0 0.0
  %1600 = vmatprep.subr.mxu0 0.0
  %1601 = vmatpush1.msra.mxu0 0.0
  %1602 = vmatprep.subr.mxu0 0.0
  %1603 = vmatpush1.msra.mxu0 0.0
  %1604 = vmatprep.subr.mxu0 0.0
  %1605 = vmatpush1.msra.mxu0 0.0
  %1606 = vmatprep.subr.mxu0 0.0
  %1607 = vmatpush1.msra.mxu0 0.0
  %1608 = vmatprep.subr.mxu0 0.0
  %1609 = vmatpush1.msra.mxu0 0.0
  %1610 = vmatprep.subr.mxu0 0.0
  %1611 = vmatpush1.msra.mxu0 0.0
  %1612 = vmatprep.subr.mxu0 0.0
  %1613 = vmatpush1.msra.mxu0 0.0
  %1614 = vmatprep.mubr.f32.mxu0 0.0
  %v1615 = vand.u32 %v1163, 4294901760
  %v1616 = vsub.f32 %v1163, %v1615
  %v1617 = vand.u32 %v1616, 4294901760
  %1618 = vmatmul.mubr.f32.gmra.mrb[0].mxu0 %v1617
  %v1619 = vpop.f32.mrb[0].mxu0
  %v1620 = vadd.f32 %v1524, %v1619
  %v1621 = vpop.f32.mrb[0].mxu0
  %1622 = vmatprep.mubr.f32.mxu0 0.0
  %v1623 = vand.u32 %v1164, 4294901760
  %v1624 = vsub.f32 %v1164, %v1623
  %v1625 = vand.u32 %v1624, 4294901760
  %1626 = vmatmul.mubr.f32.gmra.mrb[0].mxu0 %v1625
  %v1627 = vpop.f32.mrb[0].mxu0
  %v1628 = vadd.f32 %v1531, %v1627
  %v1629 = vpop.f32.mrb[0].mxu0
  %1630 = vdwg.mxu0
  %1631 = vmatprep.subr.mxu0 0.0
  %v1632 = vand.u32 %v454, 4294901760
  %v1633 = vsub.f32 %v454, %v1632
  %v1634 = vand.u32 %v1633, 4294901760
  %1635 = vmatpush1.msra.mxu0 %v1634
  %1636 = vmatprep.subr.mxu0 0.0
  %v1637 = vand.u32 %v455, 4294901760
  %v1638 = vsub.f32 %v455, %v1637
  %v1639 = vand.u32 %v1638, 4294901760
  %1640 = vmatpush1.msra.mxu0 %v1639
  %1641 = vmatprep.subr.mxu0 0.0
  %v1642 = vand.u32 %v456, 4294901760
  %v1643 = vsub.f32 %v456, %v1642
  %v1644 = vand.u32 %v1643, 4294901760
  %1645 = vmatpush1.msra.mxu0 %v1644
  %1646 = vmatprep.subr.mxu0 0.0
  %v1647 = vand.u32 %v457, 4294901760
  %v1648 = vsub.f32 %v457, %v1647
  %v1649 = vand.u32 %v1648, 4294901760
  %1650 = vmatpush1.msra.mxu0 %v1649
  %1651 = vmatprep.subr.mxu0 0.0
  %v1652 = vand.u32 %v458, 4294901760
  %v1653 = vsub.f32 %v458, %v1652
  %v1654 = vand.u32 %v1653, 4294901760
  %1655 = vmatpush1.msra.mxu0 %v1654
  %1656 = vmatprep.subr.mxu0 0.0
  %v1657 = vand.u32 %v459, 4294901760
  %v1658 = vsub.f32 %v459, %v1657
  %v1659 = vand.u32 %v1658, 4294901760
  %1660 = vmatpush1.msra.mxu0 %v1659
  %1661 = vmatprep.subr.mxu0 0.0
  %v1662 = vand.u32 %v460, 4294901760
  %v1663 = vsub.f32 %v460, %v1662
  %v1664 = vand.u32 %v1663, 4294901760
  %1665 = vmatpush1.msra.mxu0 %v1664
  %1666 = vmatprep.subr.mxu0 0.0
  %v1667 = vand.u32 %v461, 4294901760
  %v1668 = vsub.f32 %v461, %v1667
  %v1669 = vand.u32 %v1668, 4294901760
  %1670 = vmatpush1.msra.mxu0 %v1669
  %1671 = vmatprep.subr.mxu0 0.0
  %v1672 = vand.u32 %v462, 4294901760
  %v1673 = vsub.f32 %v462, %v1672
  %v1674 = vand.u32 %v1673, 4294901760
  %1675 = vmatpush1.msra.mxu0 %v1674
  %1676 = vmatprep.subr.mxu0 0.0
  %v1677 = vand.u32 %v463, 4294901760
  %v1678 = vsub.f32 %v463, %v1677
  %v1679 = vand.u32 %v1678, 4294901760
  %1680 = vmatpush1.msra.mxu0 %v1679
  %1681 = vmatprep.subr.mxu0 0.0
  %v1682 = vand.u32 %v464, 4294901760
  %v1683 = vsub.f32 %v464, %v1682
  %v1684 = vand.u32 %v1683, 4294901760
  %1685 = vmatpush1.msra.mxu0 %v1684
  %1686 = vmatprep.subr.mxu0 0.0
  %v1687 = vand.u32 %v465, 4294901760
  %v1688 = vsub.f32 %v465, %v1687
  %v1689 = vand.u32 %v1688, 4294901760
  %1690 = vmatpush1.msra.mxu0 %v1689
  %1691 = vmatprep.subr.mxu0 0.0
  %v1692 = vand.u32 %v466, 4294901760
  %v1693 = vsub.f32 %v466, %v1692
  %v1694 = vand.u32 %v1693, 4294901760
  %1695 = vmatpush1.msra.mxu0 %v1694
  %1696 = vmatprep.subr.mxu0 0.0
  %v1697 = vand.u32 %v467, 4294901760
  %v1698 = vsub.f32 %v467, %v1697
  %v1699 = vand.u32 %v1698, 4294901760
  %1700 = vmatpush1.msra.mxu0 %v1699
  %1701 = vmatprep.subr.mxu0 0.0
  %v1702 = vand.u32 %v468, 4294901760
  %v1703 = vsub.f32 %v468, %v1702
  %v1704 = vand.u32 %v1703, 4294901760
  %1705 = vmatpush1.msra.mxu0 %v1704
  %1706 = vmatprep.subr.mxu0 0.0
  %v1707 = vand.u32 %v469, 4294901760
  %v1708 = vsub.f32 %v469, %v1707
  %v1709 = vand.u32 %v1708, 4294901760
  %1710 = vmatpush1.msra.mxu0 %v1709
  %1711 = vmatprep.subr.mxu0 0.0
  %1712 = vmatpush1.msra.mxu0 0.0
  %1713 = vmatprep.subr.mxu0 0.0
  %1714 = vmatpush1.msra.mxu0 0.0
  %1715 = vmatprep.subr.mxu0 0.0
  %1716 = vmatpush1.msra.mxu0 0.0
  %1717 = vmatprep.subr.mxu0 0.0
  %1718 = vmatpush1.msra.mxu0 0.0
  %1719 = vmatprep.subr.mxu0 0.0
  %1720 = vmatpush1.msra.mxu0 0.0
  %1721 = vmatprep.subr.mxu0 0.0
  %1722 = vmatpush1.msra.mxu0 0.0
  %1723 = vmatprep.subr.mxu0 0.0
  %1724 = vmatpush1.msra.mxu0 0.0
  %1725 = vmatprep.subr.mxu0 0.0
  %1726 = vmatpush1.msra.mxu0 0.0
  %1727 = vmatprep.subr.mxu0 0.0
  %1728 = vmatpush1.msra.mxu0 0.0
  %1729 = vmatprep.subr.mxu0 0.0
  %1730 = vmatpush1.msra.mxu0 0.0
  %1731 = vmatprep.subr.mxu0 0.0
  %1732 = vmatpush1.msra.mxu0 0.0
  %1733 = vmatprep.subr.mxu0 0.0
  %1734 = vmatpush1.msra.mxu0 0.0
  %1735 = vmatprep.subr.mxu0 0.0
  %1736 = vmatpush1.msra.mxu0 0.0
  %1737 = vmatprep.subr.mxu0 0.0
  %1738 = vmatpush1.msra.mxu0 0.0
  %1739 = vmatprep.subr.mxu0 0.0
  %1740 = vmatpush1.msra.mxu0 0.0
  %1741 = vmatprep.subr.mxu0 0.0
  %1742 = vmatpush1.msra.mxu0 0.0
  %1743 = vmatprep.mubr.f32.mxu0 0.0
  %v1744 = vand.u32 %v1163, 4294901760
  %1745 = vmatmul.mubr.f32.gmra.mrb[0].mxu0 %v1744
  %v1746 = vpop.f32.mrb[0].mxu0
  %v1747 = vadd.f32 %v1620, %v1746
  %v1748 = vpop.f32.mrb[0].mxu0
  %1749 = vmatprep.mubr.f32.mxu0 0.0
  %v1750 = vand.u32 %v1164, 4294901760
  %1751 = vmatmul.mubr.f32.gmra.mrb[0].mxu0 %v1750
  %v1752 = vpop.f32.mrb[0].mxu0
  %v1753 = vadd.f32 %v1628, %v1752
  %v1754 = vpop.f32.mrb[0].mxu0
  %1755 = vdwg.mxu0
  %1756 = vmatprep.subr.mxu0 0.0
  %v1757 = vand.u32 %v454, 4294901760
  %1758 = vmatpush1.msra.mxu0 %v1757
  %1759 = vmatprep.subr.mxu0 0.0
  %v1760 = vand.u32 %v455, 4294901760
  %1761 = vmatpush1.msra.mxu0 %v1760
  %1762 = vmatprep.subr.mxu0 0.0
  %v1763 = vand.u32 %v456, 4294901760
  %1764 = vmatpush1.msra.mxu0 %v1763
  %1765 = vmatprep.subr.mxu0 0.0
  %v1766 = vand.u32 %v457, 4294901760
  %1767 = vmatpush1.msra.mxu0 %v1766
  %1768 = vmatprep.subr.mxu0 0.0
  %v1769 = vand.u32 %v458, 4294901760
  %1770 = vmatpush1.msra.mxu0 %v1769
  %1771 = vmatprep.subr.mxu0 0.0
  %v1772 = vand.u32 %v459, 4294901760
  %1773 = vmatpush1.msra.mxu0 %v1772
  %1774 = vmatprep.subr.mxu0 0.0
  %v1775 = vand.u32 %v460, 4294901760
  %1776 = vmatpush1.msra.mxu0 %v1775
  %1777 = vmatprep.subr.mxu0 0.0
  %v1778 = vand.u32 %v461, 4294901760
  %1779 = vmatpush1.msra.mxu0 %v1778
  %1780 = vmatprep.subr.mxu0 0.0
  %v1781 = vand.u32 %v462, 4294901760
  %1782 = vmatpush1.msra.mxu0 %v1781
  %1783 = vmatprep.subr.mxu0 0.0
  %v1784 = vand.u32 %v463, 4294901760
  %1785 = vmatpush1.msra.mxu0 %v1784
  %1786 = vmatprep.subr.mxu0 0.0
  %v1787 = vand.u32 %v464, 4294901760
  %1788 = vmatpush1.msra.mxu0 %v1787
  %1789 = vmatprep.subr.mxu0 0.0
  %v1790 = vand.u32 %v465, 4294901760
  %1791 = vmatpush1.msra.mxu0 %v1790
  %1792 = vmatprep.subr.mxu0 0.0
  %v1793 = vand.u32 %v466, 4294901760
  %1794 = vmatpush1.msra.mxu0 %v1793
  %1795 = vmatprep.subr.mxu0 0.0
  %v1796 = vand.u32 %v467, 4294901760
  %1797 = vmatpush1.msra.mxu0 %v1796
  %1798 = vmatprep.subr.mxu0 0.0
  %v1799 = vand.u32 %v468, 4294901760
  %1800 = vmatpush1.msra.mxu0 %v1799
  %1801 = vmatprep.subr.mxu0 0.0
  %v1802 = vand.u32 %v469, 4294901760
  %1803 = vmatpush1.msra.mxu0 %v1802
  %1804 = vmatprep.subr.mxu0 0.0
  %1805 = vmatpush1.msra.mxu0 0.0
  %1806 = vmatprep.subr.mxu0 0.0
  %1807 = vmatpush1.msra.mxu0 0.0
  %1808 = vmatprep.subr.mxu0 0.0
  %1809 = vmatpush1.msra.mxu0 0.0
  %1810 = vmatprep.subr.mxu0 0.0
  %1811 = vmatpush1.msra.mxu0 0.0
  %1812 = vmatprep.subr.mxu0 0.0
  %1813 = vmatpush1.msra.mxu0 0.0
  %1814 = vmatprep.subr.mxu0 0.0
  %1815 = vmatpush1.msra.mxu0 0.0
  %1816 = vmatprep.subr.mxu0 0.0
  %1817 = vmatpush1.msra.mxu0 0.0
  %1818 = vmatprep.subr.mxu0 0.0
  %1819 = vmatpush1.msra.mxu0 0.0
  %1820 = vmatprep.subr.mxu0 0.0
  %1821 = vmatpush1.msra.mxu0 0.0
  %1822 = vmatprep.subr.mxu0 0.0
  %1823 = vmatpush1.msra.mxu0 0.0
  %1824 = vmatprep.subr.mxu0 0.0
  %1825 = vmatpush1.msra.mxu0 0.0
  %1826 = vmatprep.subr.mxu0 0.0
  %1827 = vmatpush1.msra.mxu0 0.0
  %1828 = vmatprep.subr.mxu0 0.0
  %1829 = vmatpush1.msra.mxu0 0.0
  %1830 = vmatprep.subr.mxu0 0.0
  %1831 = vmatpush1.msra.mxu0 0.0
  %1832 = vmatprep.subr.mxu0 0.0
  %1833 = vmatpush1.msra.mxu0 0.0
  %1834 = vmatprep.subr.mxu0 0.0
  %1835 = vmatpush1.msra.mxu0 0.0
  %1836 = vmatprep.mubr.f32.mxu0 0.0
  %v1837 = vand.u32 %v1163, 4294901760
  %1838 = vmatmul.mubr.f32.gmra.mrb[0].mxu0 %v1837
  %v1839 = vpop.f32.mrb[0].mxu0
  %v1840 = vadd.f32 %v1747, %v1839
  %v1841 = vpop.f32.mrb[0].mxu0
  %1842 = vmatprep.mubr.f32.mxu0 0.0
  %v1843 = vand.u32 %v1164, 4294901760
  %1844 = vmatmul.mubr.f32.gmra.mrb[0].mxu0 %v1843
  %v1845 = vpop.f32.mrb[0].mxu0
  %v1846 = vadd.f32 %v1753, %v1845
  %v1847 = vpop.f32.mrb[0].mxu0
  %1848 = vdwg.mxu0
  %v1849 = vadd.f32 %v1840, %v1846
  %v1850 = vrot.slane %v1849, 4
  %v1851 = vadd.f32 %v1849, %v1850
  %v1852 = vrot.slane %v1851, 2
  %v1853 = vadd.f32 %v1851, %v1852
  %v1854 = vrot.slane %v1853, 1
  %v1855 = vadd.f32 %v1853, %v1854
  %v1856 = vmul.f32 %v1855, %v1161
  %v1857 = vmul.f32 %v1162, %v1162
  %v1858 = vsub.f32 %v1856, %v1857
  %v1859 = vmax.f32 %v1858, 0.0
  %v1860 = vld [vmem:[%s4] sm:$0x3]
  %v1861 = vsub.f32 %v448, %v1162
  %v1862 = vsub.f32 %v451, %v1162
  %v1863 = vadd.f32 %v1859, 1e-05
  %v1864 = vrsqrt.pop %v1863
  %v1865 = vmul.f32 %v1861, %v1864
  %v1866 = vmul.f32 %v1862, %v1864
  %v1867 = vlaneseq
  %v1868 = vshrl.u32 %v1867, 7
  %v1869 = vsub.s32 0, %v1868
  %v1870 = vrot.slane %v1860, %v1869
  %v1871 = vmul.f32 %v1865, %v1870
  %v1872 = vmul.f32 %v1866, %v1870
  %v1873 = vlaneseq
  %v1874 = vshrl.u32 %v1873, 7
  %v1875 = vsub.s32 1, %v1874
  %v1876 = vrot.slane %v1860, %v1875
  %v1877 = vadd.f32 %v1871, %v1876
  %v1878 = vadd.f32 %v1872, %v1876
  %v1879 = vmax.f32 %v1877, 0.0
  %v1880 = vmax.f32 %v1878, 0.0
  %v1881 = vpack.c.bf16 %v1880, %v1879
  %s1882 = scalar_lea.vmem %s2, 256
  %v1883 = vld [vmem:[%s1882] sm:$0xff]
  %v1884 = vld [vmem:[%s1882 + $0x8] sm:$0xff]
  %v1885 = vld [vmem:[%s1882 + $0x10] sm:$0xff]
  %v1886 = vld [vmem:[%s1882 + $0x18] sm:$0xff]
  %v1887 = vld [vmem:[%s1882 + $0x20] sm:$0xff]
  %v1888 = vld [vmem:[%s1882 + $0x28] sm:$0xff]
  %v1889 = vld [vmem:[%s1882 + $0x30] sm:$0xff]
  %v1890 = vld [vmem:[%s1882 + $0x38] sm:$0xff]
  %v1891 = vld [vmem:[%s1882 + $0x40] sm:$0xff]
  %v1892 = vld [vmem:[%s1882 + $0x48] sm:$0xff]
  %v1893 = vld [vmem:[%s1882 + $0x50] sm:$0xff]
  %v1894 = vld [vmem:[%s1882 + $0x58] sm:$0xff]
  %v1895 = vld [vmem:[%s1882 + $0x60] sm:$0xff]
  %v1896 = vld [vmem:[%s1882 + $0x68] sm:$0xff]
  %v1897 = vld [vmem:[%s1882 + $0x70] sm:$0xff]
  %v1898 = vld [vmem:[%s1882 + $0x78] sm:$0xff]
  %v1899 = vld [vmem:[%s1882 + $0x80] sm:$0xff]
  %v1900 = vld [vmem:[%s1882 + $0x88] sm:$0xff]
  %v1901 = vld [vmem:[%s1882 + $0x90] sm:$0xff]
  %v1902 = vld [vmem:[%s1882 + $0x98] sm:$0xff]
  %v1903 = vld [vmem:[%s1882 + $0xa0] sm:$0xff]
  %v1904 = vld [vmem:[%s1882 + $0xa8] sm:$0xff]
  %v1905 = vld [vmem:[%s1882 + $0xb0] sm:$0xff]
  %v1906 = vld [vmem:[%s1882 + $0xb8] sm:$0xff]
  %v1907 = vld [vmem:[%s1882 + $0xc0] sm:$0xff]
  %v1908 = vld [vmem:[%s1882 + $0xc8] sm:$0xff]
  %v1909 = vld [vmem:[%s1882 + $0xd0] sm:$0xff]
  %v1910 = vld [vmem:[%s1882 + $0xd8] sm:$0xff]
  %v1911 = vld [vmem:[%s1882 + $0xe0] sm:$0xff]
  %v1912 = vld [vmem:[%s1882 + $0xe8] sm:$0xff]
  %v1913 = vld [vmem:[%s1882 + $0xf0] sm:$0xff]
  %v1914 = vld [vmem:[%s1882 + $0xf8] sm:$0xff]
  %v1947 = vunpack.c.l.b16 %v1883
  %v1948 = vunpack.c.h.b16 %v1883
  %v1949 = vunpack.c.l.b16 %v1884
  %v1950 = vunpack.c.h.b16 %v1884
  %v1951 = vunpack.c.l.b16 %v1885
  %v1952 = vunpack.c.h.b16 %v1885
  %v1953 = vunpack.c.l.b16 %v1886
  %v1954 = vunpack.c.h.b16 %v1886
  %v1955 = vunpack.c.l.b16 %v1887
  %v1956 = vunpack.c.h.b16 %v1887
  %v1957 = vunpack.c.l.b16 %v1888
  %v1958 = vunpack.c.h.b16 %v1888
  %v1959 = vunpack.c.l.b16 %v1889
  %v1960 = vunpack.c.h.b16 %v1889
  %v1961 = vunpack.c.l.b16 %v1890
  %v1962 = vunpack.c.h.b16 %v1890
  %v1963 = vunpack.c.l.b16 %v1891
  %v1964 = vunpack.c.h.b16 %v1891
  %v1965 = vunpack.c.l.b16 %v1892
  %v1966 = vunpack.c.h.b16 %v1892
  %v1967 = vunpack.c.l.b16 %v1893
  %v1968 = vunpack.c.h.b16 %v1893
  %v1969 = vunpack.c.l.b16 %v1894
  %v1970 = vunpack.c.h.b16 %v1894
  %v1971 = vunpack.c.l.b16 %v1895
  %v1972 = vunpack.c.h.b16 %v1895
  %v1973 = vunpack.c.l.b16 %v1896
  %v1974 = vunpack.c.h.b16 %v1896
  %v1975 = vunpack.c.l.b16 %v1897
  %v1976 = vunpack.c.h.b16 %v1897
  %v1977 = vunpack.c.l.b16 %v1898
  %v1978 = vunpack.c.h.b16 %v1898
  %v1979 = vunpack.c.l.b16 %v1899
  %v1980 = vunpack.c.h.b16 %v1899
  %v1981 = vunpack.c.l.b16 %v1900
  %v1982 = vunpack.c.h.b16 %v1900
  %v1983 = vunpack.c.l.b16 %v1901
  %v1984 = vunpack.c.h.b16 %v1901
  %v1985 = vunpack.c.l.b16 %v1902
  %v1986 = vunpack.c.h.b16 %v1902
  %v1987 = vunpack.c.l.b16 %v1903
  %v1988 = vunpack.c.h.b16 %v1903
  %v1989 = vunpack.c.l.b16 %v1904
  %v1990 = vunpack.c.h.b16 %v1904
  %v1991 = vunpack.c.l.b16 %v1905
  %v1992 = vunpack.c.h.b16 %v1905
  %v1993 = vunpack.c.l.b16 %v1906
  %v1994 = vunpack.c.h.b16 %v1906
  %v1995 = vunpack.c.l.b16 %v1907
  %v1996 = vunpack.c.h.b16 %v1907
  %v1997 = vunpack.c.l.b16 %v1908
  %v1998 = vunpack.c.h.b16 %v1908
  %v1999 = vunpack.c.l.b16 %v1909
  %v2000 = vunpack.c.h.b16 %v1909
  %v2001 = vunpack.c.l.b16 %v1910
  %v2002 = vunpack.c.h.b16 %v1910
  %v2003 = vunpack.c.l.b16 %v1911
  %v2004 = vunpack.c.h.b16 %v1911
  %v2005 = vunpack.c.l.b16 %v1912
  %v2006 = vunpack.c.h.b16 %v1912
  %v2007 = vunpack.c.l.b16 %v1913
  %v2008 = vunpack.c.h.b16 %v1913
  %v2009 = vunpack.c.l.b16 %v1914
  %v2010 = vunpack.c.h.b16 %v1914
  %v2011 = vpack.c.b16 %v1951, %v1947
  %v2012 = vpack.c.b16 %v1952, %v1948
  %v2013 = vpack.c.b16 %v1953, %v1949
  %v2014 = vpack.c.b16 %v1954, %v1950
  %v2015 = vpack.c.b16 %v1959, %v1955
  %v2016 = vpack.c.b16 %v1960, %v1956
  %v2017 = vpack.c.b16 %v1961, %v1957
  %v2018 = vpack.c.b16 %v1962, %v1958
  %v2019 = vpack.c.b16 %v1967, %v1963
  %v2020 = vpack.c.b16 %v1968, %v1964
  %v2021 = vpack.c.b16 %v1969, %v1965
  %v2022 = vpack.c.b16 %v1970, %v1966
  %v2023 = vpack.c.b16 %v1975, %v1971
  %v2024 = vpack.c.b16 %v1976, %v1972
  %v2025 = vpack.c.b16 %v1977, %v1973
  %v2026 = vpack.c.b16 %v1978, %v1974
  %v2027 = vpack.c.b16 %v1983, %v1979
  %v2028 = vpack.c.b16 %v1984, %v1980
  %v2029 = vpack.c.b16 %v1985, %v1981
  %v2030 = vpack.c.b16 %v1986, %v1982
  %v2031 = vpack.c.b16 %v1991, %v1987
  %v2032 = vpack.c.b16 %v1992, %v1988
  %v2033 = vpack.c.b16 %v1993, %v1989
  %v2034 = vpack.c.b16 %v1994, %v1990
  %v2035 = vpack.c.b16 %v1999, %v1995
  %v2036 = vpack.c.b16 %v2000, %v1996
  %v2037 = vpack.c.b16 %v2001, %v1997
  %v2038 = vpack.c.b16 %v2002, %v1998
  %v2039 = vpack.c.b16 %v2007, %v2003
  %v2040 = vpack.c.b16 %v2008, %v2004
  %v2041 = vpack.c.b16 %v2009, %v2005
  %v2042 = vpack.c.b16 %v2010, %v2006
  %2075 = vmatprep.subr.bf16.mxu0 %v2012
  %2076 = vmatpush1.bf16.msra.mxu0 %v2011
  %2077 = vmatprep.subr.bf16.mxu0 %v2016
  %2078 = vmatpush1.bf16.msra.mxu0 %v2015
  %2079 = vmatprep.subr.bf16.mxu0 %v2020
  %2080 = vmatpush1.bf16.msra.mxu0 %v2019
  %2081 = vmatprep.subr.bf16.mxu0 %v2024
  %2082 = vmatpush1.bf16.msra.mxu0 %v2023
  %2083 = vmatprep.subr.bf16.mxu0 %v2028
  %2084 = vmatpush1.bf16.msra.mxu0 %v2027
  %2085 = vmatprep.subr.bf16.mxu0 %v2032
  %2086 = vmatpush1.bf16.msra.mxu0 %v2031
  %2087 = vmatprep.subr.bf16.mxu0 %v2036
  %2088 = vmatpush1.bf16.msra.mxu0 %v2035
  %2089 = vmatprep.subr.bf16.mxu0 %v2040
  %2090 = vmatpush1.bf16.msra.mxu0 %v2039
  %2091 = vmatprep.subr.bf16.mxu0 0
  %2092 = vmatpush1.bf16.msra.mxu0 0
  %2093 = vmatprep.subr.bf16.mxu0 0
  %2094 = vmatpush1.bf16.msra.mxu0 0
  %2095 = vmatprep.subr.bf16.mxu0 0
  %2096 = vmatpush1.bf16.msra.mxu0 0
  %2097 = vmatprep.subr.bf16.mxu0 0
  %2098 = vmatpush1.bf16.msra.mxu0 0
  %2099 = vmatprep.subr.bf16.mxu0 0
  %2100 = vmatpush1.bf16.msra.mxu0 0
  %2101 = vmatprep.subr.bf16.mxu0 0
  %2102 = vmatpush1.bf16.msra.mxu0 0
  %2103 = vmatprep.subr.bf16.mxu0 0
  %2104 = vmatpush1.bf16.msra.mxu0 0
  %2105 = vmatprep.subr.bf16.mxu0 0
  %2106 = vmatpush1.bf16.msra.mxu0 0
  %2107 = vmatprep.mubr.bf16.mxu0 0
  %2108 = vmatmul.mubr.bf16.gmra.mrb[0].mxu0 %v1881
  %v2109 = vpop.f32.mrb[0].mxu0
  %v2110 = vadd.f32 0.0, %v2109
  %v2111 = vpop.f32.mrb[0].mxu0
  %v2112 = vadd.f32 0.0, %v2111
  %v2113 = vpop.f32.mrb[0].mxu0
  %v2114 = vadd.f32 0.0, %v2113
  %v2115 = vpop.f32.mrb[0].mxu0
  %v2116 = vadd.f32 0.0, %v2115
  %2117 = vdwg.mxu0
  %2118 = vmatprep.subr.bf16.mxu0 %v2014
  %2119 = vmatpush1.bf16.msra.mxu0 %v2013
  %2120 = vmatprep.subr.bf16.mxu0 %v2018
  %2121 = vmatpush1.bf16.msra.mxu0 %v2017
  %2122 = vmatprep.subr.bf16.mxu0 %v2022
  %2123 = vmatpush1.bf16.msra.mxu0 %v2021
  %2124 = vmatprep.subr.bf16.mxu0 %v2026
  %2125 = vmatpush1.bf16.msra.mxu0 %v2025
  %2126 = vmatprep.subr.bf16.mxu0 %v2030
  %2127 = vmatpush1.bf16.msra.mxu0 %v2029
  %2128 = vmatprep.subr.bf16.mxu0 %v2034
  %2129 = vmatpush1.bf16.msra.mxu0 %v2033
  %2130 = vmatprep.subr.bf16.mxu0 %v2038
  %2131 = vmatpush1.bf16.msra.mxu0 %v2037
  %2132 = vmatprep.subr.bf16.mxu0 %v2042
  %2133 = vmatpush1.bf16.msra.mxu0 %v2041
  %2134 = vmatprep.subr.bf16.mxu0 0
  %2135 = vmatpush1.bf16.msra.mxu0 0
  %2136 = vmatprep.subr.bf16.mxu0 0
  %2137 = vmatpush1.bf16.msra.mxu0 0
  %2138 = vmatprep.subr.bf16.mxu0 0
  %2139 = vmatpush1.bf16.msra.mxu0 0
  %2140 = vmatprep.subr.bf16.mxu0 0
  %2141 = vmatpush1.bf16.msra.mxu0 0
  %2142 = vmatprep.subr.bf16.mxu0 0
  %2143 = vmatpush1.bf16.msra.mxu0 0
  %2144 = vmatprep.subr.bf16.mxu0 0
  %2145 = vmatpush1.bf16.msra.mxu0 0
  %2146 = vmatprep.subr.bf16.mxu0 0
  %2147 = vmatpush1.bf16.msra.mxu0 0
  %2148 = vmatprep.subr.bf16.mxu0 0
  %2149 = vmatpush1.bf16.msra.mxu0 0
  %2150 = vmatprep.mubr.bf16.mxu0 0
  %2151 = vmatmul.mubr.bf16.gmra.mrb[0].mxu0 %v1881
  %v2152 = vpop.f32.mrb[0].mxu0
  %v2153 = vadd.f32 0.0, %v2152
  %v2154 = vpop.f32.mrb[0].mxu0
  %v2155 = vadd.f32 0.0, %v2154
  %v2156 = vpop.f32.mrb[0].mxu0
  %v2157 = vadd.f32 0.0, %v2156
  %v2158 = vpop.f32.mrb[0].mxu0
  %v2159 = vadd.f32 0.0, %v2158
  %2160 = vdwg.mxu0
  %2161 = vst [vmem:[#allocation2] sm:$0xff] %v2110
  %2162 = vst [vmem:[#allocation2 + $0x8] sm:$0xff] %v2114
  %2163 = vst [vmem:[#allocation2 + $0x10] sm:$0xff] %v2112
  %2164 = vst [vmem:[#allocation2 + $0x18] sm:$0xff] %v2116
  %2165 = vst [vmem:[#allocation2 + $0x20] sm:$0xff] %v2153
  %2166 = vst [vmem:[#allocation2 + $0x28] sm:$0xff] %v2157
  %2167 = vst [vmem:[#allocation2 + $0x30] sm:$0xff] %v2155
  %2168 = vst [vmem:[#allocation2 + $0x38] sm:$0xff] %v2159
  %s2169 = scalar_lea.vmem %s1, 16
  %v2170 = vld [vmem:[%s2169] sm:$0xf]
  %v2171 = vld [vmem:[#allocation2] sm:$0xff]
  %v2172 = vld [vmem:[#allocation2 + $0x8] sm:$0xff]
  %v2173 = vld [vmem:[#allocation2 + $0x10] sm:$0xff]
  %v2174 = vld [vmem:[#allocation2 + $0x18] sm:$0xff]
  %v2175 = vld [vmem:[#allocation2 + $0x20] sm:$0xff]
  %v2176 = vld [vmem:[#allocation2 + $0x28] sm:$0xff]
  %v2177 = vld [vmem:[#allocation2 + $0x30] sm:$0xff]
  %v2178 = vld [vmem:[#allocation2 + $0x38] sm:$0xff]
  %vm2179 = vcmask 523264
  %v2181 = vsel %vm2179, %v2170, 0
  %2183 = vmatprep.subr.mxu0 0.0
  %2184 = vmatpush1.msra.mxu0 %v2171
  %2185 = vmatprep.subr.mxu0 0.0
  %2186 = vmatpush1.msra.mxu0 %v2172
  %2187 = vmatprep.subr.mxu0 0.0
  %2188 = vmatpush1.msra.mxu0 %v2173
  %2189 = vmatprep.subr.mxu0 0.0
  %2190 = vmatpush1.msra.mxu0 %v2174
  %2191 = vmatprep.subr.mxu0 0.0
  %2192 = vmatpush1.msra.mxu0 %v2175
  %2193 = vmatprep.subr.mxu0 0.0
  %2194 = vmatpush1.msra.mxu0 %v2176
  %2195 = vmatprep.subr.mxu0 0.0
  %2196 = vmatpush1.msra.mxu0 %v2177
  %2197 = vmatprep.subr.mxu0 0.0
  %2198 = vmatpush1.msra.mxu0 %v2178
  %2199 = vmatprep.subr.mxu0 0.0
  %2200 = vmatpush1.msra.mxu0 0.0
  %2201 = vmatprep.subr.mxu0 0.0
  %2202 = vmatpush1.msra.mxu0 0.0
  %2203 = vmatprep.subr.mxu0 0.0
  %2204 = vmatpush1.msra.mxu0 0.0
  %2205 = vmatprep.subr.mxu0 0.0
  %2206 = vmatpush1.msra.mxu0 0.0
  %2207 = vmatprep.subr.mxu0 0.0
  %2208 = vmatpush1.msra.mxu0 0.0
  %2209 = vmatprep.subr.mxu0 0.0
  %2210 = vmatpush1.msra.mxu0 0.0
  %2211 = vmatprep.subr.mxu0 0.0
  %2212 = vmatpush1.msra.mxu0 0.0
  %2213 = vmatprep.subr.mxu0 0.0
  %2214 = vmatpush1.msra.mxu0 0.0
  %2215 = vmatprep.subr.mxu0 0.0
  %2216 = vmatpush1.msra.mxu0 0.0
  %2217 = vmatprep.subr.mxu0 0.0
  %2218 = vmatpush1.msra.mxu0 0.0
  %2219 = vmatprep.subr.mxu0 0.0
  %2220 = vmatpush1.msra.mxu0 0.0
  %2221 = vmatprep.subr.mxu0 0.0
  %2222 = vmatpush1.msra.mxu0 0.0
  %2223 = vmatprep.subr.mxu0 0.0
  %2224 = vmatpush1.msra.mxu0 0.0
  %2225 = vmatprep.subr.mxu0 0.0
  %2226 = vmatpush1.msra.mxu0 0.0
  %2227 = vmatprep.subr.mxu0 0.0
  %2228 = vmatpush1.msra.mxu0 0.0
  %2229 = vmatprep.subr.mxu0 0.0
  %2230 = vmatpush1.msra.mxu0 0.0
  %2231 = vmatprep.subr.mxu0 0.0
  %2232 = vmatpush1.msra.mxu0 0.0
  %2233 = vmatprep.subr.mxu0 0.0
  %2234 = vmatpush1.msra.mxu0 0.0
  %2235 = vmatprep.subr.mxu0 0.0
  %2236 = vmatpush1.msra.mxu0 0.0
  %2237 = vmatprep.subr.mxu0 0.0
  %2238 = vmatpush1.msra.mxu0 0.0
  %2239 = vmatprep.subr.mxu0 0.0
  %2240 = vmatpush1.msra.mxu0 0.0
  %2241 = vmatprep.subr.mxu0 0.0
  %2242 = vmatpush1.msra.mxu0 0.0
  %2243 = vmatprep.subr.mxu0 0.0
  %2244 = vmatpush1.msra.mxu0 0.0
  %2245 = vmatprep.subr.mxu0 0.0
  %2246 = vmatpush1.msra.mxu0 0.0
  %2247 = vmatprep.mubr.bf16.mxu0 0
  %2248 = vmatmul.mubr.bf16.gmra.mrb[0].mxu0 %v2181
  %v2249 = vpop.f32.mrb[0].mxu0
  %v2250 = vadd.f32 0.0, %v2249
  %v2251 = vpop.f32.mrb[0].mxu0
  %v2252 = vpop.f32.mrb[0].mxu0
  %v2253 = vpop.f32.mrb[0].mxu0
  %2254 = vdwg.mxu0
  %s2255 = scalar_lea.vmem %s3, 128
  %v2256 = vld [vmem:[%s2255] sm:$0xff]
  %v2257 = vld [vmem:[%s2255 + $0x8] sm:$0xff]
  %v2258 = vld [vmem:[%s2255 + $0x10] sm:$0xff]
  %v2259 = vld [vmem:[%s2255 + $0x18] sm:$0xff]
  %v2260 = vld [vmem:[%s2255 + $0x20] sm:$0xff]
  %v2261 = vld [vmem:[%s2255 + $0x28] sm:$0xff]
  %v2262 = vld [vmem:[%s2255 + $0x30] sm:$0xff]
  %v2263 = vld [vmem:[%s2255 + $0x38] sm:$0xff]
  %v2264 = vld [vmem:[%s2255 + $0x40] sm:$0xff]
  %v2265 = vld [vmem:[%s2255 + $0x48] sm:$0xff]
  %v2266 = vld [vmem:[%s2255 + $0x50] sm:$0xff]
  %v2267 = vld [vmem:[%s2255 + $0x58] sm:$0xff]
  %v2268 = vld [vmem:[%s2255 + $0x60] sm:$0xff]
  %v2269 = vld [vmem:[%s2255 + $0x68] sm:$0xff]
  %v2270 = vld [vmem:[%s2255 + $0x70] sm:$0xff]
  %v2271 = vld [vmem:[%s2255 + $0x78] sm:$0xff]
  %2272 = vmatprep.subr.mxu0 0.0
  %v2273 = vand.u32 %v2256, 4294901760
  %2274 = vmatpush1.msra.mxu0 %v2273
  %2275 = vmatprep.subr.mxu0 0.0
  %v2276 = vand.u32 %v2257, 4294901760
  %2277 = vmatpush1.msra.mxu0 %v2276
  %2278 = vmatprep.subr.mxu0 0.0
  %v2279 = vand.u32 %v2258, 4294901760
  %2280 = vmatpush1.msra.mxu0 %v2279
  %2281 = vmatprep.subr.mxu0 0.0
  %v2282 = vand.u32 %v2259, 4294901760
  %2283 = vmatpush1.msra.mxu0 %v2282
  %2284 = vmatprep.subr.mxu0 0.0
  %v2285 = vand.u32 %v2260, 4294901760
  %2286 = vmatpush1.msra.mxu0 %v2285
  %2287 = vmatprep.subr.mxu0 0.0
  %v2288 = vand.u32 %v2261, 4294901760
  %2289 = vmatpush1.msra.mxu0 %v2288
  %2290 = vmatprep.subr.mxu0 0.0
  %v2291 = vand.u32 %v2262, 4294901760
  %2292 = vmatpush1.msra.mxu0 %v2291
  %2293 = vmatprep.subr.mxu0 0.0
  %v2294 = vand.u32 %v2263, 4294901760
  %2295 = vmatpush1.msra.mxu0 %v2294
  %2296 = vmatprep.subr.mxu0 0.0
  %v2297 = vand.u32 %v2264, 4294901760
  %2298 = vmatpush1.msra.mxu0 %v2297
  %2299 = vmatprep.subr.mxu0 0.0
  %v2300 = vand.u32 %v2265, 4294901760
  %2301 = vmatpush1.msra.mxu0 %v2300
  %2302 = vmatprep.subr.mxu0 0.0
  %v2303 = vand.u32 %v2266, 4294901760
  %2304 = vmatpush1.msra.mxu0 %v2303
  %2305 = vmatprep.subr.mxu0 0.0
  %v2306 = vand.u32 %v2267, 4294901760
  %2307 = vmatpush1.msra.mxu0 %v2306
  %2308 = vmatprep.subr.mxu0 0.0
  %v2309 = vand.u32 %v2268, 4294901760
  %2310 = vmatpush1.msra.mxu0 %v2309
  %2311 = vmatprep.subr.mxu0 0.0
  %v2312 = vand.u32 %v2269, 4294901760
  %2313 = vmatpush1.msra.mxu0 %v2312
  %2314 = vmatprep.subr.mxu0 0.0
  %v2315 = vand.u32 %v2270, 4294901760
  %2316 = vmatpush1.msra.mxu0 %v2315
  %2317 = vmatprep.subr.mxu0 0.0
  %v2318 = vand.u32 %v2271, 4294901760
  %2319 = vmatpush1.msra.mxu0 %v2318
  %2320 = vmatprep.subr.mxu0 0.0
  %2321 = vmatpush1.msra.mxu0 0.0
  %2322 = vmatprep.subr.mxu0 0.0
  %2323 = vmatpush1.msra.mxu0 0.0
  %2324 = vmatprep.subr.mxu0 0.0
  %2325 = vmatpush1.msra.mxu0 0.0
  %2326 = vmatprep.subr.mxu0 0.0
  %2327 = vmatpush1.msra.mxu0 0.0
  %2328 = vmatprep.subr.mxu0 0.0
  %2329 = vmatpush1.msra.mxu0 0.0
  %2330 = vmatprep.subr.mxu0 0.0
  %2331 = vmatpush1.msra.mxu0 0.0
  %2332 = vmatprep.subr.mxu0 0.0
  %2333 = vmatpush1.msra.mxu0 0.0
  %2334 = vmatprep.subr.mxu0 0.0
  %2335 = vmatpush1.msra.mxu0 0.0
  %2336 = vmatprep.subr.mxu0 0.0
  %2337 = vmatpush1.msra.mxu0 0.0
  %2338 = vmatprep.subr.mxu0 0.0
  %2339 = vmatpush1.msra.mxu0 0.0
  %2340 = vmatprep.subr.mxu0 0.0
  %2341 = vmatpush1.msra.mxu0 0.0
  %2342 = vmatprep.subr.mxu0 0.0
  %2343 = vmatpush1.msra.mxu0 0.0
  %2344 = vmatprep.subr.mxu0 0.0
  %2345 = vmatpush1.msra.mxu0 0.0
  %2346 = vmatprep.subr.mxu0 0.0
  %2347 = vmatpush1.msra.mxu0 0.0
  %2348 = vmatprep.subr.mxu0 0.0
  %2349 = vmatpush1.msra.mxu0 0.0
  %2350 = vmatprep.subr.mxu0 0.0
  %2351 = vmatpush1.msra.mxu0 0.0
  %2352 = vmatprep.mubr.f32.mxu0 0.0
  %v2353 = vand.u32 %v2250, 4294901760
  %v2354 = vsub.f32 %v2250, %v2353
  %v2355 = vand.u32 %v2354, 4294901760
  %v2356 = vsub.f32 %v2354, %v2355
  %v2357 = vand.u32 %v2356, 4294901760
  %2358 = vmatmul.mubr.f32.gmra.mrb[0].mxu0 %v2357
  %v2359 = vpop.f32.mrb[0].mxu0
  %v2360 = vadd.f32 0.0, %v2359
  %v2361 = vpop.f32.mrb[0].mxu0
  %2362 = vdwg.mxu0
  %2363 = vmatprep.subr.mxu0 0.0
  %v2364 = vand.u32 %v2256, 4294901760
  %v2365 = vsub.f32 %v2256, %v2364
  %v2366 = vand.u32 %v2365, 4294901760
  %v2367 = vsub.f32 %v2365, %v2366
  %v2368 = vand.u32 %v2367, 4294901760
  %2369 = vmatpush1.msra.mxu0 %v2368
  %2370 = vmatprep.subr.mxu0 0.0
  %v2371 = vand.u32 %v2257, 4294901760
  %v2372 = vsub.f32 %v2257, %v2371
  %v2373 = vand.u32 %v2372, 4294901760
  %v2374 = vsub.f32 %v2372, %v2373
  %v2375 = vand.u32 %v2374, 4294901760
  %2376 = vmatpush1.msra.mxu0 %v2375
  %2377 = vmatprep.subr.mxu0 0.0
  %v2378 = vand.u32 %v2258, 4294901760
  %v2379 = vsub.f32 %v2258, %v2378
  %v2380 = vand.u32 %v2379, 4294901760
  %v2381 = vsub.f32 %v2379, %v2380
  %v2382 = vand.u32 %v2381, 4294901760
  %2383 = vmatpush1.msra.mxu0 %v2382
  %2384 = vmatprep.subr.mxu0 0.0
  %v2385 = vand.u32 %v2259, 4294901760
  %v2386 = vsub.f32 %v2259, %v2385
  %v2387 = vand.u32 %v2386, 4294901760
  %v2388 = vsub.f32 %v2386, %v2387
  %v2389 = vand.u32 %v2388, 4294901760
  %2390 = vmatpush1.msra.mxu0 %v2389
  %2391 = vmatprep.subr.mxu0 0.0
  %v2392 = vand.u32 %v2260, 4294901760
  %v2393 = vsub.f32 %v2260, %v2392
  %v2394 = vand.u32 %v2393, 4294901760
  %v2395 = vsub.f32 %v2393, %v2394
  %v2396 = vand.u32 %v2395, 4294901760
  %2397 = vmatpush1.msra.mxu0 %v2396
  %2398 = vmatprep.subr.mxu0 0.0
  %v2399 = vand.u32 %v2261, 4294901760
  %v2400 = vsub.f32 %v2261, %v2399
  %v2401 = vand.u32 %v2400, 4294901760
  %v2402 = vsub.f32 %v2400, %v2401
  %v2403 = vand.u32 %v2402, 4294901760
  %2404 = vmatpush1.msra.mxu0 %v2403
  %2405 = vmatprep.subr.mxu0 0.0
  %v2406 = vand.u32 %v2262, 4294901760
  %v2407 = vsub.f32 %v2262, %v2406
  %v2408 = vand.u32 %v2407, 4294901760
  %v2409 = vsub.f32 %v2407, %v2408
  %v2410 = vand.u32 %v2409, 4294901760
  %2411 = vmatpush1.msra.mxu0 %v2410
  %2412 = vmatprep.subr.mxu0 0.0
  %v2413 = vand.u32 %v2263, 4294901760
  %v2414 = vsub.f32 %v2263, %v2413
  %v2415 = vand.u32 %v2414, 4294901760
  %v2416 = vsub.f32 %v2414, %v2415
  %v2417 = vand.u32 %v2416, 4294901760
  %2418 = vmatpush1.msra.mxu0 %v2417
  %2419 = vmatprep.subr.mxu0 0.0
  %v2420 = vand.u32 %v2264, 4294901760
  %v2421 = vsub.f32 %v2264, %v2420
  %v2422 = vand.u32 %v2421, 4294901760
  %v2423 = vsub.f32 %v2421, %v2422
  %v2424 = vand.u32 %v2423, 4294901760
  %2425 = vmatpush1.msra.mxu0 %v2424
  %2426 = vmatprep.subr.mxu0 0.0
  %v2427 = vand.u32 %v2265, 4294901760
  %v2428 = vsub.f32 %v2265, %v2427
  %v2429 = vand.u32 %v2428, 4294901760
  %v2430 = vsub.f32 %v2428, %v2429
  %v2431 = vand.u32 %v2430, 4294901760
  %2432 = vmatpush1.msra.mxu0 %v2431
  %2433 = vmatprep.subr.mxu0 0.0
  %v2434 = vand.u32 %v2266, 4294901760
  %v2435 = vsub.f32 %v2266, %v2434
  %v2436 = vand.u32 %v2435, 4294901760
  %v2437 = vsub.f32 %v2435, %v2436
  %v2438 = vand.u32 %v2437, 4294901760
  %2439 = vmatpush1.msra.mxu0 %v2438
  %2440 = vmatprep.subr.mxu0 0.0
  %v2441 = vand.u32 %v2267, 4294901760
  %v2442 = vsub.f32 %v2267, %v2441
  %v2443 = vand.u32 %v2442, 4294901760
  %v2444 = vsub.f32 %v2442, %v2443
  %v2445 = vand.u32 %v2444, 4294901760
  %2446 = vmatpush1.msra.mxu0 %v2445
  %2447 = vmatprep.subr.mxu0 0.0
  %v2448 = vand.u32 %v2268, 4294901760
  %v2449 = vsub.f32 %v2268, %v2448
  %v2450 = vand.u32 %v2449, 4294901760
  %v2451 = vsub.f32 %v2449, %v2450
  %v2452 = vand.u32 %v2451, 4294901760
  %2453 = vmatpush1.msra.mxu0 %v2452
  %2454 = vmatprep.subr.mxu0 0.0
  %v2455 = vand.u32 %v2269, 4294901760
  %v2456 = vsub.f32 %v2269, %v2455
  %v2457 = vand.u32 %v2456, 4294901760
  %v2458 = vsub.f32 %v2456, %v2457
  %v2459 = vand.u32 %v2458, 4294901760
  %2460 = vmatpush1.msra.mxu0 %v2459
  %2461 = vmatprep.subr.mxu0 0.0
  %v2462 = vand.u32 %v2270, 4294901760
  %v2463 = vsub.f32 %v2270, %v2462
  %v2464 = vand.u32 %v2463, 4294901760
  %v2465 = vsub.f32 %v2463, %v2464
  %v2466 = vand.u32 %v2465, 4294901760
  %2467 = vmatpush1.msra.mxu0 %v2466
  %2468 = vmatprep.subr.mxu0 0.0
  %v2469 = vand.u32 %v2271, 4294901760
  %v2470 = vsub.f32 %v2271, %v2469
  %v2471 = vand.u32 %v2470, 4294901760
  %v2472 = vsub.f32 %v2470, %v2471
  %v2473 = vand.u32 %v2472, 4294901760
  %2474 = vmatpush1.msra.mxu0 %v2473
  %2475 = vmatprep.subr.mxu0 0.0
  %2476 = vmatpush1.msra.mxu0 0.0
  %2477 = vmatprep.subr.mxu0 0.0
  %2478 = vmatpush1.msra.mxu0 0.0
  %2479 = vmatprep.subr.mxu0 0.0
  %2480 = vmatpush1.msra.mxu0 0.0
  %2481 = vmatprep.subr.mxu0 0.0
  %2482 = vmatpush1.msra.mxu0 0.0
  %2483 = vmatprep.subr.mxu0 0.0
  %2484 = vmatpush1.msra.mxu0 0.0
  %2485 = vmatprep.subr.mxu0 0.0
  %2486 = vmatpush1.msra.mxu0 0.0
  %2487 = vmatprep.subr.mxu0 0.0
  %2488 = vmatpush1.msra.mxu0 0.0
  %2489 = vmatprep.subr.mxu0 0.0
  %2490 = vmatpush1.msra.mxu0 0.0
  %2491 = vmatprep.subr.mxu0 0.0
  %2492 = vmatpush1.msra.mxu0 0.0
  %2493 = vmatprep.subr.mxu0 0.0
  %2494 = vmatpush1.msra.mxu0 0.0
  %2495 = vmatprep.subr.mxu0 0.0
  %2496 = vmatpush1.msra.mxu0 0.0
  %2497 = vmatprep.subr.mxu0 0.0
  %2498 = vmatpush1.msra.mxu0 0.0
  %2499 = vmatprep.subr.mxu0 0.0
  %2500 = vmatpush1.msra.mxu0 0.0
  %2501 = vmatprep.subr.mxu0 0.0
  %2502 = vmatpush1.msra.mxu0 0.0
  %2503 = vmatprep.subr.mxu0 0.0
  %2504 = vmatpush1.msra.mxu0 0.0
  %2505 = vmatprep.subr.mxu0 0.0
  %2506 = vmatpush1.msra.mxu0 0.0
  %2507 = vmatprep.mubr.f32.mxu0 0.0
  %v2508 = vand.u32 %v2250, 4294901760
  %2509 = vmatmul.mubr.f32.gmra.mrb[0].mxu0 %v2508
  %v2510 = vpop.f32.mrb[0].mxu0
  %v2511 = vadd.f32 %v2360, %v2510
  %v2512 = vpop.f32.mrb[0].mxu0
  %2513 = vdwg.mxu0
  %2514 = vmatprep.subr.mxu0 0.0
  %v2515 = vand.u32 %v2256, 4294901760
  %v2516 = vsub.f32 %v2256, %v2515
  %2517 = vmatpush1.msra.mxu0 %v2516
  %2518 = vmatprep.subr.mxu0 0.0
  %v2519 = vand.u32 %v2257, 4294901760
  %v2520 = vsub.f32 %v2257, %v2519
  %2521 = vmatpush1.msra.mxu0 %v2520
  %2522 = vmatprep.subr.mxu0 0.0
  %v2523 = vand.u32 %v2258, 4294901760
  %v2524 = vsub.f32 %v2258, %v2523
  %2525 = vmatpush1.msra.mxu0 %v2524
  %2526 = vmatprep.subr.mxu0 0.0
  %v2527 = vand.u32 %v2259, 4294901760
  %v2528 = vsub.f32 %v2259, %v2527
  %2529 = vmatpush1.msra.mxu0 %v2528
  %2530 = vmatprep.subr.mxu0 0.0
  %v2531 = vand.u32 %v2260, 4294901760
  %v2532 = vsub.f32 %v2260, %v2531
  %2533 = vmatpush1.msra.mxu0 %v2532
  %2534 = vmatprep.subr.mxu0 0.0
  %v2535 = vand.u32 %v2261, 4294901760
  %v2536 = vsub.f32 %v2261, %v2535
  %2537 = vmatpush1.msra.mxu0 %v2536
  %2538 = vmatprep.subr.mxu0 0.0
  %v2539 = vand.u32 %v2262, 4294901760
  %v2540 = vsub.f32 %v2262, %v2539
  %2541 = vmatpush1.msra.mxu0 %v2540
  %2542 = vmatprep.subr.mxu0 0.0
  %v2543 = vand.u32 %v2263, 4294901760
  %v2544 = vsub.f32 %v2263, %v2543
  %2545 = vmatpush1.msra.mxu0 %v2544
  %2546 = vmatprep.subr.mxu0 0.0
  %v2547 = vand.u32 %v2264, 4294901760
  %v2548 = vsub.f32 %v2264, %v2547
  %2549 = vmatpush1.msra.mxu0 %v2548
  %2550 = vmatprep.subr.mxu0 0.0
  %v2551 = vand.u32 %v2265, 4294901760
  %v2552 = vsub.f32 %v2265, %v2551
  %2553 = vmatpush1.msra.mxu0 %v2552
  %2554 = vmatprep.subr.mxu0 0.0
  %v2555 = vand.u32 %v2266, 4294901760
  %v2556 = vsub.f32 %v2266, %v2555
  %2557 = vmatpush1.msra.mxu0 %v2556
  %2558 = vmatprep.subr.mxu0 0.0
  %v2559 = vand.u32 %v2267, 4294901760
  %v2560 = vsub.f32 %v2267, %v2559
  %2561 = vmatpush1.msra.mxu0 %v2560
  %2562 = vmatprep.subr.mxu0 0.0
  %v2563 = vand.u32 %v2268, 4294901760
  %v2564 = vsub.f32 %v2268, %v2563
  %2565 = vmatpush1.msra.mxu0 %v2564
  %2566 = vmatprep.subr.mxu0 0.0
  %v2567 = vand.u32 %v2269, 4294901760
  %v2568 = vsub.f32 %v2269, %v2567
  %2569 = vmatpush1.msra.mxu0 %v2568
  %2570 = vmatprep.subr.mxu0 0.0
  %v2571 = vand.u32 %v2270, 4294901760
  %v2572 = vsub.f32 %v2270, %v2571
  %2573 = vmatpush1.msra.mxu0 %v2572
  %2574 = vmatprep.subr.mxu0 0.0
  %v2575 = vand.u32 %v2271, 4294901760
  %v2576 = vsub.f32 %v2271, %v2575
  %2577 = vmatpush1.msra.mxu0 %v2576
  %2578 = vmatprep.subr.mxu0 0.0
  %2579 = vmatpush1.msra.mxu0 0.0
  %2580 = vmatprep.subr.mxu0 0.0
  %2581 = vmatpush1.msra.mxu0 0.0
  %2582 = vmatprep.subr.mxu0 0.0
  %2583 = vmatpush1.msra.mxu0 0.0
  %2584 = vmatprep.subr.mxu0 0.0
  %2585 = vmatpush1.msra.mxu0 0.0
  %2586 = vmatprep.subr.mxu0 0.0
  %2587 = vmatpush1.msra.mxu0 0.0
  %2588 = vmatprep.subr.mxu0 0.0
  %2589 = vmatpush1.msra.mxu0 0.0
  %2590 = vmatprep.subr.mxu0 0.0
  %2591 = vmatpush1.msra.mxu0 0.0
  %2592 = vmatprep.subr.mxu0 0.0
  %2593 = vmatpush1.msra.mxu0 0.0
  %2594 = vmatprep.subr.mxu0 0.0
  %2595 = vmatpush1.msra.mxu0 0.0
  %2596 = vmatprep.subr.mxu0 0.0
  %2597 = vmatpush1.msra.mxu0 0.0
  %2598 = vmatprep.subr.mxu0 0.0
  %2599 = vmatpush1.msra.mxu0 0.0
  %2600 = vmatprep.subr.mxu0 0.0
  %2601 = vmatpush1.msra.mxu0 0.0
  %2602 = vmatprep.subr.mxu0 0.0
  %2603 = vmatpush1.msra.mxu0 0.0
  %2604 = vmatprep.subr.mxu0 0.0
  %2605 = vmatpush1.msra.mxu0 0.0
  %2606 = vmatprep.subr.mxu0 0.0
  %2607 = vmatpush1.msra.mxu0 0.0
  %2608 = vmatprep.subr.mxu0 0.0
  %2609 = vmatpush1.msra.mxu0 0.0
  %2610 = vmatprep.mubr.f32.mxu0 0.0
  %v2611 = vand.u32 %v2250, 4294901760
  %v2612 = vsub.f32 %v2250, %v2611
  %2613 = vmatmul.mubr.f32.gmra.mrb[0].mxu0 %v2612
  %v2614 = vpop.f32.mrb[0].mxu0
  %v2615 = vadd.f32 %v2511, %v2614
  %v2616 = vpop.f32.mrb[0].mxu0
  %2617 = vdwg.mxu0
  %2618 = vmatprep.subr.mxu0 0.0
  %v2619 = vand.u32 %v2256, 4294901760
  %2620 = vmatpush1.msra.mxu0 %v2619
  %2621 = vmatprep.subr.mxu0 0.0
  %v2622 = vand.u32 %v2257, 4294901760
  %2623 = vmatpush1.msra.mxu0 %v2622
  %2624 = vmatprep.subr.mxu0 0.0
  %v2625 = vand.u32 %v2258, 4294901760
  %2626 = vmatpush1.msra.mxu0 %v2625
  %2627 = vmatprep.subr.mxu0 0.0
  %v2628 = vand.u32 %v2259, 4294901760
  %2629 = vmatpush1.msra.mxu0 %v2628
  %2630 = vmatprep.subr.mxu0 0.0
  %v2631 = vand.u32 %v2260, 4294901760
  %2632 = vmatpush1.msra.mxu0 %v2631
  %2633 = vmatprep.subr.mxu0 0.0
  %v2634 = vand.u32 %v2261, 4294901760
  %2635 = vmatpush1.msra.mxu0 %v2634
  %2636 = vmatprep.subr.mxu0 0.0
  %v2637 = vand.u32 %v2262, 4294901760
  %2638 = vmatpush1.msra.mxu0 %v2637
  %2639 = vmatprep.subr.mxu0 0.0
  %v2640 = vand.u32 %v2263, 4294901760
  %2641 = vmatpush1.msra.mxu0 %v2640
  %2642 = vmatprep.subr.mxu0 0.0
  %v2643 = vand.u32 %v2264, 4294901760
  %2644 = vmatpush1.msra.mxu0 %v2643
  %2645 = vmatprep.subr.mxu0 0.0
  %v2646 = vand.u32 %v2265, 4294901760
  %2647 = vmatpush1.msra.mxu0 %v2646
  %2648 = vmatprep.subr.mxu0 0.0
  %v2649 = vand.u32 %v2266, 4294901760
  %2650 = vmatpush1.msra.mxu0 %v2649
  %2651 = vmatprep.subr.mxu0 0.0
  %v2652 = vand.u32 %v2267, 4294901760
  %2653 = vmatpush1.msra.mxu0 %v2652
  %2654 = vmatprep.subr.mxu0 0.0
  %v2655 = vand.u32 %v2268, 4294901760
  %2656 = vmatpush1.msra.mxu0 %v2655
  %2657 = vmatprep.subr.mxu0 0.0
  %v2658 = vand.u32 %v2269, 4294901760
  %2659 = vmatpush1.msra.mxu0 %v2658
  %2660 = vmatprep.subr.mxu0 0.0
  %v2661 = vand.u32 %v2270, 4294901760
  %2662 = vmatpush1.msra.mxu0 %v2661
  %2663 = vmatprep.subr.mxu0 0.0
  %v2664 = vand.u32 %v2271, 4294901760
  %2665 = vmatpush1.msra.mxu0 %v2664
  %2666 = vmatprep.subr.mxu0 0.0
  %2667 = vmatpush1.msra.mxu0 0.0
  %2668 = vmatprep.subr.mxu0 0.0
  %2669 = vmatpush1.msra.mxu0 0.0
  %2670 = vmatprep.subr.mxu0 0.0
  %2671 = vmatpush1.msra.mxu0 0.0
  %2672 = vmatprep.subr.mxu0 0.0
  %2673 = vmatpush1.msra.mxu0 0.0
  %2674 = vmatprep.subr.mxu0 0.0
  %2675 = vmatpush1.msra.mxu0 0.0
  %2676 = vmatprep.subr.mxu0 0.0
  %2677 = vmatpush1.msra.mxu0 0.0
  %2678 = vmatprep.subr.mxu0 0.0
  %2679 = vmatpush1.msra.mxu0 0.0
  %2680 = vmatprep.subr.mxu0 0.0
  %2681 = vmatpush1.msra.mxu0 0.0
  %2682 = vmatprep.subr.mxu0 0.0
  %2683 = vmatpush1.msra.mxu0 0.0
  %2684 = vmatprep.subr.mxu0 0.0
  %2685 = vmatpush1.msra.mxu0 0.0
  %2686 = vmatprep.subr.mxu0 0.0
  %2687 = vmatpush1.msra.mxu0 0.0
  %2688 = vmatprep.subr.mxu0 0.0
  %2689 = vmatpush1.msra.mxu0 0.0
  %2690 = vmatprep.subr.mxu0 0.0
  %2691 = vmatpush1.msra.mxu0 0.0
  %2692 = vmatprep.subr.mxu0 0.0
  %2693 = vmatpush1.msra.mxu0 0.0
  %2694 = vmatprep.subr.mxu0 0.0
  %2695 = vmatpush1.msra.mxu0 0.0
  %2696 = vmatprep.subr.mxu0 0.0
  %2697 = vmatpush1.msra.mxu0 0.0
  %2698 = vmatprep.mubr.f32.mxu0 0.0
  %v2699 = vand.u32 %v2250, 4294901760
  %v2700 = vsub.f32 %v2250, %v2699
  %v2701 = vand.u32 %v2700, 4294901760
  %2702 = vmatmul.mubr.f32.gmra.mrb[0].mxu0 %v2701
  %v2703 = vpop.f32.mrb[0].mxu0
  %v2704 = vadd.f32 %v2615, %v2703
  %v2705 = vpop.f32.mrb[0].mxu0
  %2706 = vdwg.mxu0
  %2707 = vmatprep.subr.mxu0 0.0
  %v2708 = vand.u32 %v2256, 4294901760
  %v2709 = vsub.f32 %v2256, %v2708
  %v2710 = vand.u32 %v2709, 4294901760
  %2711 = vmatpush1.msra.mxu0 %v2710
  %2712 = vmatprep.subr.mxu0 0.0
  %v2713 = vand.u32 %v2257, 4294901760
  %v2714 = vsub.f32 %v2257, %v2713
  %v2715 = vand.u32 %v2714, 4294901760
  %2716 = vmatpush1.msra.mxu0 %v2715
  %2717 = vmatprep.subr.mxu0 0.0
  %v2718 = vand.u32 %v2258, 4294901760
  %v2719 = vsub.f32 %v2258, %v2718
  %v2720 = vand.u32 %v2719, 4294901760
  %2721 = vmatpush1.msra.mxu0 %v2720
  %2722 = vmatprep.subr.mxu0 0.0
  %v2723 = vand.u32 %v2259, 4294901760
  %v2724 = vsub.f32 %v2259, %v2723
  %v2725 = vand.u32 %v2724, 4294901760
  %2726 = vmatpush1.msra.mxu0 %v2725
  %2727 = vmatprep.subr.mxu0 0.0
  %v2728 = vand.u32 %v2260, 4294901760
  %v2729 = vsub.f32 %v2260, %v2728
  %v2730 = vand.u32 %v2729, 4294901760
  %2731 = vmatpush1.msra.mxu0 %v2730
  %2732 = vmatprep.subr.mxu0 0.0
  %v2733 = vand.u32 %v2261, 4294901760
  %v2734 = vsub.f32 %v2261, %v2733
  %v2735 = vand.u32 %v2734, 4294901760
  %2736 = vmatpush1.msra.mxu0 %v2735
  %2737 = vmatprep.subr.mxu0 0.0
  %v2738 = vand.u32 %v2262, 4294901760
  %v2739 = vsub.f32 %v2262, %v2738
  %v2740 = vand.u32 %v2739, 4294901760
  %2741 = vmatpush1.msra.mxu0 %v2740
  %2742 = vmatprep.subr.mxu0 0.0
  %v2743 = vand.u32 %v2263, 4294901760
  %v2744 = vsub.f32 %v2263, %v2743
  %v2745 = vand.u32 %v2744, 4294901760
  %2746 = vmatpush1.msra.mxu0 %v2745
  %2747 = vmatprep.subr.mxu0 0.0
  %v2748 = vand.u32 %v2264, 4294901760
  %v2749 = vsub.f32 %v2264, %v2748
  %v2750 = vand.u32 %v2749, 4294901760
  %2751 = vmatpush1.msra.mxu0 %v2750
  %2752 = vmatprep.subr.mxu0 0.0
  %v2753 = vand.u32 %v2265, 4294901760
  %v2754 = vsub.f32 %v2265, %v2753
  %v2755 = vand.u32 %v2754, 4294901760
  %2756 = vmatpush1.msra.mxu0 %v2755
  %2757 = vmatprep.subr.mxu0 0.0
  %v2758 = vand.u32 %v2266, 4294901760
  %v2759 = vsub.f32 %v2266, %v2758
  %v2760 = vand.u32 %v2759, 4294901760
  %2761 = vmatpush1.msra.mxu0 %v2760
  %2762 = vmatprep.subr.mxu0 0.0
  %v2763 = vand.u32 %v2267, 4294901760
  %v2764 = vsub.f32 %v2267, %v2763
  %v2765 = vand.u32 %v2764, 4294901760
  %2766 = vmatpush1.msra.mxu0 %v2765
  %2767 = vmatprep.subr.mxu0 0.0
  %v2768 = vand.u32 %v2268, 4294901760
  %v2769 = vsub.f32 %v2268, %v2768
  %v2770 = vand.u32 %v2769, 4294901760
  %2771 = vmatpush1.msra.mxu0 %v2770
  %2772 = vmatprep.subr.mxu0 0.0
  %v2773 = vand.u32 %v2269, 4294901760
  %v2774 = vsub.f32 %v2269, %v2773
  %v2775 = vand.u32 %v2774, 4294901760
  %2776 = vmatpush1.msra.mxu0 %v2775
  %2777 = vmatprep.subr.mxu0 0.0
  %v2778 = vand.u32 %v2270, 4294901760
  %v2779 = vsub.f32 %v2270, %v2778
  %v2780 = vand.u32 %v2779, 4294901760
  %2781 = vmatpush1.msra.mxu0 %v2780
  %2782 = vmatprep.subr.mxu0 0.0
  %v2783 = vand.u32 %v2271, 4294901760
  %v2784 = vsub.f32 %v2271, %v2783
  %v2785 = vand.u32 %v2784, 4294901760
  %2786 = vmatpush1.msra.mxu0 %v2785
  %2787 = vmatprep.subr.mxu0 0.0
  %2788 = vmatpush1.msra.mxu0 0.0
  %2789 = vmatprep.subr.mxu0 0.0
  %2790 = vmatpush1.msra.mxu0 0.0
  %2791 = vmatprep.subr.mxu0 0.0
  %2792 = vmatpush1.msra.mxu0 0.0
  %2793 = vmatprep.subr.mxu0 0.0
  %2794 = vmatpush1.msra.mxu0 0.0
  %2795 = vmatprep.subr.mxu0 0.0
  %2796 = vmatpush1.msra.mxu0 0.0
  %2797 = vmatprep.subr.mxu0 0.0
  %2798 = vmatpush1.msra.mxu0 0.0
  %2799 = vmatprep.subr.mxu0 0.0
  %2800 = vmatpush1.msra.mxu0 0.0
  %2801 = vmatprep.subr.mxu0 0.0
  %2802 = vmatpush1.msra.mxu0 0.0
  %2803 = vmatprep.subr.mxu0 0.0
  %2804 = vmatpush1.msra.mxu0 0.0
  %2805 = vmatprep.subr.mxu0 0.0
  %2806 = vmatpush1.msra.mxu0 0.0
  %2807 = vmatprep.subr.mxu0 0.0
  %2808 = vmatpush1.msra.mxu0 0.0
  %2809 = vmatprep.subr.mxu0 0.0
  %2810 = vmatpush1.msra.mxu0 0.0
  %2811 = vmatprep.subr.mxu0 0.0
  %2812 = vmatpush1.msra.mxu0 0.0
  %2813 = vmatprep.subr.mxu0 0.0
  %2814 = vmatpush1.msra.mxu0 0.0
  %2815 = vmatprep.subr.mxu0 0.0
  %2816 = vmatpush1.msra.mxu0 0.0
  %2817 = vmatprep.subr.mxu0 0.0
  %2818 = vmatpush1.msra.mxu0 0.0
  %2819 = vmatprep.mubr.f32.mxu0 0.0
  %v2820 = vand.u32 %v2250, 4294901760
  %2821 = vmatmul.mubr.f32.gmra.mrb[0].mxu0 %v2820
  %v2822 = vpop.f32.mrb[0].mxu0
  %v2823 = vadd.f32 %v2704, %v2822
  %v2824 = vpop.f32.mrb[0].mxu0
  %2825 = vdwg.mxu0
  %2826 = vmatprep.subr.mxu0 0.0
  %v2827 = vand.u32 %v2256, 4294901760
  %2828 = vmatpush1.msra.mxu0 %v2827
  %2829 = vmatprep.subr.mxu0 0.0
  %v2830 = vand.u32 %v2257, 4294901760
  %2831 = vmatpush1.msra.mxu0 %v2830
  %2832 = vmatprep.subr.mxu0 0.0
  %v2833 = vand.u32 %v2258, 4294901760
  %2834 = vmatpush1.msra.mxu0 %v2833
  %2835 = vmatprep.subr.mxu0 0.0
  %v2836 = vand.u32 %v2259, 4294901760
  %2837 = vmatpush1.msra.mxu0 %v2836
  %2838 = vmatprep.subr.mxu0 0.0
  %v2839 = vand.u32 %v2260, 4294901760
  %2840 = vmatpush1.msra.mxu0 %v2839
  %2841 = vmatprep.subr.mxu0 0.0
  %v2842 = vand.u32 %v2261, 4294901760
  %2843 = vmatpush1.msra.mxu0 %v2842
  %2844 = vmatprep.subr.mxu0 0.0
  %v2845 = vand.u32 %v2262, 4294901760
  %2846 = vmatpush1.msra.mxu0 %v2845
  %2847 = vmatprep.subr.mxu0 0.0
  %v2848 = vand.u32 %v2263, 4294901760
  %2849 = vmatpush1.msra.mxu0 %v2848
  %2850 = vmatprep.subr.mxu0 0.0
  %v2851 = vand.u32 %v2264, 4294901760
  %2852 = vmatpush1.msra.mxu0 %v2851
  %2853 = vmatprep.subr.mxu0 0.0
  %v2854 = vand.u32 %v2265, 4294901760
  %2855 = vmatpush1.msra.mxu0 %v2854
  %2856 = vmatprep.subr.mxu0 0.0
  %v2857 = vand.u32 %v2266, 4294901760
  %2858 = vmatpush1.msra.mxu0 %v2857
  %2859 = vmatprep.subr.mxu0 0.0
  %v2860 = vand.u32 %v2267, 4294901760
  %2861 = vmatpush1.msra.mxu0 %v2860
  %2862 = vmatprep.subr.mxu0 0.0
  %v2863 = vand.u32 %v2268, 4294901760
  %2864 = vmatpush1.msra.mxu0 %v2863
  %2865 = vmatprep.subr.mxu0 0.0
  %v2866 = vand.u32 %v2269, 4294901760
  %2867 = vmatpush1.msra.mxu0 %v2866
  %2868 = vmatprep.subr.mxu0 0.0
  %v2869 = vand.u32 %v2270, 4294901760
  %2870 = vmatpush1.msra.mxu0 %v2869
  %2871 = vmatprep.subr.mxu0 0.0
  %v2872 = vand.u32 %v2271, 4294901760
  %2873 = vmatpush1.msra.mxu0 %v2872
  %2874 = vmatprep.subr.mxu0 0.0
  %2875 = vmatpush1.msra.mxu0 0.0
  %2876 = vmatprep.subr.mxu0 0.0
  %2877 = vmatpush1.msra.mxu0 0.0
  %2878 = vmatprep.subr.mxu0 0.0
  %2879 = vmatpush1.msra.mxu0 0.0
  %2880 = vmatprep.subr.mxu0 0.0
  %2881 = vmatpush1.msra.mxu0 0.0
  %2882 = vmatprep.subr.mxu0 0.0
  %2883 = vmatpush1.msra.mxu0 0.0
  %2884 = vmatprep.subr.mxu0 0.0
  %2885 = vmatpush1.msra.mxu0 0.0
  %2886 = vmatprep.subr.mxu0 0.0
  %2887 = vmatpush1.msra.mxu0 0.0
  %2888 = vmatprep.subr.mxu0 0.0
  %2889 = vmatpush1.msra.mxu0 0.0
  %2890 = vmatprep.subr.mxu0 0.0
  %2891 = vmatpush1.msra.mxu0 0.0
  %2892 = vmatprep.subr.mxu0 0.0
  %2893 = vmatpush1.msra.mxu0 0.0
  %2894 = vmatprep.subr.mxu0 0.0
  %2895 = vmatpush1.msra.mxu0 0.0
  %2896 = vmatprep.subr.mxu0 0.0
  %2897 = vmatpush1.msra.mxu0 0.0
  %2898 = vmatprep.subr.mxu0 0.0
  %2899 = vmatpush1.msra.mxu0 0.0
  %2900 = vmatprep.subr.mxu0 0.0
  %2901 = vmatpush1.msra.mxu0 0.0
  %2902 = vmatprep.subr.mxu0 0.0
  %2903 = vmatpush1.msra.mxu0 0.0
  %2904 = vmatprep.subr.mxu0 0.0
  %2905 = vmatpush1.msra.mxu0 0.0
  %2906 = vmatprep.mubr.f32.mxu0 0.0
  %v2907 = vand.u32 %v2250, 4294901760
  %2908 = vmatmul.mubr.f32.gmra.mrb[0].mxu0 %v2907
  %v2909 = vpop.f32.mrb[0].mxu0
  %v2910 = vadd.f32 %v2823, %v2909
  %v2911 = vpop.f32.mrb[0].mxu0
  %2912 = vdwg.mxu0
  %v2913 = vrot.slane %v2910, 4
  %v2914 = vadd.f32 %v2910, %v2913
  %v2915 = vrot.slane %v2914, 2
  %v2916 = vadd.f32 %v2914, %v2915
  %v2917 = vrot.slane %v2916, 1
  %v2918 = vadd.f32 %v2916, %v2917
  %v2919 = vrcp.pop 8.0
  %v2920 = vmul.f32 %v2918, %v2919
  %v2921 = vmul.f32 %v2250, %v2250
  %2922 = vmatprep.subr.mxu0 0.0
  %v2923 = vand.u32 %v2256, 4294901760
  %2924 = vmatpush1.msra.mxu0 %v2923
  %2925 = vmatprep.subr.mxu0 0.0
  %v2926 = vand.u32 %v2257, 4294901760
  %2927 = vmatpush1.msra.mxu0 %v2926
  %2928 = vmatprep.subr.mxu0 0.0
  %v2929 = vand.u32 %v2258, 4294901760
  %2930 = vmatpush1.msra.mxu0 %v2929
  %2931 = vmatprep.subr.mxu0 0.0
  %v2932 = vand.u32 %v2259, 4294901760
  %2933 = vmatpush1.msra.mxu0 %v2932
  %2934 = vmatprep.subr.mxu0 0.0
  %v2935 = vand.u32 %v2260, 4294901760
  %2936 = vmatpush1.msra.mxu0 %v2935
  %2937 = vmatprep.subr.mxu0 0.0
  %v2938 = vand.u32 %v2261, 4294901760
  %2939 = vmatpush1.msra.mxu0 %v2938
  %2940 = vmatprep.subr.mxu0 0.0
  %v2941 = vand.u32 %v2262, 4294901760
  %2942 = vmatpush1.msra.mxu0 %v2941
  %2943 = vmatprep.subr.mxu0 0.0
  %v2944 = vand.u32 %v2263, 4294901760
  %2945 = vmatpush1.msra.mxu0 %v2944
  %2946 = vmatprep.subr.mxu0 0.0
  %v2947 = vand.u32 %v2264, 4294901760
  %2948 = vmatpush1.msra.mxu0 %v2947
  %2949 = vmatprep.subr.mxu0 0.0
  %v2950 = vand.u32 %v2265, 4294901760
  %2951 = vmatpush1.msra.mxu0 %v2950
  %2952 = vmatprep.subr.mxu0 0.0
  %v2953 = vand.u32 %v2266, 4294901760
  %2954 = vmatpush1.msra.mxu0 %v2953
  %2955 = vmatprep.subr.mxu0 0.0
  %v2956 = vand.u32 %v2267, 4294901760
  %2957 = vmatpush1.msra.mxu0 %v2956
  %2958 = vmatprep.subr.mxu0 0.0
  %v2959 = vand.u32 %v2268, 4294901760
  %2960 = vmatpush1.msra.mxu0 %v2959
  %2961 = vmatprep.subr.mxu0 0.0
  %v2962 = vand.u32 %v2269, 4294901760
  %2963 = vmatpush1.msra.mxu0 %v2962
  %2964 = vmatprep.subr.mxu0 0.0
  %v2965 = vand.u32 %v2270, 4294901760
  %2966 = vmatpush1.msra.mxu0 %v2965
  %2967 = vmatprep.subr.mxu0 0.0
  %v2968 = vand.u32 %v2271, 4294901760
  %2969 = vmatpush1.msra.mxu0 %v2968
  %2970 = vmatprep.subr.mxu0 0.0
  %2971 = vmatpush1.msra.mxu0 0.0
  %2972 = vmatprep.subr.mxu0 0.0
  %2973 = vmatpush1.msra.mxu0 0.0
  %2974 = vmatprep.subr.mxu0 0.0
  %2975 = vmatpush1.msra.mxu0 0.0
  %2976 = vmatprep.subr.mxu0 0.0
  %2977 = vmatpush1.msra.mxu0 0.0
  %2978 = vmatprep.subr.mxu0 0.0
  %2979 = vmatpush1.msra.mxu0 0.0
  %2980 = vmatprep.subr.mxu0 0.0
  %2981 = vmatpush1.msra.mxu0 0.0
  %2982 = vmatprep.subr.mxu0 0.0
  %2983 = vmatpush1.msra.mxu0 0.0
  %2984 = vmatprep.subr.mxu0 0.0
  %2985 = vmatpush1.msra.mxu0 0.0
  %2986 = vmatprep.subr.mxu0 0.0
  %2987 = vmatpush1.msra.mxu0 0.0
  %2988 = vmatprep.subr.mxu0 0.0
  %2989 = vmatpush1.msra.mxu0 0.0
  %2990 = vmatprep.subr.mxu0 0.0
  %2991 = vmatpush1.msra.mxu0 0.0
  %2992 = vmatprep.subr.mxu0 0.0
  %2993 = vmatpush1.msra.mxu0 0.0
  %2994 = vmatprep.subr.mxu0 0.0
  %2995 = vmatpush1.msra.mxu0 0.0
  %2996 = vmatprep.subr.mxu0 0.0
  %2997 = vmatpush1.msra.mxu0 0.0
  %2998 = vmatprep.subr.mxu0 0.0
  %2999 = vmatpush1.msra.mxu0 0.0
  %3000 = vmatprep.subr.mxu0 0.0
  %3001 = vmatpush1.msra.mxu0 0.0
  %3002 = vmatprep.mubr.f32.mxu0 0.0
  %v3003 = vand.u32 %v2921, 4294901760
  %v3004 = vsub.f32 %v2921, %v3003
  %v3005 = vand.u32 %v3004, 4294901760
  %v3006 = vsub.f32 %v3004, %v3005
  %v3007 = vand.u32 %v3006, 4294901760
  %3008 = vmatmul.mubr.f32.gmra.mrb[0].mxu0 %v3007
  %v3009 = vpop.f32.mrb[0].mxu0
  %v3010 = vadd.f32 0.0, %v3009
  %v3011 = vpop.f32.mrb[0].mxu0
  %3012 = vdwg.mxu0
  %3013 = vmatprep.subr.mxu0 0.0
  %v3014 = vand.u32 %v2256, 4294901760
  %v3015 = vsub.f32 %v2256, %v3014
  %v3016 = vand.u32 %v3015, 4294901760
  %v3017 = vsub.f32 %v3015, %v3016
  %v3018 = vand.u32 %v3017, 4294901760
  %3019 = vmatpush1.msra.mxu0 %v3018
  %3020 = vmatprep.subr.mxu0 0.0
  %v3021 = vand.u32 %v2257, 4294901760
  %v3022 = vsub.f32 %v2257, %v3021
  %v3023 = vand.u32 %v3022, 4294901760
  %v3024 = vsub.f32 %v3022, %v3023
  %v3025 = vand.u32 %v3024, 4294901760
  %3026 = vmatpush1.msra.mxu0 %v3025
  %3027 = vmatprep.subr.mxu0 0.0
  %v3028 = vand.u32 %v2258, 4294901760
  %v3029 = vsub.f32 %v2258, %v3028
  %v3030 = vand.u32 %v3029, 4294901760
  %v3031 = vsub.f32 %v3029, %v3030
  %v3032 = vand.u32 %v3031, 4294901760
  %3033 = vmatpush1.msra.mxu0 %v3032
  %3034 = vmatprep.subr.mxu0 0.0
  %v3035 = vand.u32 %v2259, 4294901760
  %v3036 = vsub.f32 %v2259, %v3035
  %v3037 = vand.u32 %v3036, 4294901760
  %v3038 = vsub.f32 %v3036, %v3037
  %v3039 = vand.u32 %v3038, 4294901760
  %3040 = vmatpush1.msra.mxu0 %v3039
  %3041 = vmatprep.subr.mxu0 0.0
  %v3042 = vand.u32 %v2260, 4294901760
  %v3043 = vsub.f32 %v2260, %v3042
  %v3044 = vand.u32 %v3043, 4294901760
  %v3045 = vsub.f32 %v3043, %v3044
  %v3046 = vand.u32 %v3045, 4294901760
  %3047 = vmatpush1.msra.mxu0 %v3046
  %3048 = vmatprep.subr.mxu0 0.0
  %v3049 = vand.u32 %v2261, 4294901760
  %v3050 = vsub.f32 %v2261, %v3049
  %v3051 = vand.u32 %v3050, 4294901760
  %v3052 = vsub.f32 %v3050, %v3051
  %v3053 = vand.u32 %v3052, 4294901760
  %3054 = vmatpush1.msra.mxu0 %v3053
  %3055 = vmatprep.subr.mxu0 0.0
  %v3056 = vand.u32 %v2262, 4294901760
  %v3057 = vsub.f32 %v2262, %v3056
  %v3058 = vand.u32 %v3057, 4294901760
  %v3059 = vsub.f32 %v3057, %v3058
  %v3060 = vand.u32 %v3059, 4294901760
  %3061 = vmatpush1.msra.mxu0 %v3060
  %3062 = vmatprep.subr.mxu0 0.0
  %v3063 = vand.u32 %v2263, 4294901760
  %v3064 = vsub.f32 %v2263, %v3063
  %v3065 = vand.u32 %v3064, 4294901760
  %v3066 = vsub.f32 %v3064, %v3065
  %v3067 = vand.u32 %v3066, 4294901760
  %3068 = vmatpush1.msra.mxu0 %v3067
  %3069 = vmatprep.subr.mxu0 0.0
  %v3070 = vand.u32 %v2264, 4294901760
  %v3071 = vsub.f32 %v2264, %v3070
  %v3072 = vand.u32 %v3071, 4294901760
  %v3073 = vsub.f32 %v3071, %v3072
  %v3074 = vand.u32 %v3073, 4294901760
  %3075 = vmatpush1.msra.mxu0 %v3074
  %3076 = vmatprep.subr.mxu0 0.0
  %v3077 = vand.u32 %v2265, 4294901760
  %v3078 = vsub.f32 %v2265, %v3077
  %v3079 = vand.u32 %v3078, 4294901760
  %v3080 = vsub.f32 %v3078, %v3079
  %v3081 = vand.u32 %v3080, 4294901760
  %3082 = vmatpush1.msra.mxu0 %v3081
  %3083 = vmatprep.subr.mxu0 0.0
  %v3084 = vand.u32 %v2266, 4294901760
  %v3085 = vsub.f32 %v2266, %v3084
  %v3086 = vand.u32 %v3085, 4294901760
  %v3087 = vsub.f32 %v3085, %v3086
  %v3088 = vand.u32 %v3087, 4294901760
  %3089 = vmatpush1.msra.mxu0 %v3088
  %3090 = vmatprep.subr.mxu0 0.0
  %v3091 = vand.u32 %v2267, 4294901760
  %v3092 = vsub.f32 %v2267, %v3091
  %v3093 = vand.u32 %v3092, 4294901760
  %v3094 = vsub.f32 %v3092, %v3093
  %v3095 = vand.u32 %v3094, 4294901760
  %3096 = vmatpush1.msra.mxu0 %v3095
  %3097 = vmatprep.subr.mxu0 0.0
  %v3098 = vand.u32 %v2268, 4294901760
  %v3099 = vsub.f32 %v2268, %v3098
  %v3100 = vand.u32 %v3099, 4294901760
  %v3101 = vsub.f32 %v3099, %v3100
  %v3102 = vand.u32 %v3101, 4294901760
  %3103 = vmatpush1.msra.mxu0 %v3102
  %3104 = vmatprep.subr.mxu0 0.0
  %v3105 = vand.u32 %v2269, 4294901760
  %v3106 = vsub.f32 %v2269, %v3105
  %v3107 = vand.u32 %v3106, 4294901760
  %v3108 = vsub.f32 %v3106, %v3107
  %v3109 = vand.u32 %v3108, 4294901760
  %3110 = vmatpush1.msra.mxu0 %v3109
  %3111 = vmatprep.subr.mxu0 0.0
  %v3112 = vand.u32 %v2270, 4294901760
  %v3113 = vsub.f32 %v2270, %v3112
  %v3114 = vand.u32 %v3113, 4294901760
  %v3115 = vsub.f32 %v3113, %v3114
  %v3116 = vand.u32 %v3115, 4294901760
  %3117 = vmatpush1.msra.mxu0 %v3116
  %3118 = vmatprep.subr.mxu0 0.0
  %v3119 = vand.u32 %v2271, 4294901760
  %v3120 = vsub.f32 %v2271, %v3119
  %v3121 = vand.u32 %v3120, 4294901760
  %v3122 = vsub.f32 %v3120, %v3121
  %v3123 = vand.u32 %v3122, 4294901760
  %3124 = vmatpush1.msra.mxu0 %v3123
  %3125 = vmatprep.subr.mxu0 0.0
  %3126 = vmatpush1.msra.mxu0 0.0
  %3127 = vmatprep.subr.mxu0 0.0
  %3128 = vmatpush1.msra.mxu0 0.0
  %3129 = vmatprep.subr.mxu0 0.0
  %3130 = vmatpush1.msra.mxu0 0.0
  %3131 = vmatprep.subr.mxu0 0.0
  %3132 = vmatpush1.msra.mxu0 0.0
  %3133 = vmatprep.subr.mxu0 0.0
  %3134 = vmatpush1.msra.mxu0 0.0
  %3135 = vmatprep.subr.mxu0 0.0
  %3136 = vmatpush1.msra.mxu0 0.0
  %3137 = vmatprep.subr.mxu0 0.0
  %3138 = vmatpush1.msra.mxu0 0.0
  %3139 = vmatprep.subr.mxu0 0.0
  %3140 = vmatpush1.msra.mxu0 0.0
  %3141 = vmatprep.subr.mxu0 0.0
  %3142 = vmatpush1.msra.mxu0 0.0
  %3143 = vmatprep.subr.mxu0 0.0
  %3144 = vmatpush1.msra.mxu0 0.0
  %3145 = vmatprep.subr.mxu0 0.0
  %3146 = vmatpush1.msra.mxu0 0.0
  %3147 = vmatprep.subr.mxu0 0.0
  %3148 = vmatpush1.msra.mxu0 0.0
  %3149 = vmatprep.subr.mxu0 0.0
  %3150 = vmatpush1.msra.mxu0 0.0
  %3151 = vmatprep.subr.mxu0 0.0
  %3152 = vmatpush1.msra.mxu0 0.0
  %3153 = vmatprep.subr.mxu0 0.0
  %3154 = vmatpush1.msra.mxu0 0.0
  %3155 = vmatprep.subr.mxu0 0.0
  %3156 = vmatpush1.msra.mxu0 0.0
  %3157 = vmatprep.mubr.f32.mxu0 0.0
  %v3158 = vand.u32 %v2921, 4294901760
  %3159 = vmatmul.mubr.f32.gmra.mrb[0].mxu0 %v3158
  %v3160 = vpop.f32.mrb[0].mxu0
  %v3161 = vadd.f32 %v3010, %v3160
  %v3162 = vpop.f32.mrb[0].mxu0
  %3163 = vdwg.mxu0
  %3164 = vmatprep.subr.mxu0 0.0
  %v3165 = vand.u32 %v2256, 4294901760
  %v3166 = vsub.f32 %v2256, %v3165
  %3167 = vmatpush1.msra.mxu0 %v3166
  %3168 = vmatprep.subr.mxu0 0.0
  %v3169 = vand.u32 %v2257, 4294901760
  %v3170 = vsub.f32 %v2257, %v3169
  %3171 = vmatpush1.msra.mxu0 %v3170
  %3172 = vmatprep.subr.mxu0 0.0
  %v3173 = vand.u32 %v2258, 4294901760
  %v3174 = vsub.f32 %v2258, %v3173
  %3175 = vmatpush1.msra.mxu0 %v3174
  %3176 = vmatprep.subr.mxu0 0.0
  %v3177 = vand.u32 %v2259, 4294901760
  %v3178 = vsub.f32 %v2259, %v3177
  %3179 = vmatpush1.msra.mxu0 %v3178
  %3180 = vmatprep.subr.mxu0 0.0
  %v3181 = vand.u32 %v2260, 4294901760
  %v3182 = vsub.f32 %v2260, %v3181
  %3183 = vmatpush1.msra.mxu0 %v3182
  %3184 = vmatprep.subr.mxu0 0.0
  %v3185 = vand.u32 %v2261, 4294901760
  %v3186 = vsub.f32 %v2261, %v3185
  %3187 = vmatpush1.msra.mxu0 %v3186
  %3188 = vmatprep.subr.mxu0 0.0
  %v3189 = vand.u32 %v2262, 4294901760
  %v3190 = vsub.f32 %v2262, %v3189
  %3191 = vmatpush1.msra.mxu0 %v3190
  %3192 = vmatprep.subr.mxu0 0.0
  %v3193 = vand.u32 %v2263, 4294901760
  %v3194 = vsub.f32 %v2263, %v3193
  %3195 = vmatpush1.msra.mxu0 %v3194
  %3196 = vmatprep.subr.mxu0 0.0
  %v3197 = vand.u32 %v2264, 4294901760
  %v3198 = vsub.f32 %v2264, %v3197
  %3199 = vmatpush1.msra.mxu0 %v3198
  %3200 = vmatprep.subr.mxu0 0.0
  %v3201 = vand.u32 %v2265, 4294901760
  %v3202 = vsub.f32 %v2265, %v3201
  %3203 = vmatpush1.msra.mxu0 %v3202
  %3204 = vmatprep.subr.mxu0 0.0
  %v3205 = vand.u32 %v2266, 4294901760
  %v3206 = vsub.f32 %v2266, %v3205
  %3207 = vmatpush1.msra.mxu0 %v3206
  %3208 = vmatprep.subr.mxu0 0.0
  %v3209 = vand.u32 %v2267, 4294901760
  %v3210 = vsub.f32 %v2267, %v3209
  %3211 = vmatpush1.msra.mxu0 %v3210
  %3212 = vmatprep.subr.mxu0 0.0
  %v3213 = vand.u32 %v2268, 4294901760
  %v3214 = vsub.f32 %v2268, %v3213
  %3215 = vmatpush1.msra.mxu0 %v3214
  %3216 = vmatprep.subr.mxu0 0.0
  %v3217 = vand.u32 %v2269, 4294901760
  %v3218 = vsub.f32 %v2269, %v3217
  %3219 = vmatpush1.msra.mxu0 %v3218
  %3220 = vmatprep.subr.mxu0 0.0
  %v3221 = vand.u32 %v2270, 4294901760
  %v3222 = vsub.f32 %v2270, %v3221
  %3223 = vmatpush1.msra.mxu0 %v3222
  %3224 = vmatprep.subr.mxu0 0.0
  %v3225 = vand.u32 %v2271, 4294901760
  %v3226 = vsub.f32 %v2271, %v3225
  %3227 = vmatpush1.msra.mxu0 %v3226
  %3228 = vmatprep.subr.mxu0 0.0
  %3229 = vmatpush1.msra.mxu0 0.0
  %3230 = vmatprep.subr.mxu0 0.0
  %3231 = vmatpush1.msra.mxu0 0.0
  %3232 = vmatprep.subr.mxu0 0.0
  %3233 = vmatpush1.msra.mxu0 0.0
  %3234 = vmatprep.subr.mxu0 0.0
  %3235 = vmatpush1.msra.mxu0 0.0
  %3236 = vmatprep.subr.mxu0 0.0
  %3237 = vmatpush1.msra.mxu0 0.0
  %3238 = vmatprep.subr.mxu0 0.0
  %3239 = vmatpush1.msra.mxu0 0.0
  %3240 = vmatprep.subr.mxu0 0.0
  %3241 = vmatpush1.msra.mxu0 0.0
  %3242 = vmatprep.subr.mxu0 0.0
  %3243 = vmatpush1.msra.mxu0 0.0
  %3244 = vmatprep.subr.mxu0 0.0
  %3245 = vmatpush1.msra.mxu0 0.0
  %3246 = vmatprep.subr.mxu0 0.0
  %3247 = vmatpush1.msra.mxu0 0.0
  %3248 = vmatprep.subr.mxu0 0.0
  %3249 = vmatpush1.msra.mxu0 0.0
  %3250 = vmatprep.subr.mxu0 0.0
  %3251 = vmatpush1.msra.mxu0 0.0
  %3252 = vmatprep.subr.mxu0 0.0
  %3253 = vmatpush1.msra.mxu0 0.0
  %3254 = vmatprep.subr.mxu0 0.0
  %3255 = vmatpush1.msra.mxu0 0.0
  %3256 = vmatprep.subr.mxu0 0.0
  %3257 = vmatpush1.msra.mxu0 0.0
  %3258 = vmatprep.subr.mxu0 0.0
  %3259 = vmatpush1.msra.mxu0 0.0
  %3260 = vmatprep.mubr.f32.mxu0 0.0
  %v3261 = vand.u32 %v2921, 4294901760
  %v3262 = vsub.f32 %v2921, %v3261
  %3263 = vmatmul.mubr.f32.gmra.mrb[0].mxu0 %v3262
  %v3264 = vpop.f32.mrb[0].mxu0
  %v3265 = vadd.f32 %v3161, %v3264
  %v3266 = vpop.f32.mrb[0].mxu0
  %3267 = vdwg.mxu0
  %3268 = vmatprep.subr.mxu0 0.0
  %v3269 = vand.u32 %v2256, 4294901760
  %3270 = vmatpush1.msra.mxu0 %v3269
  %3271 = vmatprep.subr.mxu0 0.0
  %v3272 = vand.u32 %v2257, 4294901760
  %3273 = vmatpush1.msra.mxu0 %v3272
  %3274 = vmatprep.subr.mxu0 0.0
  %v3275 = vand.u32 %v2258, 4294901760
  %3276 = vmatpush1.msra.mxu0 %v3275
  %3277 = vmatprep.subr.mxu0 0.0
  %v3278 = vand.u32 %v2259, 4294901760
  %3279 = vmatpush1.msra.mxu0 %v3278
  %3280 = vmatprep.subr.mxu0 0.0
  %v3281 = vand.u32 %v2260, 4294901760
  %3282 = vmatpush1.msra.mxu0 %v3281
  %3283 = vmatprep.subr.mxu0 0.0
  %v3284 = vand.u32 %v2261, 4294901760
  %3285 = vmatpush1.msra.mxu0 %v3284
  %3286 = vmatprep.subr.mxu0 0.0
  %v3287 = vand.u32 %v2262, 4294901760
  %3288 = vmatpush1.msra.mxu0 %v3287
  %3289 = vmatprep.subr.mxu0 0.0
  %v3290 = vand.u32 %v2263, 4294901760
  %3291 = vmatpush1.msra.mxu0 %v3290
  %3292 = vmatprep.subr.mxu0 0.0
  %v3293 = vand.u32 %v2264, 4294901760
  %3294 = vmatpush1.msra.mxu0 %v3293
  %3295 = vmatprep.subr.mxu0 0.0
  %v3296 = vand.u32 %v2265, 4294901760
  %3297 = vmatpush1.msra.mxu0 %v3296
  %3298 = vmatprep.subr.mxu0 0.0
  %v3299 = vand.u32 %v2266, 4294901760
  %3300 = vmatpush1.msra.mxu0 %v3299
  %3301 = vmatprep.subr.mxu0 0.0
  %v3302 = vand.u32 %v2267, 4294901760
  %3303 = vmatpush1.msra.mxu0 %v3302
  %3304 = vmatprep.subr.mxu0 0.0
  %v3305 = vand.u32 %v2268, 4294901760
  %3306 = vmatpush1.msra.mxu0 %v3305
  %3307 = vmatprep.subr.mxu0 0.0
  %v3308 = vand.u32 %v2269, 4294901760
  %3309 = vmatpush1.msra.mxu0 %v3308
  %3310 = vmatprep.subr.mxu0 0.0
  %v3311 = vand.u32 %v2270, 4294901760
  %3312 = vmatpush1.msra.mxu0 %v3311
  %3313 = vmatprep.subr.mxu0 0.0
  %v3314 = vand.u32 %v2271, 4294901760
  %3315 = vmatpush1.msra.mxu0 %v3314
  %3316 = vmatprep.subr.mxu0 0.0
  %3317 = vmatpush1.msra.mxu0 0.0
  %3318 = vmatprep.subr.mxu0 0.0
  %3319 = vmatpush1.msra.mxu0 0.0
  %3320 = vmatprep.subr.mxu0 0.0
  %3321 = vmatpush1.msra.mxu0 0.0
  %3322 = vmatprep.subr.mxu0 0.0
  %3323 = vmatpush1.msra.mxu0 0.0
  %3324 = vmatprep.subr.mxu0 0.0
  %3325 = vmatpush1.msra.mxu0 0.0
  %3326 = vmatprep.subr.mxu0 0.0
  %3327 = vmatpush1.msra.mxu0 0.0
  %3328 = vmatprep.subr.mxu0 0.0
  %3329 = vmatpush1.msra.mxu0 0.0
  %3330 = vmatprep.subr.mxu0 0.0
  %3331 = vmatpush1.msra.mxu0 0.0
  %3332 = vmatprep.subr.mxu0 0.0
  %3333 = vmatpush1.msra.mxu0 0.0
  %3334 = vmatprep.subr.mxu0 0.0
  %3335 = vmatpush1.msra.mxu0 0.0
  %3336 = vmatprep.subr.mxu0 0.0
  %3337 = vmatpush1.msra.mxu0 0.0
  %3338 = vmatprep.subr.mxu0 0.0
  %3339 = vmatpush1.msra.mxu0 0.0
  %3340 = vmatprep.subr.mxu0 0.0
  %3341 = vmatpush1.msra.mxu0 0.0
  %3342 = vmatprep.subr.mxu0 0.0
  %3343 = vmatpush1.msra.mxu0 0.0
  %3344 = vmatprep.subr.mxu0 0.0
  %3345 = vmatpush1.msra.mxu0 0.0
  %3346 = vmatprep.subr.mxu0 0.0
  %3347 = vmatpush1.msra.mxu0 0.0
  %3348 = vmatprep.mubr.f32.mxu0 0.0
  %v3349 = vand.u32 %v2921, 4294901760
  %v3350 = vsub.f32 %v2921, %v3349
  %v3351 = vand.u32 %v3350, 4294901760
  %3352 = vmatmul.mubr.f32.gmra.mrb[0].mxu0 %v3351
  %v3353 = vpop.f32.mrb[0].mxu0
  %v3354 = vadd.f32 %v3265, %v3353
  %v3355 = vpop.f32.mrb[0].mxu0
  %3356 = vdwg.mxu0
  %3357 = vmatprep.subr.mxu0 0.0
  %v3358 = vand.u32 %v2256, 4294901760
  %v3359 = vsub.f32 %v2256, %v3358
  %v3360 = vand.u32 %v3359, 4294901760
  %3361 = vmatpush1.msra.mxu0 %v3360
  %3362 = vmatprep.subr.mxu0 0.0
  %v3363 = vand.u32 %v2257, 4294901760
  %v3364 = vsub.f32 %v2257, %v3363
  %v3365 = vand.u32 %v3364, 4294901760
  %3366 = vmatpush1.msra.mxu0 %v3365
  %3367 = vmatprep.subr.mxu0 0.0
  %v3368 = vand.u32 %v2258, 4294901760
  %v3369 = vsub.f32 %v2258, %v3368
  %v3370 = vand.u32 %v3369, 4294901760
  %3371 = vmatpush1.msra.mxu0 %v3370
  %3372 = vmatprep.subr.mxu0 0.0
  %v3373 = vand.u32 %v2259, 4294901760
  %v3374 = vsub.f32 %v2259, %v3373
  %v3375 = vand.u32 %v3374, 4294901760
  %3376 = vmatpush1.msra.mxu0 %v3375
  %3377 = vmatprep.subr.mxu0 0.0
  %v3378 = vand.u32 %v2260, 4294901760
  %v3379 = vsub.f32 %v2260, %v3378
  %v3380 = vand.u32 %v3379, 4294901760
  %3381 = vmatpush1.msra.mxu0 %v3380
  %3382 = vmatprep.subr.mxu0 0.0
  %v3383 = vand.u32 %v2261, 4294901760
  %v3384 = vsub.f32 %v2261, %v3383
  %v3385 = vand.u32 %v3384, 4294901760
  %3386 = vmatpush1.msra.mxu0 %v3385
  %3387 = vmatprep.subr.mxu0 0.0
  %v3388 = vand.u32 %v2262, 4294901760
  %v3389 = vsub.f32 %v2262, %v3388
  %v3390 = vand.u32 %v3389, 4294901760
  %3391 = vmatpush1.msra.mxu0 %v3390
  %3392 = vmatprep.subr.mxu0 0.0
  %v3393 = vand.u32 %v2263, 4294901760
  %v3394 = vsub.f32 %v2263, %v3393
  %v3395 = vand.u32 %v3394, 4294901760
  %3396 = vmatpush1.msra.mxu0 %v3395
  %3397 = vmatprep.subr.mxu0 0.0
  %v3398 = vand.u32 %v2264, 4294901760
  %v3399 = vsub.f32 %v2264, %v3398
  %v3400 = vand.u32 %v3399, 4294901760
  %3401 = vmatpush1.msra.mxu0 %v3400
  %3402 = vmatprep.subr.mxu0 0.0
  %v3403 = vand.u32 %v2265, 4294901760
  %v3404 = vsub.f32 %v2265, %v3403
  %v3405 = vand.u32 %v3404, 4294901760
  %3406 = vmatpush1.msra.mxu0 %v3405
  %3407 = vmatprep.subr.mxu0 0.0
  %v3408 = vand.u32 %v2266, 4294901760
  %v3409 = vsub.f32 %v2266, %v3408
  %v3410 = vand.u32 %v3409, 4294901760
  %3411 = vmatpush1.msra.mxu0 %v3410
  %3412 = vmatprep.subr.mxu0 0.0
  %v3413 = vand.u32 %v2267, 4294901760
  %v3414 = vsub.f32 %v2267, %v3413
  %v3415 = vand.u32 %v3414, 4294901760
  %3416 = vmatpush1.msra.mxu0 %v3415
  %3417 = vmatprep.subr.mxu0 0.0
  %v3418 = vand.u32 %v2268, 4294901760
  %v3419 = vsub.f32 %v2268, %v3418
  %v3420 = vand.u32 %v3419, 4294901760
  %3421 = vmatpush1.msra.mxu0 %v3420
  %3422 = vmatprep.subr.mxu0 0.0
  %v3423 = vand.u32 %v2269, 4294901760
  %v3424 = vsub.f32 %v2269, %v3423
  %v3425 = vand.u32 %v3424, 4294901760
  %3426 = vmatpush1.msra.mxu0 %v3425
  %3427 = vmatprep.subr.mxu0 0.0
  %v3428 = vand.u32 %v2270, 4294901760
  %v3429 = vsub.f32 %v2270, %v3428
  %v3430 = vand.u32 %v3429, 4294901760
  %3431 = vmatpush1.msra.mxu0 %v3430
  %3432 = vmatprep.subr.mxu0 0.0
  %v3433 = vand.u32 %v2271, 4294901760
  %v3434 = vsub.f32 %v2271, %v3433
  %v3435 = vand.u32 %v3434, 4294901760
  %3436 = vmatpush1.msra.mxu0 %v3435
  %3437 = vmatprep.subr.mxu0 0.0
  %3438 = vmatpush1.msra.mxu0 0.0
  %3439 = vmatprep.subr.mxu0 0.0
  %3440 = vmatpush1.msra.mxu0 0.0
  %3441 = vmatprep.subr.mxu0 0.0
  %3442 = vmatpush1.msra.mxu0 0.0
  %3443 = vmatprep.subr.mxu0 0.0
  %3444 = vmatpush1.msra.mxu0 0.0
  %3445 = vmatprep.subr.mxu0 0.0
  %3446 = vmatpush1.msra.mxu0 0.0
  %3447 = vmatprep.subr.mxu0 0.0
  %3448 = vmatpush1.msra.mxu0 0.0
  %3449 = vmatprep.subr.mxu0 0.0
  %3450 = vmatpush1.msra.mxu0 0.0
  %3451 = vmatprep.subr.mxu0 0.0
  %3452 = vmatpush1.msra.mxu0 0.0
  %3453 = vmatprep.subr.mxu0 0.0
  %3454 = vmatpush1.msra.mxu0 0.0
  %3455 = vmatprep.subr.mxu0 0.0
  %3456 = vmatpush1.msra.mxu0 0.0
  %3457 = vmatprep.subr.mxu0 0.0
  %3458 = vmatpush1.msra.mxu0 0.0
  %3459 = vmatprep.subr.mxu0 0.0
  %3460 = vmatpush1.msra.mxu0 0.0
  %3461 = vmatprep.subr.mxu0 0.0
  %3462 = vmatpush1.msra.mxu0 0.0
  %3463 = vmatprep.subr.mxu0 0.0
  %3464 = vmatpush1.msra.mxu0 0.0
  %3465 = vmatprep.subr.mxu0 0.0
  %3466 = vmatpush1.msra.mxu0 0.0
  %3467 = vmatprep.subr.mxu0 0.0
  %3468 = vmatpush1.msra.mxu0 0.0
  %3469 = vmatprep.mubr.f32.mxu0 0.0
  %v3470 = vand.u32 %v2921, 4294901760
  %3471 = vmatmul.mubr.f32.gmra.mrb[0].mxu0 %v3470
  %v3472 = vpop.f32.mrb[0].mxu0
  %v3473 = vadd.f32 %v3354, %v3472
  %v3474 = vpop.f32.mrb[0].mxu0
  %3475 = vdwg.mxu0
  %3476 = vmatprep.subr.mxu0 0.0
  %v3477 = vand.u32 %v2256, 4294901760
  %3478 = vmatpush1.msra.mxu0 %v3477
  %3479 = vmatprep.subr.mxu0 0.0
  %v3480 = vand.u32 %v2257, 4294901760
  %3481 = vmatpush1.msra.mxu0 %v3480
  %3482 = vmatprep.subr.mxu0 0.0
  %v3483 = vand.u32 %v2258, 4294901760
  %3484 = vmatpush1.msra.mxu0 %v3483
  %3485 = vmatprep.subr.mxu0 0.0
  %v3486 = vand.u32 %v2259, 4294901760
  %3487 = vmatpush1.msra.mxu0 %v3486
  %3488 = vmatprep.subr.mxu0 0.0
  %v3489 = vand.u32 %v2260, 4294901760
  %3490 = vmatpush1.msra.mxu0 %v3489
  %3491 = vmatprep.subr.mxu0 0.0
  %v3492 = vand.u32 %v2261, 4294901760
  %3493 = vmatpush1.msra.mxu0 %v3492
  %3494 = vmatprep.subr.mxu0 0.0
  %v3495 = vand.u32 %v2262, 4294901760
  %3496 = vmatpush1.msra.mxu0 %v3495
  %3497 = vmatprep.subr.mxu0 0.0
  %v3498 = vand.u32 %v2263, 4294901760
  %3499 = vmatpush1.msra.mxu0 %v3498
  %3500 = vmatprep.subr.mxu0 0.0
  %v3501 = vand.u32 %v2264, 4294901760
  %3502 = vmatpush1.msra.mxu0 %v3501
  %3503 = vmatprep.subr.mxu0 0.0
  %v3504 = vand.u32 %v2265, 4294901760
  %3505 = vmatpush1.msra.mxu0 %v3504
  %3506 = vmatprep.subr.mxu0 0.0
  %v3507 = vand.u32 %v2266, 4294901760
  %3508 = vmatpush1.msra.mxu0 %v3507
  %3509 = vmatprep.subr.mxu0 0.0
  %v3510 = vand.u32 %v2267, 4294901760
  %3511 = vmatpush1.msra.mxu0 %v3510
  %3512 = vmatprep.subr.mxu0 0.0
  %v3513 = vand.u32 %v2268, 4294901760
  %3514 = vmatpush1.msra.mxu0 %v3513
  %3515 = vmatprep.subr.mxu0 0.0
  %v3516 = vand.u32 %v2269, 4294901760
  %3517 = vmatpush1.msra.mxu0 %v3516
  %3518 = vmatprep.subr.mxu0 0.0
  %v3519 = vand.u32 %v2270, 4294901760
  %3520 = vmatpush1.msra.mxu0 %v3519
  %3521 = vmatprep.subr.mxu0 0.0
  %v3522 = vand.u32 %v2271, 4294901760
  %3523 = vmatpush1.msra.mxu0 %v3522
  %3524 = vmatprep.subr.mxu0 0.0
  %3525 = vmatpush1.msra.mxu0 0.0
  %3526 = vmatprep.subr.mxu0 0.0
  %3527 = vmatpush1.msra.mxu0 0.0
  %3528 = vmatprep.subr.mxu0 0.0
  %3529 = vmatpush1.msra.mxu0 0.0
  %3530 = vmatprep.subr.mxu0 0.0
  %3531 = vmatpush1.msra.mxu0 0.0
  %3532 = vmatprep.subr.mxu0 0.0
  %3533 = vmatpush1.msra.mxu0 0.0
  %3534 = vmatprep.subr.mxu0 0.0
  %3535 = vmatpush1.msra.mxu0 0.0
  %3536 = vmatprep.subr.mxu0 0.0
  %3537 = vmatpush1.msra.mxu0 0.0
  %3538 = vmatprep.subr.mxu0 0.0
  %3539 = vmatpush1.msra.mxu0 0.0
  %3540 = vmatprep.subr.mxu0 0.0
  %3541 = vmatpush1.msra.mxu0 0.0
  %3542 = vmatprep.subr.mxu0 0.0
  %3543 = vmatpush1.msra.mxu0 0.0
  %3544 = vmatprep.subr.mxu0 0.0
  %3545 = vmatpush1.msra.mxu0 0.0
  %3546 = vmatprep.subr.mxu0 0.0
  %3547 = vmatpush1.msra.mxu0 0.0
  %3548 = vmatprep.subr.mxu0 0.0
  %3549 = vmatpush1.msra.mxu0 0.0
  %3550 = vmatprep.subr.mxu0 0.0
  %3551 = vmatpush1.msra.mxu0 0.0
  %3552 = vmatprep.subr.mxu0 0.0
  %3553 = vmatpush1.msra.mxu0 0.0
  %3554 = vmatprep.subr.mxu0 0.0
  %3555 = vmatpush1.msra.mxu0 0.0
  %3556 = vmatprep.mubr.f32.mxu0 0.0
  %v3557 = vand.u32 %v2921, 4294901760
  %3558 = vmatmul.mubr.f32.gmra.mrb[0].mxu0 %v3557
  %v3559 = vpop.f32.mrb[0].mxu0
  %v3560 = vadd.f32 %v3473, %v3559
  %v3561 = vpop.f32.mrb[0].mxu0
  %3562 = vdwg.mxu0
  %v3563 = vrot.slane %v3560, 4
  %v3564 = vadd.f32 %v3560, %v3563
  %v3565 = vrot.slane %v3564, 2
  %v3566 = vadd.f32 %v3564, %v3565
  %v3567 = vrot.slane %v3566, 1
  %v3568 = vadd.f32 %v3566, %v3567
  %v3569 = vmul.f32 %v3568, %v2919
  %v3570 = vmul.f32 %v2920, %v2920
  %v3571 = vsub.f32 %v3569, %v3570
  %v3572 = vmax.f32 %v3571, 0.0
  %s3573 = scalar_lea.vmem %s4, 2
  %v3574 = vld [vmem:[%s3573] sm:$0x3]
  %v3575 = vsub.f32 %v2250, %v2920
  %v3576 = vadd.f32 %v3572, 1e-05
  %v3577 = vrsqrt.pop %v3576
  %v3578 = vmul.f32 %v3575, %v3577
  %v3579 = vlaneseq
  %v3580 = vshrl.u32 %v3579, 7
  %v3581 = vsub.s32 0, %v3580
  %v3582 = vrot.slane %v3574, %v3581
  %v3583 = vmul.f32 %v3578, %v3582
  %v3584 = vlaneseq
  %v3585 = vshrl.u32 %v3584, 7
  %v3586 = vsub.s32 1, %v3585
  %v3587 = vrot.slane %v3574, %v3586
  %v3588 = vadd.f32 %v3583, %v3587
  %v3589 = vmax.f32 %v3588, 0.0
  %v3590 = vpack.c.bf16 %v3589, %v3589
  %s3591 = scalar_lea.vmem %s2, 512
  %v3592 = vld [vmem:[%s3591] sm:$0xff]
  %v3593 = vld [vmem:[%s3591 + $0x8] sm:$0xff]
  %v3594 = vld [vmem:[%s3591 + $0x10] sm:$0xff]
  %v3595 = vld [vmem:[%s3591 + $0x18] sm:$0xff]
  %v3596 = vld [vmem:[%s3591 + $0x20] sm:$0xff]
  %v3597 = vld [vmem:[%s3591 + $0x28] sm:$0xff]
  %v3598 = vld [vmem:[%s3591 + $0x30] sm:$0xff]
  %v3599 = vld [vmem:[%s3591 + $0x38] sm:$0xff]
  %v3600 = vld [vmem:[%s3591 + $0x40] sm:$0xff]
  %v3601 = vld [vmem:[%s3591 + $0x48] sm:$0xff]
  %v3602 = vld [vmem:[%s3591 + $0x50] sm:$0xff]
  %v3603 = vld [vmem:[%s3591 + $0x58] sm:$0xff]
  %v3604 = vld [vmem:[%s3591 + $0x60] sm:$0xff]
  %v3605 = vld [vmem:[%s3591 + $0x68] sm:$0xff]
  %v3606 = vld [vmem:[%s3591 + $0x70] sm:$0xff]
  %v3607 = vld [vmem:[%s3591 + $0x78] sm:$0xff]
  %v3608 = vld [vmem:[%s3591 + $0x80] sm:$0xff]
  %v3609 = vld [vmem:[%s3591 + $0x88] sm:$0xff]
  %v3610 = vld [vmem:[%s3591 + $0x90] sm:$0xff]
  %v3611 = vld [vmem:[%s3591 + $0x98] sm:$0xff]
  %v3612 = vld [vmem:[%s3591 + $0xa0] sm:$0xff]
  %v3613 = vld [vmem:[%s3591 + $0xa8] sm:$0xff]
  %v3614 = vld [vmem:[%s3591 + $0xb0] sm:$0xff]
  %v3615 = vld [vmem:[%s3591 + $0xb8] sm:$0xff]
  %v3616 = vld [vmem:[%s3591 + $0xc0] sm:$0xff]
  %v3617 = vld [vmem:[%s3591 + $0xc8] sm:$0xff]
  %v3618 = vld [vmem:[%s3591 + $0xd0] sm:$0xff]
  %v3619 = vld [vmem:[%s3591 + $0xd8] sm:$0xff]
  %v3620 = vld [vmem:[%s3591 + $0xe0] sm:$0xff]
  %v3621 = vld [vmem:[%s3591 + $0xe8] sm:$0xff]
  %v3622 = vld [vmem:[%s3591 + $0xf0] sm:$0xff]
  %v3623 = vld [vmem:[%s3591 + $0xf8] sm:$0xff]
  %v3656 = vunpack.c.l.b16 %v3592
  %v3657 = vunpack.c.h.b16 %v3592
  %v3658 = vunpack.c.l.b16 %v3593
  %v3659 = vunpack.c.h.b16 %v3593
  %v3660 = vunpack.c.l.b16 %v3594
  %v3661 = vunpack.c.h.b16 %v3594
  %v3662 = vunpack.c.l.b16 %v3595
  %v3663 = vunpack.c.h.b16 %v3595
  %v3664 = vunpack.c.l.b16 %v3596
  %v3665 = vunpack.c.h.b16 %v3596
  %v3666 = vunpack.c.l.b16 %v3597
  %v3667 = vunpack.c.h.b16 %v3597
  %v3668 = vunpack.c.l.b16 %v3598
  %v3669 = vunpack.c.h.b16 %v3598
  %v3670 = vunpack.c.l.b16 %v3599
  %v3671 = vunpack.c.h.b16 %v3599
  %v3672 = vunpack.c.l.b16 %v3600
  %v3673 = vunpack.c.h.b16 %v3600
  %v3674 = vunpack.c.l.b16 %v3601
  %v3675 = vunpack.c.h.b16 %v3601
  %v3676 = vunpack.c.l.b16 %v3602
  %v3677 = vunpack.c.h.b16 %v3602
  %v3678 = vunpack.c.l.b16 %v3603
  %v3679 = vunpack.c.h.b16 %v3603
  %v3680 = vunpack.c.l.b16 %v3604
  %v3681 = vunpack.c.h.b16 %v3604
  %v3682 = vunpack.c.l.b16 %v3605
  %v3683 = vunpack.c.h.b16 %v3605
  %v3684 = vunpack.c.l.b16 %v3606
  %v3685 = vunpack.c.h.b16 %v3606
  %v3686 = vunpack.c.l.b16 %v3607
  %v3687 = vunpack.c.h.b16 %v3607
  %v3688 = vunpack.c.l.b16 %v3608
  %v3689 = vunpack.c.h.b16 %v3608
  %v3690 = vunpack.c.l.b16 %v3609
  %v3691 = vunpack.c.h.b16 %v3609
  %v3692 = vunpack.c.l.b16 %v3610
  %v3693 = vunpack.c.h.b16 %v3610
  %v3694 = vunpack.c.l.b16 %v3611
  %v3695 = vunpack.c.h.b16 %v3611
  %v3696 = vunpack.c.l.b16 %v3612
  %v3697 = vunpack.c.h.b16 %v3612
  %v3698 = vunpack.c.l.b16 %v3613
  %v3699 = vunpack.c.h.b16 %v3613
  %v3700 = vunpack.c.l.b16 %v3614
  %v3701 = vunpack.c.h.b16 %v3614
  %v3702 = vunpack.c.l.b16 %v3615
  %v3703 = vunpack.c.h.b16 %v3615
  %v3704 = vunpack.c.l.b16 %v3616
  %v3705 = vunpack.c.h.b16 %v3616
  %v3706 = vunpack.c.l.b16 %v3617
  %v3707 = vunpack.c.h.b16 %v3617
  %v3708 = vunpack.c.l.b16 %v3618
  %v3709 = vunpack.c.h.b16 %v3618
  %v3710 = vunpack.c.l.b16 %v3619
  %v3711 = vunpack.c.h.b16 %v3619
  %v3712 = vunpack.c.l.b16 %v3620
  %v3713 = vunpack.c.h.b16 %v3620
  %v3714 = vunpack.c.l.b16 %v3621
  %v3715 = vunpack.c.h.b16 %v3621
  %v3716 = vunpack.c.l.b16 %v3622
  %v3717 = vunpack.c.h.b16 %v3622
  %v3718 = vunpack.c.l.b16 %v3623
  %v3719 = vunpack.c.h.b16 %v3623
  %v3720 = vpack.c.b16 %v3660, %v3656
  %v3721 = vpack.c.b16 %v3661, %v3657
  %v3722 = vpack.c.b16 %v3662, %v3658
  %v3723 = vpack.c.b16 %v3663, %v3659
  %v3724 = vpack.c.b16 %v3668, %v3664
  %v3725 = vpack.c.b16 %v3669, %v3665
  %v3726 = vpack.c.b16 %v3670, %v3666
  %v3727 = vpack.c.b16 %v3671, %v3667
  %v3728 = vpack.c.b16 %v3676, %v3672
  %v3729 = vpack.c.b16 %v3677, %v3673
  %v3730 = vpack.c.b16 %v3678, %v3674
  %v3731 = vpack.c.b16 %v3679, %v3675
  %v3732 = vpack.c.b16 %v3684, %v3680
  %v3733 = vpack.c.b16 %v3685, %v3681
  %v3734 = vpack.c.b16 %v3686, %v3682
  %v3735 = vpack.c.b16 %v3687, %v3683
  %v3736 = vpack.c.b16 %v3692, %v3688
  %v3737 = vpack.c.b16 %v3693, %v3689
  %v3738 = vpack.c.b16 %v3694, %v3690
  %v3739 = vpack.c.b16 %v3695, %v3691
  %v3740 = vpack.c.b16 %v3700, %v3696
  %v3741 = vpack.c.b16 %v3701, %v3697
  %v3742 = vpack.c.b16 %v3702, %v3698
  %v3743 = vpack.c.b16 %v3703, %v3699
  %v3744 = vpack.c.b16 %v3708, %v3704
  %v3745 = vpack.c.b16 %v3709, %v3705
  %v3746 = vpack.c.b16 %v3710, %v3706
  %v3747 = vpack.c.b16 %v3711, %v3707
  %v3748 = vpack.c.b16 %v3716, %v3712
  %v3749 = vpack.c.b16 %v3717, %v3713
  %v3750 = vpack.c.b16 %v3718, %v3714
  %v3751 = vpack.c.b16 %v3719, %v3715
  %3784 = vmatprep.subr.bf16.mxu0 %v3721
  %3785 = vmatpush1.bf16.msra.mxu0 %v3720
  %3786 = vmatprep.subr.bf16.mxu0 %v3725
  %3787 = vmatpush1.bf16.msra.mxu0 %v3724
  %3788 = vmatprep.subr.bf16.mxu0 %v3729
  %3789 = vmatpush1.bf16.msra.mxu0 %v3728
  %3790 = vmatprep.subr.bf16.mxu0 %v3733
  %3791 = vmatpush1.bf16.msra.mxu0 %v3732
  %3792 = vmatprep.subr.bf16.mxu0 %v3737
  %3793 = vmatpush1.bf16.msra.mxu0 %v3736
  %3794 = vmatprep.subr.bf16.mxu0 %v3741
  %3795 = vmatpush1.bf16.msra.mxu0 %v3740
  %3796 = vmatprep.subr.bf16.mxu0 %v3745
  %3797 = vmatpush1.bf16.msra.mxu0 %v3744
  %3798 = vmatprep.subr.bf16.mxu0 %v3749
  %3799 = vmatpush1.bf16.msra.mxu0 %v3748
  %3800 = vmatprep.subr.bf16.mxu0 0
  %3801 = vmatpush1.bf16.msra.mxu0 0
  %3802 = vmatprep.subr.bf16.mxu0 0
  %3803 = vmatpush1.bf16.msra.mxu0 0
  %3804 = vmatprep.subr.bf16.mxu0 0
  %3805 = vmatpush1.bf16.msra.mxu0 0
  %3806 = vmatprep.subr.bf16.mxu0 0
  %3807 = vmatpush1.bf16.msra.mxu0 0
  %3808 = vmatprep.subr.bf16.mxu0 0
  %3809 = vmatpush1.bf16.msra.mxu0 0
  %3810 = vmatprep.subr.bf16.mxu0 0
  %3811 = vmatpush1.bf16.msra.mxu0 0
  %3812 = vmatprep.subr.bf16.mxu0 0
  %3813 = vmatpush1.bf16.msra.mxu0 0
  %3814 = vmatprep.subr.bf16.mxu0 0
  %3815 = vmatpush1.bf16.msra.mxu0 0
  %3816 = vmatprep.mubr.bf16.mxu0 0
  %3817 = vmatmul.mubr.bf16.gmra.mrb[0].mxu0 %v3590
  %v3818 = vpop.f32.mrb[0].mxu0
  %v3819 = vadd.f32 0.0, %v3818
  %v3820 = vpop.f32.mrb[0].mxu0
  %v3821 = vadd.f32 0.0, %v3820
  %v3822 = vpop.f32.mrb[0].mxu0
  %v3823 = vpop.f32.mrb[0].mxu0
  %3824 = vdwg.mxu0
  %3825 = vmatprep.subr.bf16.mxu0 %v3723
  %3826 = vmatpush1.bf16.msra.mxu0 %v3722
  %3827 = vmatprep.subr.bf16.mxu0 %v3727
  %3828 = vmatpush1.bf16.msra.mxu0 %v3726
  %3829 = vmatprep.subr.bf16.mxu0 %v3731
  %3830 = vmatpush1.bf16.msra.mxu0 %v3730
  %3831 = vmatprep.subr.bf16.mxu0 %v3735
  %3832 = vmatpush1.bf16.msra.mxu0 %v3734
  %3833 = vmatprep.subr.bf16.mxu0 %v3739
  %3834 = vmatpush1.bf16.msra.mxu0 %v3738
  %3835 = vmatprep.subr.bf16.mxu0 %v3743
  %3836 = vmatpush1.bf16.msra.mxu0 %v3742
  %3837 = vmatprep.subr.bf16.mxu0 %v3747
  %3838 = vmatpush1.bf16.msra.mxu0 %v3746
  %3839 = vmatprep.subr.bf16.mxu0 %v3751
  %3840 = vmatpush1.bf16.msra.mxu0 %v3750
  %3841 = vmatprep.subr.bf16.mxu0 0
  %3842 = vmatpush1.bf16.msra.mxu0 0
  %3843 = vmatprep.subr.bf16.mxu0 0
  %3844 = vmatpush1.bf16.msra.mxu0 0
  %3845 = vmatprep.subr.bf16.mxu0 0
  %3846 = vmatpush1.bf16.msra.mxu0 0
  %3847 = vmatprep.subr.bf16.mxu0 0
  %3848 = vmatpush1.bf16.msra.mxu0 0
  %3849 = vmatprep.subr.bf16.mxu0 0
  %3850 = vmatpush1.bf16.msra.mxu0 0
  %3851 = vmatprep.subr.bf16.mxu0 0
  %3852 = vmatpush1.bf16.msra.mxu0 0
  %3853 = vmatprep.subr.bf16.mxu0 0
  %3854 = vmatpush1.bf16.msra.mxu0 0
  %3855 = vmatprep.subr.bf16.mxu0 0
  %3856 = vmatpush1.bf16.msra.mxu0 0
  %3857 = vmatprep.mubr.bf16.mxu0 0
  %3858 = vmatmul.mubr.bf16.gmra.mrb[0].mxu0 %v3590
  %v3859 = vpop.f32.mrb[0].mxu0
  %v3860 = vadd.f32 0.0, %v3859
  %v3861 = vpop.f32.mrb[0].mxu0
  %v3862 = vadd.f32 0.0, %v3861
  %v3863 = vpop.f32.mrb[0].mxu0
  %v3864 = vpop.f32.mrb[0].mxu0
  %3865 = vdwg.mxu0
  %3866 = vst [vmem:[#allocation2] sm:$0xff] %v3819
  %3867 = vst [vmem:[#allocation2 + $0x8] sm:$0xff] %v3821
  %3868 = vst [vmem:[#allocation2 + $0x10] sm:$0xff] %v3860
  %3869 = vst [vmem:[#allocation2 + $0x18] sm:$0xff] %v3862
  %s3870 = scalar_lea.vmem %s1, 32
  %v3871 = vld [vmem:[%s3870] sm:$0xf]
  %v3872 = vld [vmem:[#allocation2] sm:$0xff]
  %v3873 = vld [vmem:[#allocation2 + $0x8] sm:$0xff]
  %v3874 = vld [vmem:[#allocation2 + $0x10] sm:$0xff]
  %v3875 = vld [vmem:[#allocation2 + $0x18] sm:$0xff]
  %vm3876 = vcmask 261120
  %v3878 = vsel %vm3876, %v3871, 0
  %3880 = vmatprep.subr.mxu0 0.0
  %3881 = vmatpush1.msra.mxu0 %v3872
  %3882 = vmatprep.subr.mxu0 0.0
  %3883 = vmatpush1.msra.mxu0 %v3873
  %3884 = vmatprep.subr.mxu0 0.0
  %3885 = vmatpush1.msra.mxu0 %v3874
  %3886 = vmatprep.subr.mxu0 0.0
  %3887 = vmatpush1.msra.mxu0 %v3875
  %3888 = vmatprep.subr.mxu0 0.0
  %3889 = vmatpush1.msra.mxu0 0.0
  %3890 = vmatprep.subr.mxu0 0.0
  %3891 = vmatpush1.msra.mxu0 0.0
  %3892 = vmatprep.subr.mxu0 0.0
  %3893 = vmatpush1.msra.mxu0 0.0
  %3894 = vmatprep.subr.mxu0 0.0
  %3895 = vmatpush1.msra.mxu0 0.0
  %3896 = vmatprep.subr.mxu0 0.0
  %3897 = vmatpush1.msra.mxu0 0.0
  %3898 = vmatprep.subr.mxu0 0.0
  %3899 = vmatpush1.msra.mxu0 0.0
  %3900 = vmatprep.subr.mxu0 0.0
  %3901 = vmatpush1.msra.mxu0 0.0
  %3902 = vmatprep.subr.mxu0 0.0
  %3903 = vmatpush1.msra.mxu0 0.0
  %3904 = vmatprep.subr.mxu0 0.0
  %3905 = vmatpush1.msra.mxu0 0.0
  %3906 = vmatprep.subr.mxu0 0.0
  %3907 = vmatpush1.msra.mxu0 0.0
  %3908 = vmatprep.subr.mxu0 0.0
  %3909 = vmatpush1.msra.mxu0 0.0
  %3910 = vmatprep.subr.mxu0 0.0
  %3911 = vmatpush1.msra.mxu0 0.0
  %3912 = vmatprep.subr.mxu0 0.0
  %3913 = vmatpush1.msra.mxu0 0.0
  %3914 = vmatprep.subr.mxu0 0.0
  %3915 = vmatpush1.msra.mxu0 0.0
  %3916 = vmatprep.subr.mxu0 0.0
  %3917 = vmatpush1.msra.mxu0 0.0
  %3918 = vmatprep.subr.mxu0 0.0
  %3919 = vmatpush1.msra.mxu0 0.0
  %3920 = vmatprep.subr.mxu0 0.0
  %3921 = vmatpush1.msra.mxu0 0.0
  %3922 = vmatprep.subr.mxu0 0.0
  %3923 = vmatpush1.msra.mxu0 0.0
  %3924 = vmatprep.subr.mxu0 0.0
  %3925 = vmatpush1.msra.mxu0 0.0
  %3926 = vmatprep.subr.mxu0 0.0
  %3927 = vmatpush1.msra.mxu0 0.0
  %3928 = vmatprep.subr.mxu0 0.0
  %3929 = vmatpush1.msra.mxu0 0.0
  %3930 = vmatprep.subr.mxu0 0.0
  %3931 = vmatpush1.msra.mxu0 0.0
  %3932 = vmatprep.subr.mxu0 0.0
  %3933 = vmatpush1.msra.mxu0 0.0
  %3934 = vmatprep.subr.mxu0 0.0
  %3935 = vmatpush1.msra.mxu0 0.0
  %3936 = vmatprep.subr.mxu0 0.0
  %3937 = vmatpush1.msra.mxu0 0.0
  %3938 = vmatprep.subr.mxu0 0.0
  %3939 = vmatpush1.msra.mxu0 0.0
  %3940 = vmatprep.subr.mxu0 0.0
  %3941 = vmatpush1.msra.mxu0 0.0
  %3942 = vmatprep.subr.mxu0 0.0
  %3943 = vmatpush1.msra.mxu0 0.0
  %3944 = vmatprep.mubr.bf16.mxu0 0
  %3945 = vmatmul.mubr.bf16.gmra.mrb[0].mxu0 %v3878
  %v3946 = vpop.f32.mrb[0].mxu0
  %v3947 = vadd.f32 0.0, %v3946
  %v3948 = vpop.f32.mrb[0].mxu0
  %v3949 = vpop.f32.mrb[0].mxu0
  %v3950 = vpop.f32.mrb[0].mxu0
  %3951 = vdwg.mxu0
  %s3952 = scalar_lea.vmem %s3, 256
  %v3953 = vld [vmem:[%s3952] sm:$0xff]
  %v3954 = vld [vmem:[%s3952 + $0x8] sm:$0xff]
  %v3955 = vld [vmem:[%s3952 + $0x10] sm:$0xff]
  %v3956 = vld [vmem:[%s3952 + $0x18] sm:$0xff]
  %v3957 = vld [vmem:[%s3952 + $0x20] sm:$0xff]
  %v3958 = vld [vmem:[%s3952 + $0x28] sm:$0xff]
  %v3959 = vld [vmem:[%s3952 + $0x30] sm:$0xff]
  %v3960 = vld [vmem:[%s3952 + $0x38] sm:$0xff]
  %v3961 = vld [vmem:[%s3952 + $0x40] sm:$0xff]
  %v3962 = vld [vmem:[%s3952 + $0x48] sm:$0xff]
  %v3963 = vld [vmem:[%s3952 + $0x50] sm:$0xff]
  %v3964 = vld [vmem:[%s3952 + $0x58] sm:$0xff]
  %v3965 = vld [vmem:[%s3952 + $0x60] sm:$0xff]
  %v3966 = vld [vmem:[%s3952 + $0x68] sm:$0xff]
  %v3967 = vld [vmem:[%s3952 + $0x70] sm:$0xff]
  %v3968 = vld [vmem:[%s3952 + $0x78] sm:$0xff]
  %3969 = vmatprep.subr.mxu0 0.0
  %v3970 = vand.u32 %v3953, 4294901760
  %3971 = vmatpush1.msra.mxu0 %v3970
  %3972 = vmatprep.subr.mxu0 0.0
  %v3973 = vand.u32 %v3954, 4294901760
  %3974 = vmatpush1.msra.mxu0 %v3973
  %3975 = vmatprep.subr.mxu0 0.0
  %v3976 = vand.u32 %v3955, 4294901760
  %3977 = vmatpush1.msra.mxu0 %v3976
  %3978 = vmatprep.subr.mxu0 0.0
  %v3979 = vand.u32 %v3956, 4294901760
  %3980 = vmatpush1.msra.mxu0 %v3979
  %3981 = vmatprep.subr.mxu0 0.0
  %v3982 = vand.u32 %v3957, 4294901760
  %3983 = vmatpush1.msra.mxu0 %v3982
  %3984 = vmatprep.subr.mxu0 0.0
  %v3985 = vand.u32 %v3958, 4294901760
  %3986 = vmatpush1.msra.mxu0 %v3985
  %3987 = vmatprep.subr.mxu0 0.0
  %v3988 = vand.u32 %v3959, 4294901760
  %3989 = vmatpush1.msra.mxu0 %v3988
  %3990 = vmatprep.subr.mxu0 0.0
  %v3991 = vand.u32 %v3960, 4294901760
  %3992 = vmatpush1.msra.mxu0 %v3991
  %3993 = vmatprep.subr.mxu0 0.0
  %v3994 = vand.u32 %v3961, 4294901760
  %3995 = vmatpush1.msra.mxu0 %v3994
  %3996 = vmatprep.subr.mxu0 0.0
  %v3997 = vand.u32 %v3962, 4294901760
  %3998 = vmatpush1.msra.mxu0 %v3997
  %3999 = vmatprep.subr.mxu0 0.0
  %v4000 = vand.u32 %v3963, 4294901760
  %4001 = vmatpush1.msra.mxu0 %v4000
  %4002 = vmatprep.subr.mxu0 0.0
  %v4003 = vand.u32 %v3964, 4294901760
  %4004 = vmatpush1.msra.mxu0 %v4003
  %4005 = vmatprep.subr.mxu0 0.0
  %v4006 = vand.u32 %v3965, 4294901760
  %4007 = vmatpush1.msra.mxu0 %v4006
  %4008 = vmatprep.subr.mxu0 0.0
  %v4009 = vand.u32 %v3966, 4294901760
  %4010 = vmatpush1.msra.mxu0 %v4009
  %4011 = vmatprep.subr.mxu0 0.0
  %v4012 = vand.u32 %v3967, 4294901760
  %4013 = vmatpush1.msra.mxu0 %v4012
  %4014 = vmatprep.subr.mxu0 0.0
  %v4015 = vand.u32 %v3968, 4294901760
  %4016 = vmatpush1.msra.mxu0 %v4015
  %4017 = vmatprep.subr.mxu0 0.0
  %4018 = vmatpush1.msra.mxu0 0.0
  %4019 = vmatprep.subr.mxu0 0.0
  %4020 = vmatpush1.msra.mxu0 0.0
  %4021 = vmatprep.subr.mxu0 0.0
  %4022 = vmatpush1.msra.mxu0 0.0
  %4023 = vmatprep.subr.mxu0 0.0
  %4024 = vmatpush1.msra.mxu0 0.0
  %4025 = vmatprep.subr.mxu0 0.0
  %4026 = vmatpush1.msra.mxu0 0.0
  %4027 = vmatprep.subr.mxu0 0.0
  %4028 = vmatpush1.msra.mxu0 0.0
  %4029 = vmatprep.subr.mxu0 0.0
  %4030 = vmatpush1.msra.mxu0 0.0
  %4031 = vmatprep.subr.mxu0 0.0
  %4032 = vmatpush1.msra.mxu0 0.0
  %4033 = vmatprep.subr.mxu0 0.0
  %4034 = vmatpush1.msra.mxu0 0.0
  %4035 = vmatprep.subr.mxu0 0.0
  %4036 = vmatpush1.msra.mxu0 0.0
  %4037 = vmatprep.subr.mxu0 0.0
  %4038 = vmatpush1.msra.mxu0 0.0
  %4039 = vmatprep.subr.mxu0 0.0
  %4040 = vmatpush1.msra.mxu0 0.0
  %4041 = vmatprep.subr.mxu0 0.0
  %4042 = vmatpush1.msra.mxu0 0.0
  %4043 = vmatprep.subr.mxu0 0.0
  %4044 = vmatpush1.msra.mxu0 0.0
  %4045 = vmatprep.subr.mxu0 0.0
  %4046 = vmatpush1.msra.mxu0 0.0
  %4047 = vmatprep.subr.mxu0 0.0
  %4048 = vmatpush1.msra.mxu0 0.0
  %4049 = vmatprep.mubr.f32.mxu0 0.0
  %v4050 = vand.u32 %v3947, 4294901760
  %v4051 = vsub.f32 %v3947, %v4050
  %v4052 = vand.u32 %v4051, 4294901760
  %v4053 = vsub.f32 %v4051, %v4052
  %v4054 = vand.u32 %v4053, 4294901760
  %4055 = vmatmul.mubr.f32.gmra.mrb[0].mxu0 %v4054
  %v4056 = vpop.f32.mrb[0].mxu0
  %v4057 = vadd.f32 0.0, %v4056
  %v4058 = vpop.f32.mrb[0].mxu0
  %4059 = vdwg.mxu0
  %4060 = vmatprep.subr.mxu0 0.0
  %v4061 = vand.u32 %v3953, 4294901760
  %v4062 = vsub.f32 %v3953, %v4061
  %v4063 = vand.u32 %v4062, 4294901760
  %v4064 = vsub.f32 %v4062, %v4063
  %v4065 = vand.u32 %v4064, 4294901760
  %4066 = vmatpush1.msra.mxu0 %v4065
  %4067 = vmatprep.subr.mxu0 0.0
  %v4068 = vand.u32 %v3954, 4294901760
  %v4069 = vsub.f32 %v3954, %v4068
  %v4070 = vand.u32 %v4069, 4294901760
  %v4071 = vsub.f32 %v4069, %v4070
  %v4072 = vand.u32 %v4071, 4294901760
  %4073 = vmatpush1.msra.mxu0 %v4072
  %4074 = vmatprep.subr.mxu0 0.0
  %v4075 = vand.u32 %v3955, 4294901760
  %v4076 = vsub.f32 %v3955, %v4075
  %v4077 = vand.u32 %v4076, 4294901760
  %v4078 = vsub.f32 %v4076, %v4077
  %v4079 = vand.u32 %v4078, 4294901760
  %4080 = vmatpush1.msra.mxu0 %v4079
  %4081 = vmatprep.subr.mxu0 0.0
  %v4082 = vand.u32 %v3956, 4294901760
  %v4083 = vsub.f32 %v3956, %v4082
  %v4084 = vand.u32 %v4083, 4294901760
  %v4085 = vsub.f32 %v4083, %v4084
  %v4086 = vand.u32 %v4085, 4294901760
  %4087 = vmatpush1.msra.mxu0 %v4086
  %4088 = vmatprep.subr.mxu0 0.0
  %v4089 = vand.u32 %v3957, 4294901760
  %v4090 = vsub.f32 %v3957, %v4089
  %v4091 = vand.u32 %v4090, 4294901760
  %v4092 = vsub.f32 %v4090, %v4091
  %v4093 = vand.u32 %v4092, 4294901760
  %4094 = vmatpush1.msra.mxu0 %v4093
  %4095 = vmatprep.subr.mxu0 0.0
  %v4096 = vand.u32 %v3958, 4294901760
  %v4097 = vsub.f32 %v3958, %v4096
  %v4098 = vand.u32 %v4097, 4294901760
  %v4099 = vsub.f32 %v4097, %v4098
  %v4100 = vand.u32 %v4099, 4294901760
  %4101 = vmatpush1.msra.mxu0 %v4100
  %4102 = vmatprep.subr.mxu0 0.0
  %v4103 = vand.u32 %v3959, 4294901760
  %v4104 = vsub.f32 %v3959, %v4103
  %v4105 = vand.u32 %v4104, 4294901760
  %v4106 = vsub.f32 %v4104, %v4105
  %v4107 = vand.u32 %v4106, 4294901760
  %4108 = vmatpush1.msra.mxu0 %v4107
  %4109 = vmatprep.subr.mxu0 0.0
  %v4110 = vand.u32 %v3960, 4294901760
  %v4111 = vsub.f32 %v3960, %v4110
  %v4112 = vand.u32 %v4111, 4294901760
  %v4113 = vsub.f32 %v4111, %v4112
  %v4114 = vand.u32 %v4113, 4294901760
  %4115 = vmatpush1.msra.mxu0 %v4114
  %4116 = vmatprep.subr.mxu0 0.0
  %v4117 = vand.u32 %v3961, 4294901760
  %v4118 = vsub.f32 %v3961, %v4117
  %v4119 = vand.u32 %v4118, 4294901760
  %v4120 = vsub.f32 %v4118, %v4119
  %v4121 = vand.u32 %v4120, 4294901760
  %4122 = vmatpush1.msra.mxu0 %v4121
  %4123 = vmatprep.subr.mxu0 0.0
  %v4124 = vand.u32 %v3962, 4294901760
  %v4125 = vsub.f32 %v3962, %v4124
  %v4126 = vand.u32 %v4125, 4294901760
  %v4127 = vsub.f32 %v4125, %v4126
  %v4128 = vand.u32 %v4127, 4294901760
  %4129 = vmatpush1.msra.mxu0 %v4128
  %4130 = vmatprep.subr.mxu0 0.0
  %v4131 = vand.u32 %v3963, 4294901760
  %v4132 = vsub.f32 %v3963, %v4131
  %v4133 = vand.u32 %v4132, 4294901760
  %v4134 = vsub.f32 %v4132, %v4133
  %v4135 = vand.u32 %v4134, 4294901760
  %4136 = vmatpush1.msra.mxu0 %v4135
  %4137 = vmatprep.subr.mxu0 0.0
  %v4138 = vand.u32 %v3964, 4294901760
  %v4139 = vsub.f32 %v3964, %v4138
  %v4140 = vand.u32 %v4139, 4294901760
  %v4141 = vsub.f32 %v4139, %v4140
  %v4142 = vand.u32 %v4141, 4294901760
  %4143 = vmatpush1.msra.mxu0 %v4142
  %4144 = vmatprep.subr.mxu0 0.0
  %v4145 = vand.u32 %v3965, 4294901760
  %v4146 = vsub.f32 %v3965, %v4145
  %v4147 = vand.u32 %v4146, 4294901760
  %v4148 = vsub.f32 %v4146, %v4147
  %v4149 = vand.u32 %v4148, 4294901760
  %4150 = vmatpush1.msra.mxu0 %v4149
  %4151 = vmatprep.subr.mxu0 0.0
  %v4152 = vand.u32 %v3966, 4294901760
  %v4153 = vsub.f32 %v3966, %v4152
  %v4154 = vand.u32 %v4153, 4294901760
  %v4155 = vsub.f32 %v4153, %v4154
  %v4156 = vand.u32 %v4155, 4294901760
  %4157 = vmatpush1.msra.mxu0 %v4156
  %4158 = vmatprep.subr.mxu0 0.0
  %v4159 = vand.u32 %v3967, 4294901760
  %v4160 = vsub.f32 %v3967, %v4159
  %v4161 = vand.u32 %v4160, 4294901760
  %v4162 = vsub.f32 %v4160, %v4161
  %v4163 = vand.u32 %v4162, 4294901760
  %4164 = vmatpush1.msra.mxu0 %v4163
  %4165 = vmatprep.subr.mxu0 0.0
  %v4166 = vand.u32 %v3968, 4294901760
  %v4167 = vsub.f32 %v3968, %v4166
  %v4168 = vand.u32 %v4167, 4294901760
  %v4169 = vsub.f32 %v4167, %v4168
  %v4170 = vand.u32 %v4169, 4294901760
  %4171 = vmatpush1.msra.mxu0 %v4170
  %4172 = vmatprep.subr.mxu0 0.0
  %4173 = vmatpush1.msra.mxu0 0.0
  %4174 = vmatprep.subr.mxu0 0.0
  %4175 = vmatpush1.msra.mxu0 0.0
  %4176 = vmatprep.subr.mxu0 0.0
  %4177 = vmatpush1.msra.mxu0 0.0
  %4178 = vmatprep.subr.mxu0 0.0
  %4179 = vmatpush1.msra.mxu0 0.0
  %4180 = vmatprep.subr.mxu0 0.0
  %4181 = vmatpush1.msra.mxu0 0.0
  %4182 = vmatprep.subr.mxu0 0.0
  %4183 = vmatpush1.msra.mxu0 0.0
  %4184 = vmatprep.subr.mxu0 0.0
  %4185 = vmatpush1.msra.mxu0 0.0
  %4186 = vmatprep.subr.mxu0 0.0
  %4187 = vmatpush1.msra.mxu0 0.0
  %4188 = vmatprep.subr.mxu0 0.0
  %4189 = vmatpush1.msra.mxu0 0.0
  %4190 = vmatprep.subr.mxu0 0.0
  %4191 = vmatpush1.msra.mxu0 0.0
  %4192 = vmatprep.subr.mxu0 0.0
  %4193 = vmatpush1.msra.mxu0 0.0
  %4194 = vmatprep.subr.mxu0 0.0
  %4195 = vmatpush1.msra.mxu0 0.0
  %4196 = vmatprep.subr.mxu0 0.0
  %4197 = vmatpush1.msra.mxu0 0.0
  %4198 = vmatprep.subr.mxu0 0.0
  %4199 = vmatpush1.msra.mxu0 0.0
  %4200 = vmatprep.subr.mxu0 0.0
  %4201 = vmatpush1.msra.mxu0 0.0
  %4202 = vmatprep.subr.mxu0 0.0
  %4203 = vmatpush1.msra.mxu0 0.0
  %4204 = vmatprep.mubr.f32.mxu0 0.0
  %v4205 = vand.u32 %v3947, 4294901760
  %4206 = vmatmul.mubr.f32.gmra.mrb[0].mxu0 %v4205
  %v4207 = vpop.f32.mrb[0].mxu0
  %v4208 = vadd.f32 %v4057, %v4207
  %v4209 = vpop.f32.mrb[0].mxu0
  %4210 = vdwg.mxu0
  %4211 = vmatprep.subr.mxu0 0.0
  %v4212 = vand.u32 %v3953, 4294901760
  %v4213 = vsub.f32 %v3953, %v4212
  %4214 = vmatpush1.msra.mxu0 %v4213
  %4215 = vmatprep.subr.mxu0 0.0
  %v4216 = vand.u32 %v3954, 4294901760
  %v4217 = vsub.f32 %v3954, %v4216
  %4218 = vmatpush1.msra.mxu0 %v4217
  %4219 = vmatprep.subr.mxu0 0.0
  %v4220 = vand.u32 %v3955, 4294901760
  %v4221 = vsub.f32 %v3955, %v4220
  %4222 = vmatpush1.msra.mxu0 %v4221
  %4223 = vmatprep.subr.mxu0 0.0
  %v4224 = vand.u32 %v3956, 4294901760
  %v4225 = vsub.f32 %v3956, %v4224
  %4226 = vmatpush1.msra.mxu0 %v4225
  %4227 = vmatprep.subr.mxu0 0.0
  %v4228 = vand.u32 %v3957, 4294901760
  %v4229 = vsub.f32 %v3957, %v4228
  %4230 = vmatpush1.msra.mxu0 %v4229
  %4231 = vmatprep.subr.mxu0 0.0
  %v4232 = vand.u32 %v3958, 4294901760
  %v4233 = vsub.f32 %v3958, %v4232
  %4234 = vmatpush1.msra.mxu0 %v4233
  %4235 = vmatprep.subr.mxu0 0.0
  %v4236 = vand.u32 %v3959, 4294901760
  %v4237 = vsub.f32 %v3959, %v4236
  %4238 = vmatpush1.msra.mxu0 %v4237
  %4239 = vmatprep.subr.mxu0 0.0
  %v4240 = vand.u32 %v3960, 4294901760
  %v4241 = vsub.f32 %v3960, %v4240
  %4242 = vmatpush1.msra.mxu0 %v4241
  %4243 = vmatprep.subr.mxu0 0.0
  %v4244 = vand.u32 %v3961, 4294901760
  %v4245 = vsub.f32 %v3961, %v4244
  %4246 = vmatpush1.msra.mxu0 %v4245
  %4247 = vmatprep.subr.mxu0 0.0
  %v4248 = vand.u32 %v3962, 4294901760
  %v4249 = vsub.f32 %v3962, %v4248
  %4250 = vmatpush1.msra.mxu0 %v4249
  %4251 = vmatprep.subr.mxu0 0.0
  %v4252 = vand.u32 %v3963, 4294901760
  %v4253 = vsub.f32 %v3963, %v4252
  %4254 = vmatpush1.msra.mxu0 %v4253
  %4255 = vmatprep.subr.mxu0 0.0
  %v4256 = vand.u32 %v3964, 4294901760
  %v4257 = vsub.f32 %v3964, %v4256
  %4258 = vmatpush1.msra.mxu0 %v4257
  %4259 = vmatprep.subr.mxu0 0.0
  %v4260 = vand.u32 %v3965, 4294901760
  %v4261 = vsub.f32 %v3965, %v4260
  %4262 = vmatpush1.msra.mxu0 %v4261
  %4263 = vmatprep.subr.mxu0 0.0
  %v4264 = vand.u32 %v3966, 4294901760
  %v4265 = vsub.f32 %v3966, %v4264
  %4266 = vmatpush1.msra.mxu0 %v4265
  %4267 = vmatprep.subr.mxu0 0.0
  %v4268 = vand.u32 %v3967, 4294901760
  %v4269 = vsub.f32 %v3967, %v4268
  %4270 = vmatpush1.msra.mxu0 %v4269
  %4271 = vmatprep.subr.mxu0 0.0
  %v4272 = vand.u32 %v3968, 4294901760
  %v4273 = vsub.f32 %v3968, %v4272
  %4274 = vmatpush1.msra.mxu0 %v4273
  %4275 = vmatprep.subr.mxu0 0.0
  %4276 = vmatpush1.msra.mxu0 0.0
  %4277 = vmatprep.subr.mxu0 0.0
  %4278 = vmatpush1.msra.mxu0 0.0
  %4279 = vmatprep.subr.mxu0 0.0
  %4280 = vmatpush1.msra.mxu0 0.0
  %4281 = vmatprep.subr.mxu0 0.0
  %4282 = vmatpush1.msra.mxu0 0.0
  %4283 = vmatprep.subr.mxu0 0.0
  %4284 = vmatpush1.msra.mxu0 0.0
  %4285 = vmatprep.subr.mxu0 0.0
  %4286 = vmatpush1.msra.mxu0 0.0
  %4287 = vmatprep.subr.mxu0 0.0
  %4288 = vmatpush1.msra.mxu0 0.0
  %4289 = vmatprep.subr.mxu0 0.0
  %4290 = vmatpush1.msra.mxu0 0.0
  %4291 = vmatprep.subr.mxu0 0.0
  %4292 = vmatpush1.msra.mxu0 0.0
  %4293 = vmatprep.subr.mxu0 0.0
  %4294 = vmatpush1.msra.mxu0 0.0
  %4295 = vmatprep.subr.mxu0 0.0
  %4296 = vmatpush1.msra.mxu0 0.0
  %4297 = vmatprep.subr.mxu0 0.0
  %4298 = vmatpush1.msra.mxu0 0.0
  %4299 = vmatprep.subr.mxu0 0.0
  %4300 = vmatpush1.msra.mxu0 0.0
  %4301 = vmatprep.subr.mxu0 0.0
  %4302 = vmatpush1.msra.mxu0 0.0
  %4303 = vmatprep.subr.mxu0 0.0
  %4304 = vmatpush1.msra.mxu0 0.0
  %4305 = vmatprep.subr.mxu0 0.0
  %4306 = vmatpush1.msra.mxu0 0.0
  %4307 = vmatprep.mubr.f32.mxu0 0.0
  %v4308 = vand.u32 %v3947, 4294901760
  %v4309 = vsub.f32 %v3947, %v4308
  %4310 = vmatmul.mubr.f32.gmra.mrb[0].mxu0 %v4309
  %v4311 = vpop.f32.mrb[0].mxu0
  %v4312 = vadd.f32 %v4208, %v4311
  %v4313 = vpop.f32.mrb[0].mxu0
  %4314 = vdwg.mxu0
  %4315 = vmatprep.subr.mxu0 0.0
  %v4316 = vand.u32 %v3953, 4294901760
  %4317 = vmatpush1.msra.mxu0 %v4316
  %4318 = vmatprep.subr.mxu0 0.0
  %v4319 = vand.u32 %v3954, 4294901760
  %4320 = vmatpush1.msra.mxu0 %v4319
  %4321 = vmatprep.subr.mxu0 0.0
  %v4322 = vand.u32 %v3955, 4294901760
  %4323 = vmatpush1.msra.mxu0 %v4322
  %4324 = vmatprep.subr.mxu0 0.0
  %v4325 = vand.u32 %v3956, 4294901760
  %4326 = vmatpush1.msra.mxu0 %v4325
  %4327 = vmatprep.subr.mxu0 0.0
  %v4328 = vand.u32 %v3957, 4294901760
  %4329 = vmatpush1.msra.mxu0 %v4328
  %4330 = vmatprep.subr.mxu0 0.0
  %v4331 = vand.u32 %v3958, 4294901760
  %4332 = vmatpush1.msra.mxu0 %v4331
  %4333 = vmatprep.subr.mxu0 0.0
  %v4334 = vand.u32 %v3959, 4294901760
  %4335 = vmatpush1.msra.mxu0 %v4334
  %4336 = vmatprep.subr.mxu0 0.0
  %v4337 = vand.u32 %v3960, 4294901760
  %4338 = vmatpush1.msra.mxu0 %v4337
  %4339 = vmatprep.subr.mxu0 0.0
  %v4340 = vand.u32 %v3961, 4294901760
  %4341 = vmatpush1.msra.mxu0 %v4340
  %4342 = vmatprep.subr.mxu0 0.0
  %v4343 = vand.u32 %v3962, 4294901760
  %4344 = vmatpush1.msra.mxu0 %v4343
  %4345 = vmatprep.subr.mxu0 0.0
  %v4346 = vand.u32 %v3963, 4294901760
  %4347 = vmatpush1.msra.mxu0 %v4346
  %4348 = vmatprep.subr.mxu0 0.0
  %v4349 = vand.u32 %v3964, 4294901760
  %4350 = vmatpush1.msra.mxu0 %v4349
  %4351 = vmatprep.subr.mxu0 0.0
  %v4352 = vand.u32 %v3965, 4294901760
  %4353 = vmatpush1.msra.mxu0 %v4352
  %4354 = vmatprep.subr.mxu0 0.0
  %v4355 = vand.u32 %v3966, 4294901760
  %4356 = vmatpush1.msra.mxu0 %v4355
  %4357 = vmatprep.subr.mxu0 0.0
  %v4358 = vand.u32 %v3967, 4294901760
  %4359 = vmatpush1.msra.mxu0 %v4358
  %4360 = vmatprep.subr.mxu0 0.0
  %v4361 = vand.u32 %v3968, 4294901760
  %4362 = vmatpush1.msra.mxu0 %v4361
  %4363 = vmatprep.subr.mxu0 0.0
  %4364 = vmatpush1.msra.mxu0 0.0
  %4365 = vmatprep.subr.mxu0 0.0
  %4366 = vmatpush1.msra.mxu0 0.0
  %4367 = vmatprep.subr.mxu0 0.0
  %4368 = vmatpush1.msra.mxu0 0.0
  %4369 = vmatprep.subr.mxu0 0.0
  %4370 = vmatpush1.msra.mxu0 0.0
  %4371 = vmatprep.subr.mxu0 0.0
  %4372 = vmatpush1.msra.mxu0 0.0
  %4373 = vmatprep.subr.mxu0 0.0
  %4374 = vmatpush1.msra.mxu0 0.0
  %4375 = vmatprep.subr.mxu0 0.0
  %4376 = vmatpush1.msra.mxu0 0.0
  %4377 = vmatprep.subr.mxu0 0.0
  %4378 = vmatpush1.msra.mxu0 0.0
  %4379 = vmatprep.subr.mxu0 0.0
  %4380 = vmatpush1.msra.mxu0 0.0
  %4381 = vmatprep.subr.mxu0 0.0
  %4382 = vmatpush1.msra.mxu0 0.0
  %4383 = vmatprep.subr.mxu0 0.0
  %4384 = vmatpush1.msra.mxu0 0.0
  %4385 = vmatprep.subr.mxu0 0.0
  %4386 = vmatpush1.msra.mxu0 0.0
  %4387 = vmatprep.subr.mxu0 0.0
  %4388 = vmatpush1.msra.mxu0 0.0
  %4389 = vmatprep.subr.mxu0 0.0
  %4390 = vmatpush1.msra.mxu0 0.0
  %4391 = vmatprep.subr.mxu0 0.0
  %4392 = vmatpush1.msra.mxu0 0.0
  %4393 = vmatprep.subr.mxu0 0.0
  %4394 = vmatpush1.msra.mxu0 0.0
  %4395 = vmatprep.mubr.f32.mxu0 0.0
  %v4396 = vand.u32 %v3947, 4294901760
  %v4397 = vsub.f32 %v3947, %v4396
  %v4398 = vand.u32 %v4397, 4294901760
  %4399 = vmatmul.mubr.f32.gmra.mrb[0].mxu0 %v4398
  %v4400 = vpop.f32.mrb[0].mxu0
  %v4401 = vadd.f32 %v4312, %v4400
  %v4402 = vpop.f32.mrb[0].mxu0
  %4403 = vdwg.mxu0
  %4404 = vmatprep.subr.mxu0 0.0
  %v4405 = vand.u32 %v3953, 4294901760
  %v4406 = vsub.f32 %v3953, %v4405
  %v4407 = vand.u32 %v4406, 4294901760
  %4408 = vmatpush1.msra.mxu0 %v4407
  %4409 = vmatprep.subr.mxu0 0.0
  %v4410 = vand.u32 %v3954, 4294901760
  %v4411 = vsub.f32 %v3954, %v4410
  %v4412 = vand.u32 %v4411, 4294901760
  %4413 = vmatpush1.msra.mxu0 %v4412
  %4414 = vmatprep.subr.mxu0 0.0
  %v4415 = vand.u32 %v3955, 4294901760
  %v4416 = vsub.f32 %v3955, %v4415
  %v4417 = vand.u32 %v4416, 4294901760
  %4418 = vmatpush1.msra.mxu0 %v4417
  %4419 = vmatprep.subr.mxu0 0.0
  %v4420 = vand.u32 %v3956, 4294901760
  %v4421 = vsub.f32 %v3956, %v4420
  %v4422 = vand.u32 %v4421, 4294901760
  %4423 = vmatpush1.msra.mxu0 %v4422
  %4424 = vmatprep.subr.mxu0 0.0
  %v4425 = vand.u32 %v3957, 4294901760
  %v4426 = vsub.f32 %v3957, %v4425
  %v4427 = vand.u32 %v4426, 4294901760
  %4428 = vmatpush1.msra.mxu0 %v4427
  %4429 = vmatprep.subr.mxu0 0.0
  %v4430 = vand.u32 %v3958, 4294901760
  %v4431 = vsub.f32 %v3958, %v4430
  %v4432 = vand.u32 %v4431, 4294901760
  %4433 = vmatpush1.msra.mxu0 %v4432
  %4434 = vmatprep.subr.mxu0 0.0
  %v4435 = vand.u32 %v3959, 4294901760
  %v4436 = vsub.f32 %v3959, %v4435
  %v4437 = vand.u32 %v4436, 4294901760
  %4438 = vmatpush1.msra.mxu0 %v4437
  %4439 = vmatprep.subr.mxu0 0.0
  %v4440 = vand.u32 %v3960, 4294901760
  %v4441 = vsub.f32 %v3960, %v4440
  %v4442 = vand.u32 %v4441, 4294901760
  %4443 = vmatpush1.msra.mxu0 %v4442
  %4444 = vmatprep.subr.mxu0 0.0
  %v4445 = vand.u32 %v3961, 4294901760
  %v4446 = vsub.f32 %v3961, %v4445
  %v4447 = vand.u32 %v4446, 4294901760
  %4448 = vmatpush1.msra.mxu0 %v4447
  %4449 = vmatprep.subr.mxu0 0.0
  %v4450 = vand.u32 %v3962, 4294901760
  %v4451 = vsub.f32 %v3962, %v4450
  %v4452 = vand.u32 %v4451, 4294901760
  %4453 = vmatpush1.msra.mxu0 %v4452
  %4454 = vmatprep.subr.mxu0 0.0
  %v4455 = vand.u32 %v3963, 4294901760
  %v4456 = vsub.f32 %v3963, %v4455
  %v4457 = vand.u32 %v4456, 4294901760
  %4458 = vmatpush1.msra.mxu0 %v4457
  %4459 = vmatprep.subr.mxu0 0.0
  %v4460 = vand.u32 %v3964, 4294901760
  %v4461 = vsub.f32 %v3964, %v4460
  %v4462 = vand.u32 %v4461, 4294901760
  %4463 = vmatpush1.msra.mxu0 %v4462
  %4464 = vmatprep.subr.mxu0 0.0
  %v4465 = vand.u32 %v3965, 4294901760
  %v4466 = vsub.f32 %v3965, %v4465
  %v4467 = vand.u32 %v4466, 4294901760
  %4468 = vmatpush1.msra.mxu0 %v4467
  %4469 = vmatprep.subr.mxu0 0.0
  %v4470 = vand.u32 %v3966, 4294901760
  %v4471 = vsub.f32 %v3966, %v4470
  %v4472 = vand.u32 %v4471, 4294901760
  %4473 = vmatpush1.msra.mxu0 %v4472
  %4474 = vmatprep.subr.mxu0 0.0
  %v4475 = vand.u32 %v3967, 4294901760
  %v4476 = vsub.f32 %v3967, %v4475
  %v4477 = vand.u32 %v4476, 4294901760
  %4478 = vmatpush1.msra.mxu0 %v4477
  %4479 = vmatprep.subr.mxu0 0.0
  %v4480 = vand.u32 %v3968, 4294901760
  %v4481 = vsub.f32 %v3968, %v4480
  %v4482 = vand.u32 %v4481, 4294901760
  %4483 = vmatpush1.msra.mxu0 %v4482
  %4484 = vmatprep.subr.mxu0 0.0
  %4485 = vmatpush1.msra.mxu0 0.0
  %4486 = vmatprep.subr.mxu0 0.0
  %4487 = vmatpush1.msra.mxu0 0.0
  %4488 = vmatprep.subr.mxu0 0.0
  %4489 = vmatpush1.msra.mxu0 0.0
  %4490 = vmatprep.subr.mxu0 0.0
  %4491 = vmatpush1.msra.mxu0 0.0
  %4492 = vmatprep.subr.mxu0 0.0
  %4493 = vmatpush1.msra.mxu0 0.0
  %4494 = vmatprep.subr.mxu0 0.0
  %4495 = vmatpush1.msra.mxu0 0.0
  %4496 = vmatprep.subr.mxu0 0.0
  %4497 = vmatpush1.msra.mxu0 0.0
  %4498 = vmatprep.subr.mxu0 0.0
  %4499 = vmatpush1.msra.mxu0 0.0
  %4500 = vmatprep.subr.mxu0 0.0
  %4501 = vmatpush1.msra.mxu0 0.0
  %4502 = vmatprep.subr.mxu0 0.0
  %4503 = vmatpush1.msra.mxu0 0.0
  %4504 = vmatprep.subr.mxu0 0.0
  %4505 = vmatpush1.msra.mxu0 0.0
  %4506 = vmatprep.subr.mxu0 0.0
  %4507 = vmatpush1.msra.mxu0 0.0
  %4508 = vmatprep.subr.mxu0 0.0
  %4509 = vmatpush1.msra.mxu0 0.0
  %4510 = vmatprep.subr.mxu0 0.0
  %4511 = vmatpush1.msra.mxu0 0.0
  %4512 = vmatprep.subr.mxu0 0.0
  %4513 = vmatpush1.msra.mxu0 0.0
  %4514 = vmatprep.subr.mxu0 0.0
  %4515 = vmatpush1.msra.mxu0 0.0
  %4516 = vmatprep.mubr.f32.mxu0 0.0
  %v4517 = vand.u32 %v3947, 4294901760
  %4518 = vmatmul.mubr.f32.gmra.mrb[0].mxu0 %v4517
  %v4519 = vpop.f32.mrb[0].mxu0
  %v4520 = vadd.f32 %v4401, %v4519
  %v4521 = vpop.f32.mrb[0].mxu0
  %4522 = vdwg.mxu0
  %4523 = vmatprep.subr.mxu0 0.0
  %v4524 = vand.u32 %v3953, 4294901760
  %4525 = vmatpush1.msra.mxu0 %v4524
  %4526 = vmatprep.subr.mxu0 0.0
  %v4527 = vand.u32 %v3954, 4294901760
  %4528 = vmatpush1.msra.mxu0 %v4527
  %4529 = vmatprep.subr.mxu0 0.0
  %v4530 = vand.u32 %v3955, 4294901760
  %4531 = vmatpush1.msra.mxu0 %v4530
  %4532 = vmatprep.subr.mxu0 0.0
  %v4533 = vand.u32 %v3956, 4294901760
  %4534 = vmatpush1.msra.mxu0 %v4533
  %4535 = vmatprep.subr.mxu0 0.0
  %v4536 = vand.u32 %v3957, 4294901760
  %4537 = vmatpush1.msra.mxu0 %v4536
  %4538 = vmatprep.subr.mxu0 0.0
  %v4539 = vand.u32 %v3958, 4294901760
  %4540 = vmatpush1.msra.mxu0 %v4539
  %4541 = vmatprep.subr.mxu0 0.0
  %v4542 = vand.u32 %v3959, 4294901760
  %4543 = vmatpush1.msra.mxu0 %v4542
  %4544 = vmatprep.subr.mxu0 0.0
  %v4545 = vand.u32 %v3960, 4294901760
  %4546 = vmatpush1.msra.mxu0 %v4545
  %4547 = vmatprep.subr.mxu0 0.0
  %v4548 = vand.u32 %v3961, 4294901760
  %4549 = vmatpush1.msra.mxu0 %v4548
  %4550 = vmatprep.subr.mxu0 0.0
  %v4551 = vand.u32 %v3962, 4294901760
  %4552 = vmatpush1.msra.mxu0 %v4551
  %4553 = vmatprep.subr.mxu0 0.0
  %v4554 = vand.u32 %v3963, 4294901760
  %4555 = vmatpush1.msra.mxu0 %v4554
  %4556 = vmatprep.subr.mxu0 0.0
  %v4557 = vand.u32 %v3964, 4294901760
  %4558 = vmatpush1.msra.mxu0 %v4557
  %4559 = vmatprep.subr.mxu0 0.0
  %v4560 = vand.u32 %v3965, 4294901760
  %4561 = vmatpush1.msra.mxu0 %v4560
  %4562 = vmatprep.subr.mxu0 0.0
  %v4563 = vand.u32 %v3966, 4294901760
  %4564 = vmatpush1.msra.mxu0 %v4563
  %4565 = vmatprep.subr.mxu0 0.0
  %v4566 = vand.u32 %v3967, 4294901760
  %4567 = vmatpush1.msra.mxu0 %v4566
  %4568 = vmatprep.subr.mxu0 0.0
  %v4569 = vand.u32 %v3968, 4294901760
  %4570 = vmatpush1.msra.mxu0 %v4569
  %4571 = vmatprep.subr.mxu0 0.0
  %4572 = vmatpush1.msra.mxu0 0.0
  %4573 = vmatprep.subr.mxu0 0.0
  %4574 = vmatpush1.msra.mxu0 0.0
  %4575 = vmatprep.subr.mxu0 0.0
  %4576 = vmatpush1.msra.mxu0 0.0
  %4577 = vmatprep.subr.mxu0 0.0
  %4578 = vmatpush1.msra.mxu0 0.0
  %4579 = vmatprep.subr.mxu0 0.0
  %4580 = vmatpush1.msra.mxu0 0.0
  %4581 = vmatprep.subr.mxu0 0.0
  %4582 = vmatpush1.msra.mxu0 0.0
  %4583 = vmatprep.subr.mxu0 0.0
  %4584 = vmatpush1.msra.mxu0 0.0
  %4585 = vmatprep.subr.mxu0 0.0
  %4586 = vmatpush1.msra.mxu0 0.0
  %4587 = vmatprep.subr.mxu0 0.0
  %4588 = vmatpush1.msra.mxu0 0.0
  %4589 = vmatprep.subr.mxu0 0.0
  %4590 = vmatpush1.msra.mxu0 0.0
  %4591 = vmatprep.subr.mxu0 0.0
  %4592 = vmatpush1.msra.mxu0 0.0
  %4593 = vmatprep.subr.mxu0 0.0
  %4594 = vmatpush1.msra.mxu0 0.0
  %4595 = vmatprep.subr.mxu0 0.0
  %4596 = vmatpush1.msra.mxu0 0.0
  %4597 = vmatprep.subr.mxu0 0.0
  %4598 = vmatpush1.msra.mxu0 0.0
  %4599 = vmatprep.subr.mxu0 0.0
  %4600 = vmatpush1.msra.mxu0 0.0
  %4601 = vmatprep.subr.mxu0 0.0
  %4602 = vmatpush1.msra.mxu0 0.0
  %4603 = vmatprep.mubr.f32.mxu0 0.0
  %v4604 = vand.u32 %v3947, 4294901760
  %4605 = vmatmul.mubr.f32.gmra.mrb[0].mxu0 %v4604
  %v4606 = vpop.f32.mrb[0].mxu0
  %v4607 = vadd.f32 %v4520, %v4606
  %v4608 = vpop.f32.mrb[0].mxu0
  %4609 = vdwg.mxu0
  %vm4610 = vcmask 1043456
  %v4611 = vsel %vm4610, %v4607, 0.0
  %v4612 = vrot.slane %v4611, 4
  %v4613 = vadd.f32 %v4611, %v4612
  %v4614 = vrot.slane %v4613, 2
  %v4615 = vadd.f32 %v4613, %v4614
  %v4616 = vrot.slane %v4615, 1
  %v4617 = vadd.f32 %v4615, %v4616
  %v4618 = vrcp.pop 4.0
  %v4619 = vmul.f32 %v4617, %v4618
  %v4620 = vmul.f32 %v3947, %v3947
  %4621 = vmatprep.subr.mxu0 0.0
  %v4622 = vand.u32 %v3953, 4294901760
  %4623 = vmatpush1.msra.mxu0 %v4622
  %4624 = vmatprep.subr.mxu0 0.0
  %v4625 = vand.u32 %v3954, 4294901760
  %4626 = vmatpush1.msra.mxu0 %v4625
  %4627 = vmatprep.subr.mxu0 0.0
  %v4628 = vand.u32 %v3955, 4294901760
  %4629 = vmatpush1.msra.mxu0 %v4628
  %4630 = vmatprep.subr.mxu0 0.0
  %v4631 = vand.u32 %v3956, 4294901760
  %4632 = vmatpush1.msra.mxu0 %v4631
  %4633 = vmatprep.subr.mxu0 0.0
  %v4634 = vand.u32 %v3957, 4294901760
  %4635 = vmatpush1.msra.mxu0 %v4634
  %4636 = vmatprep.subr.mxu0 0.0
  %v4637 = vand.u32 %v3958, 4294901760
  %4638 = vmatpush1.msra.mxu0 %v4637
  %4639 = vmatprep.subr.mxu0 0.0
  %v4640 = vand.u32 %v3959, 4294901760
  %4641 = vmatpush1.msra.mxu0 %v4640
  %4642 = vmatprep.subr.mxu0 0.0
  %v4643 = vand.u32 %v3960, 4294901760
  %4644 = vmatpush1.msra.mxu0 %v4643
  %4645 = vmatprep.subr.mxu0 0.0
  %v4646 = vand.u32 %v3961, 4294901760
  %4647 = vmatpush1.msra.mxu0 %v4646
  %4648 = vmatprep.subr.mxu0 0.0
  %v4649 = vand.u32 %v3962, 4294901760
  %4650 = vmatpush1.msra.mxu0 %v4649
  %4651 = vmatprep.subr.mxu0 0.0
  %v4652 = vand.u32 %v3963, 4294901760
  %4653 = vmatpush1.msra.mxu0 %v4652
  %4654 = vmatprep.subr.mxu0 0.0
  %v4655 = vand.u32 %v3964, 4294901760
  %4656 = vmatpush1.msra.mxu0 %v4655
  %4657 = vmatprep.subr.mxu0 0.0
  %v4658 = vand.u32 %v3965, 4294901760
  %4659 = vmatpush1.msra.mxu0 %v4658
  %4660 = vmatprep.subr.mxu0 0.0
  %v4661 = vand.u32 %v3966, 4294901760
  %4662 = vmatpush1.msra.mxu0 %v4661
  %4663 = vmatprep.subr.mxu0 0.0
  %v4664 = vand.u32 %v3967, 4294901760
  %4665 = vmatpush1.msra.mxu0 %v4664
  %4666 = vmatprep.subr.mxu0 0.0
  %v4667 = vand.u32 %v3968, 4294901760
  %4668 = vmatpush1.msra.mxu0 %v4667
  %4669 = vmatprep.subr.mxu0 0.0
  %4670 = vmatpush1.msra.mxu0 0.0
  %4671 = vmatprep.subr.mxu0 0.0
  %4672 = vmatpush1.msra.mxu0 0.0
  %4673 = vmatprep.subr.mxu0 0.0
  %4674 = vmatpush1.msra.mxu0 0.0
  %4675 = vmatprep.subr.mxu0 0.0
  %4676 = vmatpush1.msra.mxu0 0.0
  %4677 = vmatprep.subr.mxu0 0.0
  %4678 = vmatpush1.msra.mxu0 0.0
  %4679 = vmatprep.subr.mxu0 0.0
  %4680 = vmatpush1.msra.mxu0 0.0
  %4681 = vmatprep.subr.mxu0 0.0
  %4682 = vmatpush1.msra.mxu0 0.0
  %4683 = vmatprep.subr.mxu0 0.0
  %4684 = vmatpush1.msra.mxu0 0.0
  %4685 = vmatprep.subr.mxu0 0.0
  %4686 = vmatpush1.msra.mxu0 0.0
  %4687 = vmatprep.subr.mxu0 0.0
  %4688 = vmatpush1.msra.mxu0 0.0
  %4689 = vmatprep.subr.mxu0 0.0
  %4690 = vmatpush1.msra.mxu0 0.0
  %4691 = vmatprep.subr.mxu0 0.0
  %4692 = vmatpush1.msra.mxu0 0.0
  %4693 = vmatprep.subr.mxu0 0.0
  %4694 = vmatpush1.msra.mxu0 0.0
  %4695 = vmatprep.subr.mxu0 0.0
  %4696 = vmatpush1.msra.mxu0 0.0
  %4697 = vmatprep.subr.mxu0 0.0
  %4698 = vmatpush1.msra.mxu0 0.0
  %4699 = vmatprep.subr.mxu0 0.0
  %4700 = vmatpush1.msra.mxu0 0.0
  %4701 = vmatprep.mubr.f32.mxu0 0.0
  %v4702 = vand.u32 %v4620, 4294901760
  %v4703 = vsub.f32 %v4620, %v4702
  %v4704 = vand.u32 %v4703, 4294901760
  %v4705 = vsub.f32 %v4703, %v4704
  %v4706 = vand.u32 %v4705, 4294901760
  %4707 = vmatmul.mubr.f32.gmra.mrb[0].mxu0 %v4706
  %v4708 = vpop.f32.mrb[0].mxu0
  %v4709 = vadd.f32 0.0, %v4708
  %v4710 = vpop.f32.mrb[0].mxu0
  %4711 = vdwg.mxu0
  %4712 = vmatprep.subr.mxu0 0.0
  %v4713 = vand.u32 %v3953, 4294901760
  %v4714 = vsub.f32 %v3953, %v4713
  %v4715 = vand.u32 %v4714, 4294901760
  %v4716 = vsub.f32 %v4714, %v4715
  %v4717 = vand.u32 %v4716, 4294901760
  %4718 = vmatpush1.msra.mxu0 %v4717
  %4719 = vmatprep.subr.mxu0 0.0
  %v4720 = vand.u32 %v3954, 4294901760
  %v4721 = vsub.f32 %v3954, %v4720
  %v4722 = vand.u32 %v4721, 4294901760
  %v4723 = vsub.f32 %v4721, %v4722
  %v4724 = vand.u32 %v4723, 4294901760
  %4725 = vmatpush1.msra.mxu0 %v4724
  %4726 = vmatprep.subr.mxu0 0.0
  %v4727 = vand.u32 %v3955, 4294901760
  %v4728 = vsub.f32 %v3955, %v4727
  %v4729 = vand.u32 %v4728, 4294901760
  %v4730 = vsub.f32 %v4728, %v4729
  %v4731 = vand.u32 %v4730, 4294901760
  %4732 = vmatpush1.msra.mxu0 %v4731
  %4733 = vmatprep.subr.mxu0 0.0
  %v4734 = vand.u32 %v3956, 4294901760
  %v4735 = vsub.f32 %v3956, %v4734
  %v4736 = vand.u32 %v4735, 4294901760
  %v4737 = vsub.f32 %v4735, %v4736
  %v4738 = vand.u32 %v4737, 4294901760
  %4739 = vmatpush1.msra.mxu0 %v4738
  %4740 = vmatprep.subr.mxu0 0.0
  %v4741 = vand.u32 %v3957, 4294901760
  %v4742 = vsub.f32 %v3957, %v4741
  %v4743 = vand.u32 %v4742, 4294901760
  %v4744 = vsub.f32 %v4742, %v4743
  %v4745 = vand.u32 %v4744, 4294901760
  %4746 = vmatpush1.msra.mxu0 %v4745
  %4747 = vmatprep.subr.mxu0 0.0
  %v4748 = vand.u32 %v3958, 4294901760
  %v4749 = vsub.f32 %v3958, %v4748
  %v4750 = vand.u32 %v4749, 4294901760
  %v4751 = vsub.f32 %v4749, %v4750
  %v4752 = vand.u32 %v4751, 4294901760
  %4753 = vmatpush1.msra.mxu0 %v4752
  %4754 = vmatprep.subr.mxu0 0.0
  %v4755 = vand.u32 %v3959, 4294901760
  %v4756 = vsub.f32 %v3959, %v4755
  %v4757 = vand.u32 %v4756, 4294901760
  %v4758 = vsub.f32 %v4756, %v4757
  %v4759 = vand.u32 %v4758, 4294901760
  %4760 = vmatpush1.msra.mxu0 %v4759
  %4761 = vmatprep.subr.mxu0 0.0
  %v4762 = vand.u32 %v3960, 4294901760
  %v4763 = vsub.f32 %v3960, %v4762
  %v4764 = vand.u32 %v4763, 4294901760
  %v4765 = vsub.f32 %v4763, %v4764
  %v4766 = vand.u32 %v4765, 4294901760
  %4767 = vmatpush1.msra.mxu0 %v4766
  %4768 = vmatprep.subr.mxu0 0.0
  %v4769 = vand.u32 %v3961, 4294901760
  %v4770 = vsub.f32 %v3961, %v4769
  %v4771 = vand.u32 %v4770, 4294901760
  %v4772 = vsub.f32 %v4770, %v4771
  %v4773 = vand.u32 %v4772, 4294901760
  %4774 = vmatpush1.msra.mxu0 %v4773
  %4775 = vmatprep.subr.mxu0 0.0
  %v4776 = vand.u32 %v3962, 4294901760
  %v4777 = vsub.f32 %v3962, %v4776
  %v4778 = vand.u32 %v4777, 4294901760
  %v4779 = vsub.f32 %v4777, %v4778
  %v4780 = vand.u32 %v4779, 4294901760
  %4781 = vmatpush1.msra.mxu0 %v4780
  %4782 = vmatprep.subr.mxu0 0.0
  %v4783 = vand.u32 %v3963, 4294901760
  %v4784 = vsub.f32 %v3963, %v4783
  %v4785 = vand.u32 %v4784, 4294901760
  %v4786 = vsub.f32 %v4784, %v4785
  %v4787 = vand.u32 %v4786, 4294901760
  %4788 = vmatpush1.msra.mxu0 %v4787
  %4789 = vmatprep.subr.mxu0 0.0
  %v4790 = vand.u32 %v3964, 4294901760
  %v4791 = vsub.f32 %v3964, %v4790
  %v4792 = vand.u32 %v4791, 4294901760
  %v4793 = vsub.f32 %v4791, %v4792
  %v4794 = vand.u32 %v4793, 4294901760
  %4795 = vmatpush1.msra.mxu0 %v4794
  %4796 = vmatprep.subr.mxu0 0.0
  %v4797 = vand.u32 %v3965, 4294901760
  %v4798 = vsub.f32 %v3965, %v4797
  %v4799 = vand.u32 %v4798, 4294901760
  %v4800 = vsub.f32 %v4798, %v4799
  %v4801 = vand.u32 %v4800, 4294901760
  %4802 = vmatpush1.msra.mxu0 %v4801
  %4803 = vmatprep.subr.mxu0 0.0
  %v4804 = vand.u32 %v3966, 4294901760
  %v4805 = vsub.f32 %v3966, %v4804
  %v4806 = vand.u32 %v4805, 4294901760
  %v4807 = vsub.f32 %v4805, %v4806
  %v4808 = vand.u32 %v4807, 4294901760
  %4809 = vmatpush1.msra.mxu0 %v4808
  %4810 = vmatprep.subr.mxu0 0.0
  %v4811 = vand.u32 %v3967, 4294901760
  %v4812 = vsub.f32 %v3967, %v4811
  %v4813 = vand.u32 %v4812, 4294901760
  %v4814 = vsub.f32 %v4812, %v4813
  %v4815 = vand.u32 %v4814, 4294901760
  %4816 = vmatpush1.msra.mxu0 %v4815
  %4817 = vmatprep.subr.mxu0 0.0
  %v4818 = vand.u32 %v3968, 4294901760
  %v4819 = vsub.f32 %v3968, %v4818
  %v4820 = vand.u32 %v4819, 4294901760
  %v4821 = vsub.f32 %v4819, %v4820
  %v4822 = vand.u32 %v4821, 4294901760
  %4823 = vmatpush1.msra.mxu0 %v4822
  %4824 = vmatprep.subr.mxu0 0.0
  %4825 = vmatpush1.msra.mxu0 0.0
  %4826 = vmatprep.subr.mxu0 0.0
  %4827 = vmatpush1.msra.mxu0 0.0
  %4828 = vmatprep.subr.mxu0 0.0
  %4829 = vmatpush1.msra.mxu0 0.0
  %4830 = vmatprep.subr.mxu0 0.0
  %4831 = vmatpush1.msra.mxu0 0.0
  %4832 = vmatprep.subr.mxu0 0.0
  %4833 = vmatpush1.msra.mxu0 0.0
  %4834 = vmatprep.subr.mxu0 0.0
  %4835 = vmatpush1.msra.mxu0 0.0
  %4836 = vmatprep.subr.mxu0 0.0
  %4837 = vmatpush1.msra.mxu0 0.0
  %4838 = vmatprep.subr.mxu0 0.0
  %4839 = vmatpush1.msra.mxu0 0.0
  %4840 = vmatprep.subr.mxu0 0.0
  %4841 = vmatpush1.msra.mxu0 0.0
  %4842 = vmatprep.subr.mxu0 0.0
  %4843 = vmatpush1.msra.mxu0 0.0
  %4844 = vmatprep.subr.mxu0 0.0
  %4845 = vmatpush1.msra.mxu0 0.0
  %4846 = vmatprep.subr.mxu0 0.0
  %4847 = vmatpush1.msra.mxu0 0.0
  %4848 = vmatprep.subr.mxu0 0.0
  %4849 = vmatpush1.msra.mxu0 0.0
  %4850 = vmatprep.subr.mxu0 0.0
  %4851 = vmatpush1.msra.mxu0 0.0
  %4852 = vmatprep.subr.mxu0 0.0
  %4853 = vmatpush1.msra.mxu0 0.0
  %4854 = vmatprep.subr.mxu0 0.0
  %4855 = vmatpush1.msra.mxu0 0.0
  %4856 = vmatprep.mubr.f32.mxu0 0.0
  %v4857 = vand.u32 %v4620, 4294901760
  %4858 = vmatmul.mubr.f32.gmra.mrb[0].mxu0 %v4857
  %v4859 = vpop.f32.mrb[0].mxu0
  %v4860 = vadd.f32 %v4709, %v4859
  %v4861 = vpop.f32.mrb[0].mxu0
  %4862 = vdwg.mxu0
  %4863 = vmatprep.subr.mxu0 0.0
  %v4864 = vand.u32 %v3953, 4294901760
  %v4865 = vsub.f32 %v3953, %v4864
  %4866 = vmatpush1.msra.mxu0 %v4865
  %4867 = vmatprep.subr.mxu0 0.0
  %v4868 = vand.u32 %v3954, 4294901760
  %v4869 = vsub.f32 %v3954, %v4868
  %4870 = vmatpush1.msra.mxu0 %v4869
  %4871 = vmatprep.subr.mxu0 0.0
  %v4872 = vand.u32 %v3955, 4294901760
  %v4873 = vsub.f32 %v3955, %v4872
  %4874 = vmatpush1.msra.mxu0 %v4873
  %4875 = vmatprep.subr.mxu0 0.0
  %v4876 = vand.u32 %v3956, 4294901760
  %v4877 = vsub.f32 %v3956, %v4876
  %4878 = vmatpush1.msra.mxu0 %v4877
  %4879 = vmatprep.subr.mxu0 0.0
  %v4880 = vand.u32 %v3957, 4294901760
  %v4881 = vsub.f32 %v3957, %v4880
  %4882 = vmatpush1.msra.mxu0 %v4881
  %4883 = vmatprep.subr.mxu0 0.0
  %v4884 = vand.u32 %v3958, 4294901760
  %v4885 = vsub.f32 %v3958, %v4884
  %4886 = vmatpush1.msra.mxu0 %v4885
  %4887 = vmatprep.subr.mxu0 0.0
  %v4888 = vand.u32 %v3959, 4294901760
  %v4889 = vsub.f32 %v3959, %v4888
  %4890 = vmatpush1.msra.mxu0 %v4889
  %4891 = vmatprep.subr.mxu0 0.0
  %v4892 = vand.u32 %v3960, 4294901760
  %v4893 = vsub.f32 %v3960, %v4892
  %4894 = vmatpush1.msra.mxu0 %v4893
  %4895 = vmatprep.subr.mxu0 0.0
  %v4896 = vand.u32 %v3961, 4294901760
  %v4897 = vsub.f32 %v3961, %v4896
  %4898 = vmatpush1.msra.mxu0 %v4897
  %4899 = vmatprep.subr.mxu0 0.0
  %v4900 = vand.u32 %v3962, 4294901760
  %v4901 = vsub.f32 %v3962, %v4900
  %4902 = vmatpush1.msra.mxu0 %v4901
  %4903 = vmatprep.subr.mxu0 0.0
  %v4904 = vand.u32 %v3963, 4294901760
  %v4905 = vsub.f32 %v3963, %v4904
  %4906 = vmatpush1.msra.mxu0 %v4905
  %4907 = vmatprep.subr.mxu0 0.0
  %v4908 = vand.u32 %v3964, 4294901760
  %v4909 = vsub.f32 %v3964, %v4908
  %4910 = vmatpush1.msra.mxu0 %v4909
  %4911 = vmatprep.subr.mxu0 0.0
  %v4912 = vand.u32 %v3965, 4294901760
  %v4913 = vsub.f32 %v3965, %v4912
  %4914 = vmatpush1.msra.mxu0 %v4913
  %4915 = vmatprep.subr.mxu0 0.0
  %v4916 = vand.u32 %v3966, 4294901760
  %v4917 = vsub.f32 %v3966, %v4916
  %4918 = vmatpush1.msra.mxu0 %v4917
  %4919 = vmatprep.subr.mxu0 0.0
  %v4920 = vand.u32 %v3967, 4294901760
  %v4921 = vsub.f32 %v3967, %v4920
  %4922 = vmatpush1.msra.mxu0 %v4921
  %4923 = vmatprep.subr.mxu0 0.0
  %v4924 = vand.u32 %v3968, 4294901760
  %v4925 = vsub.f32 %v3968, %v4924
  %4926 = vmatpush1.msra.mxu0 %v4925
  %4927 = vmatprep.subr.mxu0 0.0
  %4928 = vmatpush1.msra.mxu0 0.0
  %4929 = vmatprep.subr.mxu0 0.0
  %4930 = vmatpush1.msra.mxu0 0.0
  %4931 = vmatprep.subr.mxu0 0.0
  %4932 = vmatpush1.msra.mxu0 0.0
  %4933 = vmatprep.subr.mxu0 0.0
  %4934 = vmatpush1.msra.mxu0 0.0
  %4935 = vmatprep.subr.mxu0 0.0
  %4936 = vmatpush1.msra.mxu0 0.0
  %4937 = vmatprep.subr.mxu0 0.0
  %4938 = vmatpush1.msra.mxu0 0.0
  %4939 = vmatprep.subr.mxu0 0.0
  %4940 = vmatpush1.msra.mxu0 0.0
  %4941 = vmatprep.subr.mxu0 0.0
  %4942 = vmatpush1.msra.mxu0 0.0
  %4943 = vmatprep.subr.mxu0 0.0
  %4944 = vmatpush1.msra.mxu0 0.0
  %4945 = vmatprep.subr.mxu0 0.0
  %4946 = vmatpush1.msra.mxu0 0.0
  %4947 = vmatprep.subr.mxu0 0.0
  %4948 = vmatpush1.msra.mxu0 0.0
  %4949 = vmatprep.subr.mxu0 0.0
  %4950 = vmatpush1.msra.mxu0 0.0
  %4951 = vmatprep.subr.mxu0 0.0
  %4952 = vmatpush1.msra.mxu0 0.0
  %4953 = vmatprep.subr.mxu0 0.0
  %4954 = vmatpush1.msra.mxu0 0.0
  %4955 = vmatprep.subr.mxu0 0.0
  %4956 = vmatpush1.msra.mxu0 0.0
  %4957 = vmatprep.subr.mxu0 0.0
  %4958 = vmatpush1.msra.mxu0 0.0
  %4959 = vmatprep.mubr.f32.mxu0 0.0
  %v4960 = vand.u32 %v4620, 4294901760
  %v4961 = vsub.f32 %v4620, %v4960
  %4962 = vmatmul.mubr.f32.gmra.mrb[0].mxu0 %v4961
  %v4963 = vpop.f32.mrb[0].mxu0
  %v4964 = vadd.f32 %v4860, %v4963
  %v4965 = vpop.f32.mrb[0].mxu0
  %4966 = vdwg.mxu0
  %4967 = vmatprep.subr.mxu0 0.0
  %v4968 = vand.u32 %v3953, 4294901760
  %4969 = vmatpush1.msra.mxu0 %v4968
  %4970 = vmatprep.subr.mxu0 0.0
  %v4971 = vand.u32 %v3954, 4294901760
  %4972 = vmatpush1.msra.mxu0 %v4971
  %4973 = vmatprep.subr.mxu0 0.0
  %v4974 = vand.u32 %v3955, 4294901760
  %4975 = vmatpush1.msra.mxu0 %v4974
  %4976 = vmatprep.subr.mxu0 0.0
  %v4977 = vand.u32 %v3956, 4294901760
  %4978 = vmatpush1.msra.mxu0 %v4977
  %4979 = vmatprep.subr.mxu0 0.0
  %v4980 = vand.u32 %v3957, 4294901760
  %4981 = vmatpush1.msra.mxu0 %v4980
  %4982 = vmatprep.subr.mxu0 0.0
  %v4983 = vand.u32 %v3958, 4294901760
  %4984 = vmatpush1.msra.mxu0 %v4983
  %4985 = vmatprep.subr.mxu0 0.0
  %v4986 = vand.u32 %v3959, 4294901760
  %4987 = vmatpush1.msra.mxu0 %v4986
  %4988 = vmatprep.subr.mxu0 0.0
  %v4989 = vand.u32 %v3960, 4294901760
  %4990 = vmatpush1.msra.mxu0 %v4989
  %4991 = vmatprep.subr.mxu0 0.0
  %v4992 = vand.u32 %v3961, 4294901760
  %4993 = vmatpush1.msra.mxu0 %v4992
  %4994 = vmatprep.subr.mxu0 0.0
  %v4995 = vand.u32 %v3962, 4294901760
  %4996 = vmatpush1.msra.mxu0 %v4995
  %4997 = vmatprep.subr.mxu0 0.0
  %v4998 = vand.u32 %v3963, 4294901760
  %4999 = vmatpush1.msra.mxu0 %v4998
  %5000 = vmatprep.subr.mxu0 0.0
  %v5001 = vand.u32 %v3964, 4294901760
  %5002 = vmatpush1.msra.mxu0 %v5001
  %5003 = vmatprep.subr.mxu0 0.0
  %v5004 = vand.u32 %v3965, 4294901760
  %5005 = vmatpush1.msra.mxu0 %v5004
  %5006 = vmatprep.subr.mxu0 0.0
  %v5007 = vand.u32 %v3966, 4294901760
  %5008 = vmatpush1.msra.mxu0 %v5007
  %5009 = vmatprep.subr.mxu0 0.0
  %v5010 = vand.u32 %v3967, 4294901760
  %5011 = vmatpush1.msra.mxu0 %v5010
  %5012 = vmatprep.subr.mxu0 0.0
  %v5013 = vand.u32 %v3968, 4294901760
  %5014 = vmatpush1.msra.mxu0 %v5013
  %5015 = vmatprep.subr.mxu0 0.0
  %5016 = vmatpush1.msra.mxu0 0.0
  %5017 = vmatprep.subr.mxu0 0.0
  %5018 = vmatpush1.msra.mxu0 0.0
  %5019 = vmatprep.subr.mxu0 0.0
  %5020 = vmatpush1.msra.mxu0 0.0
  %5021 = vmatprep.subr.mxu0 0.0
  %5022 = vmatpush1.msra.mxu0 0.0
  %5023 = vmatprep.subr.mxu0 0.0
  %5024 = vmatpush1.msra.mxu0 0.0
  %5025 = vmatprep.subr.mxu0 0.0
  %5026 = vmatpush1.msra.mxu0 0.0
  %5027 = vmatprep.subr.mxu0 0.0
  %5028 = vmatpush1.msra.mxu0 0.0
  %5029 = vmatprep.subr.mxu0 0.0
  %5030 = vmatpush1.msra.mxu0 0.0
  %5031 = vmatprep.subr.mxu0 0.0
  %5032 = vmatpush1.msra.mxu0 0.0
  %5033 = vmatprep.subr.mxu0 0.0
  %5034 = vmatpush1.msra.mxu0 0.0
  %5035 = vmatprep.subr.mxu0 0.0
  %5036 = vmatpush1.msra.mxu0 0.0
  %5037 = vmatprep.subr.mxu0 0.0
  %5038 = vmatpush1.msra.mxu0 0.0
  %5039 = vmatprep.subr.mxu0 0.0
  %5040 = vmatpush1.msra.mxu0 0.0
  %5041 = vmatprep.subr.mxu0 0.0
  %5042 = vmatpush1.msra.mxu0 0.0
  %5043 = vmatprep.subr.mxu0 0.0
  %5044 = vmatpush1.msra.mxu0 0.0
  %5045 = vmatprep.subr.mxu0 0.0
  %5046 = vmatpush1.msra.mxu0 0.0
  %5047 = vmatprep.mubr.f32.mxu0 0.0
  %v5048 = vand.u32 %v4620, 4294901760
  %v5049 = vsub.f32 %v4620, %v5048
  %v5050 = vand.u32 %v5049, 4294901760
  %5051 = vmatmul.mubr.f32.gmra.mrb[0].mxu0 %v5050
  %v5052 = vpop.f32.mrb[0].mxu0
  %v5053 = vadd.f32 %v4964, %v5052
  %v5054 = vpop.f32.mrb[0].mxu0
  %5055 = vdwg.mxu0
  %5056 = vmatprep.subr.mxu0 0.0
  %v5057 = vand.u32 %v3953, 4294901760
  %v5058 = vsub.f32 %v3953, %v5057
  %v5059 = vand.u32 %v5058, 4294901760
  %5060 = vmatpush1.msra.mxu0 %v5059
  %5061 = vmatprep.subr.mxu0 0.0
  %v5062 = vand.u32 %v3954, 4294901760
  %v5063 = vsub.f32 %v3954, %v5062
  %v5064 = vand.u32 %v5063, 4294901760
  %5065 = vmatpush1.msra.mxu0 %v5064
  %5066 = vmatprep.subr.mxu0 0.0
  %v5067 = vand.u32 %v3955, 4294901760
  %v5068 = vsub.f32 %v3955, %v5067
  %v5069 = vand.u32 %v5068, 4294901760
  %5070 = vmatpush1.msra.mxu0 %v5069
  %5071 = vmatprep.subr.mxu0 0.0
  %v5072 = vand.u32 %v3956, 4294901760
  %v5073 = vsub.f32 %v3956, %v5072
  %v5074 = vand.u32 %v5073, 4294901760
  %5075 = vmatpush1.msra.mxu0 %v5074
  %5076 = vmatprep.subr.mxu0 0.0
  %v5077 = vand.u32 %v3957, 4294901760
  %v5078 = vsub.f32 %v3957, %v5077
  %v5079 = vand.u32 %v5078, 4294901760
  %5080 = vmatpush1.msra.mxu0 %v5079
  %5081 = vmatprep.subr.mxu0 0.0
  %v5082 = vand.u32 %v3958, 4294901760
  %v5083 = vsub.f32 %v3958, %v5082
  %v5084 = vand.u32 %v5083, 4294901760
  %5085 = vmatpush1.msra.mxu0 %v5084
  %5086 = vmatprep.subr.mxu0 0.0
  %v5087 = vand.u32 %v3959, 4294901760
  %v5088 = vsub.f32 %v3959, %v5087
  %v5089 = vand.u32 %v5088, 4294901760
  %5090 = vmatpush1.msra.mxu0 %v5089
  %5091 = vmatprep.subr.mxu0 0.0
  %v5092 = vand.u32 %v3960, 4294901760
  %v5093 = vsub.f32 %v3960, %v5092
  %v5094 = vand.u32 %v5093, 4294901760
  %5095 = vmatpush1.msra.mxu0 %v5094
  %5096 = vmatprep.subr.mxu0 0.0
  %v5097 = vand.u32 %v3961, 4294901760
  %v5098 = vsub.f32 %v3961, %v5097
  %v5099 = vand.u32 %v5098, 4294901760
  %5100 = vmatpush1.msra.mxu0 %v5099
  %5101 = vmatprep.subr.mxu0 0.0
  %v5102 = vand.u32 %v3962, 4294901760
  %v5103 = vsub.f32 %v3962, %v5102
  %v5104 = vand.u32 %v5103, 4294901760
  %5105 = vmatpush1.msra.mxu0 %v5104
  %5106 = vmatprep.subr.mxu0 0.0
  %v5107 = vand.u32 %v3963, 4294901760
  %v5108 = vsub.f32 %v3963, %v5107
  %v5109 = vand.u32 %v5108, 4294901760
  %5110 = vmatpush1.msra.mxu0 %v5109
  %5111 = vmatprep.subr.mxu0 0.0
  %v5112 = vand.u32 %v3964, 4294901760
  %v5113 = vsub.f32 %v3964, %v5112
  %v5114 = vand.u32 %v5113, 4294901760
  %5115 = vmatpush1.msra.mxu0 %v5114
  %5116 = vmatprep.subr.mxu0 0.0
  %v5117 = vand.u32 %v3965, 4294901760
  %v5118 = vsub.f32 %v3965, %v5117
  %v5119 = vand.u32 %v5118, 4294901760
  %5120 = vmatpush1.msra.mxu0 %v5119
  %5121 = vmatprep.subr.mxu0 0.0
  %v5122 = vand.u32 %v3966, 4294901760
  %v5123 = vsub.f32 %v3966, %v5122
  %v5124 = vand.u32 %v5123, 4294901760
  %5125 = vmatpush1.msra.mxu0 %v5124
  %5126 = vmatprep.subr.mxu0 0.0
  %v5127 = vand.u32 %v3967, 4294901760
  %v5128 = vsub.f32 %v3967, %v5127
  %v5129 = vand.u32 %v5128, 4294901760
  %5130 = vmatpush1.msra.mxu0 %v5129
  %5131 = vmatprep.subr.mxu0 0.0
  %v5132 = vand.u32 %v3968, 4294901760
  %v5133 = vsub.f32 %v3968, %v5132
  %v5134 = vand.u32 %v5133, 4294901760
  %5135 = vmatpush1.msra.mxu0 %v5134
  %5136 = vmatprep.subr.mxu0 0.0
  %5137 = vmatpush1.msra.mxu0 0.0
  %5138 = vmatprep.subr.mxu0 0.0
  %5139 = vmatpush1.msra.mxu0 0.0
  %5140 = vmatprep.subr.mxu0 0.0
  %5141 = vmatpush1.msra.mxu0 0.0
  %5142 = vmatprep.subr.mxu0 0.0
  %5143 = vmatpush1.msra.mxu0 0.0
  %5144 = vmatprep.subr.mxu0 0.0
  %5145 = vmatpush1.msra.mxu0 0.0
  %5146 = vmatprep.subr.mxu0 0.0
  %5147 = vmatpush1.msra.mxu0 0.0
  %5148 = vmatprep.subr.mxu0 0.0
  %5149 = vmatpush1.msra.mxu0 0.0
  %5150 = vmatprep.subr.mxu0 0.0
  %5151 = vmatpush1.msra.mxu0 0.0
  %5152 = vmatprep.subr.mxu0 0.0
  %5153 = vmatpush1.msra.mxu0 0.0
  %5154 = vmatprep.subr.mxu0 0.0
  %5155 = vmatpush1.msra.mxu0 0.0
  %5156 = vmatprep.subr.mxu0 0.0
  %5157 = vmatpush1.msra.mxu0 0.0
  %5158 = vmatprep.subr.mxu0 0.0
  %5159 = vmatpush1.msra.mxu0 0.0
  %5160 = vmatprep.subr.mxu0 0.0
  %5161 = vmatpush1.msra.mxu0 0.0
  %5162 = vmatprep.subr.mxu0 0.0
  %5163 = vmatpush1.msra.mxu0 0.0
  %5164 = vmatprep.subr.mxu0 0.0
  %5165 = vmatpush1.msra.mxu0 0.0
  %5166 = vmatprep.subr.mxu0 0.0
  %5167 = vmatpush1.msra.mxu0 0.0
  %5168 = vmatprep.mubr.f32.mxu0 0.0
  %v5169 = vand.u32 %v4620, 4294901760
  %5170 = vmatmul.mubr.f32.gmra.mrb[0].mxu0 %v5169
  %v5171 = vpop.f32.mrb[0].mxu0
  %v5172 = vadd.f32 %v5053, %v5171
  %v5173 = vpop.f32.mrb[0].mxu0
  %5174 = vdwg.mxu0
  %5175 = vmatprep.subr.mxu0 0.0
  %v5176 = vand.u32 %v3953, 4294901760
  %5177 = vmatpush1.msra.mxu0 %v5176
  %5178 = vmatprep.subr.mxu0 0.0
  %v5179 = vand.u32 %v3954, 4294901760
  %5180 = vmatpush1.msra.mxu0 %v5179
  %5181 = vmatprep.subr.mxu0 0.0
  %v5182 = vand.u32 %v3955, 4294901760
  %5183 = vmatpush1.msra.mxu0 %v5182
  %5184 = vmatprep.subr.mxu0 0.0
  %v5185 = vand.u32 %v3956, 4294901760
  %5186 = vmatpush1.msra.mxu0 %v5185
  %5187 = vmatprep.subr.mxu0 0.0
  %v5188 = vand.u32 %v3957, 4294901760
  %5189 = vmatpush1.msra.mxu0 %v5188
  %5190 = vmatprep.subr.mxu0 0.0
  %v5191 = vand.u32 %v3958, 4294901760
  %5192 = vmatpush1.msra.mxu0 %v5191
  %5193 = vmatprep.subr.mxu0 0.0
  %v5194 = vand.u32 %v3959, 4294901760
  %5195 = vmatpush1.msra.mxu0 %v5194
  %5196 = vmatprep.subr.mxu0 0.0
  %v5197 = vand.u32 %v3960, 4294901760
  %5198 = vmatpush1.msra.mxu0 %v5197
  %5199 = vmatprep.subr.mxu0 0.0
  %v5200 = vand.u32 %v3961, 4294901760
  %5201 = vmatpush1.msra.mxu0 %v5200
  %5202 = vmatprep.subr.mxu0 0.0
  %v5203 = vand.u32 %v3962, 4294901760
  %5204 = vmatpush1.msra.mxu0 %v5203
  %5205 = vmatprep.subr.mxu0 0.0
  %v5206 = vand.u32 %v3963, 4294901760
  %5207 = vmatpush1.msra.mxu0 %v5206
  %5208 = vmatprep.subr.mxu0 0.0
  %v5209 = vand.u32 %v3964, 4294901760
  %5210 = vmatpush1.msra.mxu0 %v5209
  %5211 = vmatprep.subr.mxu0 0.0
  %v5212 = vand.u32 %v3965, 4294901760
  %5213 = vmatpush1.msra.mxu0 %v5212
  %5214 = vmatprep.subr.mxu0 0.0
  %v5215 = vand.u32 %v3966, 4294901760
  %5216 = vmatpush1.msra.mxu0 %v5215
  %5217 = vmatprep.subr.mxu0 0.0
  %v5218 = vand.u32 %v3967, 4294901760
  %5219 = vmatpush1.msra.mxu0 %v5218
  %5220 = vmatprep.subr.mxu0 0.0
  %v5221 = vand.u32 %v3968, 4294901760
  %5222 = vmatpush1.msra.mxu0 %v5221
  %5223 = vmatprep.subr.mxu0 0.0
  %5224 = vmatpush1.msra.mxu0 0.0
  %5225 = vmatprep.subr.mxu0 0.0
  %5226 = vmatpush1.msra.mxu0 0.0
  %5227 = vmatprep.subr.mxu0 0.0
  %5228 = vmatpush1.msra.mxu0 0.0
  %5229 = vmatprep.subr.mxu0 0.0
  %5230 = vmatpush1.msra.mxu0 0.0
  %5231 = vmatprep.subr.mxu0 0.0
  %5232 = vmatpush1.msra.mxu0 0.0
  %5233 = vmatprep.subr.mxu0 0.0
  %5234 = vmatpush1.msra.mxu0 0.0
  %5235 = vmatprep.subr.mxu0 0.0
  %5236 = vmatpush1.msra.mxu0 0.0
  %5237 = vmatprep.subr.mxu0 0.0
  %5238 = vmatpush1.msra.mxu0 0.0
  %5239 = vmatprep.subr.mxu0 0.0
  %5240 = vmatpush1.msra.mxu0 0.0
  %5241 = vmatprep.subr.mxu0 0.0
  %5242 = vmatpush1.msra.mxu0 0.0
  %5243 = vmatprep.subr.mxu0 0.0
  %5244 = vmatpush1.msra.mxu0 0.0
  %5245 = vmatprep.subr.mxu0 0.0
  %5246 = vmatpush1.msra.mxu0 0.0
  %5247 = vmatprep.subr.mxu0 0.0
  %5248 = vmatpush1.msra.mxu0 0.0
  %5249 = vmatprep.subr.mxu0 0.0
  %5250 = vmatpush1.msra.mxu0 0.0
  %5251 = vmatprep.subr.mxu0 0.0
  %5252 = vmatpush1.msra.mxu0 0.0
  %5253 = vmatprep.subr.mxu0 0.0
  %5254 = vmatpush1.msra.mxu0 0.0
  %5255 = vmatprep.mubr.f32.mxu0 0.0
  %v5256 = vand.u32 %v4620, 4294901760
  %5257 = vmatmul.mubr.f32.gmra.mrb[0].mxu0 %v5256
  %v5258 = vpop.f32.mrb[0].mxu0
  %v5259 = vadd.f32 %v5172, %v5258
  %v5260 = vpop.f32.mrb[0].mxu0
  %5261 = vdwg.mxu0
  %v5262 = vsel %vm4610, %v5259, 0.0
  %v5263 = vrot.slane %v5262, 4
  %v5264 = vadd.f32 %v5262, %v5263
  %v5265 = vrot.slane %v5264, 2
  %v5266 = vadd.f32 %v5264, %v5265
  %v5267 = vrot.slane %v5266, 1
  %v5268 = vadd.f32 %v5266, %v5267
  %v5269 = vmul.f32 %v5268, %v4618
  %v5270 = vmul.f32 %v4619, %v4619
  %v5271 = vsub.f32 %v5269, %v5270
  %v5272 = vmax.f32 %v5271, 0.0
  %s5273 = scalar_lea.vmem %s4, 4
  %v5274 = vld [vmem:[%s5273] sm:$0x3]
  %v5275 = vsub.f32 %v3947, %v4619
  %v5276 = vadd.f32 %v5272, 1e-05
  %v5277 = vrsqrt.pop %v5276
  %v5278 = vmul.f32 %v5275, %v5277
  %v5279 = vlaneseq
  %v5280 = vshrl.u32 %v5279, 7
  %v5281 = vsub.s32 0, %v5280
  %v5282 = vrot.slane %v5274, %v5281
  %v5283 = vmul.f32 %v5278, %v5282
  %v5284 = vlaneseq
  %v5285 = vshrl.u32 %v5284, 7
  %v5286 = vsub.s32 1, %v5285
  %v5287 = vrot.slane %v5274, %v5286
  %v5288 = vadd.f32 %v5283, %v5287
  %v5289 = vmax.f32 %v5288, 0.0
  %v5290 = vpack.c.bf16 %v5289, %v5289
  %s5291 = scalar_lea.vmem %s2, 768
  %v5292 = vld [vmem:[%s5291] sm:$0xff]
  %v5293 = vld [vmem:[%s5291 + $0x8] sm:$0xff]
  %v5294 = vld [vmem:[%s5291 + $0x10] sm:$0xff]
  %v5295 = vld [vmem:[%s5291 + $0x18] sm:$0xff]
  %v5296 = vld [vmem:[%s5291 + $0x20] sm:$0xff]
  %v5297 = vld [vmem:[%s5291 + $0x28] sm:$0xff]
  %v5298 = vld [vmem:[%s5291 + $0x30] sm:$0xff]
  %v5299 = vld [vmem:[%s5291 + $0x38] sm:$0xff]
  %v5300 = vld [vmem:[%s5291 + $0x40] sm:$0xff]
  %v5301 = vld [vmem:[%s5291 + $0x48] sm:$0xff]
  %v5302 = vld [vmem:[%s5291 + $0x50] sm:$0xff]
  %v5303 = vld [vmem:[%s5291 + $0x58] sm:$0xff]
  %v5304 = vld [vmem:[%s5291 + $0x60] sm:$0xff]
  %v5305 = vld [vmem:[%s5291 + $0x68] sm:$0xff]
  %v5306 = vld [vmem:[%s5291 + $0x70] sm:$0xff]
  %v5307 = vld [vmem:[%s5291 + $0x78] sm:$0xff]
  %v5308 = vld [vmem:[%s5291 + $0x80] sm:$0xff]
  %v5309 = vld [vmem:[%s5291 + $0x88] sm:$0xff]
  %v5310 = vld [vmem:[%s5291 + $0x90] sm:$0xff]
  %v5311 = vld [vmem:[%s5291 + $0x98] sm:$0xff]
  %v5312 = vld [vmem:[%s5291 + $0xa0] sm:$0xff]
  %v5313 = vld [vmem:[%s5291 + $0xa8] sm:$0xff]
  %v5314 = vld [vmem:[%s5291 + $0xb0] sm:$0xff]
  %v5315 = vld [vmem:[%s5291 + $0xb8] sm:$0xff]
  %v5316 = vld [vmem:[%s5291 + $0xc0] sm:$0xff]
  %v5317 = vld [vmem:[%s5291 + $0xc8] sm:$0xff]
  %v5318 = vld [vmem:[%s5291 + $0xd0] sm:$0xff]
  %v5319 = vld [vmem:[%s5291 + $0xd8] sm:$0xff]
  %v5320 = vld [vmem:[%s5291 + $0xe0] sm:$0xff]
  %v5321 = vld [vmem:[%s5291 + $0xe8] sm:$0xff]
  %v5322 = vld [vmem:[%s5291 + $0xf0] sm:$0xff]
  %v5323 = vld [vmem:[%s5291 + $0xf8] sm:$0xff]
  %v5356 = vunpack.c.l.b16 %v5292
  %v5357 = vunpack.c.h.b16 %v5292
  %v5358 = vunpack.c.l.b16 %v5293
  %v5359 = vunpack.c.h.b16 %v5293
  %v5360 = vunpack.c.l.b16 %v5294
  %v5361 = vunpack.c.h.b16 %v5294
  %v5362 = vunpack.c.l.b16 %v5295
  %v5363 = vunpack.c.h.b16 %v5295
  %v5364 = vunpack.c.l.b16 %v5296
  %v5365 = vunpack.c.h.b16 %v5296
  %v5366 = vunpack.c.l.b16 %v5297
  %v5367 = vunpack.c.h.b16 %v5297
  %v5368 = vunpack.c.l.b16 %v5298
  %v5369 = vunpack.c.h.b16 %v5298
  %v5370 = vunpack.c.l.b16 %v5299
  %v5371 = vunpack.c.h.b16 %v5299
  %v5372 = vunpack.c.l.b16 %v5300
  %v5373 = vunpack.c.h.b16 %v5300
  %v5374 = vunpack.c.l.b16 %v5301
  %v5375 = vunpack.c.h.b16 %v5301
  %v5376 = vunpack.c.l.b16 %v5302
  %v5377 = vunpack.c.h.b16 %v5302
  %v5378 = vunpack.c.l.b16 %v5303
  %v5379 = vunpack.c.h.b16 %v5303
  %v5380 = vunpack.c.l.b16 %v5304
  %v5381 = vunpack.c.h.b16 %v5304
  %v5382 = vunpack.c.l.b16 %v5305
  %v5383 = vunpack.c.h.b16 %v5305
  %v5384 = vunpack.c.l.b16 %v5306
  %v5385 = vunpack.c.h.b16 %v5306
  %v5386 = vunpack.c.l.b16 %v5307
  %v5387 = vunpack.c.h.b16 %v5307
  %v5388 = vunpack.c.l.b16 %v5308
  %v5389 = vunpack.c.h.b16 %v5308
  %v5390 = vunpack.c.l.b16 %v5309
  %v5391 = vunpack.c.h.b16 %v5309
  %v5392 = vunpack.c.l.b16 %v5310
  %v5393 = vunpack.c.h.b16 %v5310
  %v5394 = vunpack.c.l.b16 %v5311
  %v5395 = vunpack.c.h.b16 %v5311
  %v5396 = vunpack.c.l.b16 %v5312
  %v5397 = vunpack.c.h.b16 %v5312
  %v5398 = vunpack.c.l.b16 %v5313
  %v5399 = vunpack.c.h.b16 %v5313
  %v5400 = vunpack.c.l.b16 %v5314
  %v5401 = vunpack.c.h.b16 %v5314
  %v5402 = vunpack.c.l.b16 %v5315
  %v5403 = vunpack.c.h.b16 %v5315
  %v5404 = vunpack.c.l.b16 %v5316
  %v5405 = vunpack.c.h.b16 %v5316
  %v5406 = vunpack.c.l.b16 %v5317
  %v5407 = vunpack.c.h.b16 %v5317
  %v5408 = vunpack.c.l.b16 %v5318
  %v5409 = vunpack.c.h.b16 %v5318
  %v5410 = vunpack.c.l.b16 %v5319
  %v5411 = vunpack.c.h.b16 %v5319
  %v5412 = vunpack.c.l.b16 %v5320
  %v5413 = vunpack.c.h.b16 %v5320
  %v5414 = vunpack.c.l.b16 %v5321
  %v5415 = vunpack.c.h.b16 %v5321
  %v5416 = vunpack.c.l.b16 %v5322
  %v5417 = vunpack.c.h.b16 %v5322
  %v5418 = vunpack.c.l.b16 %v5323
  %v5419 = vunpack.c.h.b16 %v5323
  %v5420 = vpack.c.b16 %v5360, %v5356
  %v5421 = vpack.c.b16 %v5361, %v5357
  %v5422 = vpack.c.b16 %v5362, %v5358
  %v5423 = vpack.c.b16 %v5363, %v5359
  %v5424 = vpack.c.b16 %v5368, %v5364
  %v5425 = vpack.c.b16 %v5369, %v5365
  %v5426 = vpack.c.b16 %v5370, %v5366
  %v5427 = vpack.c.b16 %v5371, %v5367
  %v5428 = vpack.c.b16 %v5376, %v5372
  %v5429 = vpack.c.b16 %v5377, %v5373
  %v5430 = vpack.c.b16 %v5378, %v5374
  %v5431 = vpack.c.b16 %v5379, %v5375
  %v5432 = vpack.c.b16 %v5384, %v5380
  %v5433 = vpack.c.b16 %v5385, %v5381
  %v5434 = vpack.c.b16 %v5386, %v5382
  %v5435 = vpack.c.b16 %v5387, %v5383
  %v5436 = vpack.c.b16 %v5392, %v5388
  %v5437 = vpack.c.b16 %v5393, %v5389
  %v5438 = vpack.c.b16 %v5394, %v5390
  %v5439 = vpack.c.b16 %v5395, %v5391
  %v5440 = vpack.c.b16 %v5400, %v5396
  %v5441 = vpack.c.b16 %v5401, %v5397
  %v5442 = vpack.c.b16 %v5402, %v5398
  %v5443 = vpack.c.b16 %v5403, %v5399
  %v5444 = vpack.c.b16 %v5408, %v5404
  %v5445 = vpack.c.b16 %v5409, %v5405
  %v5446 = vpack.c.b16 %v5410, %v5406
  %v5447 = vpack.c.b16 %v5411, %v5407
  %v5448 = vpack.c.b16 %v5416, %v5412
  %v5449 = vpack.c.b16 %v5417, %v5413
  %v5450 = vpack.c.b16 %v5418, %v5414
  %v5451 = vpack.c.b16 %v5419, %v5415
  %5484 = vmatprep.subr.bf16.mxu0 %v5421
  %5485 = vmatpush1.bf16.msra.mxu0 %v5420
  %5486 = vmatprep.subr.bf16.mxu0 %v5425
  %5487 = vmatpush1.bf16.msra.mxu0 %v5424
  %5488 = vmatprep.subr.bf16.mxu0 %v5429
  %5489 = vmatpush1.bf16.msra.mxu0 %v5428
  %5490 = vmatprep.subr.bf16.mxu0 %v5433
  %5491 = vmatpush1.bf16.msra.mxu0 %v5432
  %5492 = vmatprep.subr.bf16.mxu0 %v5437
  %5493 = vmatpush1.bf16.msra.mxu0 %v5436
  %5494 = vmatprep.subr.bf16.mxu0 %v5441
  %5495 = vmatpush1.bf16.msra.mxu0 %v5440
  %5496 = vmatprep.subr.bf16.mxu0 %v5445
  %5497 = vmatpush1.bf16.msra.mxu0 %v5444
  %5498 = vmatprep.subr.bf16.mxu0 %v5449
  %5499 = vmatpush1.bf16.msra.mxu0 %v5448
  %5500 = vmatprep.subr.bf16.mxu0 0
  %5501 = vmatpush1.bf16.msra.mxu0 0
  %5502 = vmatprep.subr.bf16.mxu0 0
  %5503 = vmatpush1.bf16.msra.mxu0 0
  %5504 = vmatprep.subr.bf16.mxu0 0
  %5505 = vmatpush1.bf16.msra.mxu0 0
  %5506 = vmatprep.subr.bf16.mxu0 0
  %5507 = vmatpush1.bf16.msra.mxu0 0
  %5508 = vmatprep.subr.bf16.mxu0 0
  %5509 = vmatpush1.bf16.msra.mxu0 0
  %5510 = vmatprep.subr.bf16.mxu0 0
  %5511 = vmatpush1.bf16.msra.mxu0 0
  %5512 = vmatprep.subr.bf16.mxu0 0
  %5513 = vmatpush1.bf16.msra.mxu0 0
  %5514 = vmatprep.subr.bf16.mxu0 0
  %5515 = vmatpush1.bf16.msra.mxu0 0
  %5516 = vmatprep.mubr.bf16.mxu0 0
  %5517 = vmatmul.mubr.bf16.gmra.mrb[0].mxu0 %v5290
  %v5518 = vpop.f32.mrb[0].mxu0
  %v5519 = vadd.f32 0.0, %v5518
  %v5520 = vpop.f32.mrb[0].mxu0
  %v5521 = vadd.f32 0.0, %v5520
  %v5522 = vpop.f32.mrb[0].mxu0
  %v5523 = vpop.f32.mrb[0].mxu0
  %5524 = vdwg.mxu0
  %5525 = vmatprep.subr.bf16.mxu0 %v5423
  %5526 = vmatpush1.bf16.msra.mxu0 %v5422
  %5527 = vmatprep.subr.bf16.mxu0 %v5427
  %5528 = vmatpush1.bf16.msra.mxu0 %v5426
  %5529 = vmatprep.subr.bf16.mxu0 %v5431
  %5530 = vmatpush1.bf16.msra.mxu0 %v5430
  %5531 = vmatprep.subr.bf16.mxu0 %v5435
  %5532 = vmatpush1.bf16.msra.mxu0 %v5434
  %5533 = vmatprep.subr.bf16.mxu0 %v5439
  %5534 = vmatpush1.bf16.msra.mxu0 %v5438
  %5535 = vmatprep.subr.bf16.mxu0 %v5443
  %5536 = vmatpush1.bf16.msra.mxu0 %v5442
  %5537 = vmatprep.subr.bf16.mxu0 %v5447
  %5538 = vmatpush1.bf16.msra.mxu0 %v5446
  %5539 = vmatprep.subr.bf16.mxu0 %v5451
  %5540 = vmatpush1.bf16.msra.mxu0 %v5450
  %5541 = vmatprep.subr.bf16.mxu0 0
  %5542 = vmatpush1.bf16.msra.mxu0 0
  %5543 = vmatprep.subr.bf16.mxu0 0
  %5544 = vmatpush1.bf16.msra.mxu0 0
  %5545 = vmatprep.subr.bf16.mxu0 0
  %5546 = vmatpush1.bf16.msra.mxu0 0
  %5547 = vmatprep.subr.bf16.mxu0 0
  %5548 = vmatpush1.bf16.msra.mxu0 0
  %5549 = vmatprep.subr.bf16.mxu0 0
  %5550 = vmatpush1.bf16.msra.mxu0 0
  %5551 = vmatprep.subr.bf16.mxu0 0
  %5552 = vmatpush1.bf16.msra.mxu0 0
  %5553 = vmatprep.subr.bf16.mxu0 0
  %5554 = vmatpush1.bf16.msra.mxu0 0
  %5555 = vmatprep.subr.bf16.mxu0 0
  %5556 = vmatpush1.bf16.msra.mxu0 0
  %5557 = vmatprep.mubr.bf16.mxu0 0
  %5558 = vmatmul.mubr.bf16.gmra.mrb[0].mxu0 %v5290
  %v5559 = vpop.f32.mrb[0].mxu0
  %v5560 = vadd.f32 0.0, %v5559
  %v5561 = vpop.f32.mrb[0].mxu0
  %v5562 = vadd.f32 0.0, %v5561
  %v5563 = vpop.f32.mrb[0].mxu0
  %v5564 = vpop.f32.mrb[0].mxu0
  %5565 = vdwg.mxu0
  %5566 = vst [vmem:[#allocation2] sm:$0xf] %v5519
  %5567 = vst [vmem:[#allocation2 + $0x8] sm:$0xf] %v5521
  %5568 = vst [vmem:[#allocation2 + $0x10] sm:$0xf] %v5560
  %5569 = vst [vmem:[#allocation2 + $0x18] sm:$0xf] %v5562
  %s5570 = scalar_lea.vmem %s1, 48
  %v5571 = vld [vmem:[%s5570] sm:$0xf]
  %v5572 = vld [vmem:[#allocation2] sm:$0xff]
  %v5573 = vld [vmem:[#allocation2 + $0x8] sm:$0xff]
  %v5574 = vld [vmem:[#allocation2 + $0x10] sm:$0xff]
  %v5575 = vld [vmem:[#allocation2 + $0x18] sm:$0xff]
  %v5577 = vsel %vm3876, %v5571, 0
  %5579 = vmatprep.subr.mxu0 0.0
  %5580 = vmatpush1.msra.mxu0 %v5572
  %5581 = vmatprep.subr.mxu0 0.0
  %5582 = vmatpush1.msra.mxu0 %v5573
  %5583 = vmatprep.subr.mxu0 0.0
  %5584 = vmatpush1.msra.mxu0 %v5574
  %5585 = vmatprep.subr.mxu0 0.0
  %5586 = vmatpush1.msra.mxu0 %v5575
  %5587 = vmatprep.subr.mxu0 0.0
  %5588 = vmatpush1.msra.mxu0 0.0
  %5589 = vmatprep.subr.mxu0 0.0
  %5590 = vmatpush1.msra.mxu0 0.0
  %5591 = vmatprep.subr.mxu0 0.0
  %5592 = vmatpush1.msra.mxu0 0.0
  %5593 = vmatprep.subr.mxu0 0.0
  %5594 = vmatpush1.msra.mxu0 0.0
  %5595 = vmatprep.subr.mxu0 0.0
  %5596 = vmatpush1.msra.mxu0 0.0
  %5597 = vmatprep.subr.mxu0 0.0
  %5598 = vmatpush1.msra.mxu0 0.0
  %5599 = vmatprep.subr.mxu0 0.0
  %5600 = vmatpush1.msra.mxu0 0.0
  %5601 = vmatprep.subr.mxu0 0.0
  %5602 = vmatpush1.msra.mxu0 0.0
  %5603 = vmatprep.subr.mxu0 0.0
  %5604 = vmatpush1.msra.mxu0 0.0
  %5605 = vmatprep.subr.mxu0 0.0
  %5606 = vmatpush1.msra.mxu0 0.0
  %5607 = vmatprep.subr.mxu0 0.0
  %5608 = vmatpush1.msra.mxu0 0.0
  %5609 = vmatprep.subr.mxu0 0.0
  %5610 = vmatpush1.msra.mxu0 0.0
  %5611 = vmatprep.subr.mxu0 0.0
  %5612 = vmatpush1.msra.mxu0 0.0
  %5613 = vmatprep.subr.mxu0 0.0
  %5614 = vmatpush1.msra.mxu0 0.0
  %5615 = vmatprep.subr.mxu0 0.0
  %5616 = vmatpush1.msra.mxu0 0.0
  %5617 = vmatprep.subr.mxu0 0.0
  %5618 = vmatpush1.msra.mxu0 0.0
  %5619 = vmatprep.subr.mxu0 0.0
  %5620 = vmatpush1.msra.mxu0 0.0
  %5621 = vmatprep.subr.mxu0 0.0
  %5622 = vmatpush1.msra.mxu0 0.0
  %5623 = vmatprep.subr.mxu0 0.0
  %5624 = vmatpush1.msra.mxu0 0.0
  %5625 = vmatprep.subr.mxu0 0.0
  %5626 = vmatpush1.msra.mxu0 0.0
  %5627 = vmatprep.subr.mxu0 0.0
  %5628 = vmatpush1.msra.mxu0 0.0
  %5629 = vmatprep.subr.mxu0 0.0
  %5630 = vmatpush1.msra.mxu0 0.0
  %5631 = vmatprep.subr.mxu0 0.0
  %5632 = vmatpush1.msra.mxu0 0.0
  %5633 = vmatprep.subr.mxu0 0.0
  %5634 = vmatpush1.msra.mxu0 0.0
  %5635 = vmatprep.subr.mxu0 0.0
  %5636 = vmatpush1.msra.mxu0 0.0
  %5637 = vmatprep.subr.mxu0 0.0
  %5638 = vmatpush1.msra.mxu0 0.0
  %5639 = vmatprep.subr.mxu0 0.0
  %5640 = vmatpush1.msra.mxu0 0.0
  %5641 = vmatprep.subr.mxu0 0.0
  %5642 = vmatpush1.msra.mxu0 0.0
  %5643 = vmatprep.mubr.bf16.mxu0 0
  %5644 = vmatmul.mubr.bf16.gmra.mrb[0].mxu0 %v5577
  %v5645 = vpop.f32.mrb[0].mxu0
  %v5646 = vadd.f32 0.0, %v5645
  %v5647 = vpop.f32.mrb[0].mxu0
  %v5648 = vpop.f32.mrb[0].mxu0
  %v5649 = vpop.f32.mrb[0].mxu0
  %5650 = vdwg.mxu0
  %s5651 = scalar_lea.vmem %s3, 384
  %v5652 = vld [vmem:[%s5651] sm:$0xff]
  %v5653 = vld [vmem:[%s5651 + $0x8] sm:$0xff]
  %v5654 = vld [vmem:[%s5651 + $0x10] sm:$0xff]
  %v5655 = vld [vmem:[%s5651 + $0x18] sm:$0xff]
  %v5656 = vld [vmem:[%s5651 + $0x20] sm:$0xff]
  %v5657 = vld [vmem:[%s5651 + $0x28] sm:$0xff]
  %v5658 = vld [vmem:[%s5651 + $0x30] sm:$0xff]
  %v5659 = vld [vmem:[%s5651 + $0x38] sm:$0xff]
  %v5660 = vld [vmem:[%s5651 + $0x40] sm:$0xff]
  %v5661 = vld [vmem:[%s5651 + $0x48] sm:$0xff]
  %v5662 = vld [vmem:[%s5651 + $0x50] sm:$0xff]
  %v5663 = vld [vmem:[%s5651 + $0x58] sm:$0xff]
  %v5664 = vld [vmem:[%s5651 + $0x60] sm:$0xff]
  %v5665 = vld [vmem:[%s5651 + $0x68] sm:$0xff]
  %v5666 = vld [vmem:[%s5651 + $0x70] sm:$0xff]
  %v5667 = vld [vmem:[%s5651 + $0x78] sm:$0xff]
  %5668 = vmatprep.subr.mxu0 0.0
  %v5669 = vand.u32 %v5652, 4294901760
  %5670 = vmatpush1.msra.mxu0 %v5669
  %5671 = vmatprep.subr.mxu0 0.0
  %v5672 = vand.u32 %v5653, 4294901760
  %5673 = vmatpush1.msra.mxu0 %v5672
  %5674 = vmatprep.subr.mxu0 0.0
  %v5675 = vand.u32 %v5654, 4294901760
  %5676 = vmatpush1.msra.mxu0 %v5675
  %5677 = vmatprep.subr.mxu0 0.0
  %v5678 = vand.u32 %v5655, 4294901760
  %5679 = vmatpush1.msra.mxu0 %v5678
  %5680 = vmatprep.subr.mxu0 0.0
  %v5681 = vand.u32 %v5656, 4294901760
  %5682 = vmatpush1.msra.mxu0 %v5681
  %5683 = vmatprep.subr.mxu0 0.0
  %v5684 = vand.u32 %v5657, 4294901760
  %5685 = vmatpush1.msra.mxu0 %v5684
  %5686 = vmatprep.subr.mxu0 0.0
  %v5687 = vand.u32 %v5658, 4294901760
  %5688 = vmatpush1.msra.mxu0 %v5687
  %5689 = vmatprep.subr.mxu0 0.0
  %v5690 = vand.u32 %v5659, 4294901760
  %5691 = vmatpush1.msra.mxu0 %v5690
  %5692 = vmatprep.subr.mxu0 0.0
  %v5693 = vand.u32 %v5660, 4294901760
  %5694 = vmatpush1.msra.mxu0 %v5693
  %5695 = vmatprep.subr.mxu0 0.0
  %v5696 = vand.u32 %v5661, 4294901760
  %5697 = vmatpush1.msra.mxu0 %v5696
  %5698 = vmatprep.subr.mxu0 0.0
  %v5699 = vand.u32 %v5662, 4294901760
  %5700 = vmatpush1.msra.mxu0 %v5699
  %5701 = vmatprep.subr.mxu0 0.0
  %v5702 = vand.u32 %v5663, 4294901760
  %5703 = vmatpush1.msra.mxu0 %v5702
  %5704 = vmatprep.subr.mxu0 0.0
  %v5705 = vand.u32 %v5664, 4294901760
  %5706 = vmatpush1.msra.mxu0 %v5705
  %5707 = vmatprep.subr.mxu0 0.0
  %v5708 = vand.u32 %v5665, 4294901760
  %5709 = vmatpush1.msra.mxu0 %v5708
  %5710 = vmatprep.subr.mxu0 0.0
  %v5711 = vand.u32 %v5666, 4294901760
  %5712 = vmatpush1.msra.mxu0 %v5711
  %5713 = vmatprep.subr.mxu0 0.0
  %v5714 = vand.u32 %v5667, 4294901760
  %5715 = vmatpush1.msra.mxu0 %v5714
  %5716 = vmatprep.subr.mxu0 0.0
  %5717 = vmatpush1.msra.mxu0 0.0
  %5718 = vmatprep.subr.mxu0 0.0
  %5719 = vmatpush1.msra.mxu0 0.0
  %5720 = vmatprep.subr.mxu0 0.0
  %5721 = vmatpush1.msra.mxu0 0.0
  %5722 = vmatprep.subr.mxu0 0.0
  %5723 = vmatpush1.msra.mxu0 0.0
  %5724 = vmatprep.subr.mxu0 0.0
  %5725 = vmatpush1.msra.mxu0 0.0
  %5726 = vmatprep.subr.mxu0 0.0
  %5727 = vmatpush1.msra.mxu0 0.0
  %5728 = vmatprep.subr.mxu0 0.0
  %5729 = vmatpush1.msra.mxu0 0.0
  %5730 = vmatprep.subr.mxu0 0.0
  %5731 = vmatpush1.msra.mxu0 0.0
  %5732 = vmatprep.subr.mxu0 0.0
  %5733 = vmatpush1.msra.mxu0 0.0
  %5734 = vmatprep.subr.mxu0 0.0
  %5735 = vmatpush1.msra.mxu0 0.0
  %5736 = vmatprep.subr.mxu0 0.0
  %5737 = vmatpush1.msra.mxu0 0.0
  %5738 = vmatprep.subr.mxu0 0.0
  %5739 = vmatpush1.msra.mxu0 0.0
  %5740 = vmatprep.subr.mxu0 0.0
  %5741 = vmatpush1.msra.mxu0 0.0
  %5742 = vmatprep.subr.mxu0 0.0
  %5743 = vmatpush1.msra.mxu0 0.0
  %5744 = vmatprep.subr.mxu0 0.0
  %5745 = vmatpush1.msra.mxu0 0.0
  %5746 = vmatprep.subr.mxu0 0.0
  %5747 = vmatpush1.msra.mxu0 0.0
  %5748 = vmatprep.mubr.f32.mxu0 0.0
  %v5749 = vand.u32 %v5646, 4294901760
  %v5750 = vsub.f32 %v5646, %v5749
  %v5751 = vand.u32 %v5750, 4294901760
  %v5752 = vsub.f32 %v5750, %v5751
  %v5753 = vand.u32 %v5752, 4294901760
  %5754 = vmatmul.mubr.f32.gmra.mrb[0].mxu0 %v5753
  %v5755 = vpop.f32.mrb[0].mxu0
  %v5756 = vadd.f32 0.0, %v5755
  %v5757 = vpop.f32.mrb[0].mxu0
  %5758 = vdwg.mxu0
  %5759 = vmatprep.subr.mxu0 0.0
  %v5760 = vand.u32 %v5652, 4294901760
  %v5761 = vsub.f32 %v5652, %v5760
  %v5762 = vand.u32 %v5761, 4294901760
  %v5763 = vsub.f32 %v5761, %v5762
  %v5764 = vand.u32 %v5763, 4294901760
  %5765 = vmatpush1.msra.mxu0 %v5764
  %5766 = vmatprep.subr.mxu0 0.0
  %v5767 = vand.u32 %v5653, 4294901760
  %v5768 = vsub.f32 %v5653, %v5767
  %v5769 = vand.u32 %v5768, 4294901760
  %v5770 = vsub.f32 %v5768, %v5769
  %v5771 = vand.u32 %v5770, 4294901760
  %5772 = vmatpush1.msra.mxu0 %v5771
  %5773 = vmatprep.subr.mxu0 0.0
  %v5774 = vand.u32 %v5654, 4294901760
  %v5775 = vsub.f32 %v5654, %v5774
  %v5776 = vand.u32 %v5775, 4294901760
  %v5777 = vsub.f32 %v5775, %v5776
  %v5778 = vand.u32 %v5777, 4294901760
  %5779 = vmatpush1.msra.mxu0 %v5778
  %5780 = vmatprep.subr.mxu0 0.0
  %v5781 = vand.u32 %v5655, 4294901760
  %v5782 = vsub.f32 %v5655, %v5781
  %v5783 = vand.u32 %v5782, 4294901760
  %v5784 = vsub.f32 %v5782, %v5783
  %v5785 = vand.u32 %v5784, 4294901760
  %5786 = vmatpush1.msra.mxu0 %v5785
  %5787 = vmatprep.subr.mxu0 0.0
  %v5788 = vand.u32 %v5656, 4294901760
  %v5789 = vsub.f32 %v5656, %v5788
  %v5790 = vand.u32 %v5789, 4294901760
  %v5791 = vsub.f32 %v5789, %v5790
  %v5792 = vand.u32 %v5791, 4294901760
  %5793 = vmatpush1.msra.mxu0 %v5792
  %5794 = vmatprep.subr.mxu0 0.0
  %v5795 = vand.u32 %v5657, 4294901760
  %v5796 = vsub.f32 %v5657, %v5795
  %v5797 = vand.u32 %v5796, 4294901760
  %v5798 = vsub.f32 %v5796, %v5797
  %v5799 = vand.u32 %v5798, 4294901760
  %5800 = vmatpush1.msra.mxu0 %v5799
  %5801 = vmatprep.subr.mxu0 0.0
  %v5802 = vand.u32 %v5658, 4294901760
  %v5803 = vsub.f32 %v5658, %v5802
  %v5804 = vand.u32 %v5803, 4294901760
  %v5805 = vsub.f32 %v5803, %v5804
  %v5806 = vand.u32 %v5805, 4294901760
  %5807 = vmatpush1.msra.mxu0 %v5806
  %5808 = vmatprep.subr.mxu0 0.0
  %v5809 = vand.u32 %v5659, 4294901760
  %v5810 = vsub.f32 %v5659, %v5809
  %v5811 = vand.u32 %v5810, 4294901760
  %v5812 = vsub.f32 %v5810, %v5811
  %v5813 = vand.u32 %v5812, 4294901760
  %5814 = vmatpush1.msra.mxu0 %v5813
  %5815 = vmatprep.subr.mxu0 0.0
  %v5816 = vand.u32 %v5660, 4294901760
  %v5817 = vsub.f32 %v5660, %v5816
  %v5818 = vand.u32 %v5817, 4294901760
  %v5819 = vsub.f32 %v5817, %v5818
  %v5820 = vand.u32 %v5819, 4294901760
  %5821 = vmatpush1.msra.mxu0 %v5820
  %5822 = vmatprep.subr.mxu0 0.0
  %v5823 = vand.u32 %v5661, 4294901760
  %v5824 = vsub.f32 %v5661, %v5823
  %v5825 = vand.u32 %v5824, 4294901760
  %v5826 = vsub.f32 %v5824, %v5825
  %v5827 = vand.u32 %v5826, 4294901760
  %5828 = vmatpush1.msra.mxu0 %v5827
  %5829 = vmatprep.subr.mxu0 0.0
  %v5830 = vand.u32 %v5662, 4294901760
  %v5831 = vsub.f32 %v5662, %v5830
  %v5832 = vand.u32 %v5831, 4294901760
  %v5833 = vsub.f32 %v5831, %v5832
  %v5834 = vand.u32 %v5833, 4294901760
  %5835 = vmatpush1.msra.mxu0 %v5834
  %5836 = vmatprep.subr.mxu0 0.0
  %v5837 = vand.u32 %v5663, 4294901760
  %v5838 = vsub.f32 %v5663, %v5837
  %v5839 = vand.u32 %v5838, 4294901760
  %v5840 = vsub.f32 %v5838, %v5839
  %v5841 = vand.u32 %v5840, 4294901760
  %5842 = vmatpush1.msra.mxu0 %v5841
  %5843 = vmatprep.subr.mxu0 0.0
  %v5844 = vand.u32 %v5664, 4294901760
  %v5845 = vsub.f32 %v5664, %v5844
  %v5846 = vand.u32 %v5845, 4294901760
  %v5847 = vsub.f32 %v5845, %v5846
  %v5848 = vand.u32 %v5847, 4294901760
  %5849 = vmatpush1.msra.mxu0 %v5848
  %5850 = vmatprep.subr.mxu0 0.0
  %v5851 = vand.u32 %v5665, 4294901760
  %v5852 = vsub.f32 %v5665, %v5851
  %v5853 = vand.u32 %v5852, 4294901760
  %v5854 = vsub.f32 %v5852, %v5853
  %v5855 = vand.u32 %v5854, 4294901760
  %5856 = vmatpush1.msra.mxu0 %v5855
  %5857 = vmatprep.subr.mxu0 0.0
  %v5858 = vand.u32 %v5666, 4294901760
  %v5859 = vsub.f32 %v5666, %v5858
  %v5860 = vand.u32 %v5859, 4294901760
  %v5861 = vsub.f32 %v5859, %v5860
  %v5862 = vand.u32 %v5861, 4294901760
  %5863 = vmatpush1.msra.mxu0 %v5862
  %5864 = vmatprep.subr.mxu0 0.0
  %v5865 = vand.u32 %v5667, 4294901760
  %v5866 = vsub.f32 %v5667, %v5865
  %v5867 = vand.u32 %v5866, 4294901760
  %v5868 = vsub.f32 %v5866, %v5867
  %v5869 = vand.u32 %v5868, 4294901760
  %5870 = vmatpush1.msra.mxu0 %v5869
  %5871 = vmatprep.subr.mxu0 0.0
  %5872 = vmatpush1.msra.mxu0 0.0
  %5873 = vmatprep.subr.mxu0 0.0
  %5874 = vmatpush1.msra.mxu0 0.0
  %5875 = vmatprep.subr.mxu0 0.0
  %5876 = vmatpush1.msra.mxu0 0.0
  %5877 = vmatprep.subr.mxu0 0.0
  %5878 = vmatpush1.msra.mxu0 0.0
  %5879 = vmatprep.subr.mxu0 0.0
  %5880 = vmatpush1.msra.mxu0 0.0
  %5881 = vmatprep.subr.mxu0 0.0
  %5882 = vmatpush1.msra.mxu0 0.0
  %5883 = vmatprep.subr.mxu0 0.0
  %5884 = vmatpush1.msra.mxu0 0.0
  %5885 = vmatprep.subr.mxu0 0.0
  %5886 = vmatpush1.msra.mxu0 0.0
  %5887 = vmatprep.subr.mxu0 0.0
  %5888 = vmatpush1.msra.mxu0 0.0
  %5889 = vmatprep.subr.mxu0 0.0
  %5890 = vmatpush1.msra.mxu0 0.0
  %5891 = vmatprep.subr.mxu0 0.0
  %5892 = vmatpush1.msra.mxu0 0.0
  %5893 = vmatprep.subr.mxu0 0.0
  %5894 = vmatpush1.msra.mxu0 0.0
  %5895 = vmatprep.subr.mxu0 0.0
  %5896 = vmatpush1.msra.mxu0 0.0
  %5897 = vmatprep.subr.mxu0 0.0
  %5898 = vmatpush1.msra.mxu0 0.0
  %5899 = vmatprep.subr.mxu0 0.0
  %5900 = vmatpush1.msra.mxu0 0.0
  %5901 = vmatprep.subr.mxu0 0.0
  %5902 = vmatpush1.msra.mxu0 0.0
  %5903 = vmatprep.mubr.f32.mxu0 0.0
  %v5904 = vand.u32 %v5646, 4294901760
  %5905 = vmatmul.mubr.f32.gmra.mrb[0].mxu0 %v5904
  %v5906 = vpop.f32.mrb[0].mxu0
  %v5907 = vadd.f32 %v5756, %v5906
  %v5908 = vpop.f32.mrb[0].mxu0
  %5909 = vdwg.mxu0
  %5910 = vmatprep.subr.mxu0 0.0
  %v5911 = vand.u32 %v5652, 4294901760
  %v5912 = vsub.f32 %v5652, %v5911
  %5913 = vmatpush1.msra.mxu0 %v5912
  %5914 = vmatprep.subr.mxu0 0.0
  %v5915 = vand.u32 %v5653, 4294901760
  %v5916 = vsub.f32 %v5653, %v5915
  %5917 = vmatpush1.msra.mxu0 %v5916
  %5918 = vmatprep.subr.mxu0 0.0
  %v5919 = vand.u32 %v5654, 4294901760
  %v5920 = vsub.f32 %v5654, %v5919
  %5921 = vmatpush1.msra.mxu0 %v5920
  %5922 = vmatprep.subr.mxu0 0.0
  %v5923 = vand.u32 %v5655, 4294901760
  %v5924 = vsub.f32 %v5655, %v5923
  %5925 = vmatpush1.msra.mxu0 %v5924
  %5926 = vmatprep.subr.mxu0 0.0
  %v5927 = vand.u32 %v5656, 4294901760
  %v5928 = vsub.f32 %v5656, %v5927
  %5929 = vmatpush1.msra.mxu0 %v5928
  %5930 = vmatprep.subr.mxu0 0.0
  %v5931 = vand.u32 %v5657, 4294901760
  %v5932 = vsub.f32 %v5657, %v5931
  %5933 = vmatpush1.msra.mxu0 %v5932
  %5934 = vmatprep.subr.mxu0 0.0
  %v5935 = vand.u32 %v5658, 4294901760
  %v5936 = vsub.f32 %v5658, %v5935
  %5937 = vmatpush1.msra.mxu0 %v5936
  %5938 = vmatprep.subr.mxu0 0.0
  %v5939 = vand.u32 %v5659, 4294901760
  %v5940 = vsub.f32 %v5659, %v5939
  %5941 = vmatpush1.msra.mxu0 %v5940
  %5942 = vmatprep.subr.mxu0 0.0
  %v5943 = vand.u32 %v5660, 4294901760
  %v5944 = vsub.f32 %v5660, %v5943
  %5945 = vmatpush1.msra.mxu0 %v5944
  %5946 = vmatprep.subr.mxu0 0.0
  %v5947 = vand.u32 %v5661, 4294901760
  %v5948 = vsub.f32 %v5661, %v5947
  %5949 = vmatpush1.msra.mxu0 %v5948
  %5950 = vmatprep.subr.mxu0 0.0
  %v5951 = vand.u32 %v5662, 4294901760
  %v5952 = vsub.f32 %v5662, %v5951
  %5953 = vmatpush1.msra.mxu0 %v5952
  %5954 = vmatprep.subr.mxu0 0.0
  %v5955 = vand.u32 %v5663, 4294901760
  %v5956 = vsub.f32 %v5663, %v5955
  %5957 = vmatpush1.msra.mxu0 %v5956
  %5958 = vmatprep.subr.mxu0 0.0
  %v5959 = vand.u32 %v5664, 4294901760
  %v5960 = vsub.f32 %v5664, %v5959
  %5961 = vmatpush1.msra.mxu0 %v5960
  %5962 = vmatprep.subr.mxu0 0.0
  %v5963 = vand.u32 %v5665, 4294901760
  %v5964 = vsub.f32 %v5665, %v5963
  %5965 = vmatpush1.msra.mxu0 %v5964
  %5966 = vmatprep.subr.mxu0 0.0
  %v5967 = vand.u32 %v5666, 4294901760
  %v5968 = vsub.f32 %v5666, %v5967
  %5969 = vmatpush1.msra.mxu0 %v5968
  %5970 = vmatprep.subr.mxu0 0.0
  %v5971 = vand.u32 %v5667, 4294901760
  %v5972 = vsub.f32 %v5667, %v5971
  %5973 = vmatpush1.msra.mxu0 %v5972
  %5974 = vmatprep.subr.mxu0 0.0
  %5975 = vmatpush1.msra.mxu0 0.0
  %5976 = vmatprep.subr.mxu0 0.0
  %5977 = vmatpush1.msra.mxu0 0.0
  %5978 = vmatprep.subr.mxu0 0.0
  %5979 = vmatpush1.msra.mxu0 0.0
  %5980 = vmatprep.subr.mxu0 0.0
  %5981 = vmatpush1.msra.mxu0 0.0
  %5982 = vmatprep.subr.mxu0 0.0
  %5983 = vmatpush1.msra.mxu0 0.0
  %5984 = vmatprep.subr.mxu0 0.0
  %5985 = vmatpush1.msra.mxu0 0.0
  %5986 = vmatprep.subr.mxu0 0.0
  %5987 = vmatpush1.msra.mxu0 0.0
  %5988 = vmatprep.subr.mxu0 0.0
  %5989 = vmatpush1.msra.mxu0 0.0
  %5990 = vmatprep.subr.mxu0 0.0
  %5991 = vmatpush1.msra.mxu0 0.0
  %5992 = vmatprep.subr.mxu0 0.0
  %5993 = vmatpush1.msra.mxu0 0.0
  %5994 = vmatprep.subr.mxu0 0.0
  %5995 = vmatpush1.msra.mxu0 0.0
  %5996 = vmatprep.subr.mxu0 0.0
  %5997 = vmatpush1.msra.mxu0 0.0
  %5998 = vmatprep.subr.mxu0 0.0
  %5999 = vmatpush1.msra.mxu0 0.0
  %6000 = vmatprep.subr.mxu0 0.0
  %6001 = vmatpush1.msra.mxu0 0.0
  %6002 = vmatprep.subr.mxu0 0.0
  %6003 = vmatpush1.msra.mxu0 0.0
  %6004 = vmatprep.subr.mxu0 0.0
  %6005 = vmatpush1.msra.mxu0 0.0
  %6006 = vmatprep.mubr.f32.mxu0 0.0
  %v6007 = vand.u32 %v5646, 4294901760
  %v6008 = vsub.f32 %v5646, %v6007
  %6009 = vmatmul.mubr.f32.gmra.mrb[0].mxu0 %v6008
  %v6010 = vpop.f32.mrb[0].mxu0
  %v6011 = vadd.f32 %v5907, %v6010
  %v6012 = vpop.f32.mrb[0].mxu0
  %6013 = vdwg.mxu0
  %6014 = vmatprep.subr.mxu0 0.0
  %v6015 = vand.u32 %v5652, 4294901760
  %6016 = vmatpush1.msra.mxu0 %v6015
  %6017 = vmatprep.subr.mxu0 0.0
  %v6018 = vand.u32 %v5653, 4294901760
  %6019 = vmatpush1.msra.mxu0 %v6018
  %6020 = vmatprep.subr.mxu0 0.0
  %v6021 = vand.u32 %v5654, 4294901760
  %6022 = vmatpush1.msra.mxu0 %v6021
  %6023 = vmatprep.subr.mxu0 0.0
  %v6024 = vand.u32 %v5655, 4294901760
  %6025 = vmatpush1.msra.mxu0 %v6024
  %6026 = vmatprep.subr.mxu0 0.0
  %v6027 = vand.u32 %v5656, 4294901760
  %6028 = vmatpush1.msra.mxu0 %v6027
  %6029 = vmatprep.subr.mxu0 0.0
  %v6030 = vand.u32 %v5657, 4294901760
  %6031 = vmatpush1.msra.mxu0 %v6030
  %6032 = vmatprep.subr.mxu0 0.0
  %v6033 = vand.u32 %v5658, 4294901760
  %6034 = vmatpush1.msra.mxu0 %v6033
  %6035 = vmatprep.subr.mxu0 0.0
  %v6036 = vand.u32 %v5659, 4294901760
  %6037 = vmatpush1.msra.mxu0 %v6036
  %6038 = vmatprep.subr.mxu0 0.0
  %v6039 = vand.u32 %v5660, 4294901760
  %6040 = vmatpush1.msra.mxu0 %v6039
  %6041 = vmatprep.subr.mxu0 0.0
  %v6042 = vand.u32 %v5661, 4294901760
  %6043 = vmatpush1.msra.mxu0 %v6042
  %6044 = vmatprep.subr.mxu0 0.0
  %v6045 = vand.u32 %v5662, 4294901760
  %6046 = vmatpush1.msra.mxu0 %v6045
  %6047 = vmatprep.subr.mxu0 0.0
  %v6048 = vand.u32 %v5663, 4294901760
  %6049 = vmatpush1.msra.mxu0 %v6048
  %6050 = vmatprep.subr.mxu0 0.0
  %v6051 = vand.u32 %v5664, 4294901760
  %6052 = vmatpush1.msra.mxu0 %v6051
  %6053 = vmatprep.subr.mxu0 0.0
  %v6054 = vand.u32 %v5665, 4294901760
  %6055 = vmatpush1.msra.mxu0 %v6054
  %6056 = vmatprep.subr.mxu0 0.0
  %v6057 = vand.u32 %v5666, 4294901760
  %6058 = vmatpush1.msra.mxu0 %v6057
  %6059 = vmatprep.subr.mxu0 0.0
  %v6060 = vand.u32 %v5667, 4294901760
  %6061 = vmatpush1.msra.mxu0 %v6060
  %6062 = vmatprep.subr.mxu0 0.0
  %6063 = vmatpush1.msra.mxu0 0.0
  %6064 = vmatprep.subr.mxu0 0.0
  %6065 = vmatpush1.msra.mxu0 0.0
  %6066 = vmatprep.subr.mxu0 0.0
  %6067 = vmatpush1.msra.mxu0 0.0
  %6068 = vmatprep.subr.mxu0 0.0
  %6069 = vmatpush1.msra.mxu0 0.0
  %6070 = vmatprep.subr.mxu0 0.0
  %6071 = vmatpush1.msra.mxu0 0.0
  %6072 = vmatprep.subr.mxu0 0.0
  %6073 = vmatpush1.msra.mxu0 0.0
  %6074 = vmatprep.subr.mxu0 0.0
  %6075 = vmatpush1.msra.mxu0 0.0
  %6076 = vmatprep.subr.mxu0 0.0
  %6077 = vmatpush1.msra.mxu0 0.0
  %6078 = vmatprep.subr.mxu0 0.0
  %6079 = vmatpush1.msra.mxu0 0.0
  %6080 = vmatprep.subr.mxu0 0.0
  %6081 = vmatpush1.msra.mxu0 0.0
  %6082 = vmatprep.subr.mxu0 0.0
  %6083 = vmatpush1.msra.mxu0 0.0
  %6084 = vmatprep.subr.mxu0 0.0
  %6085 = vmatpush1.msra.mxu0 0.0
  %6086 = vmatprep.subr.mxu0 0.0
  %6087 = vmatpush1.msra.mxu0 0.0
  %6088 = vmatprep.subr.mxu0 0.0
  %6089 = vmatpush1.msra.mxu0 0.0
  %6090 = vmatprep.subr.mxu0 0.0
  %6091 = vmatpush1.msra.mxu0 0.0
  %6092 = vmatprep.subr.mxu0 0.0
  %6093 = vmatpush1.msra.mxu0 0.0
  %6094 = vmatprep.mubr.f32.mxu0 0.0
  %v6095 = vand.u32 %v5646, 4294901760
  %v6096 = vsub.f32 %v5646, %v6095
  %v6097 = vand.u32 %v6096, 4294901760
  %6098 = vmatmul.mubr.f32.gmra.mrb[0].mxu0 %v6097
  %v6099 = vpop.f32.mrb[0].mxu0
  %v6100 = vadd.f32 %v6011, %v6099
  %v6101 = vpop.f32.mrb[0].mxu0
  %6102 = vdwg.mxu0
  %6103 = vmatprep.subr.mxu0 0.0
  %v6104 = vand.u32 %v5652, 4294901760
  %v6105 = vsub.f32 %v5652, %v6104
  %v6106 = vand.u32 %v6105, 4294901760
  %6107 = vmatpush1.msra.mxu0 %v6106
  %6108 = vmatprep.subr.mxu0 0.0
  %v6109 = vand.u32 %v5653, 4294901760
  %v6110 = vsub.f32 %v5653, %v6109
  %v6111 = vand.u32 %v6110, 4294901760
  %6112 = vmatpush1.msra.mxu0 %v6111
  %6113 = vmatprep.subr.mxu0 0.0
  %v6114 = vand.u32 %v5654, 4294901760
  %v6115 = vsub.f32 %v5654, %v6114
  %v6116 = vand.u32 %v6115, 4294901760
  %6117 = vmatpush1.msra.mxu0 %v6116
  %6118 = vmatprep.subr.mxu0 0.0
  %v6119 = vand.u32 %v5655, 4294901760
  %v6120 = vsub.f32 %v5655, %v6119
  %v6121 = vand.u32 %v6120, 4294901760
  %6122 = vmatpush1.msra.mxu0 %v6121
  %6123 = vmatprep.subr.mxu0 0.0
  %v6124 = vand.u32 %v5656, 4294901760
  %v6125 = vsub.f32 %v5656, %v6124
  %v6126 = vand.u32 %v6125, 4294901760
  %6127 = vmatpush1.msra.mxu0 %v6126
  %6128 = vmatprep.subr.mxu0 0.0
  %v6129 = vand.u32 %v5657, 4294901760
  %v6130 = vsub.f32 %v5657, %v6129
  %v6131 = vand.u32 %v6130, 4294901760
  %6132 = vmatpush1.msra.mxu0 %v6131
  %6133 = vmatprep.subr.mxu0 0.0
  %v6134 = vand.u32 %v5658, 4294901760
  %v6135 = vsub.f32 %v5658, %v6134
  %v6136 = vand.u32 %v6135, 4294901760
  %6137 = vmatpush1.msra.mxu0 %v6136
  %6138 = vmatprep.subr.mxu0 0.0
  %v6139 = vand.u32 %v5659, 4294901760
  %v6140 = vsub.f32 %v5659, %v6139
  %v6141 = vand.u32 %v6140, 4294901760
  %6142 = vmatpush1.msra.mxu0 %v6141
  %6143 = vmatprep.subr.mxu0 0.0
  %v6144 = vand.u32 %v5660, 4294901760
  %v6145 = vsub.f32 %v5660, %v6144
  %v6146 = vand.u32 %v6145, 4294901760
  %6147 = vmatpush1.msra.mxu0 %v6146
  %6148 = vmatprep.subr.mxu0 0.0
  %v6149 = vand.u32 %v5661, 4294901760
  %v6150 = vsub.f32 %v5661, %v6149
  %v6151 = vand.u32 %v6150, 4294901760
  %6152 = vmatpush1.msra.mxu0 %v6151
  %6153 = vmatprep.subr.mxu0 0.0
  %v6154 = vand.u32 %v5662, 4294901760
  %v6155 = vsub.f32 %v5662, %v6154
  %v6156 = vand.u32 %v6155, 4294901760
  %6157 = vmatpush1.msra.mxu0 %v6156
  %6158 = vmatprep.subr.mxu0 0.0
  %v6159 = vand.u32 %v5663, 4294901760
  %v6160 = vsub.f32 %v5663, %v6159
  %v6161 = vand.u32 %v6160, 4294901760
  %6162 = vmatpush1.msra.mxu0 %v6161
  %6163 = vmatprep.subr.mxu0 0.0
  %v6164 = vand.u32 %v5664, 4294901760
  %v6165 = vsub.f32 %v5664, %v6164
  %v6166 = vand.u32 %v6165, 4294901760
  %6167 = vmatpush1.msra.mxu0 %v6166
  %6168 = vmatprep.subr.mxu0 0.0
  %v6169 = vand.u32 %v5665, 4294901760
  %v6170 = vsub.f32 %v5665, %v6169
  %v6171 = vand.u32 %v6170, 4294901760
  %6172 = vmatpush1.msra.mxu0 %v6171
  %6173 = vmatprep.subr.mxu0 0.0
  %v6174 = vand.u32 %v5666, 4294901760
  %v6175 = vsub.f32 %v5666, %v6174
  %v6176 = vand.u32 %v6175, 4294901760
  %6177 = vmatpush1.msra.mxu0 %v6176
  %6178 = vmatprep.subr.mxu0 0.0
  %v6179 = vand.u32 %v5667, 4294901760
  %v6180 = vsub.f32 %v5667, %v6179
  %v6181 = vand.u32 %v6180, 4294901760
  %6182 = vmatpush1.msra.mxu0 %v6181
  %6183 = vmatprep.subr.mxu0 0.0
  %6184 = vmatpush1.msra.mxu0 0.0
  %6185 = vmatprep.subr.mxu0 0.0
  %6186 = vmatpush1.msra.mxu0 0.0
  %6187 = vmatprep.subr.mxu0 0.0
  %6188 = vmatpush1.msra.mxu0 0.0
  %6189 = vmatprep.subr.mxu0 0.0
  %6190 = vmatpush1.msra.mxu0 0.0
  %6191 = vmatprep.subr.mxu0 0.0
  %6192 = vmatpush1.msra.mxu0 0.0
  %6193 = vmatprep.subr.mxu0 0.0
  %6194 = vmatpush1.msra.mxu0 0.0
  %6195 = vmatprep.subr.mxu0 0.0
  %6196 = vmatpush1.msra.mxu0 0.0
  %6197 = vmatprep.subr.mxu0 0.0
  %6198 = vmatpush1.msra.mxu0 0.0
  %6199 = vmatprep.subr.mxu0 0.0
  %6200 = vmatpush1.msra.mxu0 0.0
  %6201 = vmatprep.subr.mxu0 0.0
  %6202 = vmatpush1.msra.mxu0 0.0
  %6203 = vmatprep.subr.mxu0 0.0
  %6204 = vmatpush1.msra.mxu0 0.0
  %6205 = vmatprep.subr.mxu0 0.0
  %6206 = vmatpush1.msra.mxu0 0.0
  %6207 = vmatprep.subr.mxu0 0.0
  %6208 = vmatpush1.msra.mxu0 0.0
  %6209 = vmatprep.subr.mxu0 0.0
  %6210 = vmatpush1.msra.mxu0 0.0
  %6211 = vmatprep.subr.mxu0 0.0
  %6212 = vmatpush1.msra.mxu0 0.0
  %6213 = vmatprep.subr.mxu0 0.0
  %6214 = vmatpush1.msra.mxu0 0.0
  %6215 = vmatprep.mubr.f32.mxu0 0.0
  %v6216 = vand.u32 %v5646, 4294901760
  %6217 = vmatmul.mubr.f32.gmra.mrb[0].mxu0 %v6216
  %v6218 = vpop.f32.mrb[0].mxu0
  %v6219 = vadd.f32 %v6100, %v6218
  %v6220 = vpop.f32.mrb[0].mxu0
  %6221 = vdwg.mxu0
  %6222 = vmatprep.subr.mxu0 0.0
  %v6223 = vand.u32 %v5652, 4294901760
  %6224 = vmatpush1.msra.mxu0 %v6223
  %6225 = vmatprep.subr.mxu0 0.0
  %v6226 = vand.u32 %v5653, 4294901760
  %6227 = vmatpush1.msra.mxu0 %v6226
  %6228 = vmatprep.subr.mxu0 0.0
  %v6229 = vand.u32 %v5654, 4294901760
  %6230 = vmatpush1.msra.mxu0 %v6229
  %6231 = vmatprep.subr.mxu0 0.0
  %v6232 = vand.u32 %v5655, 4294901760
  %6233 = vmatpush1.msra.mxu0 %v6232
  %6234 = vmatprep.subr.mxu0 0.0
  %v6235 = vand.u32 %v5656, 4294901760
  %6236 = vmatpush1.msra.mxu0 %v6235
  %6237 = vmatprep.subr.mxu0 0.0
  %v6238 = vand.u32 %v5657, 4294901760
  %6239 = vmatpush1.msra.mxu0 %v6238
  %6240 = vmatprep.subr.mxu0 0.0
  %v6241 = vand.u32 %v5658, 4294901760
  %6242 = vmatpush1.msra.mxu0 %v6241
  %6243 = vmatprep.subr.mxu0 0.0
  %v6244 = vand.u32 %v5659, 4294901760
  %6245 = vmatpush1.msra.mxu0 %v6244
  %6246 = vmatprep.subr.mxu0 0.0
  %v6247 = vand.u32 %v5660, 4294901760
  %6248 = vmatpush1.msra.mxu0 %v6247
  %6249 = vmatprep.subr.mxu0 0.0
  %v6250 = vand.u32 %v5661, 4294901760
  %6251 = vmatpush1.msra.mxu0 %v6250
  %6252 = vmatprep.subr.mxu0 0.0
  %v6253 = vand.u32 %v5662, 4294901760
  %6254 = vmatpush1.msra.mxu0 %v6253
  %6255 = vmatprep.subr.mxu0 0.0
  %v6256 = vand.u32 %v5663, 4294901760
  %6257 = vmatpush1.msra.mxu0 %v6256
  %6258 = vmatprep.subr.mxu0 0.0
  %v6259 = vand.u32 %v5664, 4294901760
  %6260 = vmatpush1.msra.mxu0 %v6259
  %6261 = vmatprep.subr.mxu0 0.0
  %v6262 = vand.u32 %v5665, 4294901760
  %6263 = vmatpush1.msra.mxu0 %v6262
  %6264 = vmatprep.subr.mxu0 0.0
  %v6265 = vand.u32 %v5666, 4294901760
  %6266 = vmatpush1.msra.mxu0 %v6265
  %6267 = vmatprep.subr.mxu0 0.0
  %v6268 = vand.u32 %v5667, 4294901760
  %6269 = vmatpush1.msra.mxu0 %v6268
  %6270 = vmatprep.subr.mxu0 0.0
  %6271 = vmatpush1.msra.mxu0 0.0
  %6272 = vmatprep.subr.mxu0 0.0
  %6273 = vmatpush1.msra.mxu0 0.0
  %6274 = vmatprep.subr.mxu0 0.0
  %6275 = vmatpush1.msra.mxu0 0.0
  %6276 = vmatprep.subr.mxu0 0.0
  %6277 = vmatpush1.msra.mxu0 0.0
  %6278 = vmatprep.subr.mxu0 0.0
  %6279 = vmatpush1.msra.mxu0 0.0
  %6280 = vmatprep.subr.mxu0 0.0
  %6281 = vmatpush1.msra.mxu0 0.0
  %6282 = vmatprep.subr.mxu0 0.0
  %6283 = vmatpush1.msra.mxu0 0.0
  %6284 = vmatprep.subr.mxu0 0.0
  %6285 = vmatpush1.msra.mxu0 0.0
  %6286 = vmatprep.subr.mxu0 0.0
  %6287 = vmatpush1.msra.mxu0 0.0
  %6288 = vmatprep.subr.mxu0 0.0
  %6289 = vmatpush1.msra.mxu0 0.0
  %6290 = vmatprep.subr.mxu0 0.0
  %6291 = vmatpush1.msra.mxu0 0.0
  %6292 = vmatprep.subr.mxu0 0.0
  %6293 = vmatpush1.msra.mxu0 0.0
  %6294 = vmatprep.subr.mxu0 0.0
  %6295 = vmatpush1.msra.mxu0 0.0
  %6296 = vmatprep.subr.mxu0 0.0
  %6297 = vmatpush1.msra.mxu0 0.0
  %6298 = vmatprep.subr.mxu0 0.0
  %6299 = vmatpush1.msra.mxu0 0.0
  %6300 = vmatprep.subr.mxu0 0.0
  %6301 = vmatpush1.msra.mxu0 0.0
  %6302 = vmatprep.mubr.f32.mxu0 0.0
  %v6303 = vand.u32 %v5646, 4294901760
  %6304 = vmatmul.mubr.f32.gmra.mrb[0].mxu0 %v6303
  %v6305 = vpop.f32.mrb[0].mxu0
  %v6306 = vadd.f32 %v6219, %v6305
  %v6307 = vpop.f32.mrb[0].mxu0
  %6308 = vdwg.mxu0
  %v6309 = vrot.slane %v6306, 4
  %v6310 = vadd.f32 %v6306, %v6309
  %v6311 = vrot.slane %v6310, 2
  %v6312 = vadd.f32 %v6310, %v6311
  %v6313 = vrot.slane %v6312, 1
  %v6314 = vadd.f32 %v6312, %v6313
  %v6315 = vmul.f32 %v6314, %v2919
  %v6316 = vmul.f32 %v5646, %v5646
  %6317 = vmatprep.subr.mxu0 0.0
  %v6318 = vand.u32 %v5652, 4294901760
  %6319 = vmatpush1.msra.mxu0 %v6318
  %6320 = vmatprep.subr.mxu0 0.0
  %v6321 = vand.u32 %v5653, 4294901760
  %6322 = vmatpush1.msra.mxu0 %v6321
  %6323 = vmatprep.subr.mxu0 0.0
  %v6324 = vand.u32 %v5654, 4294901760
  %6325 = vmatpush1.msra.mxu0 %v6324
  %6326 = vmatprep.subr.mxu0 0.0
  %v6327 = vand.u32 %v5655, 4294901760
  %6328 = vmatpush1.msra.mxu0 %v6327
  %6329 = vmatprep.subr.mxu0 0.0
  %v6330 = vand.u32 %v5656, 4294901760
  %6331 = vmatpush1.msra.mxu0 %v6330
  %6332 = vmatprep.subr.mxu0 0.0
  %v6333 = vand.u32 %v5657, 4294901760
  %6334 = vmatpush1.msra.mxu0 %v6333
  %6335 = vmatprep.subr.mxu0 0.0
  %v6336 = vand.u32 %v5658, 4294901760
  %6337 = vmatpush1.msra.mxu0 %v6336
  %6338 = vmatprep.subr.mxu0 0.0
  %v6339 = vand.u32 %v5659, 4294901760
  %6340 = vmatpush1.msra.mxu0 %v6339
  %6341 = vmatprep.subr.mxu0 0.0
  %v6342 = vand.u32 %v5660, 4294901760
  %6343 = vmatpush1.msra.mxu0 %v6342
  %6344 = vmatprep.subr.mxu0 0.0
  %v6345 = vand.u32 %v5661, 4294901760
  %6346 = vmatpush1.msra.mxu0 %v6345
  %6347 = vmatprep.subr.mxu0 0.0
  %v6348 = vand.u32 %v5662, 4294901760
  %6349 = vmatpush1.msra.mxu0 %v6348
  %6350 = vmatprep.subr.mxu0 0.0
  %v6351 = vand.u32 %v5663, 4294901760
  %6352 = vmatpush1.msra.mxu0 %v6351
  %6353 = vmatprep.subr.mxu0 0.0
  %v6354 = vand.u32 %v5664, 4294901760
  %6355 = vmatpush1.msra.mxu0 %v6354
  %6356 = vmatprep.subr.mxu0 0.0
  %v6357 = vand.u32 %v5665, 4294901760
  %6358 = vmatpush1.msra.mxu0 %v6357
  %6359 = vmatprep.subr.mxu0 0.0
  %v6360 = vand.u32 %v5666, 4294901760
  %6361 = vmatpush1.msra.mxu0 %v6360
  %6362 = vmatprep.subr.mxu0 0.0
  %v6363 = vand.u32 %v5667, 4294901760
  %6364 = vmatpush1.msra.mxu0 %v6363
  %6365 = vmatprep.subr.mxu0 0.0
  %6366 = vmatpush1.msra.mxu0 0.0
  %6367 = vmatprep.subr.mxu0 0.0
  %6368 = vmatpush1.msra.mxu0 0.0
  %6369 = vmatprep.subr.mxu0 0.0
  %6370 = vmatpush1.msra.mxu0 0.0
  %6371 = vmatprep.subr.mxu0 0.0
  %6372 = vmatpush1.msra.mxu0 0.0
  %6373 = vmatprep.subr.mxu0 0.0
  %6374 = vmatpush1.msra.mxu0 0.0
  %6375 = vmatprep.subr.mxu0 0.0
  %6376 = vmatpush1.msra.mxu0 0.0
  %6377 = vmatprep.subr.mxu0 0.0
  %6378 = vmatpush1.msra.mxu0 0.0
  %6379 = vmatprep.subr.mxu0 0.0
  %6380 = vmatpush1.msra.mxu0 0.0
  %6381 = vmatprep.subr.mxu0 0.0
  %6382 = vmatpush1.msra.mxu0 0.0
  %6383 = vmatprep.subr.mxu0 0.0
  %6384 = vmatpush1.msra.mxu0 0.0
  %6385 = vmatprep.subr.mxu0 0.0
  %6386 = vmatpush1.msra.mxu0 0.0
  %6387 = vmatprep.subr.mxu0 0.0
  %6388 = vmatpush1.msra.mxu0 0.0
  %6389 = vmatprep.subr.mxu0 0.0
  %6390 = vmatpush1.msra.mxu0 0.0
  %6391 = vmatprep.subr.mxu0 0.0
  %6392 = vmatpush1.msra.mxu0 0.0
  %6393 = vmatprep.subr.mxu0 0.0
  %6394 = vmatpush1.msra.mxu0 0.0
  %6395 = vmatprep.subr.mxu0 0.0
  %6396 = vmatpush1.msra.mxu0 0.0
  %6397 = vmatprep.mubr.f32.mxu0 0.0
  %v6398 = vand.u32 %v6316, 4294901760
  %v6399 = vsub.f32 %v6316, %v6398
  %v6400 = vand.u32 %v6399, 4294901760
  %v6401 = vsub.f32 %v6399, %v6400
  %v6402 = vand.u32 %v6401, 4294901760
  %6403 = vmatmul.mubr.f32.gmra.mrb[0].mxu0 %v6402
  %v6404 = vpop.f32.mrb[0].mxu0
  %v6405 = vadd.f32 0.0, %v6404
  %v6406 = vpop.f32.mrb[0].mxu0
  %6407 = vdwg.mxu0
  %6408 = vmatprep.subr.mxu0 0.0
  %v6409 = vand.u32 %v5652, 4294901760
  %v6410 = vsub.f32 %v5652, %v6409
  %v6411 = vand.u32 %v6410, 4294901760
  %v6412 = vsub.f32 %v6410, %v6411
  %v6413 = vand.u32 %v6412, 4294901760
  %6414 = vmatpush1.msra.mxu0 %v6413
  %6415 = vmatprep.subr.mxu0 0.0
  %v6416 = vand.u32 %v5653, 4294901760
  %v6417 = vsub.f32 %v5653, %v6416
  %v6418 = vand.u32 %v6417, 4294901760
  %v6419 = vsub.f32 %v6417, %v6418
  %v6420 = vand.u32 %v6419, 4294901760
  %6421 = vmatpush1.msra.mxu0 %v6420
  %6422 = vmatprep.subr.mxu0 0.0
  %v6423 = vand.u32 %v5654, 4294901760
  %v6424 = vsub.f32 %v5654, %v6423
  %v6425 = vand.u32 %v6424, 4294901760
  %v6426 = vsub.f32 %v6424, %v6425
  %v6427 = vand.u32 %v6426, 4294901760
  %6428 = vmatpush1.msra.mxu0 %v6427
  %6429 = vmatprep.subr.mxu0 0.0
  %v6430 = vand.u32 %v5655, 4294901760
  %v6431 = vsub.f32 %v5655, %v6430
  %v6432 = vand.u32 %v6431, 4294901760
  %v6433 = vsub.f32 %v6431, %v6432
  %v6434 = vand.u32 %v6433, 4294901760
  %6435 = vmatpush1.msra.mxu0 %v6434
  %6436 = vmatprep.subr.mxu0 0.0
  %v6437 = vand.u32 %v5656, 4294901760
  %v6438 = vsub.f32 %v5656, %v6437
  %v6439 = vand.u32 %v6438, 4294901760
  %v6440 = vsub.f32 %v6438, %v6439
  %v6441 = vand.u32 %v6440, 4294901760
  %6442 = vmatpush1.msra.mxu0 %v6441
  %6443 = vmatprep.subr.mxu0 0.0
  %v6444 = vand.u32 %v5657, 4294901760
  %v6445 = vsub.f32 %v5657, %v6444
  %v6446 = vand.u32 %v6445, 4294901760
  %v6447 = vsub.f32 %v6445, %v6446
  %v6448 = vand.u32 %v6447, 4294901760
  %6449 = vmatpush1.msra.mxu0 %v6448
  %6450 = vmatprep.subr.mxu0 0.0
  %v6451 = vand.u32 %v5658, 4294901760
  %v6452 = vsub.f32 %v5658, %v6451
  %v6453 = vand.u32 %v6452, 4294901760
  %v6454 = vsub.f32 %v6452, %v6453
  %v6455 = vand.u32 %v6454, 4294901760
  %6456 = vmatpush1.msra.mxu0 %v6455
  %6457 = vmatprep.subr.mxu0 0.0
  %v6458 = vand.u32 %v5659, 4294901760
  %v6459 = vsub.f32 %v5659, %v6458
  %v6460 = vand.u32 %v6459, 4294901760
  %v6461 = vsub.f32 %v6459, %v6460
  %v6462 = vand.u32 %v6461, 4294901760
  %6463 = vmatpush1.msra.mxu0 %v6462
  %6464 = vmatprep.subr.mxu0 0.0
  %v6465 = vand.u32 %v5660, 4294901760
  %v6466 = vsub.f32 %v5660, %v6465
  %v6467 = vand.u32 %v6466, 4294901760
  %v6468 = vsub.f32 %v6466, %v6467
  %v6469 = vand.u32 %v6468, 4294901760
  %6470 = vmatpush1.msra.mxu0 %v6469
  %6471 = vmatprep.subr.mxu0 0.0
  %v6472 = vand.u32 %v5661, 4294901760
  %v6473 = vsub.f32 %v5661, %v6472
  %v6474 = vand.u32 %v6473, 4294901760
  %v6475 = vsub.f32 %v6473, %v6474
  %v6476 = vand.u32 %v6475, 4294901760
  %6477 = vmatpush1.msra.mxu0 %v6476
  %6478 = vmatprep.subr.mxu0 0.0
  %v6479 = vand.u32 %v5662, 4294901760
  %v6480 = vsub.f32 %v5662, %v6479
  %v6481 = vand.u32 %v6480, 4294901760
  %v6482 = vsub.f32 %v6480, %v6481
  %v6483 = vand.u32 %v6482, 4294901760
  %6484 = vmatpush1.msra.mxu0 %v6483
  %6485 = vmatprep.subr.mxu0 0.0
  %v6486 = vand.u32 %v5663, 4294901760
  %v6487 = vsub.f32 %v5663, %v6486
  %v6488 = vand.u32 %v6487, 4294901760
  %v6489 = vsub.f32 %v6487, %v6488
  %v6490 = vand.u32 %v6489, 4294901760
  %6491 = vmatpush1.msra.mxu0 %v6490
  %6492 = vmatprep.subr.mxu0 0.0
  %v6493 = vand.u32 %v5664, 4294901760
  %v6494 = vsub.f32 %v5664, %v6493
  %v6495 = vand.u32 %v6494, 4294901760
  %v6496 = vsub.f32 %v6494, %v6495
  %v6497 = vand.u32 %v6496, 4294901760
  %6498 = vmatpush1.msra.mxu0 %v6497
  %6499 = vmatprep.subr.mxu0 0.0
  %v6500 = vand.u32 %v5665, 4294901760
  %v6501 = vsub.f32 %v5665, %v6500
  %v6502 = vand.u32 %v6501, 4294901760
  %v6503 = vsub.f32 %v6501, %v6502
  %v6504 = vand.u32 %v6503, 4294901760
  %6505 = vmatpush1.msra.mxu0 %v6504
  %6506 = vmatprep.subr.mxu0 0.0
  %v6507 = vand.u32 %v5666, 4294901760
  %v6508 = vsub.f32 %v5666, %v6507
  %v6509 = vand.u32 %v6508, 4294901760
  %v6510 = vsub.f32 %v6508, %v6509
  %v6511 = vand.u32 %v6510, 4294901760
  %6512 = vmatpush1.msra.mxu0 %v6511
  %6513 = vmatprep.subr.mxu0 0.0
  %v6514 = vand.u32 %v5667, 4294901760
  %v6515 = vsub.f32 %v5667, %v6514
  %v6516 = vand.u32 %v6515, 4294901760
  %v6517 = vsub.f32 %v6515, %v6516
  %v6518 = vand.u32 %v6517, 4294901760
  %6519 = vmatpush1.msra.mxu0 %v6518
  %6520 = vmatprep.subr.mxu0 0.0
  %6521 = vmatpush1.msra.mxu0 0.0
  %6522 = vmatprep.subr.mxu0 0.0
  %6523 = vmatpush1.msra.mxu0 0.0
  %6524 = vmatprep.subr.mxu0 0.0
  %6525 = vmatpush1.msra.mxu0 0.0
  %6526 = vmatprep.subr.mxu0 0.0
  %6527 = vmatpush1.msra.mxu0 0.0
  %6528 = vmatprep.subr.mxu0 0.0
  %6529 = vmatpush1.msra.mxu0 0.0
  %6530 = vmatprep.subr.mxu0 0.0
  %6531 = vmatpush1.msra.mxu0 0.0
  %6532 = vmatprep.subr.mxu0 0.0
  %6533 = vmatpush1.msra.mxu0 0.0
  %6534 = vmatprep.subr.mxu0 0.0
  %6535 = vmatpush1.msra.mxu0 0.0
  %6536 = vmatprep.subr.mxu0 0.0
  %6537 = vmatpush1.msra.mxu0 0.0
  %6538 = vmatprep.subr.mxu0 0.0
  %6539 = vmatpush1.msra.mxu0 0.0
  %6540 = vmatprep.subr.mxu0 0.0
  %6541 = vmatpush1.msra.mxu0 0.0
  %6542 = vmatprep.subr.mxu0 0.0
  %6543 = vmatpush1.msra.mxu0 0.0
  %6544 = vmatprep.subr.mxu0 0.0
  %6545 = vmatpush1.msra.mxu0 0.0
  %6546 = vmatprep.subr.mxu0 0.0
  %6547 = vmatpush1.msra.mxu0 0.0
  %6548 = vmatprep.subr.mxu0 0.0
  %6549 = vmatpush1.msra.mxu0 0.0
  %6550 = vmatprep.subr.mxu0 0.0
  %6551 = vmatpush1.msra.mxu0 0.0
  %6552 = vmatprep.mubr.f32.mxu0 0.0
  %v6553 = vand.u32 %v6316, 4294901760
  %6554 = vmatmul.mubr.f32.gmra.mrb[0].mxu0 %v6553
  %v6555 = vpop.f32.mrb[0].mxu0
  %v6556 = vadd.f32 %v6405, %v6555
  %v6557 = vpop.f32.mrb[0].mxu0
  %6558 = vdwg.mxu0
  %6559 = vmatprep.subr.mxu0 0.0
  %v6560 = vand.u32 %v5652, 4294901760
  %v6561 = vsub.f32 %v5652, %v6560
  %6562 = vmatpush1.msra.mxu0 %v6561
  %6563 = vmatprep.subr.mxu0 0.0
  %v6564 = vand.u32 %v5653, 4294901760
  %v6565 = vsub.f32 %v5653, %v6564
  %6566 = vmatpush1.msra.mxu0 %v6565
  %6567 = vmatprep.subr.mxu0 0.0
  %v6568 = vand.u32 %v5654, 4294901760
  %v6569 = vsub.f32 %v5654, %v6568
  %6570 = vmatpush1.msra.mxu0 %v6569
  %6571 = vmatprep.subr.mxu0 0.0
  %v6572 = vand.u32 %v5655, 4294901760
  %v6573 = vsub.f32 %v5655, %v6572
  %6574 = vmatpush1.msra.mxu0 %v6573
  %6575 = vmatprep.subr.mxu0 0.0
  %v6576 = vand.u32 %v5656, 4294901760
  %v6577 = vsub.f32 %v5656, %v6576
  %6578 = vmatpush1.msra.mxu0 %v6577
  %6579 = vmatprep.subr.mxu0 0.0
  %v6580 = vand.u32 %v5657, 4294901760
  %v6581 = vsub.f32 %v5657, %v6580
  %6582 = vmatpush1.msra.mxu0 %v6581
  %6583 = vmatprep.subr.mxu0 0.0
  %v6584 = vand.u32 %v5658, 4294901760
  %v6585 = vsub.f32 %v5658, %v6584
  %6586 = vmatpush1.msra.mxu0 %v6585
  %6587 = vmatprep.subr.mxu0 0.0
  %v6588 = vand.u32 %v5659, 4294901760
  %v6589 = vsub.f32 %v5659, %v6588
  %6590 = vmatpush1.msra.mxu0 %v6589
  %6591 = vmatprep.subr.mxu0 0.0
  %v6592 = vand.u32 %v5660, 4294901760
  %v6593 = vsub.f32 %v5660, %v6592
  %6594 = vmatpush1.msra.mxu0 %v6593
  %6595 = vmatprep.subr.mxu0 0.0
  %v6596 = vand.u32 %v5661, 4294901760
  %v6597 = vsub.f32 %v5661, %v6596
  %6598 = vmatpush1.msra.mxu0 %v6597
  %6599 = vmatprep.subr.mxu0 0.0
  %v6600 = vand.u32 %v5662, 4294901760
  %v6601 = vsub.f32 %v5662, %v6600
  %6602 = vmatpush1.msra.mxu0 %v6601
  %6603 = vmatprep.subr.mxu0 0.0
  %v6604 = vand.u32 %v5663, 4294901760
  %v6605 = vsub.f32 %v5663, %v6604
  %6606 = vmatpush1.msra.mxu0 %v6605
  %6607 = vmatprep.subr.mxu0 0.0
  %v6608 = vand.u32 %v5664, 4294901760
  %v6609 = vsub.f32 %v5664, %v6608
  %6610 = vmatpush1.msra.mxu0 %v6609
  %6611 = vmatprep.subr.mxu0 0.0
  %v6612 = vand.u32 %v5665, 4294901760
  %v6613 = vsub.f32 %v5665, %v6612
  %6614 = vmatpush1.msra.mxu0 %v6613
  %6615 = vmatprep.subr.mxu0 0.0
  %v6616 = vand.u32 %v5666, 4294901760
  %v6617 = vsub.f32 %v5666, %v6616
  %6618 = vmatpush1.msra.mxu0 %v6617
  %6619 = vmatprep.subr.mxu0 0.0
  %v6620 = vand.u32 %v5667, 4294901760
  %v6621 = vsub.f32 %v5667, %v6620
  %6622 = vmatpush1.msra.mxu0 %v6621
  %6623 = vmatprep.subr.mxu0 0.0
  %6624 = vmatpush1.msra.mxu0 0.0
  %6625 = vmatprep.subr.mxu0 0.0
  %6626 = vmatpush1.msra.mxu0 0.0
  %6627 = vmatprep.subr.mxu0 0.0
  %6628 = vmatpush1.msra.mxu0 0.0
  %6629 = vmatprep.subr.mxu0 0.0
  %6630 = vmatpush1.msra.mxu0 0.0
  %6631 = vmatprep.subr.mxu0 0.0
  %6632 = vmatpush1.msra.mxu0 0.0
  %6633 = vmatprep.subr.mxu0 0.0
  %6634 = vmatpush1.msra.mxu0 0.0
  %6635 = vmatprep.subr.mxu0 0.0
  %6636 = vmatpush1.msra.mxu0 0.0
  %6637 = vmatprep.subr.mxu0 0.0
  %6638 = vmatpush1.msra.mxu0 0.0
  %6639 = vmatprep.subr.mxu0 0.0
  %6640 = vmatpush1.msra.mxu0 0.0
  %6641 = vmatprep.subr.mxu0 0.0
  %6642 = vmatpush1.msra.mxu0 0.0
  %6643 = vmatprep.subr.mxu0 0.0
  %6644 = vmatpush1.msra.mxu0 0.0
  %6645 = vmatprep.subr.mxu0 0.0
  %6646 = vmatpush1.msra.mxu0 0.0
  %6647 = vmatprep.subr.mxu0 0.0
  %6648 = vmatpush1.msra.mxu0 0.0
  %6649 = vmatprep.subr.mxu0 0.0
  %6650 = vmatpush1.msra.mxu0 0.0
  %6651 = vmatprep.subr.mxu0 0.0
  %6652 = vmatpush1.msra.mxu0 0.0
  %6653 = vmatprep.subr.mxu0 0.0
  %6654 = vmatpush1.msra.mxu0 0.0
  %6655 = vmatprep.mubr.f32.mxu0 0.0
  %v6656 = vand.u32 %v6316, 4294901760
  %v6657 = vsub.f32 %v6316, %v6656
  %6658 = vmatmul.mubr.f32.gmra.mrb[0].mxu0 %v6657
  %v6659 = vpop.f32.mrb[0].mxu0
  %v6660 = vadd.f32 %v6556, %v6659
  %v6661 = vpop.f32.mrb[0].mxu0
  %6662 = vdwg.mxu0
  %6663 = vmatprep.subr.mxu0 0.0
  %v6664 = vand.u32 %v5652, 4294901760
  %6665 = vmatpush1.msra.mxu0 %v6664
  %6666 = vmatprep.subr.mxu0 0.0
  %v6667 = vand.u32 %v5653, 4294901760
  %6668 = vmatpush1.msra.mxu0 %v6667
  %6669 = vmatprep.subr.mxu0 0.0
  %v6670 = vand.u32 %v5654, 4294901760
  %6671 = vmatpush1.msra.mxu0 %v6670
  %6672 = vmatprep.subr.mxu0 0.0
  %v6673 = vand.u32 %v5655, 4294901760
  %6674 = vmatpush1.msra.mxu0 %v6673
  %6675 = vmatprep.subr.mxu0 0.0
  %v6676 = vand.u32 %v5656, 4294901760
  %6677 = vmatpush1.msra.mxu0 %v6676
  %6678 = vmatprep.subr.mxu0 0.0
  %v6679 = vand.u32 %v5657, 4294901760
  %6680 = vmatpush1.msra.mxu0 %v6679
  %6681 = vmatprep.subr.mxu0 0.0
  %v6682 = vand.u32 %v5658, 4294901760
  %6683 = vmatpush1.msra.mxu0 %v6682
  %6684 = vmatprep.subr.mxu0 0.0
  %v6685 = vand.u32 %v5659, 4294901760
  %6686 = vmatpush1.msra.mxu0 %v6685
  %6687 = vmatprep.subr.mxu0 0.0
  %v6688 = vand.u32 %v5660, 4294901760
  %6689 = vmatpush1.msra.mxu0 %v6688
  %6690 = vmatprep.subr.mxu0 0.0
  %v6691 = vand.u32 %v5661, 4294901760
  %6692 = vmatpush1.msra.mxu0 %v6691
  %6693 = vmatprep.subr.mxu0 0.0
  %v6694 = vand.u32 %v5662, 4294901760
  %6695 = vmatpush1.msra.mxu0 %v6694
  %6696 = vmatprep.subr.mxu0 0.0
  %v6697 = vand.u32 %v5663, 4294901760
  %6698 = vmatpush1.msra.mxu0 %v6697
  %6699 = vmatprep.subr.mxu0 0.0
  %v6700 = vand.u32 %v5664, 4294901760
  %6701 = vmatpush1.msra.mxu0 %v6700
  %6702 = vmatprep.subr.mxu0 0.0
  %v6703 = vand.u32 %v5665, 4294901760
  %6704 = vmatpush1.msra.mxu0 %v6703
  %6705 = vmatprep.subr.mxu0 0.0
  %v6706 = vand.u32 %v5666, 4294901760
  %6707 = vmatpush1.msra.mxu0 %v6706
  %6708 = vmatprep.subr.mxu0 0.0
  %v6709 = vand.u32 %v5667, 4294901760
  %6710 = vmatpush1.msra.mxu0 %v6709
  %6711 = vmatprep.subr.mxu0 0.0
  %6712 = vmatpush1.msra.mxu0 0.0
  %6713 = vmatprep.subr.mxu0 0.0
  %6714 = vmatpush1.msra.mxu0 0.0
  %6715 = vmatprep.subr.mxu0 0.0
  %6716 = vmatpush1.msra.mxu0 0.0
  %6717 = vmatprep.subr.mxu0 0.0
  %6718 = vmatpush1.msra.mxu0 0.0
  %6719 = vmatprep.subr.mxu0 0.0
  %6720 = vmatpush1.msra.mxu0 0.0
  %6721 = vmatprep.subr.mxu0 0.0
  %6722 = vmatpush1.msra.mxu0 0.0
  %6723 = vmatprep.subr.mxu0 0.0
  %6724 = vmatpush1.msra.mxu0 0.0
  %6725 = vmatprep.subr.mxu0 0.0
  %6726 = vmatpush1.msra.mxu0 0.0
  %6727 = vmatprep.subr.mxu0 0.0
  %6728 = vmatpush1.msra.mxu0 0.0
  %6729 = vmatprep.subr.mxu0 0.0
  %6730 = vmatpush1.msra.mxu0 0.0
  %6731 = vmatprep.subr.mxu0 0.0
  %6732 = vmatpush1.msra.mxu0 0.0
  %6733 = vmatprep.subr.mxu0 0.0
  %6734 = vmatpush1.msra.mxu0 0.0
  %6735 = vmatprep.subr.mxu0 0.0
  %6736 = vmatpush1.msra.mxu0 0.0
  %6737 = vmatprep.subr.mxu0 0.0
  %6738 = vmatpush1.msra.mxu0 0.0
  %6739 = vmatprep.subr.mxu0 0.0
  %6740 = vmatpush1.msra.mxu0 0.0
  %6741 = vmatprep.subr.mxu0 0.0
  %6742 = vmatpush1.msra.mxu0 0.0
  %6743 = vmatprep.mubr.f32.mxu0 0.0
  %v6744 = vand.u32 %v6316, 4294901760
  %v6745 = vsub.f32 %v6316, %v6744
  %v6746 = vand.u32 %v6745, 4294901760
  %6747 = vmatmul.mubr.f32.gmra.mrb[0].mxu0 %v6746
  %v6748 = vpop.f32.mrb[0].mxu0
  %v6749 = vadd.f32 %v6660, %v6748
  %v6750 = vpop.f32.mrb[0].mxu0
  %6751 = vdwg.mxu0
  %6752 = vmatprep.subr.mxu0 0.0
  %v6753 = vand.u32 %v5652, 4294901760
  %v6754 = vsub.f32 %v5652, %v6753
  %v6755 = vand.u32 %v6754, 4294901760
  %6756 = vmatpush1.msra.mxu0 %v6755
  %6757 = vmatprep.subr.mxu0 0.0
  %v6758 = vand.u32 %v5653, 4294901760
  %v6759 = vsub.f32 %v5653, %v6758
  %v6760 = vand.u32 %v6759, 4294901760
  %6761 = vmatpush1.msra.mxu0 %v6760
  %6762 = vmatprep.subr.mxu0 0.0
  %v6763 = vand.u32 %v5654, 4294901760
  %v6764 = vsub.f32 %v5654, %v6763
  %v6765 = vand.u32 %v6764, 4294901760
  %6766 = vmatpush1.msra.mxu0 %v6765
  %6767 = vmatprep.subr.mxu0 0.0
  %v6768 = vand.u32 %v5655, 4294901760
  %v6769 = vsub.f32 %v5655, %v6768
  %v6770 = vand.u32 %v6769, 4294901760
  %6771 = vmatpush1.msra.mxu0 %v6770
  %6772 = vmatprep.subr.mxu0 0.0
  %v6773 = vand.u32 %v5656, 4294901760
  %v6774 = vsub.f32 %v5656, %v6773
  %v6775 = vand.u32 %v6774, 4294901760
  %6776 = vmatpush1.msra.mxu0 %v6775
  %6777 = vmatprep.subr.mxu0 0.0
  %v6778 = vand.u32 %v5657, 4294901760
  %v6779 = vsub.f32 %v5657, %v6778
  %v6780 = vand.u32 %v6779, 4294901760
  %6781 = vmatpush1.msra.mxu0 %v6780
  %6782 = vmatprep.subr.mxu0 0.0
  %v6783 = vand.u32 %v5658, 4294901760
  %v6784 = vsub.f32 %v5658, %v6783
  %v6785 = vand.u32 %v6784, 4294901760
  %6786 = vmatpush1.msra.mxu0 %v6785
  %6787 = vmatprep.subr.mxu0 0.0
  %v6788 = vand.u32 %v5659, 4294901760
  %v6789 = vsub.f32 %v5659, %v6788
  %v6790 = vand.u32 %v6789, 4294901760
  %6791 = vmatpush1.msra.mxu0 %v6790
  %6792 = vmatprep.subr.mxu0 0.0
  %v6793 = vand.u32 %v5660, 4294901760
  %v6794 = vsub.f32 %v5660, %v6793
  %v6795 = vand.u32 %v6794, 4294901760
  %6796 = vmatpush1.msra.mxu0 %v6795
  %6797 = vmatprep.subr.mxu0 0.0
  %v6798 = vand.u32 %v5661, 4294901760
  %v6799 = vsub.f32 %v5661, %v6798
  %v6800 = vand.u32 %v6799, 4294901760
  %6801 = vmatpush1.msra.mxu0 %v6800
  %6802 = vmatprep.subr.mxu0 0.0
  %v6803 = vand.u32 %v5662, 4294901760
  %v6804 = vsub.f32 %v5662, %v6803
  %v6805 = vand.u32 %v6804, 4294901760
  %6806 = vmatpush1.msra.mxu0 %v6805
  %6807 = vmatprep.subr.mxu0 0.0
  %v6808 = vand.u32 %v5663, 4294901760
  %v6809 = vsub.f32 %v5663, %v6808
  %v6810 = vand.u32 %v6809, 4294901760
  %6811 = vmatpush1.msra.mxu0 %v6810
  %6812 = vmatprep.subr.mxu0 0.0
  %v6813 = vand.u32 %v5664, 4294901760
  %v6814 = vsub.f32 %v5664, %v6813
  %v6815 = vand.u32 %v6814, 4294901760
  %6816 = vmatpush1.msra.mxu0 %v6815
  %6817 = vmatprep.subr.mxu0 0.0
  %v6818 = vand.u32 %v5665, 4294901760
  %v6819 = vsub.f32 %v5665, %v6818
  %v6820 = vand.u32 %v6819, 4294901760
  %6821 = vmatpush1.msra.mxu0 %v6820
  %6822 = vmatprep.subr.mxu0 0.0
  %v6823 = vand.u32 %v5666, 4294901760
  %v6824 = vsub.f32 %v5666, %v6823
  %v6825 = vand.u32 %v6824, 4294901760
  %6826 = vmatpush1.msra.mxu0 %v6825
  %6827 = vmatprep.subr.mxu0 0.0
  %v6828 = vand.u32 %v5667, 4294901760
  %v6829 = vsub.f32 %v5667, %v6828
  %v6830 = vand.u32 %v6829, 4294901760
  %6831 = vmatpush1.msra.mxu0 %v6830
  %6832 = vmatprep.subr.mxu0 0.0
  %6833 = vmatpush1.msra.mxu0 0.0
  %6834 = vmatprep.subr.mxu0 0.0
  %6835 = vmatpush1.msra.mxu0 0.0
  %6836 = vmatprep.subr.mxu0 0.0
  %6837 = vmatpush1.msra.mxu0 0.0
  %6838 = vmatprep.subr.mxu0 0.0
  %6839 = vmatpush1.msra.mxu0 0.0
  %6840 = vmatprep.subr.mxu0 0.0
  %6841 = vmatpush1.msra.mxu0 0.0
  %6842 = vmatprep.subr.mxu0 0.0
  %6843 = vmatpush1.msra.mxu0 0.0
  %6844 = vmatprep.subr.mxu0 0.0
  %6845 = vmatpush1.msra.mxu0 0.0
  %6846 = vmatprep.subr.mxu0 0.0
  %6847 = vmatpush1.msra.mxu0 0.0
  %6848 = vmatprep.subr.mxu0 0.0
  %6849 = vmatpush1.msra.mxu0 0.0
  %6850 = vmatprep.subr.mxu0 0.0
  %6851 = vmatpush1.msra.mxu0 0.0
  %6852 = vmatprep.subr.mxu0 0.0
  %6853 = vmatpush1.msra.mxu0 0.0
  %6854 = vmatprep.subr.mxu0 0.0
  %6855 = vmatpush1.msra.mxu0 0.0
  %6856 = vmatprep.subr.mxu0 0.0
  %6857 = vmatpush1.msra.mxu0 0.0
  %6858 = vmatprep.subr.mxu0 0.0
  %6859 = vmatpush1.msra.mxu0 0.0
  %6860 = vmatprep.subr.mxu0 0.0
  %6861 = vmatpush1.msra.mxu0 0.0
  %6862 = vmatprep.subr.mxu0 0.0
  %6863 = vmatpush1.msra.mxu0 0.0
  %6864 = vmatprep.mubr.f32.mxu0 0.0
  %v6865 = vand.u32 %v6316, 4294901760
  %6866 = vmatmul.mubr.f32.gmra.mrb[0].mxu0 %v6865
  %v6867 = vpop.f32.mrb[0].mxu0
  %v6868 = vadd.f32 %v6749, %v6867
  %v6869 = vpop.f32.mrb[0].mxu0
  %6870 = vdwg.mxu0
  %6871 = vmatprep.subr.mxu0 0.0
  %v6872 = vand.u32 %v5652, 4294901760
  %6873 = vmatpush1.msra.mxu0 %v6872
  %6874 = vmatprep.subr.mxu0 0.0
  %v6875 = vand.u32 %v5653, 4294901760
  %6876 = vmatpush1.msra.mxu0 %v6875
  %6877 = vmatprep.subr.mxu0 0.0
  %v6878 = vand.u32 %v5654, 4294901760
  %6879 = vmatpush1.msra.mxu0 %v6878
  %6880 = vmatprep.subr.mxu0 0.0
  %v6881 = vand.u32 %v5655, 4294901760
  %6882 = vmatpush1.msra.mxu0 %v6881
  %6883 = vmatprep.subr.mxu0 0.0
  %v6884 = vand.u32 %v5656, 4294901760
  %6885 = vmatpush1.msra.mxu0 %v6884
  %6886 = vmatprep.subr.mxu0 0.0
  %v6887 = vand.u32 %v5657, 4294901760
  %6888 = vmatpush1.msra.mxu0 %v6887
  %6889 = vmatprep.subr.mxu0 0.0
  %v6890 = vand.u32 %v5658, 4294901760
  %6891 = vmatpush1.msra.mxu0 %v6890
  %6892 = vmatprep.subr.mxu0 0.0
  %v6893 = vand.u32 %v5659, 4294901760
  %6894 = vmatpush1.msra.mxu0 %v6893
  %6895 = vmatprep.subr.mxu0 0.0
  %v6896 = vand.u32 %v5660, 4294901760
  %6897 = vmatpush1.msra.mxu0 %v6896
  %6898 = vmatprep.subr.mxu0 0.0
  %v6899 = vand.u32 %v5661, 4294901760
  %6900 = vmatpush1.msra.mxu0 %v6899
  %6901 = vmatprep.subr.mxu0 0.0
  %v6902 = vand.u32 %v5662, 4294901760
  %6903 = vmatpush1.msra.mxu0 %v6902
  %6904 = vmatprep.subr.mxu0 0.0
  %v6905 = vand.u32 %v5663, 4294901760
  %6906 = vmatpush1.msra.mxu0 %v6905
  %6907 = vmatprep.subr.mxu0 0.0
  %v6908 = vand.u32 %v5664, 4294901760
  %6909 = vmatpush1.msra.mxu0 %v6908
  %6910 = vmatprep.subr.mxu0 0.0
  %v6911 = vand.u32 %v5665, 4294901760
  %6912 = vmatpush1.msra.mxu0 %v6911
  %6913 = vmatprep.subr.mxu0 0.0
  %v6914 = vand.u32 %v5666, 4294901760
  %6915 = vmatpush1.msra.mxu0 %v6914
  %6916 = vmatprep.subr.mxu0 0.0
  %v6917 = vand.u32 %v5667, 4294901760
  %6918 = vmatpush1.msra.mxu0 %v6917
  %6919 = vmatprep.subr.mxu0 0.0
  %6920 = vmatpush1.msra.mxu0 0.0
  %6921 = vmatprep.subr.mxu0 0.0
  %6922 = vmatpush1.msra.mxu0 0.0
  %6923 = vmatprep.subr.mxu0 0.0
  %6924 = vmatpush1.msra.mxu0 0.0
  %6925 = vmatprep.subr.mxu0 0.0
  %6926 = vmatpush1.msra.mxu0 0.0
  %6927 = vmatprep.subr.mxu0 0.0
  %6928 = vmatpush1.msra.mxu0 0.0
  %6929 = vmatprep.subr.mxu0 0.0
  %6930 = vmatpush1.msra.mxu0 0.0
  %6931 = vmatprep.subr.mxu0 0.0
  %6932 = vmatpush1.msra.mxu0 0.0
  %6933 = vmatprep.subr.mxu0 0.0
  %6934 = vmatpush1.msra.mxu0 0.0
  %6935 = vmatprep.subr.mxu0 0.0
  %6936 = vmatpush1.msra.mxu0 0.0
  %6937 = vmatprep.subr.mxu0 0.0
  %6938 = vmatpush1.msra.mxu0 0.0
  %6939 = vmatprep.subr.mxu0 0.0
  %6940 = vmatpush1.msra.mxu0 0.0
  %6941 = vmatprep.subr.mxu0 0.0
  %6942 = vmatpush1.msra.mxu0 0.0
  %6943 = vmatprep.subr.mxu0 0.0
  %6944 = vmatpush1.msra.mxu0 0.0
  %6945 = vmatprep.subr.mxu0 0.0
  %6946 = vmatpush1.msra.mxu0 0.0
  %6947 = vmatprep.subr.mxu0 0.0
  %6948 = vmatpush1.msra.mxu0 0.0
  %6949 = vmatprep.subr.mxu0 0.0
  %6950 = vmatpush1.msra.mxu0 0.0
  %6951 = vmatprep.mubr.f32.mxu0 0.0
  %v6952 = vand.u32 %v6316, 4294901760
  %6953 = vmatmul.mubr.f32.gmra.mrb[0].mxu0 %v6952
  %v6954 = vpop.f32.mrb[0].mxu0
  %v6955 = vadd.f32 %v6868, %v6954
  %v6956 = vpop.f32.mrb[0].mxu0
  %6957 = vdwg.mxu0
  %v6958 = vrot.slane %v6955, 4
  %v6959 = vadd.f32 %v6955, %v6958
  %v6960 = vrot.slane %v6959, 2
  %v6961 = vadd.f32 %v6959, %v6960
  %v6962 = vrot.slane %v6961, 1
  %v6963 = vadd.f32 %v6961, %v6962
  %v6964 = vmul.f32 %v6963, %v2919
  %v6965 = vmul.f32 %v6315, %v6315
  %v6966 = vsub.f32 %v6964, %v6965
  %v6967 = vmax.f32 %v6966, 0.0
  %s6968 = scalar_lea.vmem %s4, 6
  %v6969 = vld [vmem:[%s6968] sm:$0x3]
  %v6970 = vsub.f32 %v5646, %v6315
  %v6971 = vadd.f32 %v6967, 1e-05
  %v6972 = vrsqrt.pop %v6971
  %v6973 = vmul.f32 %v6970, %v6972
  %v6974 = vlaneseq
  %v6975 = vshrl.u32 %v6974, 7
  %v6976 = vsub.s32 0, %v6975
  %v6977 = vrot.slane %v6969, %v6976
  %v6978 = vmul.f32 %v6973, %v6977
  %v6979 = vlaneseq
  %v6980 = vshrl.u32 %v6979, 7
  %v6981 = vsub.s32 1, %v6980
  %v6982 = vrot.slane %v6969, %v6981
  %v6983 = vadd.f32 %v6978, %v6982
  %v6984 = vmax.f32 %v6983, 0.0
  %v6985 = vpack.c.bf16 %v6984, %v6984
  %s6986 = scalar_lea.vmem %s2, 1024
  %v6987 = vld [vmem:[%s6986] sm:$0xff]
  %v6988 = vld [vmem:[%s6986 + $0x8] sm:$0xff]
  %v6989 = vld [vmem:[%s6986 + $0x10] sm:$0xff]
  %v6990 = vld [vmem:[%s6986 + $0x18] sm:$0xff]
  %v6991 = vld [vmem:[%s6986 + $0x20] sm:$0xff]
  %v6992 = vld [vmem:[%s6986 + $0x28] sm:$0xff]
  %v6993 = vld [vmem:[%s6986 + $0x30] sm:$0xff]
  %v6994 = vld [vmem:[%s6986 + $0x38] sm:$0xff]
  %v6995 = vld [vmem:[%s6986 + $0x40] sm:$0xff]
  %v6996 = vld [vmem:[%s6986 + $0x48] sm:$0xff]
  %v6997 = vld [vmem:[%s6986 + $0x50] sm:$0xff]
  %v6998 = vld [vmem:[%s6986 + $0x58] sm:$0xff]
  %v6999 = vld [vmem:[%s6986 + $0x60] sm:$0xff]
  %v7000 = vld [vmem:[%s6986 + $0x68] sm:$0xff]
  %v7001 = vld [vmem:[%s6986 + $0x70] sm:$0xff]
  %v7002 = vld [vmem:[%s6986 + $0x78] sm:$0xff]
  %v7003 = vld [vmem:[%s6986 + $0x80] sm:$0xff]
  %v7004 = vld [vmem:[%s6986 + $0x88] sm:$0xff]
  %v7005 = vld [vmem:[%s6986 + $0x90] sm:$0xff]
  %v7006 = vld [vmem:[%s6986 + $0x98] sm:$0xff]
  %v7007 = vld [vmem:[%s6986 + $0xa0] sm:$0xff]
  %v7008 = vld [vmem:[%s6986 + $0xa8] sm:$0xff]
  %v7009 = vld [vmem:[%s6986 + $0xb0] sm:$0xff]
  %v7010 = vld [vmem:[%s6986 + $0xb8] sm:$0xff]
  %v7011 = vld [vmem:[%s6986 + $0xc0] sm:$0xff]
  %v7012 = vld [vmem:[%s6986 + $0xc8] sm:$0xff]
  %v7013 = vld [vmem:[%s6986 + $0xd0] sm:$0xff]
  %v7014 = vld [vmem:[%s6986 + $0xd8] sm:$0xff]
  %v7015 = vld [vmem:[%s6986 + $0xe0] sm:$0xff]
  %v7016 = vld [vmem:[%s6986 + $0xe8] sm:$0xff]
  %v7017 = vld [vmem:[%s6986 + $0xf0] sm:$0xff]
  %v7018 = vld [vmem:[%s6986 + $0xf8] sm:$0xff]
  %v7051 = vunpack.c.l.b16 %v6987
  %v7052 = vunpack.c.h.b16 %v6987
  %v7053 = vunpack.c.l.b16 %v6988
  %v7054 = vunpack.c.h.b16 %v6988
  %v7055 = vunpack.c.l.b16 %v6989
  %v7056 = vunpack.c.h.b16 %v6989
  %v7057 = vunpack.c.l.b16 %v6990
  %v7058 = vunpack.c.h.b16 %v6990
  %v7059 = vunpack.c.l.b16 %v6991
  %v7060 = vunpack.c.h.b16 %v6991
  %v7061 = vunpack.c.l.b16 %v6992
  %v7062 = vunpack.c.h.b16 %v6992
  %v7063 = vunpack.c.l.b16 %v6993
  %v7064 = vunpack.c.h.b16 %v6993
  %v7065 = vunpack.c.l.b16 %v6994
  %v7066 = vunpack.c.h.b16 %v6994
  %v7067 = vunpack.c.l.b16 %v6995
  %v7068 = vunpack.c.h.b16 %v6995
  %v7069 = vunpack.c.l.b16 %v6996
  %v7070 = vunpack.c.h.b16 %v6996
  %v7071 = vunpack.c.l.b16 %v6997
  %v7072 = vunpack.c.h.b16 %v6997
  %v7073 = vunpack.c.l.b16 %v6998
  %v7074 = vunpack.c.h.b16 %v6998
  %v7075 = vunpack.c.l.b16 %v6999
  %v7076 = vunpack.c.h.b16 %v6999
  %v7077 = vunpack.c.l.b16 %v7000
  %v7078 = vunpack.c.h.b16 %v7000
  %v7079 = vunpack.c.l.b16 %v7001
  %v7080 = vunpack.c.h.b16 %v7001
  %v7081 = vunpack.c.l.b16 %v7002
  %v7082 = vunpack.c.h.b16 %v7002
  %v7083 = vunpack.c.l.b16 %v7003
  %v7084 = vunpack.c.h.b16 %v7003
  %v7085 = vunpack.c.l.b16 %v7004
  %v7086 = vunpack.c.h.b16 %v7004
  %v7087 = vunpack.c.l.b16 %v7005
  %v7088 = vunpack.c.h.b16 %v7005
  %v7089 = vunpack.c.l.b16 %v7006
  %v7090 = vunpack.c.h.b16 %v7006
  %v7091 = vunpack.c.l.b16 %v7007
  %v7092 = vunpack.c.h.b16 %v7007
  %v7093 = vunpack.c.l.b16 %v7008
  %v7094 = vunpack.c.h.b16 %v7008
  %v7095 = vunpack.c.l.b16 %v7009
  %v7096 = vunpack.c.h.b16 %v7009
  %v7097 = vunpack.c.l.b16 %v7010
  %v7098 = vunpack.c.h.b16 %v7010
  %v7099 = vunpack.c.l.b16 %v7011
  %v7100 = vunpack.c.h.b16 %v7011
  %v7101 = vunpack.c.l.b16 %v7012
  %v7102 = vunpack.c.h.b16 %v7012
  %v7103 = vunpack.c.l.b16 %v7013
  %v7104 = vunpack.c.h.b16 %v7013
  %v7105 = vunpack.c.l.b16 %v7014
  %v7106 = vunpack.c.h.b16 %v7014
  %v7107 = vunpack.c.l.b16 %v7015
  %v7108 = vunpack.c.h.b16 %v7015
  %v7109 = vunpack.c.l.b16 %v7016
  %v7110 = vunpack.c.h.b16 %v7016
  %v7111 = vunpack.c.l.b16 %v7017
  %v7112 = vunpack.c.h.b16 %v7017
  %v7113 = vunpack.c.l.b16 %v7018
  %v7114 = vunpack.c.h.b16 %v7018
  %v7115 = vpack.c.b16 %v7055, %v7051
  %v7116 = vpack.c.b16 %v7056, %v7052
  %v7117 = vpack.c.b16 %v7057, %v7053
  %v7118 = vpack.c.b16 %v7058, %v7054
  %v7119 = vpack.c.b16 %v7063, %v7059
  %v7120 = vpack.c.b16 %v7064, %v7060
  %v7121 = vpack.c.b16 %v7065, %v7061
  %v7122 = vpack.c.b16 %v7066, %v7062
  %v7123 = vpack.c.b16 %v7071, %v7067
  %v7124 = vpack.c.b16 %v7072, %v7068
  %v7125 = vpack.c.b16 %v7073, %v7069
  %v7126 = vpack.c.b16 %v7074, %v7070
  %v7127 = vpack.c.b16 %v7079, %v7075
  %v7128 = vpack.c.b16 %v7080, %v7076
  %v7129 = vpack.c.b16 %v7081, %v7077
  %v7130 = vpack.c.b16 %v7082, %v7078
  %v7131 = vpack.c.b16 %v7087, %v7083
  %v7132 = vpack.c.b16 %v7088, %v7084
  %v7133 = vpack.c.b16 %v7089, %v7085
  %v7134 = vpack.c.b16 %v7090, %v7086
  %v7135 = vpack.c.b16 %v7095, %v7091
  %v7136 = vpack.c.b16 %v7096, %v7092
  %v7137 = vpack.c.b16 %v7097, %v7093
  %v7138 = vpack.c.b16 %v7098, %v7094
  %v7139 = vpack.c.b16 %v7103, %v7099
  %v7140 = vpack.c.b16 %v7104, %v7100
  %v7141 = vpack.c.b16 %v7105, %v7101
  %v7142 = vpack.c.b16 %v7106, %v7102
  %v7143 = vpack.c.b16 %v7111, %v7107
  %v7144 = vpack.c.b16 %v7112, %v7108
  %v7145 = vpack.c.b16 %v7113, %v7109
  %v7146 = vpack.c.b16 %v7114, %v7110
  %7179 = vmatprep.subr.bf16.mxu0 %v7116
  %7180 = vmatpush1.bf16.msra.mxu0 %v7115
  %7181 = vmatprep.subr.bf16.mxu0 %v7120
  %7182 = vmatpush1.bf16.msra.mxu0 %v7119
  %7183 = vmatprep.subr.bf16.mxu0 %v7124
  %7184 = vmatpush1.bf16.msra.mxu0 %v7123
  %7185 = vmatprep.subr.bf16.mxu0 %v7128
  %7186 = vmatpush1.bf16.msra.mxu0 %v7127
  %7187 = vmatprep.subr.bf16.mxu0 %v7132
  %7188 = vmatpush1.bf16.msra.mxu0 %v7131
  %7189 = vmatprep.subr.bf16.mxu0 %v7136
  %7190 = vmatpush1.bf16.msra.mxu0 %v7135
  %7191 = vmatprep.subr.bf16.mxu0 %v7140
  %7192 = vmatpush1.bf16.msra.mxu0 %v7139
  %7193 = vmatprep.subr.bf16.mxu0 %v7144
  %7194 = vmatpush1.bf16.msra.mxu0 %v7143
  %7195 = vmatprep.subr.bf16.mxu0 0
  %7196 = vmatpush1.bf16.msra.mxu0 0
  %7197 = vmatprep.subr.bf16.mxu0 0
  %7198 = vmatpush1.bf16.msra.mxu0 0
  %7199 = vmatprep.subr.bf16.mxu0 0
  %7200 = vmatpush1.bf16.msra.mxu0 0
  %7201 = vmatprep.subr.bf16.mxu0 0
  %7202 = vmatpush1.bf16.msra.mxu0 0
  %7203 = vmatprep.subr.bf16.mxu0 0
  %7204 = vmatpush1.bf16.msra.mxu0 0
  %7205 = vmatprep.subr.bf16.mxu0 0
  %7206 = vmatpush1.bf16.msra.mxu0 0
  %7207 = vmatprep.subr.bf16.mxu0 0
  %7208 = vmatpush1.bf16.msra.mxu0 0
  %7209 = vmatprep.subr.bf16.mxu0 0
  %7210 = vmatpush1.bf16.msra.mxu0 0
  %7211 = vmatprep.mubr.bf16.mxu0 0
  %7212 = vmatmul.mubr.bf16.gmra.mrb[0].mxu0 %v6985
  %v7213 = vpop.f32.mrb[0].mxu0
  %v7214 = vadd.f32 0.0, %v7213
  %v7215 = vpop.f32.mrb[0].mxu0
  %v7216 = vadd.f32 0.0, %v7215
  %v7217 = vpop.f32.mrb[0].mxu0
  %v7218 = vpop.f32.mrb[0].mxu0
  %7219 = vdwg.mxu0
  %7220 = vmatprep.subr.bf16.mxu0 %v7118
  %7221 = vmatpush1.bf16.msra.mxu0 %v7117
  %7222 = vmatprep.subr.bf16.mxu0 %v7122
  %7223 = vmatpush1.bf16.msra.mxu0 %v7121
  %7224 = vmatprep.subr.bf16.mxu0 %v7126
  %7225 = vmatpush1.bf16.msra.mxu0 %v7125
  %7226 = vmatprep.subr.bf16.mxu0 %v7130
  %7227 = vmatpush1.bf16.msra.mxu0 %v7129
  %7228 = vmatprep.subr.bf16.mxu0 %v7134
  %7229 = vmatpush1.bf16.msra.mxu0 %v7133
  %7230 = vmatprep.subr.bf16.mxu0 %v7138
  %7231 = vmatpush1.bf16.msra.mxu0 %v7137
  %7232 = vmatprep.subr.bf16.mxu0 %v7142
  %7233 = vmatpush1.bf16.msra.mxu0 %v7141
  %7234 = vmatprep.subr.bf16.mxu0 %v7146
  %7235 = vmatpush1.bf16.msra.mxu0 %v7145
  %7236 = vmatprep.subr.bf16.mxu0 0
  %7237 = vmatpush1.bf16.msra.mxu0 0
  %7238 = vmatprep.subr.bf16.mxu0 0
  %7239 = vmatpush1.bf16.msra.mxu0 0
  %7240 = vmatprep.subr.bf16.mxu0 0
  %7241 = vmatpush1.bf16.msra.mxu0 0
  %7242 = vmatprep.subr.bf16.mxu0 0
  %7243 = vmatpush1.bf16.msra.mxu0 0
  %7244 = vmatprep.subr.bf16.mxu0 0
  %7245 = vmatpush1.bf16.msra.mxu0 0
  %7246 = vmatprep.subr.bf16.mxu0 0
  %7247 = vmatpush1.bf16.msra.mxu0 0
  %7248 = vmatprep.subr.bf16.mxu0 0
  %7249 = vmatpush1.bf16.msra.mxu0 0
  %7250 = vmatprep.subr.bf16.mxu0 0
  %7251 = vmatpush1.bf16.msra.mxu0 0
  %7252 = vmatprep.mubr.bf16.mxu0 0
  %7253 = vmatmul.mubr.bf16.gmra.mrb[0].mxu0 %v6985
  %v7254 = vpop.f32.mrb[0].mxu0
  %v7255 = vadd.f32 0.0, %v7254
  %v7256 = vpop.f32.mrb[0].mxu0
  %v7257 = vadd.f32 0.0, %v7256
  %v7258 = vpop.f32.mrb[0].mxu0
  %v7259 = vpop.f32.mrb[0].mxu0
  %7260 = vdwg.mxu0
  %7261 = vst [vmem:[#allocation2] sm:$0xff] %v7214
  %7262 = vst [vmem:[#allocation2 + $0x8] sm:$0xff] %v7216
  %7263 = vst [vmem:[#allocation2 + $0x10] sm:$0xff] %v7255
  %7264 = vst [vmem:[#allocation2 + $0x18] sm:$0xff] %v7257
  %s7265 = scalar_lea.vmem %s1, 64
  %v7266 = vld [vmem:[%s7265] sm:$0xf]
  %v7267 = vld [vmem:[%s7265 + $0x4] sm:$0xf]
  %v7268 = vld [vmem:[#allocation2] sm:$0xff]
  %v7269 = vld [vmem:[#allocation2 + $0x8] sm:$0xff]
  %v7270 = vld [vmem:[#allocation2 + $0x10] sm:$0xff]
  %v7271 = vld [vmem:[#allocation2 + $0x18] sm:$0xff]
  %v7274 = vunpack.c.l.b16 %v7266
  %v7275 = vunpack.c.l.b16 %v7267
  %v7276 = vpack.c.b16 %v7275, %v7274
  %v7278 = vsel %vm3876, %v7276, 0
  %7280 = vmatprep.subr.mxu0 0.0
  %7281 = vmatpush1.msra.mxu0 %v7268
  %7282 = vmatprep.subr.mxu0 0.0
  %7283 = vmatpush1.msra.mxu0 %v7269
  %7284 = vmatprep.subr.mxu0 0.0
  %7285 = vmatpush1.msra.mxu0 %v7270
  %7286 = vmatprep.subr.mxu0 0.0
  %7287 = vmatpush1.msra.mxu0 %v7271
  %7288 = vmatprep.subr.mxu0 0.0
  %7289 = vmatpush1.msra.mxu0 0.0
  %7290 = vmatprep.subr.mxu0 0.0
  %7291 = vmatpush1.msra.mxu0 0.0
  %7292 = vmatprep.subr.mxu0 0.0
  %7293 = vmatpush1.msra.mxu0 0.0
  %7294 = vmatprep.subr.mxu0 0.0
  %7295 = vmatpush1.msra.mxu0 0.0
  %7296 = vmatprep.subr.mxu0 0.0
  %7297 = vmatpush1.msra.mxu0 0.0
  %7298 = vmatprep.subr.mxu0 0.0
  %7299 = vmatpush1.msra.mxu0 0.0
  %7300 = vmatprep.subr.mxu0 0.0
  %7301 = vmatpush1.msra.mxu0 0.0
  %7302 = vmatprep.subr.mxu0 0.0
  %7303 = vmatpush1.msra.mxu0 0.0
  %7304 = vmatprep.subr.mxu0 0.0
  %7305 = vmatpush1.msra.mxu0 0.0
  %7306 = vmatprep.subr.mxu0 0.0
  %7307 = vmatpush1.msra.mxu0 0.0
  %7308 = vmatprep.subr.mxu0 0.0
  %7309 = vmatpush1.msra.mxu0 0.0
  %7310 = vmatprep.subr.mxu0 0.0
  %7311 = vmatpush1.msra.mxu0 0.0
  %7312 = vmatprep.subr.mxu0 0.0
  %7313 = vmatpush1.msra.mxu0 0.0
  %7314 = vmatprep.subr.mxu0 0.0
  %7315 = vmatpush1.msra.mxu0 0.0
  %7316 = vmatprep.subr.mxu0 0.0
  %7317 = vmatpush1.msra.mxu0 0.0
  %7318 = vmatprep.subr.mxu0 0.0
  %7319 = vmatpush1.msra.mxu0 0.0
  %7320 = vmatprep.subr.mxu0 0.0
  %7321 = vmatpush1.msra.mxu0 0.0
  %7322 = vmatprep.subr.mxu0 0.0
  %7323 = vmatpush1.msra.mxu0 0.0
  %7324 = vmatprep.subr.mxu0 0.0
  %7325 = vmatpush1.msra.mxu0 0.0
  %7326 = vmatprep.subr.mxu0 0.0
  %7327 = vmatpush1.msra.mxu0 0.0
  %7328 = vmatprep.subr.mxu0 0.0
  %7329 = vmatpush1.msra.mxu0 0.0
  %7330 = vmatprep.subr.mxu0 0.0
  %7331 = vmatpush1.msra.mxu0 0.0
  %7332 = vmatprep.subr.mxu0 0.0
  %7333 = vmatpush1.msra.mxu0 0.0
  %7334 = vmatprep.subr.mxu0 0.0
  %7335 = vmatpush1.msra.mxu0 0.0
  %7336 = vmatprep.subr.mxu0 0.0
  %7337 = vmatpush1.msra.mxu0 0.0
  %7338 = vmatprep.subr.mxu0 0.0
  %7339 = vmatpush1.msra.mxu0 0.0
  %7340 = vmatprep.subr.mxu0 0.0
  %7341 = vmatpush1.msra.mxu0 0.0
  %7342 = vmatprep.subr.mxu0 0.0
  %7343 = vmatpush1.msra.mxu0 0.0
  %7344 = vmatprep.mubr.bf16.mxu0 0
  %7345 = vmatmul.mubr.bf16.gmra.mrb[0].mxu0 %v7278
  %v7346 = vpop.f32.mrb[0].mxu0
  %v7347 = vadd.f32 0.0, %v7346
  %v7348 = vpop.f32.mrb[0].mxu0
  %v7349 = vpop.f32.mrb[0].mxu0
  %v7350 = vadd.f32 0.0, %v7349
  %v7351 = vpop.f32.mrb[0].mxu0
  %7352 = vdwg.mxu0
  %s7353 = scalar_lea.vmem %s3, 512
  %v7354 = vld [vmem:[%s7353] sm:$0xff]
  %v7355 = vld [vmem:[%s7353 + $0x8] sm:$0xff]
  %v7356 = vld [vmem:[%s7353 + $0x10] sm:$0xff]
  %v7357 = vld [vmem:[%s7353 + $0x18] sm:$0xff]
  %v7358 = vld [vmem:[%s7353 + $0x20] sm:$0xff]
  %v7359 = vld [vmem:[%s7353 + $0x28] sm:$0xff]
  %v7360 = vld [vmem:[%s7353 + $0x30] sm:$0xff]
  %v7361 = vld [vmem:[%s7353 + $0x38] sm:$0xff]
  %v7362 = vld [vmem:[%s7353 + $0x40] sm:$0xff]
  %v7363 = vld [vmem:[%s7353 + $0x48] sm:$0xff]
  %v7364 = vld [vmem:[%s7353 + $0x50] sm:$0xff]
  %v7365 = vld [vmem:[%s7353 + $0x58] sm:$0xff]
  %v7366 = vld [vmem:[%s7353 + $0x60] sm:$0xff]
  %v7367 = vld [vmem:[%s7353 + $0x68] sm:$0xff]
  %v7368 = vld [vmem:[%s7353 + $0x70] sm:$0xff]
  %v7369 = vld [vmem:[%s7353 + $0x78] sm:$0xff]
  %7370 = vmatprep.subr.mxu0 0.0
  %v7371 = vand.u32 %v7354, 4294901760
  %7372 = vmatpush1.msra.mxu0 %v7371
  %7373 = vmatprep.subr.mxu0 0.0
  %v7374 = vand.u32 %v7355, 4294901760
  %7375 = vmatpush1.msra.mxu0 %v7374
  %7376 = vmatprep.subr.mxu0 0.0
  %v7377 = vand.u32 %v7356, 4294901760
  %7378 = vmatpush1.msra.mxu0 %v7377
  %7379 = vmatprep.subr.mxu0 0.0
  %v7380 = vand.u32 %v7357, 4294901760
  %7381 = vmatpush1.msra.mxu0 %v7380
  %7382 = vmatprep.subr.mxu0 0.0
  %v7383 = vand.u32 %v7358, 4294901760
  %7384 = vmatpush1.msra.mxu0 %v7383
  %7385 = vmatprep.subr.mxu0 0.0
  %v7386 = vand.u32 %v7359, 4294901760
  %7387 = vmatpush1.msra.mxu0 %v7386
  %7388 = vmatprep.subr.mxu0 0.0
  %v7389 = vand.u32 %v7360, 4294901760
  %7390 = vmatpush1.msra.mxu0 %v7389
  %7391 = vmatprep.subr.mxu0 0.0
  %v7392 = vand.u32 %v7361, 4294901760
  %7393 = vmatpush1.msra.mxu0 %v7392
  %7394 = vmatprep.subr.mxu0 0.0
  %v7395 = vand.u32 %v7362, 4294901760
  %7396 = vmatpush1.msra.mxu0 %v7395
  %7397 = vmatprep.subr.mxu0 0.0
  %v7398 = vand.u32 %v7363, 4294901760
  %7399 = vmatpush1.msra.mxu0 %v7398
  %7400 = vmatprep.subr.mxu0 0.0
  %v7401 = vand.u32 %v7364, 4294901760
  %7402 = vmatpush1.msra.mxu0 %v7401
  %7403 = vmatprep.subr.mxu0 0.0
  %v7404 = vand.u32 %v7365, 4294901760
  %7405 = vmatpush1.msra.mxu0 %v7404
  %7406 = vmatprep.subr.mxu0 0.0
  %v7407 = vand.u32 %v7366, 4294901760
  %7408 = vmatpush1.msra.mxu0 %v7407
  %7409 = vmatprep.subr.mxu0 0.0
  %v7410 = vand.u32 %v7367, 4294901760
  %7411 = vmatpush1.msra.mxu0 %v7410
  %7412 = vmatprep.subr.mxu0 0.0
  %v7413 = vand.u32 %v7368, 4294901760
  %7414 = vmatpush1.msra.mxu0 %v7413
  %7415 = vmatprep.subr.mxu0 0.0
  %v7416 = vand.u32 %v7369, 4294901760
  %7417 = vmatpush1.msra.mxu0 %v7416
  %7418 = vmatprep.subr.mxu0 0.0
  %7419 = vmatpush1.msra.mxu0 0.0
  %7420 = vmatprep.subr.mxu0 0.0
  %7421 = vmatpush1.msra.mxu0 0.0
  %7422 = vmatprep.subr.mxu0 0.0
  %7423 = vmatpush1.msra.mxu0 0.0
  %7424 = vmatprep.subr.mxu0 0.0
  %7425 = vmatpush1.msra.mxu0 0.0
  %7426 = vmatprep.subr.mxu0 0.0
  %7427 = vmatpush1.msra.mxu0 0.0
  %7428 = vmatprep.subr.mxu0 0.0
  %7429 = vmatpush1.msra.mxu0 0.0
  %7430 = vmatprep.subr.mxu0 0.0
  %7431 = vmatpush1.msra.mxu0 0.0
  %7432 = vmatprep.subr.mxu0 0.0
  %7433 = vmatpush1.msra.mxu0 0.0
  %7434 = vmatprep.subr.mxu0 0.0
  %7435 = vmatpush1.msra.mxu0 0.0
  %7436 = vmatprep.subr.mxu0 0.0
  %7437 = vmatpush1.msra.mxu0 0.0
  %7438 = vmatprep.subr.mxu0 0.0
  %7439 = vmatpush1.msra.mxu0 0.0
  %7440 = vmatprep.subr.mxu0 0.0
  %7441 = vmatpush1.msra.mxu0 0.0
  %7442 = vmatprep.subr.mxu0 0.0
  %7443 = vmatpush1.msra.mxu0 0.0
  %7444 = vmatprep.subr.mxu0 0.0
  %7445 = vmatpush1.msra.mxu0 0.0
  %7446 = vmatprep.subr.mxu0 0.0
  %7447 = vmatpush1.msra.mxu0 0.0
  %7448 = vmatprep.subr.mxu0 0.0
  %7449 = vmatpush1.msra.mxu0 0.0
  %7450 = vmatprep.mubr.f32.mxu0 0.0
  %v7451 = vand.u32 %v7347, 4294901760
  %v7452 = vsub.f32 %v7347, %v7451
  %v7453 = vand.u32 %v7452, 4294901760
  %v7454 = vsub.f32 %v7452, %v7453
  %v7455 = vand.u32 %v7454, 4294901760
  %7456 = vmatmul.mubr.f32.gmra.mrb[0].mxu0 %v7455
  %v7457 = vpop.f32.mrb[0].mxu0
  %v7458 = vadd.f32 0.0, %v7457
  %v7459 = vpop.f32.mrb[0].mxu0
  %7460 = vmatprep.mubr.f32.mxu0 0.0
  %v7461 = vand.u32 %v7350, 4294901760
  %v7462 = vsub.f32 %v7350, %v7461
  %v7463 = vand.u32 %v7462, 4294901760
  %v7464 = vsub.f32 %v7462, %v7463
  %v7465 = vand.u32 %v7464, 4294901760
  %7466 = vmatmul.mubr.f32.gmra.mrb[0].mxu0 %v7465
  %v7467 = vpop.f32.mrb[0].mxu0
  %v7468 = vadd.f32 0.0, %v7467
  %v7469 = vpop.f32.mrb[0].mxu0
  %7470 = vdwg.mxu0
  %7471 = vmatprep.subr.mxu0 0.0
  %v7472 = vand.u32 %v7354, 4294901760
  %v7473 = vsub.f32 %v7354, %v7472
  %v7474 = vand.u32 %v7473, 4294901760
  %v7475 = vsub.f32 %v7473, %v7474
  %v7476 = vand.u32 %v7475, 4294901760
  %7477 = vmatpush1.msra.mxu0 %v7476
  %7478 = vmatprep.subr.mxu0 0.0
  %v7479 = vand.u32 %v7355, 4294901760
  %v7480 = vsub.f32 %v7355, %v7479
  %v7481 = vand.u32 %v7480, 4294901760
  %v7482 = vsub.f32 %v7480, %v7481
  %v7483 = vand.u32 %v7482, 4294901760
  %7484 = vmatpush1.msra.mxu0 %v7483
  %7485 = vmatprep.subr.mxu0 0.0
  %v7486 = vand.u32 %v7356, 4294901760
  %v7487 = vsub.f32 %v7356, %v7486
  %v7488 = vand.u32 %v7487, 4294901760
  %v7489 = vsub.f32 %v7487, %v7488
  %v7490 = vand.u32 %v7489, 4294901760
  %7491 = vmatpush1.msra.mxu0 %v7490
  %7492 = vmatprep.subr.mxu0 0.0
  %v7493 = vand.u32 %v7357, 4294901760
  %v7494 = vsub.f32 %v7357, %v7493
  %v7495 = vand.u32 %v7494, 4294901760
  %v7496 = vsub.f32 %v7494, %v7495
  %v7497 = vand.u32 %v7496, 4294901760
  %7498 = vmatpush1.msra.mxu0 %v7497
  %7499 = vmatprep.subr.mxu0 0.0
  %v7500 = vand.u32 %v7358, 4294901760
  %v7501 = vsub.f32 %v7358, %v7500
  %v7502 = vand.u32 %v7501, 4294901760
  %v7503 = vsub.f32 %v7501, %v7502
  %v7504 = vand.u32 %v7503, 4294901760
  %7505 = vmatpush1.msra.mxu0 %v7504
  %7506 = vmatprep.subr.mxu0 0.0
  %v7507 = vand.u32 %v7359, 4294901760
  %v7508 = vsub.f32 %v7359, %v7507
  %v7509 = vand.u32 %v7508, 4294901760
  %v7510 = vsub.f32 %v7508, %v7509
  %v7511 = vand.u32 %v7510, 4294901760
  %7512 = vmatpush1.msra.mxu0 %v7511
  %7513 = vmatprep.subr.mxu0 0.0
  %v7514 = vand.u32 %v7360, 4294901760
  %v7515 = vsub.f32 %v7360, %v7514
  %v7516 = vand.u32 %v7515, 4294901760
  %v7517 = vsub.f32 %v7515, %v7516
  %v7518 = vand.u32 %v7517, 4294901760
  %7519 = vmatpush1.msra.mxu0 %v7518
  %7520 = vmatprep.subr.mxu0 0.0
  %v7521 = vand.u32 %v7361, 4294901760
  %v7522 = vsub.f32 %v7361, %v7521
  %v7523 = vand.u32 %v7522, 4294901760
  %v7524 = vsub.f32 %v7522, %v7523
  %v7525 = vand.u32 %v7524, 4294901760
  %7526 = vmatpush1.msra.mxu0 %v7525
  %7527 = vmatprep.subr.mxu0 0.0
  %v7528 = vand.u32 %v7362, 4294901760
  %v7529 = vsub.f32 %v7362, %v7528
  %v7530 = vand.u32 %v7529, 4294901760
  %v7531 = vsub.f32 %v7529, %v7530
  %v7532 = vand.u32 %v7531, 4294901760
  %7533 = vmatpush1.msra.mxu0 %v7532
  %7534 = vmatprep.subr.mxu0 0.0
  %v7535 = vand.u32 %v7363, 4294901760
  %v7536 = vsub.f32 %v7363, %v7535
  %v7537 = vand.u32 %v7536, 4294901760
  %v7538 = vsub.f32 %v7536, %v7537
  %v7539 = vand.u32 %v7538, 4294901760
  %7540 = vmatpush1.msra.mxu0 %v7539
  %7541 = vmatprep.subr.mxu0 0.0
  %v7542 = vand.u32 %v7364, 4294901760
  %v7543 = vsub.f32 %v7364, %v7542
  %v7544 = vand.u32 %v7543, 4294901760
  %v7545 = vsub.f32 %v7543, %v7544
  %v7546 = vand.u32 %v7545, 4294901760
  %7547 = vmatpush1.msra.mxu0 %v7546
  %7548 = vmatprep.subr.mxu0 0.0
  %v7549 = vand.u32 %v7365, 4294901760
  %v7550 = vsub.f32 %v7365, %v7549
  %v7551 = vand.u32 %v7550, 4294901760
  %v7552 = vsub.f32 %v7550, %v7551
  %v7553 = vand.u32 %v7552, 4294901760
  %7554 = vmatpush1.msra.mxu0 %v7553
  %7555 = vmatprep.subr.mxu0 0.0
  %v7556 = vand.u32 %v7366, 4294901760
  %v7557 = vsub.f32 %v7366, %v7556
  %v7558 = vand.u32 %v7557, 4294901760
  %v7559 = vsub.f32 %v7557, %v7558
  %v7560 = vand.u32 %v7559, 4294901760
  %7561 = vmatpush1.msra.mxu0 %v7560
  %7562 = vmatprep.subr.mxu0 0.0
  %v7563 = vand.u32 %v7367, 4294901760
  %v7564 = vsub.f32 %v7367, %v7563
  %v7565 = vand.u32 %v7564, 4294901760
  %v7566 = vsub.f32 %v7564, %v7565
  %v7567 = vand.u32 %v7566, 4294901760
  %7568 = vmatpush1.msra.mxu0 %v7567
  %7569 = vmatprep.subr.mxu0 0.0
  %v7570 = vand.u32 %v7368, 4294901760
  %v7571 = vsub.f32 %v7368, %v7570
  %v7572 = vand.u32 %v7571, 4294901760
  %v7573 = vsub.f32 %v7571, %v7572
  %v7574 = vand.u32 %v7573, 4294901760
  %7575 = vmatpush1.msra.mxu0 %v7574
  %7576 = vmatprep.subr.mxu0 0.0
  %v7577 = vand.u32 %v7369, 4294901760
  %v7578 = vsub.f32 %v7369, %v7577
  %v7579 = vand.u32 %v7578, 4294901760
  %v7580 = vsub.f32 %v7578, %v7579
  %v7581 = vand.u32 %v7580, 4294901760
  %7582 = vmatpush1.msra.mxu0 %v7581
  %7583 = vmatprep.subr.mxu0 0.0
  %7584 = vmatpush1.msra.mxu0 0.0
  %7585 = vmatprep.subr.mxu0 0.0
  %7586 = vmatpush1.msra.mxu0 0.0
  %7587 = vmatprep.subr.mxu0 0.0
  %7588 = vmatpush1.msra.mxu0 0.0
  %7589 = vmatprep.subr.mxu0 0.0
  %7590 = vmatpush1.msra.mxu0 0.0
  %7591 = vmatprep.subr.mxu0 0.0
  %7592 = vmatpush1.msra.mxu0 0.0
  %7593 = vmatprep.subr.mxu0 0.0
  %7594 = vmatpush1.msra.mxu0 0.0
  %7595 = vmatprep.subr.mxu0 0.0
  %7596 = vmatpush1.msra.mxu0 0.0
  %7597 = vmatprep.subr.mxu0 0.0
  %7598 = vmatpush1.msra.mxu0 0.0
  %7599 = vmatprep.subr.mxu0 0.0
  %7600 = vmatpush1.msra.mxu0 0.0
  %7601 = vmatprep.subr.mxu0 0.0
  %7602 = vmatpush1.msra.mxu0 0.0
  %7603 = vmatprep.subr.mxu0 0.0
  %7604 = vmatpush1.msra.mxu0 0.0
  %7605 = vmatprep.subr.mxu0 0.0
  %7606 = vmatpush1.msra.mxu0 0.0
  %7607 = vmatprep.subr.mxu0 0.0
  %7608 = vmatpush1.msra.mxu0 0.0
  %7609 = vmatprep.subr.mxu0 0.0
  %7610 = vmatpush1.msra.mxu0 0.0
  %7611 = vmatprep.subr.mxu0 0.0
  %7612 = vmatpush1.msra.mxu0 0.0
  %7613 = vmatprep.subr.mxu0 0.0
  %7614 = vmatpush1.msra.mxu0 0.0
  %7615 = vmatprep.mubr.f32.mxu0 0.0
  %v7616 = vand.u32 %v7347, 4294901760
  %7617 = vmatmul.mubr.f32.gmra.mrb[0].mxu0 %v7616
  %v7618 = vpop.f32.mrb[0].mxu0
  %v7619 = vadd.f32 %v7458, %v7618
  %v7620 = vpop.f32.mrb[0].mxu0
  %7621 = vmatprep.mubr.f32.mxu0 0.0
  %v7622 = vand.u32 %v7350, 4294901760
  %7623 = vmatmul.mubr.f32.gmra.mrb[0].mxu0 %v7622
  %v7624 = vpop.f32.mrb[0].mxu0
  %v7625 = vadd.f32 %v7468, %v7624
  %v7626 = vpop.f32.mrb[0].mxu0
  %7627 = vdwg.mxu0
  %7628 = vmatprep.subr.mxu0 0.0
  %v7629 = vand.u32 %v7354, 4294901760
  %v7630 = vsub.f32 %v7354, %v7629
  %7631 = vmatpush1.msra.mxu0 %v7630
  %7632 = vmatprep.subr.mxu0 0.0
  %v7633 = vand.u32 %v7355, 4294901760
  %v7634 = vsub.f32 %v7355, %v7633
  %7635 = vmatpush1.msra.mxu0 %v7634
  %7636 = vmatprep.subr.mxu0 0.0
  %v7637 = vand.u32 %v7356, 4294901760
  %v7638 = vsub.f32 %v7356, %v7637
  %7639 = vmatpush1.msra.mxu0 %v7638
  %7640 = vmatprep.subr.mxu0 0.0
  %v7641 = vand.u32 %v7357, 4294901760
  %v7642 = vsub.f32 %v7357, %v7641
  %7643 = vmatpush1.msra.mxu0 %v7642
  %7644 = vmatprep.subr.mxu0 0.0
  %v7645 = vand.u32 %v7358, 4294901760
  %v7646 = vsub.f32 %v7358, %v7645
  %7647 = vmatpush1.msra.mxu0 %v7646
  %7648 = vmatprep.subr.mxu0 0.0
  %v7649 = vand.u32 %v7359, 4294901760
  %v7650 = vsub.f32 %v7359, %v7649
  %7651 = vmatpush1.msra.mxu0 %v7650
  %7652 = vmatprep.subr.mxu0 0.0
  %v7653 = vand.u32 %v7360, 4294901760
  %v7654 = vsub.f32 %v7360, %v7653
  %7655 = vmatpush1.msra.mxu0 %v7654
  %7656 = vmatprep.subr.mxu0 0.0
  %v7657 = vand.u32 %v7361, 4294901760
  %v7658 = vsub.f32 %v7361, %v7657
  %7659 = vmatpush1.msra.mxu0 %v7658
  %7660 = vmatprep.subr.mxu0 0.0
  %v7661 = vand.u32 %v7362, 4294901760
  %v7662 = vsub.f32 %v7362, %v7661
  %7663 = vmatpush1.msra.mxu0 %v7662
  %7664 = vmatprep.subr.mxu0 0.0
  %v7665 = vand.u32 %v7363, 4294901760
  %v7666 = vsub.f32 %v7363, %v7665
  %7667 = vmatpush1.msra.mxu0 %v7666
  %7668 = vmatprep.subr.mxu0 0.0
  %v7669 = vand.u32 %v7364, 4294901760
  %v7670 = vsub.f32 %v7364, %v7669
  %7671 = vmatpush1.msra.mxu0 %v7670
  %7672 = vmatprep.subr.mxu0 0.0
  %v7673 = vand.u32 %v7365, 4294901760
  %v7674 = vsub.f32 %v7365, %v7673
  %7675 = vmatpush1.msra.mxu0 %v7674
  %7676 = vmatprep.subr.mxu0 0.0
  %v7677 = vand.u32 %v7366, 4294901760
  %v7678 = vsub.f32 %v7366, %v7677
  %7679 = vmatpush1.msra.mxu0 %v7678
  %7680 = vmatprep.subr.mxu0 0.0
  %v7681 = vand.u32 %v7367, 4294901760
  %v7682 = vsub.f32 %v7367, %v7681
  %7683 = vmatpush1.msra.mxu0 %v7682
  %7684 = vmatprep.subr.mxu0 0.0
  %v7685 = vand.u32 %v7368, 4294901760
  %v7686 = vsub.f32 %v7368, %v7685
  %7687 = vmatpush1.msra.mxu0 %v7686
  %7688 = vmatprep.subr.mxu0 0.0
  %v7689 = vand.u32 %v7369, 4294901760
  %v7690 = vsub.f32 %v7369, %v7689
  %7691 = vmatpush1.msra.mxu0 %v7690
  %7692 = vmatprep.subr.mxu0 0.0
  %7693 = vmatpush1.msra.mxu0 0.0
  %7694 = vmatprep.subr.mxu0 0.0
  %7695 = vmatpush1.msra.mxu0 0.0
  %7696 = vmatprep.subr.mxu0 0.0
  %7697 = vmatpush1.msra.mxu0 0.0
  %7698 = vmatprep.subr.mxu0 0.0
  %7699 = vmatpush1.msra.mxu0 0.0
  %7700 = vmatprep.subr.mxu0 0.0
  %7701 = vmatpush1.msra.mxu0 0.0
  %7702 = vmatprep.subr.mxu0 0.0
  %7703 = vmatpush1.msra.mxu0 0.0
  %7704 = vmatprep.subr.mxu0 0.0
  %7705 = vmatpush1.msra.mxu0 0.0
  %7706 = vmatprep.subr.mxu0 0.0
  %7707 = vmatpush1.msra.mxu0 0.0
  %7708 = vmatprep.subr.mxu0 0.0
  %7709 = vmatpush1.msra.mxu0 0.0
  %7710 = vmatprep.subr.mxu0 0.0
  %7711 = vmatpush1.msra.mxu0 0.0
  %7712 = vmatprep.subr.mxu0 0.0
  %7713 = vmatpush1.msra.mxu0 0.0
  %7714 = vmatprep.subr.mxu0 0.0
  %7715 = vmatpush1.msra.mxu0 0.0
  %7716 = vmatprep.subr.mxu0 0.0
  %7717 = vmatpush1.msra.mxu0 0.0
  %7718 = vmatprep.subr.mxu0 0.0
  %7719 = vmatpush1.msra.mxu0 0.0
  %7720 = vmatprep.subr.mxu0 0.0
  %7721 = vmatpush1.msra.mxu0 0.0
  %7722 = vmatprep.subr.mxu0 0.0
  %7723 = vmatpush1.msra.mxu0 0.0
  %7724 = vmatprep.mubr.f32.mxu0 0.0
  %v7725 = vand.u32 %v7347, 4294901760
  %v7726 = vsub.f32 %v7347, %v7725
  %7727 = vmatmul.mubr.f32.gmra.mrb[0].mxu0 %v7726
  %v7728 = vpop.f32.mrb[0].mxu0
  %v7729 = vadd.f32 %v7619, %v7728
  %v7730 = vpop.f32.mrb[0].mxu0
  %7731 = vmatprep.mubr.f32.mxu0 0.0
  %v7732 = vand.u32 %v7350, 4294901760
  %v7733 = vsub.f32 %v7350, %v7732
  %7734 = vmatmul.mubr.f32.gmra.mrb[0].mxu0 %v7733
  %v7735 = vpop.f32.mrb[0].mxu0
  %v7736 = vadd.f32 %v7625, %v7735
  %v7737 = vpop.f32.mrb[0].mxu0
  %7738 = vdwg.mxu0
  %7739 = vmatprep.subr.mxu0 0.0
  %v7740 = vand.u32 %v7354, 4294901760
  %7741 = vmatpush1.msra.mxu0 %v7740
  %7742 = vmatprep.subr.mxu0 0.0
  %v7743 = vand.u32 %v7355, 4294901760
  %7744 = vmatpush1.msra.mxu0 %v7743
  %7745 = vmatprep.subr.mxu0 0.0
  %v7746 = vand.u32 %v7356, 4294901760
  %7747 = vmatpush1.msra.mxu0 %v7746
  %7748 = vmatprep.subr.mxu0 0.0
  %v7749 = vand.u32 %v7357, 4294901760
  %7750 = vmatpush1.msra.mxu0 %v7749
  %7751 = vmatprep.subr.mxu0 0.0
  %v7752 = vand.u32 %v7358, 4294901760
  %7753 = vmatpush1.msra.mxu0 %v7752
  %7754 = vmatprep.subr.mxu0 0.0
  %v7755 = vand.u32 %v7359, 4294901760
  %7756 = vmatpush1.msra.mxu0 %v7755
  %7757 = vmatprep.subr.mxu0 0.0
  %v7758 = vand.u32 %v7360, 4294901760
  %7759 = vmatpush1.msra.mxu0 %v7758
  %7760 = vmatprep.subr.mxu0 0.0
  %v7761 = vand.u32 %v7361, 4294901760
  %7762 = vmatpush1.msra.mxu0 %v7761
  %7763 = vmatprep.subr.mxu0 0.0
  %v7764 = vand.u32 %v7362, 4294901760
  %7765 = vmatpush1.msra.mxu0 %v7764
  %7766 = vmatprep.subr.mxu0 0.0
  %v7767 = vand.u32 %v7363, 4294901760
  %7768 = vmatpush1.msra.mxu0 %v7767
  %7769 = vmatprep.subr.mxu0 0.0
  %v7770 = vand.u32 %v7364, 4294901760
  %7771 = vmatpush1.msra.mxu0 %v7770
  %7772 = vmatprep.subr.mxu0 0.0
  %v7773 = vand.u32 %v7365, 4294901760
  %7774 = vmatpush1.msra.mxu0 %v7773
  %7775 = vmatprep.subr.mxu0 0.0
  %v7776 = vand.u32 %v7366, 4294901760
  %7777 = vmatpush1.msra.mxu0 %v7776
  %7778 = vmatprep.subr.mxu0 0.0
  %v7779 = vand.u32 %v7367, 4294901760
  %7780 = vmatpush1.msra.mxu0 %v7779
  %7781 = vmatprep.subr.mxu0 0.0
  %v7782 = vand.u32 %v7368, 4294901760
  %7783 = vmatpush1.msra.mxu0 %v7782
  %7784 = vmatprep.subr.mxu0 0.0
  %v7785 = vand.u32 %v7369, 4294901760
  %7786 = vmatpush1.msra.mxu0 %v7785
  %7787 = vmatprep.subr.mxu0 0.0
  %7788 = vmatpush1.msra.mxu0 0.0
  %7789 = vmatprep.subr.mxu0 0.0
  %7790 = vmatpush1.msra.mxu0 0.0
  %7791 = vmatprep.subr.mxu0 0.0
  %7792 = vmatpush1.msra.mxu0 0.0
  %7793 = vmatprep.subr.mxu0 0.0
  %7794 = vmatpush1.msra.mxu0 0.0
  %7795 = vmatprep.subr.mxu0 0.0
  %7796 = vmatpush1.msra.mxu0 0.0
  %7797 = vmatprep.subr.mxu0 0.0
  %7798 = vmatpush1.msra.mxu0 0.0
  %7799 = vmatprep.subr.mxu0 0.0
  %7800 = vmatpush1.msra.mxu0 0.0
  %7801 = vmatprep.subr.mxu0 0.0
  %7802 = vmatpush1.msra.mxu0 0.0
  %7803 = vmatprep.subr.mxu0 0.0
  %7804 = vmatpush1.msra.mxu0 0.0
  %7805 = vmatprep.subr.mxu0 0.0
  %7806 = vmatpush1.msra.mxu0 0.0
  %7807 = vmatprep.subr.mxu0 0.0
  %7808 = vmatpush1.msra.mxu0 0.0
  %7809 = vmatprep.subr.mxu0 0.0
  %7810 = vmatpush1.msra.mxu0 0.0
  %7811 = vmatprep.subr.mxu0 0.0
  %7812 = vmatpush1.msra.mxu0 0.0
  %7813 = vmatprep.subr.mxu0 0.0
  %7814 = vmatpush1.msra.mxu0 0.0
  %7815 = vmatprep.subr.mxu0 0.0
  %7816 = vmatpush1.msra.mxu0 0.0
  %7817 = vmatprep.subr.mxu0 0.0
  %7818 = vmatpush1.msra.mxu0 0.0
  %7819 = vmatprep.mubr.f32.mxu0 0.0
  %v7820 = vand.u32 %v7347, 4294901760
  %v7821 = vsub.f32 %v7347, %v7820
  %v7822 = vand.u32 %v7821, 4294901760
  %7823 = vmatmul.mubr.f32.gmra.mrb[0].mxu0 %v7822
  %v7824 = vpop.f32.mrb[0].mxu0
  %v7825 = vadd.f32 %v7729, %v7824
  %v7826 = vpop.f32.mrb[0].mxu0
  %7827 = vmatprep.mubr.f32.mxu0 0.0
  %v7828 = vand.u32 %v7350, 4294901760
  %v7829 = vsub.f32 %v7350, %v7828
  %v7830 = vand.u32 %v7829, 4294901760
  %7831 = vmatmul.mubr.f32.gmra.mrb[0].mxu0 %v7830
  %v7832 = vpop.f32.mrb[0].mxu0
  %v7833 = vadd.f32 %v7736, %v7832
  %v7834 = vpop.f32.mrb[0].mxu0
  %7835 = vdwg.mxu0
  %7836 = vmatprep.subr.mxu0 0.0
  %v7837 = vand.u32 %v7354, 4294901760
  %v7838 = vsub.f32 %v7354, %v7837
  %v7839 = vand.u32 %v7838, 4294901760
  %7840 = vmatpush1.msra.mxu0 %v7839
  %7841 = vmatprep.subr.mxu0 0.0
  %v7842 = vand.u32 %v7355, 4294901760
  %v7843 = vsub.f32 %v7355, %v7842
  %v7844 = vand.u32 %v7843, 4294901760
  %7845 = vmatpush1.msra.mxu0 %v7844
  %7846 = vmatprep.subr.mxu0 0.0
  %v7847 = vand.u32 %v7356, 4294901760
  %v7848 = vsub.f32 %v7356, %v7847
  %v7849 = vand.u32 %v7848, 4294901760
  %7850 = vmatpush1.msra.mxu0 %v7849
  %7851 = vmatprep.subr.mxu0 0.0
  %v7852 = vand.u32 %v7357, 4294901760
  %v7853 = vsub.f32 %v7357, %v7852
  %v7854 = vand.u32 %v7853, 4294901760
  %7855 = vmatpush1.msra.mxu0 %v7854
  %7856 = vmatprep.subr.mxu0 0.0
  %v7857 = vand.u32 %v7358, 4294901760
  %v7858 = vsub.f32 %v7358, %v7857
  %v7859 = vand.u32 %v7858, 4294901760
  %7860 = vmatpush1.msra.mxu0 %v7859
  %7861 = vmatprep.subr.mxu0 0.0
  %v7862 = vand.u32 %v7359, 4294901760
  %v7863 = vsub.f32 %v7359, %v7862
  %v7864 = vand.u32 %v7863, 4294901760
  %7865 = vmatpush1.msra.mxu0 %v7864
  %7866 = vmatprep.subr.mxu0 0.0
  %v7867 = vand.u32 %v7360, 4294901760
  %v7868 = vsub.f32 %v7360, %v7867
  %v7869 = vand.u32 %v7868, 4294901760
  %7870 = vmatpush1.msra.mxu0 %v7869
  %7871 = vmatprep.subr.mxu0 0.0
  %v7872 = vand.u32 %v7361, 4294901760
  %v7873 = vsub.f32 %v7361, %v7872
  %v7874 = vand.u32 %v7873, 4294901760
  %7875 = vmatpush1.msra.mxu0 %v7874
  %7876 = vmatprep.subr.mxu0 0.0
  %v7877 = vand.u32 %v7362, 4294901760
  %v7878 = vsub.f32 %v7362, %v7877
  %v7879 = vand.u32 %v7878, 4294901760
  %7880 = vmatpush1.msra.mxu0 %v7879
  %7881 = vmatprep.subr.mxu0 0.0
  %v7882 = vand.u32 %v7363, 4294901760
  %v7883 = vsub.f32 %v7363, %v7882
  %v7884 = vand.u32 %v7883, 4294901760
  %7885 = vmatpush1.msra.mxu0 %v7884
  %7886 = vmatprep.subr.mxu0 0.0
  %v7887 = vand.u32 %v7364, 4294901760
  %v7888 = vsub.f32 %v7364, %v7887
  %v7889 = vand.u32 %v7888, 4294901760
  %7890 = vmatpush1.msra.mxu0 %v7889
  %7891 = vmatprep.subr.mxu0 0.0
  %v7892 = vand.u32 %v7365, 4294901760
  %v7893 = vsub.f32 %v7365, %v7892
  %v7894 = vand.u32 %v7893, 4294901760
  %7895 = vmatpush1.msra.mxu0 %v7894
  %7896 = vmatprep.subr.mxu0 0.0
  %v7897 = vand.u32 %v7366, 4294901760
  %v7898 = vsub.f32 %v7366, %v7897
  %v7899 = vand.u32 %v7898, 4294901760
  %7900 = vmatpush1.msra.mxu0 %v7899
  %7901 = vmatprep.subr.mxu0 0.0
  %v7902 = vand.u32 %v7367, 4294901760
  %v7903 = vsub.f32 %v7367, %v7902
  %v7904 = vand.u32 %v7903, 4294901760
  %7905 = vmatpush1.msra.mxu0 %v7904
  %7906 = vmatprep.subr.mxu0 0.0
  %v7907 = vand.u32 %v7368, 4294901760
  %v7908 = vsub.f32 %v7368, %v7907
  %v7909 = vand.u32 %v7908, 4294901760
  %7910 = vmatpush1.msra.mxu0 %v7909
  %7911 = vmatprep.subr.mxu0 0.0
  %v7912 = vand.u32 %v7369, 4294901760
  %v7913 = vsub.f32 %v7369, %v7912
  %v7914 = vand.u32 %v7913, 4294901760
  %7915 = vmatpush1.msra.mxu0 %v7914
  %7916 = vmatprep.subr.mxu0 0.0
  %7917 = vmatpush1.msra.mxu0 0.0
  %7918 = vmatprep.subr.mxu0 0.0
  %7919 = vmatpush1.msra.mxu0 0.0
  %7920 = vmatprep.subr.mxu0 0.0
  %7921 = vmatpush1.msra.mxu0 0.0
  %7922 = vmatprep.subr.mxu0 0.0
  %7923 = vmatpush1.msra.mxu0 0.0
  %7924 = vmatprep.subr.mxu0 0.0
  %7925 = vmatpush1.msra.mxu0 0.0
  %7926 = vmatprep.subr.mxu0 0.0
  %7927 = vmatpush1.msra.mxu0 0.0
  %7928 = vmatprep.subr.mxu0 0.0
  %7929 = vmatpush1.msra.mxu0 0.0
  %7930 = vmatprep.subr.mxu0 0.0
  %7931 = vmatpush1.msra.mxu0 0.0
  %7932 = vmatprep.subr.mxu0 0.0
  %7933 = vmatpush1.msra.mxu0 0.0
  %7934 = vmatprep.subr.mxu0 0.0
  %7935 = vmatpush1.msra.mxu0 0.0
  %7936 = vmatprep.subr.mxu0 0.0
  %7937 = vmatpush1.msra.mxu0 0.0
  %7938 = vmatprep.subr.mxu0 0.0
  %7939 = vmatpush1.msra.mxu0 0.0
  %7940 = vmatprep.subr.mxu0 0.0
  %7941 = vmatpush1.msra.mxu0 0.0
  %7942 = vmatprep.subr.mxu0 0.0
  %7943 = vmatpush1.msra.mxu0 0.0
  %7944 = vmatprep.subr.mxu0 0.0
  %7945 = vmatpush1.msra.mxu0 0.0
  %7946 = vmatprep.subr.mxu0 0.0
  %7947 = vmatpush1.msra.mxu0 0.0
  %7948 = vmatprep.mubr.f32.mxu0 0.0
  %v7949 = vand.u32 %v7347, 4294901760
  %7950 = vmatmul.mubr.f32.gmra.mrb[0].mxu0 %v7949
  %v7951 = vpop.f32.mrb[0].mxu0
  %v7952 = vadd.f32 %v7825, %v7951
  %v7953 = vpop.f32.mrb[0].mxu0
  %7954 = vmatprep.mubr.f32.mxu0 0.0
  %v7955 = vand.u32 %v7350, 4294901760
  %7956 = vmatmul.mubr.f32.gmra.mrb[0].mxu0 %v7955
  %v7957 = vpop.f32.mrb[0].mxu0
  %v7958 = vadd.f32 %v7833, %v7957
  %v7959 = vpop.f32.mrb[0].mxu0
  %7960 = vdwg.mxu0
  %7961 = vmatprep.subr.mxu0 0.0
  %v7962 = vand.u32 %v7354, 4294901760
  %7963 = vmatpush1.msra.mxu0 %v7962
  %7964 = vmatprep.subr.mxu0 0.0
  %v7965 = vand.u32 %v7355, 4294901760
  %7966 = vmatpush1.msra.mxu0 %v7965
  %7967 = vmatprep.subr.mxu0 0.0
  %v7968 = vand.u32 %v7356, 4294901760
  %7969 = vmatpush1.msra.mxu0 %v7968
  %7970 = vmatprep.subr.mxu0 0.0
  %v7971 = vand.u32 %v7357, 4294901760
  %7972 = vmatpush1.msra.mxu0 %v7971
  %7973 = vmatprep.subr.mxu0 0.0
  %v7974 = vand.u32 %v7358, 4294901760
  %7975 = vmatpush1.msra.mxu0 %v7974
  %7976 = vmatprep.subr.mxu0 0.0
  %v7977 = vand.u32 %v7359, 4294901760
  %7978 = vmatpush1.msra.mxu0 %v7977
  %7979 = vmatprep.subr.mxu0 0.0
  %v7980 = vand.u32 %v7360, 4294901760
  %7981 = vmatpush1.msra.mxu0 %v7980
  %7982 = vmatprep.subr.mxu0 0.0
  %v7983 = vand.u32 %v7361, 4294901760
  %7984 = vmatpush1.msra.mxu0 %v7983
  %7985 = vmatprep.subr.mxu0 0.0
  %v7986 = vand.u32 %v7362, 4294901760
  %7987 = vmatpush1.msra.mxu0 %v7986
  %7988 = vmatprep.subr.mxu0 0.0
  %v7989 = vand.u32 %v7363, 4294901760
  %7990 = vmatpush1.msra.mxu0 %v7989
  %7991 = vmatprep.subr.mxu0 0.0
  %v7992 = vand.u32 %v7364, 4294901760
  %7993 = vmatpush1.msra.mxu0 %v7992
  %7994 = vmatprep.subr.mxu0 0.0
  %v7995 = vand.u32 %v7365, 4294901760
  %7996 = vmatpush1.msra.mxu0 %v7995
  %7997 = vmatprep.subr.mxu0 0.0
  %v7998 = vand.u32 %v7366, 4294901760
  %7999 = vmatpush1.msra.mxu0 %v7998
  %8000 = vmatprep.subr.mxu0 0.0
  %v8001 = vand.u32 %v7367, 4294901760
  %8002 = vmatpush1.msra.mxu0 %v8001
  %8003 = vmatprep.subr.mxu0 0.0
  %v8004 = vand.u32 %v7368, 4294901760
  %8005 = vmatpush1.msra.mxu0 %v8004
  %8006 = vmatprep.subr.mxu0 0.0
  %v8007 = vand.u32 %v7369, 4294901760
  %8008 = vmatpush1.msra.mxu0 %v8007
  %8009 = vmatprep.subr.mxu0 0.0
  %8010 = vmatpush1.msra.mxu0 0.0
  %8011 = vmatprep.subr.mxu0 0.0
  %8012 = vmatpush1.msra.mxu0 0.0
  %8013 = vmatprep.subr.mxu0 0.0
  %8014 = vmatpush1.msra.mxu0 0.0
  %8015 = vmatprep.subr.mxu0 0.0
  %8016 = vmatpush1.msra.mxu0 0.0
  %8017 = vmatprep.subr.mxu0 0.0
  %8018 = vmatpush1.msra.mxu0 0.0
  %8019 = vmatprep.subr.mxu0 0.0
  %8020 = vmatpush1.msra.mxu0 0.0
  %8021 = vmatprep.subr.mxu0 0.0
  %8022 = vmatpush1.msra.mxu0 0.0
  %8023 = vmatprep.subr.mxu0 0.0
  %8024 = vmatpush1.msra.mxu0 0.0
  %8025 = vmatprep.subr.mxu0 0.0
  %8026 = vmatpush1.msra.mxu0 0.0
  %8027 = vmatprep.subr.mxu0 0.0
  %8028 = vmatpush1.msra.mxu0 0.0
  %8029 = vmatprep.subr.mxu0 0.0
  %8030 = vmatpush1.msra.mxu0 0.0
  %8031 = vmatprep.subr.mxu0 0.0
  %8032 = vmatpush1.msra.mxu0 0.0
  %8033 = vmatprep.subr.mxu0 0.0
  %8034 = vmatpush1.msra.mxu0 0.0
  %8035 = vmatprep.subr.mxu0 0.0
  %8036 = vmatpush1.msra.mxu0 0.0
  %8037 = vmatprep.subr.mxu0 0.0
  %8038 = vmatpush1.msra.mxu0 0.0
  %8039 = vmatprep.subr.mxu0 0.0
  %8040 = vmatpush1.msra.mxu0 0.0
  %8041 = vmatprep.mubr.f32.mxu0 0.0
  %v8042 = vand.u32 %v7347, 4294901760
  %8043 = vmatmul.mubr.f32.gmra.mrb[0].mxu0 %v8042
  %v8044 = vpop.f32.mrb[0].mxu0
  %v8045 = vadd.f32 %v7952, %v8044
  %v8046 = vpop.f32.mrb[0].mxu0
  %8047 = vmatprep.mubr.f32.mxu0 0.0
  %v8048 = vand.u32 %v7350, 4294901760
  %8049 = vmatmul.mubr.f32.gmra.mrb[0].mxu0 %v8048
  %v8050 = vpop.f32.mrb[0].mxu0
  %v8051 = vadd.f32 %v7958, %v8050
  %v8052 = vpop.f32.mrb[0].mxu0
  %8053 = vdwg.mxu0
  %v8054 = vadd.f32 %v8045, %v8051
  %v8055 = vrot.slane %v8054, 4
  %v8056 = vadd.f32 %v8054, %v8055
  %v8057 = vrot.slane %v8056, 2
  %v8058 = vadd.f32 %v8056, %v8057
  %v8059 = vrot.slane %v8058, 1
  %v8060 = vadd.f32 %v8058, %v8059
  %v8061 = vmul.f32 %v8060, %v1161
  %v8062 = vmul.f32 %v7347, %v7347
  %v8063 = vmul.f32 %v7350, %v7350
  %8064 = vmatprep.subr.mxu0 0.0
  %v8065 = vand.u32 %v7354, 4294901760
  %8066 = vmatpush1.msra.mxu0 %v8065
  %8067 = vmatprep.subr.mxu0 0.0
  %v8068 = vand.u32 %v7355, 4294901760
  %8069 = vmatpush1.msra.mxu0 %v8068
  %8070 = vmatprep.subr.mxu0 0.0
  %v8071 = vand.u32 %v7356, 4294901760
  %8072 = vmatpush1.msra.mxu0 %v8071
  %8073 = vmatprep.subr.mxu0 0.0
  %v8074 = vand.u32 %v7357, 4294901760
  %8075 = vmatpush1.msra.mxu0 %v8074
  %8076 = vmatprep.subr.mxu0 0.0
  %v8077 = vand.u32 %v7358, 4294901760
  %8078 = vmatpush1.msra.mxu0 %v8077
  %8079 = vmatprep.subr.mxu0 0.0
  %v8080 = vand.u32 %v7359, 4294901760
  %8081 = vmatpush1.msra.mxu0 %v8080
  %8082 = vmatprep.subr.mxu0 0.0
  %v8083 = vand.u32 %v7360, 4294901760
  %8084 = vmatpush1.msra.mxu0 %v8083
  %8085 = vmatprep.subr.mxu0 0.0
  %v8086 = vand.u32 %v7361, 4294901760
  %8087 = vmatpush1.msra.mxu0 %v8086
  %8088 = vmatprep.subr.mxu0 0.0
  %v8089 = vand.u32 %v7362, 4294901760
  %8090 = vmatpush1.msra.mxu0 %v8089
  %8091 = vmatprep.subr.mxu0 0.0
  %v8092 = vand.u32 %v7363, 4294901760
  %8093 = vmatpush1.msra.mxu0 %v8092
  %8094 = vmatprep.subr.mxu0 0.0
  %v8095 = vand.u32 %v7364, 4294901760
  %8096 = vmatpush1.msra.mxu0 %v8095
  %8097 = vmatprep.subr.mxu0 0.0
  %v8098 = vand.u32 %v7365, 4294901760
  %8099 = vmatpush1.msra.mxu0 %v8098
  %8100 = vmatprep.subr.mxu0 0.0
  %v8101 = vand.u32 %v7366, 4294901760
  %8102 = vmatpush1.msra.mxu0 %v8101
  %8103 = vmatprep.subr.mxu0 0.0
  %v8104 = vand.u32 %v7367, 4294901760
  %8105 = vmatpush1.msra.mxu0 %v8104
  %8106 = vmatprep.subr.mxu0 0.0
  %v8107 = vand.u32 %v7368, 4294901760
  %8108 = vmatpush1.msra.mxu0 %v8107
  %8109 = vmatprep.subr.mxu0 0.0
  %v8110 = vand.u32 %v7369, 4294901760
  %8111 = vmatpush1.msra.mxu0 %v8110
  %8112 = vmatprep.subr.mxu0 0.0
  %8113 = vmatpush1.msra.mxu0 0.0
  %8114 = vmatprep.subr.mxu0 0.0
  %8115 = vmatpush1.msra.mxu0 0.0
  %8116 = vmatprep.subr.mxu0 0.0
  %8117 = vmatpush1.msra.mxu0 0.0
  %8118 = vmatprep.subr.mxu0 0.0
  %8119 = vmatpush1.msra.mxu0 0.0
  %8120 = vmatprep.subr.mxu0 0.0
  %8121 = vmatpush1.msra.mxu0 0.0
  %8122 = vmatprep.subr.mxu0 0.0
  %8123 = vmatpush1.msra.mxu0 0.0
  %8124 = vmatprep.subr.mxu0 0.0
  %8125 = vmatpush1.msra.mxu0 0.0
  %8126 = vmatprep.subr.mxu0 0.0
  %8127 = vmatpush1.msra.mxu0 0.0
  %8128 = vmatprep.subr.mxu0 0.0
  %8129 = vmatpush1.msra.mxu0 0.0
  %8130 = vmatprep.subr.mxu0 0.0
  %8131 = vmatpush1.msra.mxu0 0.0
  %8132 = vmatprep.subr.mxu0 0.0
  %8133 = vmatpush1.msra.mxu0 0.0
  %8134 = vmatprep.subr.mxu0 0.0
  %8135 = vmatpush1.msra.mxu0 0.0
  %8136 = vmatprep.subr.mxu0 0.0
  %8137 = vmatpush1.msra.mxu0 0.0
  %8138 = vmatprep.subr.mxu0 0.0
  %8139 = vmatpush1.msra.mxu0 0.0
  %8140 = vmatprep.subr.mxu0 0.0
  %8141 = vmatpush1.msra.mxu0 0.0
  %8142 = vmatprep.subr.mxu0 0.0
  %8143 = vmatpush1.msra.mxu0 0.0
  %8144 = vmatprep.mubr.f32.mxu0 0.0
  %v8145 = vand.u32 %v8062, 4294901760
  %v8146 = vsub.f32 %v8062, %v8145
  %v8147 = vand.u32 %v8146, 4294901760
  %v8148 = vsub.f32 %v8146, %v8147
  %v8149 = vand.u32 %v8148, 4294901760
  %8150 = vmatmul.mubr.f32.gmra.mrb[0].mxu0 %v8149
  %v8151 = vpop.f32.mrb[0].mxu0
  %v8152 = vadd.f32 0.0, %v8151
  %v8153 = vpop.f32.mrb[0].mxu0
  %8154 = vmatprep.mubr.f32.mxu0 0.0
  %v8155 = vand.u32 %v8063, 4294901760
  %v8156 = vsub.f32 %v8063, %v8155
  %v8157 = vand.u32 %v8156, 4294901760
  %v8158 = vsub.f32 %v8156, %v8157
  %v8159 = vand.u32 %v8158, 4294901760
  %8160 = vmatmul.mubr.f32.gmra.mrb[0].mxu0 %v8159
  %v8161 = vpop.f32.mrb[0].mxu0
  %v8162 = vadd.f32 0.0, %v8161
  %v8163 = vpop.f32.mrb[0].mxu0
  %8164 = vdwg.mxu0
  %8165 = vmatprep.subr.mxu0 0.0
  %v8166 = vand.u32 %v7354, 4294901760
  %v8167 = vsub.f32 %v7354, %v8166
  %v8168 = vand.u32 %v8167, 4294901760
  %v8169 = vsub.f32 %v8167, %v8168
  %v8170 = vand.u32 %v8169, 4294901760
  %8171 = vmatpush1.msra.mxu0 %v8170
  %8172 = vmatprep.subr.mxu0 0.0
  %v8173 = vand.u32 %v7355, 4294901760
  %v8174 = vsub.f32 %v7355, %v8173
  %v8175 = vand.u32 %v8174, 4294901760
  %v8176 = vsub.f32 %v8174, %v8175
  %v8177 = vand.u32 %v8176, 4294901760
  %8178 = vmatpush1.msra.mxu0 %v8177
  %8179 = vmatprep.subr.mxu0 0.0
  %v8180 = vand.u32 %v7356, 4294901760
  %v8181 = vsub.f32 %v7356, %v8180
  %v8182 = vand.u32 %v8181, 4294901760
  %v8183 = vsub.f32 %v8181, %v8182
  %v8184 = vand.u32 %v8183, 4294901760
  %8185 = vmatpush1.msra.mxu0 %v8184
  %8186 = vmatprep.subr.mxu0 0.0
  %v8187 = vand.u32 %v7357, 4294901760
  %v8188 = vsub.f32 %v7357, %v8187
  %v8189 = vand.u32 %v8188, 4294901760
  %v8190 = vsub.f32 %v8188, %v8189
  %v8191 = vand.u32 %v8190, 4294901760
  %8192 = vmatpush1.msra.mxu0 %v8191
  %8193 = vmatprep.subr.mxu0 0.0
  %v8194 = vand.u32 %v7358, 4294901760
  %v8195 = vsub.f32 %v7358, %v8194
  %v8196 = vand.u32 %v8195, 4294901760
  %v8197 = vsub.f32 %v8195, %v8196
  %v8198 = vand.u32 %v8197, 4294901760
  %8199 = vmatpush1.msra.mxu0 %v8198
  %8200 = vmatprep.subr.mxu0 0.0
  %v8201 = vand.u32 %v7359, 4294901760
  %v8202 = vsub.f32 %v7359, %v8201
  %v8203 = vand.u32 %v8202, 4294901760
  %v8204 = vsub.f32 %v8202, %v8203
  %v8205 = vand.u32 %v8204, 4294901760
  %8206 = vmatpush1.msra.mxu0 %v8205
  %8207 = vmatprep.subr.mxu0 0.0
  %v8208 = vand.u32 %v7360, 4294901760
  %v8209 = vsub.f32 %v7360, %v8208
  %v8210 = vand.u32 %v8209, 4294901760
  %v8211 = vsub.f32 %v8209, %v8210
  %v8212 = vand.u32 %v8211, 4294901760
  %8213 = vmatpush1.msra.mxu0 %v8212
  %8214 = vmatprep.subr.mxu0 0.0
  %v8215 = vand.u32 %v7361, 4294901760
  %v8216 = vsub.f32 %v7361, %v8215
  %v8217 = vand.u32 %v8216, 4294901760
  %v8218 = vsub.f32 %v8216, %v8217
  %v8219 = vand.u32 %v8218, 4294901760
  %8220 = vmatpush1.msra.mxu0 %v8219
  %8221 = vmatprep.subr.mxu0 0.0
  %v8222 = vand.u32 %v7362, 4294901760
  %v8223 = vsub.f32 %v7362, %v8222
  %v8224 = vand.u32 %v8223, 4294901760
  %v8225 = vsub.f32 %v8223, %v8224
  %v8226 = vand.u32 %v8225, 4294901760
  %8227 = vmatpush1.msra.mxu0 %v8226
  %8228 = vmatprep.subr.mxu0 0.0
  %v8229 = vand.u32 %v7363, 4294901760
  %v8230 = vsub.f32 %v7363, %v8229
  %v8231 = vand.u32 %v8230, 4294901760
  %v8232 = vsub.f32 %v8230, %v8231
  %v8233 = vand.u32 %v8232, 4294901760
  %8234 = vmatpush1.msra.mxu0 %v8233
  %8235 = vmatprep.subr.mxu0 0.0
  %v8236 = vand.u32 %v7364, 4294901760
  %v8237 = vsub.f32 %v7364, %v8236
  %v8238 = vand.u32 %v8237, 4294901760
  %v8239 = vsub.f32 %v8237, %v8238
  %v8240 = vand.u32 %v8239, 4294901760
  %8241 = vmatpush1.msra.mxu0 %v8240
  %8242 = vmatprep.subr.mxu0 0.0
  %v8243 = vand.u32 %v7365, 4294901760
  %v8244 = vsub.f32 %v7365, %v8243
  %v8245 = vand.u32 %v8244, 4294901760
  %v8246 = vsub.f32 %v8244, %v8245
  %v8247 = vand.u32 %v8246, 4294901760
  %8248 = vmatpush1.msra.mxu0 %v8247
  %8249 = vmatprep.subr.mxu0 0.0
  %v8250 = vand.u32 %v7366, 4294901760
  %v8251 = vsub.f32 %v7366, %v8250
  %v8252 = vand.u32 %v8251, 4294901760
  %v8253 = vsub.f32 %v8251, %v8252
  %v8254 = vand.u32 %v8253, 4294901760
  %8255 = vmatpush1.msra.mxu0 %v8254
  %8256 = vmatprep.subr.mxu0 0.0
  %v8257 = vand.u32 %v7367, 4294901760
  %v8258 = vsub.f32 %v7367, %v8257
  %v8259 = vand.u32 %v8258, 4294901760
  %v8260 = vsub.f32 %v8258, %v8259
  %v8261 = vand.u32 %v8260, 4294901760
  %8262 = vmatpush1.msra.mxu0 %v8261
  %8263 = vmatprep.subr.mxu0 0.0
  %v8264 = vand.u32 %v7368, 4294901760
  %v8265 = vsub.f32 %v7368, %v8264
  %v8266 = vand.u32 %v8265, 4294901760
  %v8267 = vsub.f32 %v8265, %v8266
  %v8268 = vand.u32 %v8267, 4294901760
  %8269 = vmatpush1.msra.mxu0 %v8268
  %8270 = vmatprep.subr.mxu0 0.0
  %v8271 = vand.u32 %v7369, 4294901760
  %v8272 = vsub.f32 %v7369, %v8271
  %v8273 = vand.u32 %v8272, 4294901760
  %v8274 = vsub.f32 %v8272, %v8273
  %v8275 = vand.u32 %v8274, 4294901760
  %8276 = vmatpush1.msra.mxu0 %v8275
  %8277 = vmatprep.subr.mxu0 0.0
  %8278 = vmatpush1.msra.mxu0 0.0
  %8279 = vmatprep.subr.mxu0 0.0
  %8280 = vmatpush1.msra.mxu0 0.0
  %8281 = vmatprep.subr.mxu0 0.0
  %8282 = vmatpush1.msra.mxu0 0.0
  %8283 = vmatprep.subr.mxu0 0.0
  %8284 = vmatpush1.msra.mxu0 0.0
  %8285 = vmatprep.subr.mxu0 0.0
  %8286 = vmatpush1.msra.mxu0 0.0
  %8287 = vmatprep.subr.mxu0 0.0
  %8288 = vmatpush1.msra.mxu0 0.0
  %8289 = vmatprep.subr.mxu0 0.0
  %8290 = vmatpush1.msra.mxu0 0.0
  %8291 = vmatprep.subr.mxu0 0.0
  %8292 = vmatpush1.msra.mxu0 0.0
  %8293 = vmatprep.subr.mxu0 0.0
  %8294 = vmatpush1.msra.mxu0 0.0
  %8295 = vmatprep.subr.mxu0 0.0
  %8296 = vmatpush1.msra.mxu0 0.0
  %8297 = vmatprep.subr.mxu0 0.0
  %8298 = vmatpush1.msra.mxu0 0.0
  %8299 = vmatprep.subr.mxu0 0.0
  %8300 = vmatpush1.msra.mxu0 0.0
  %8301 = vmatprep.subr.mxu0 0.0
  %8302 = vmatpush1.msra.mxu0 0.0
  %8303 = vmatprep.subr.mxu0 0.0
  %8304 = vmatpush1.msra.mxu0 0.0
  %8305 = vmatprep.subr.mxu0 0.0
  %8306 = vmatpush1.msra.mxu0 0.0
  %8307 = vmatprep.subr.mxu0 0.0
  %8308 = vmatpush1.msra.mxu0 0.0
  %8309 = vmatprep.mubr.f32.mxu0 0.0
  %v8310 = vand.u32 %v8062, 4294901760
  %8311 = vmatmul.mubr.f32.gmra.mrb[0].mxu0 %v8310
  %v8312 = vpop.f32.mrb[0].mxu0
  %v8313 = vadd.f32 %v8152, %v8312
  %v8314 = vpop.f32.mrb[0].mxu0
  %8315 = vmatprep.mubr.f32.mxu0 0.0
  %v8316 = vand.u32 %v8063, 4294901760
  %8317 = vmatmul.mubr.f32.gmra.mrb[0].mxu0 %v8316
  %v8318 = vpop.f32.mrb[0].mxu0
  %v8319 = vadd.f32 %v8162, %v8318
  %v8320 = vpop.f32.mrb[0].mxu0
  %8321 = vdwg.mxu0
  %8322 = vmatprep.subr.mxu0 0.0
  %v8323 = vand.u32 %v7354, 4294901760
  %v8324 = vsub.f32 %v7354, %v8323
  %8325 = vmatpush1.msra.mxu0 %v8324
  %8326 = vmatprep.subr.mxu0 0.0
  %v8327 = vand.u32 %v7355, 4294901760
  %v8328 = vsub.f32 %v7355, %v8327
  %8329 = vmatpush1.msra.mxu0 %v8328
  %8330 = vmatprep.subr.mxu0 0.0
  %v8331 = vand.u32 %v7356, 4294901760
  %v8332 = vsub.f32 %v7356, %v8331
  %8333 = vmatpush1.msra.mxu0 %v8332
  %8334 = vmatprep.subr.mxu0 0.0
  %v8335 = vand.u32 %v7357, 4294901760
  %v8336 = vsub.f32 %v7357, %v8335
  %8337 = vmatpush1.msra.mxu0 %v8336
  %8338 = vmatprep.subr.mxu0 0.0
  %v8339 = vand.u32 %v7358, 4294901760
  %v8340 = vsub.f32 %v7358, %v8339
  %8341 = vmatpush1.msra.mxu0 %v8340
  %8342 = vmatprep.subr.mxu0 0.0
  %v8343 = vand.u32 %v7359, 4294901760
  %v8344 = vsub.f32 %v7359, %v8343
  %8345 = vmatpush1.msra.mxu0 %v8344
  %8346 = vmatprep.subr.mxu0 0.0
  %v8347 = vand.u32 %v7360, 4294901760
  %v8348 = vsub.f32 %v7360, %v8347
  %8349 = vmatpush1.msra.mxu0 %v8348
  %8350 = vmatprep.subr.mxu0 0.0
  %v8351 = vand.u32 %v7361, 4294901760
  %v8352 = vsub.f32 %v7361, %v8351
  %8353 = vmatpush1.msra.mxu0 %v8352
  %8354 = vmatprep.subr.mxu0 0.0
  %v8355 = vand.u32 %v7362, 4294901760
  %v8356 = vsub.f32 %v7362, %v8355
  %8357 = vmatpush1.msra.mxu0 %v8356
  %8358 = vmatprep.subr.mxu0 0.0
  %v8359 = vand.u32 %v7363, 4294901760
  %v8360 = vsub.f32 %v7363, %v8359
  %8361 = vmatpush1.msra.mxu0 %v8360
  %8362 = vmatprep.subr.mxu0 0.0
  %v8363 = vand.u32 %v7364, 4294901760
  %v8364 = vsub.f32 %v7364, %v8363
  %8365 = vmatpush1.msra.mxu0 %v8364
  %8366 = vmatprep.subr.mxu0 0.0
  %v8367 = vand.u32 %v7365, 4294901760
  %v8368 = vsub.f32 %v7365, %v8367
  %8369 = vmatpush1.msra.mxu0 %v8368
  %8370 = vmatprep.subr.mxu0 0.0
  %v8371 = vand.u32 %v7366, 4294901760
  %v8372 = vsub.f32 %v7366, %v8371
  %8373 = vmatpush1.msra.mxu0 %v8372
  %8374 = vmatprep.subr.mxu0 0.0
  %v8375 = vand.u32 %v7367, 4294901760
  %v8376 = vsub.f32 %v7367, %v8375
  %8377 = vmatpush1.msra.mxu0 %v8376
  %8378 = vmatprep.subr.mxu0 0.0
  %v8379 = vand.u32 %v7368, 4294901760
  %v8380 = vsub.f32 %v7368, %v8379
  %8381 = vmatpush1.msra.mxu0 %v8380
  %8382 = vmatprep.subr.mxu0 0.0
  %v8383 = vand.u32 %v7369, 4294901760
  %v8384 = vsub.f32 %v7369, %v8383
  %8385 = vmatpush1.msra.mxu0 %v8384
  %8386 = vmatprep.subr.mxu0 0.0
  %8387 = vmatpush1.msra.mxu0 0.0
  %8388 = vmatprep.subr.mxu0 0.0
  %8389 = vmatpush1.msra.mxu0 0.0
  %8390 = vmatprep.subr.mxu0 0.0
  %8391 = vmatpush1.msra.mxu0 0.0
  %8392 = vmatprep.subr.mxu0 0.0
  %8393 = vmatpush1.msra.mxu0 0.0
  %8394 = vmatprep.subr.mxu0 0.0
  %8395 = vmatpush1.msra.mxu0 0.0
  %8396 = vmatprep.subr.mxu0 0.0
  %8397 = vmatpush1.msra.mxu0 0.0
  %8398 = vmatprep.subr.mxu0 0.0
  %8399 = vmatpush1.msra.mxu0 0.0
  %8400 = vmatprep.subr.mxu0 0.0
  %8401 = vmatpush1.msra.mxu0 0.0
  %8402 = vmatprep.subr.mxu0 0.0
  %8403 = vmatpush1.msra.mxu0 0.0
  %8404 = vmatprep.subr.mxu0 0.0
  %8405 = vmatpush1.msra.mxu0 0.0
  %8406 = vmatprep.subr.mxu0 0.0
  %8407 = vmatpush1.msra.mxu0 0.0
  %8408 = vmatprep.subr.mxu0 0.0
  %8409 = vmatpush1.msra.mxu0 0.0
  %8410 = vmatprep.subr.mxu0 0.0
  %8411 = vmatpush1.msra.mxu0 0.0
  %8412 = vmatprep.subr.mxu0 0.0
  %8413 = vmatpush1.msra.mxu0 0.0
  %8414 = vmatprep.subr.mxu0 0.0
  %8415 = vmatpush1.msra.mxu0 0.0
  %8416 = vmatprep.subr.mxu0 0.0
  %8417 = vmatpush1.msra.mxu0 0.0
  %8418 = vmatprep.mubr.f32.mxu0 0.0
  %v8419 = vand.u32 %v8062, 4294901760
  %v8420 = vsub.f32 %v8062, %v8419
  %8421 = vmatmul.mubr.f32.gmra.mrb[0].mxu0 %v8420
  %v8422 = vpop.f32.mrb[0].mxu0
  %v8423 = vadd.f32 %v8313, %v8422
  %v8424 = vpop.f32.mrb[0].mxu0
  %8425 = vmatprep.mubr.f32.mxu0 0.0
  %v8426 = vand.u32 %v8063, 4294901760
  %v8427 = vsub.f32 %v8063, %v8426
  %8428 = vmatmul.mubr.f32.gmra.mrb[0].mxu0 %v8427
  %v8429 = vpop.f32.mrb[0].mxu0
  %v8430 = vadd.f32 %v8319, %v8429
  %v8431 = vpop.f32.mrb[0].mxu0
  %8432 = vdwg.mxu0
  %8433 = vmatprep.subr.mxu0 0.0
  %v8434 = vand.u32 %v7354, 4294901760
  %8435 = vmatpush1.msra.mxu0 %v8434
  %8436 = vmatprep.subr.mxu0 0.0
  %v8437 = vand.u32 %v7355, 4294901760
  %8438 = vmatpush1.msra.mxu0 %v8437
  %8439 = vmatprep.subr.mxu0 0.0
  %v8440 = vand.u32 %v7356, 4294901760
  %8441 = vmatpush1.msra.mxu0 %v8440
  %8442 = vmatprep.subr.mxu0 0.0
  %v8443 = vand.u32 %v7357, 4294901760
  %8444 = vmatpush1.msra.mxu0 %v8443
  %8445 = vmatprep.subr.mxu0 0.0
  %v8446 = vand.u32 %v7358, 4294901760
  %8447 = vmatpush1.msra.mxu0 %v8446
  %8448 = vmatprep.subr.mxu0 0.0
  %v8449 = vand.u32 %v7359, 4294901760
  %8450 = vmatpush1.msra.mxu0 %v8449
  %8451 = vmatprep.subr.mxu0 0.0
  %v8452 = vand.u32 %v7360, 4294901760
  %8453 = vmatpush1.msra.mxu0 %v8452
  %8454 = vmatprep.subr.mxu0 0.0
  %v8455 = vand.u32 %v7361, 4294901760
  %8456 = vmatpush1.msra.mxu0 %v8455
  %8457 = vmatprep.subr.mxu0 0.0
  %v8458 = vand.u32 %v7362, 4294901760
  %8459 = vmatpush1.msra.mxu0 %v8458
  %8460 = vmatprep.subr.mxu0 0.0
  %v8461 = vand.u32 %v7363, 4294901760
  %8462 = vmatpush1.msra.mxu0 %v8461
  %8463 = vmatprep.subr.mxu0 0.0
  %v8464 = vand.u32 %v7364, 4294901760
  %8465 = vmatpush1.msra.mxu0 %v8464
  %8466 = vmatprep.subr.mxu0 0.0
  %v8467 = vand.u32 %v7365, 4294901760
  %8468 = vmatpush1.msra.mxu0 %v8467
  %8469 = vmatprep.subr.mxu0 0.0
  %v8470 = vand.u32 %v7366, 4294901760
  %8471 = vmatpush1.msra.mxu0 %v8470
  %8472 = vmatprep.subr.mxu0 0.0
  %v8473 = vand.u32 %v7367, 4294901760
  %8474 = vmatpush1.msra.mxu0 %v8473
  %8475 = vmatprep.subr.mxu0 0.0
  %v8476 = vand.u32 %v7368, 4294901760
  %8477 = vmatpush1.msra.mxu0 %v8476
  %8478 = vmatprep.subr.mxu0 0.0
  %v8479 = vand.u32 %v7369, 4294901760
  %8480 = vmatpush1.msra.mxu0 %v8479
  %8481 = vmatprep.subr.mxu0 0.0
  %8482 = vmatpush1.msra.mxu0 0.0
  %8483 = vmatprep.subr.mxu0 0.0
  %8484 = vmatpush1.msra.mxu0 0.0
  %8485 = vmatprep.subr.mxu0 0.0
  %8486 = vmatpush1.msra.mxu0 0.0
  %8487 = vmatprep.subr.mxu0 0.0
  %8488 = vmatpush1.msra.mxu0 0.0
  %8489 = vmatprep.subr.mxu0 0.0
  %8490 = vmatpush1.msra.mxu0 0.0
  %8491 = vmatprep.subr.mxu0 0.0
  %8492 = vmatpush1.msra.mxu0 0.0
  %8493 = vmatprep.subr.mxu0 0.0
  %8494 = vmatpush1.msra.mxu0 0.0
  %8495 = vmatprep.subr.mxu0 0.0
  %8496 = vmatpush1.msra.mxu0 0.0
  %8497 = vmatprep.subr.mxu0 0.0
  %8498 = vmatpush1.msra.mxu0 0.0
  %8499 = vmatprep.subr.mxu0 0.0
  %8500 = vmatpush1.msra.mxu0 0.0
  %8501 = vmatprep.subr.mxu0 0.0
  %8502 = vmatpush1.msra.mxu0 0.0
  %8503 = vmatprep.subr.mxu0 0.0
  %8504 = vmatpush1.msra.mxu0 0.0
  %8505 = vmatprep.subr.mxu0 0.0
  %8506 = vmatpush1.msra.mxu0 0.0
  %8507 = vmatprep.subr.mxu0 0.0
  %8508 = vmatpush1.msra.mxu0 0.0
  %8509 = vmatprep.subr.mxu0 0.0
  %8510 = vmatpush1.msra.mxu0 0.0
  %8511 = vmatprep.subr.mxu0 0.0
  %8512 = vmatpush1.msra.mxu0 0.0
  %8513 = vmatprep.mubr.f32.mxu0 0.0
  %v8514 = vand.u32 %v8062, 4294901760
  %v8515 = vsub.f32 %v8062, %v8514
  %v8516 = vand.u32 %v8515, 4294901760
  %8517 = vmatmul.mubr.f32.gmra.mrb[0].mxu0 %v8516
  %v8518 = vpop.f32.mrb[0].mxu0
  %v8519 = vadd.f32 %v8423, %v8518
  %v8520 = vpop.f32.mrb[0].mxu0
  %8521 = vmatprep.mubr.f32.mxu0 0.0
  %v8522 = vand.u32 %v8063, 4294901760
  %v8523 = vsub.f32 %v8063, %v8522
  %v8524 = vand.u32 %v8523, 4294901760
  %8525 = vmatmul.mubr.f32.gmra.mrb[0].mxu0 %v8524
  %v8526 = vpop.f32.mrb[0].mxu0
  %v8527 = vadd.f32 %v8430, %v8526
  %v8528 = vpop.f32.mrb[0].mxu0
  %8529 = vdwg.mxu0
  %8530 = vmatprep.subr.mxu0 0.0
  %v8531 = vand.u32 %v7354, 4294901760
  %v8532 = vsub.f32 %v7354, %v8531
  %v8533 = vand.u32 %v8532, 4294901760
  %8534 = vmatpush1.msra.mxu0 %v8533
  %8535 = vmatprep.subr.mxu0 0.0
  %v8536 = vand.u32 %v7355, 4294901760
  %v8537 = vsub.f32 %v7355, %v8536
  %v8538 = vand.u32 %v8537, 4294901760
  %8539 = vmatpush1.msra.mxu0 %v8538
  %8540 = vmatprep.subr.mxu0 0.0
  %v8541 = vand.u32 %v7356, 4294901760
  %v8542 = vsub.f32 %v7356, %v8541
  %v8543 = vand.u32 %v8542, 4294901760
  %8544 = vmatpush1.msra.mxu0 %v8543
  %8545 = vmatprep.subr.mxu0 0.0
  %v8546 = vand.u32 %v7357, 4294901760
  %v8547 = vsub.f32 %v7357, %v8546
  %v8548 = vand.u32 %v8547, 4294901760
  %8549 = vmatpush1.msra.mxu0 %v8548
  %8550 = vmatprep.subr.mxu0 0.0
  %v8551 = vand.u32 %v7358, 4294901760
  %v8552 = vsub.f32 %v7358, %v8551
  %v8553 = vand.u32 %v8552, 4294901760
  %8554 = vmatpush1.msra.mxu0 %v8553
  %8555 = vmatprep.subr.mxu0 0.0
  %v8556 = vand.u32 %v7359, 4294901760
  %v8557 = vsub.f32 %v7359, %v8556
  %v8558 = vand.u32 %v8557, 4294901760
  %8559 = vmatpush1.msra.mxu0 %v8558
  %8560 = vmatprep.subr.mxu0 0.0
  %v8561 = vand.u32 %v7360, 4294901760
  %v8562 = vsub.f32 %v7360, %v8561
  %v8563 = vand.u32 %v8562, 4294901760
  %8564 = vmatpush1.msra.mxu0 %v8563
  %8565 = vmatprep.subr.mxu0 0.0
  %v8566 = vand.u32 %v7361, 4294901760
  %v8567 = vsub.f32 %v7361, %v8566
  %v8568 = vand.u32 %v8567, 4294901760
  %8569 = vmatpush1.msra.mxu0 %v8568
  %8570 = vmatprep.subr.mxu0 0.0
  %v8571 = vand.u32 %v7362, 4294901760
  %v8572 = vsub.f32 %v7362, %v8571
  %v8573 = vand.u32 %v8572, 4294901760
  %8574 = vmatpush1.msra.mxu0 %v8573
  %8575 = vmatprep.subr.mxu0 0.0
  %v8576 = vand.u32 %v7363, 4294901760
  %v8577 = vsub.f32 %v7363, %v8576
  %v8578 = vand.u32 %v8577, 4294901760
  %8579 = vmatpush1.msra.mxu0 %v8578
  %8580 = vmatprep.subr.mxu0 0.0
  %v8581 = vand.u32 %v7364, 4294901760
  %v8582 = vsub.f32 %v7364, %v8581
  %v8583 = vand.u32 %v8582, 4294901760
  %8584 = vmatpush1.msra.mxu0 %v8583
  %8585 = vmatprep.subr.mxu0 0.0
  %v8586 = vand.u32 %v7365, 4294901760
  %v8587 = vsub.f32 %v7365, %v8586
  %v8588 = vand.u32 %v8587, 4294901760
  %8589 = vmatpush1.msra.mxu0 %v8588
  %8590 = vmatprep.subr.mxu0 0.0
  %v8591 = vand.u32 %v7366, 4294901760
  %v8592 = vsub.f32 %v7366, %v8591
  %v8593 = vand.u32 %v8592, 4294901760
  %8594 = vmatpush1.msra.mxu0 %v8593
  %8595 = vmatprep.subr.mxu0 0.0
  %v8596 = vand.u32 %v7367, 4294901760
  %v8597 = vsub.f32 %v7367, %v8596
  %v8598 = vand.u32 %v8597, 4294901760
  %8599 = vmatpush1.msra.mxu0 %v8598
  %8600 = vmatprep.subr.mxu0 0.0
  %v8601 = vand.u32 %v7368, 4294901760
  %v8602 = vsub.f32 %v7368, %v8601
  %v8603 = vand.u32 %v8602, 4294901760
  %8604 = vmatpush1.msra.mxu0 %v8603
  %8605 = vmatprep.subr.mxu0 0.0
  %v8606 = vand.u32 %v7369, 4294901760
  %v8607 = vsub.f32 %v7369, %v8606
  %v8608 = vand.u32 %v8607, 4294901760
  %8609 = vmatpush1.msra.mxu0 %v8608
  %8610 = vmatprep.subr.mxu0 0.0
  %8611 = vmatpush1.msra.mxu0 0.0
  %8612 = vmatprep.subr.mxu0 0.0
  %8613 = vmatpush1.msra.mxu0 0.0
  %8614 = vmatprep.subr.mxu0 0.0
  %8615 = vmatpush1.msra.mxu0 0.0
  %8616 = vmatprep.subr.mxu0 0.0
  %8617 = vmatpush1.msra.mxu0 0.0
  %8618 = vmatprep.subr.mxu0 0.0
  %8619 = vmatpush1.msra.mxu0 0.0
  %8620 = vmatprep.subr.mxu0 0.0
  %8621 = vmatpush1.msra.mxu0 0.0
  %8622 = vmatprep.subr.mxu0 0.0
  %8623 = vmatpush1.msra.mxu0 0.0
  %8624 = vmatprep.subr.mxu0 0.0
  %8625 = vmatpush1.msra.mxu0 0.0
  %8626 = vmatprep.subr.mxu0 0.0
  %8627 = vmatpush1.msra.mxu0 0.0
  %8628 = vmatprep.subr.mxu0 0.0
  %8629 = vmatpush1.msra.mxu0 0.0
  %8630 = vmatprep.subr.mxu0 0.0
  %8631 = vmatpush1.msra.mxu0 0.0
  %8632 = vmatprep.subr.mxu0 0.0
  %8633 = vmatpush1.msra.mxu0 0.0
  %8634 = vmatprep.subr.mxu0 0.0
  %8635 = vmatpush1.msra.mxu0 0.0
  %8636 = vmatprep.subr.mxu0 0.0
  %8637 = vmatpush1.msra.mxu0 0.0
  %8638 = vmatprep.subr.mxu0 0.0
  %8639 = vmatpush1.msra.mxu0 0.0
  %8640 = vmatprep.subr.mxu0 0.0
  %8641 = vmatpush1.msra.mxu0 0.0
  %8642 = vmatprep.mubr.f32.mxu0 0.0
  %v8643 = vand.u32 %v8062, 4294901760
  %8644 = vmatmul.mubr.f32.gmra.mrb[0].mxu0 %v8643
  %v8645 = vpop.f32.mrb[0].mxu0
  %v8646 = vadd.f32 %v8519, %v8645
  %v8647 = vpop.f32.mrb[0].mxu0
  %8648 = vmatprep.mubr.f32.mxu0 0.0
  %v8649 = vand.u32 %v8063, 4294901760
  %8650 = vmatmul.mubr.f32.gmra.mrb[0].mxu0 %v8649
  %v8651 = vpop.f32.mrb[0].mxu0
  %v8652 = vadd.f32 %v8527, %v8651
  %v8653 = vpop.f32.mrb[0].mxu0
  %8654 = vdwg.mxu0
  %8655 = vmatprep.subr.mxu0 0.0
  %v8656 = vand.u32 %v7354, 4294901760
  %8657 = vmatpush1.msra.mxu0 %v8656
  %8658 = vmatprep.subr.mxu0 0.0
  %v8659 = vand.u32 %v7355, 4294901760
  %8660 = vmatpush1.msra.mxu0 %v8659
  %8661 = vmatprep.subr.mxu0 0.0
  %v8662 = vand.u32 %v7356, 4294901760
  %8663 = vmatpush1.msra.mxu0 %v8662
  %8664 = vmatprep.subr.mxu0 0.0
  %v8665 = vand.u32 %v7357, 4294901760
  %8666 = vmatpush1.msra.mxu0 %v8665
  %8667 = vmatprep.subr.mxu0 0.0
  %v8668 = vand.u32 %v7358, 4294901760
  %8669 = vmatpush1.msra.mxu0 %v8668
  %8670 = vmatprep.subr.mxu0 0.0
  %v8671 = vand.u32 %v7359, 4294901760
  %8672 = vmatpush1.msra.mxu0 %v8671
  %8673 = vmatprep.subr.mxu0 0.0
  %v8674 = vand.u32 %v7360, 4294901760
  %8675 = vmatpush1.msra.mxu0 %v8674
  %8676 = vmatprep.subr.mxu0 0.0
  %v8677 = vand.u32 %v7361, 4294901760
  %8678 = vmatpush1.msra.mxu0 %v8677
  %8679 = vmatprep.subr.mxu0 0.0
  %v8680 = vand.u32 %v7362, 4294901760
  %8681 = vmatpush1.msra.mxu0 %v8680
  %8682 = vmatprep.subr.mxu0 0.0
  %v8683 = vand.u32 %v7363, 4294901760
  %8684 = vmatpush1.msra.mxu0 %v8683
  %8685 = vmatprep.subr.mxu0 0.0
  %v8686 = vand.u32 %v7364, 4294901760
  %8687 = vmatpush1.msra.mxu0 %v8686
  %8688 = vmatprep.subr.mxu0 0.0
  %v8689 = vand.u32 %v7365, 4294901760
  %8690 = vmatpush1.msra.mxu0 %v8689
  %8691 = vmatprep.subr.mxu0 0.0
  %v8692 = vand.u32 %v7366, 4294901760
  %8693 = vmatpush1.msra.mxu0 %v8692
  %8694 = vmatprep.subr.mxu0 0.0
  %v8695 = vand.u32 %v7367, 4294901760
  %8696 = vmatpush1.msra.mxu0 %v8695
  %8697 = vmatprep.subr.mxu0 0.0
  %v8698 = vand.u32 %v7368, 4294901760
  %8699 = vmatpush1.msra.mxu0 %v8698
  %8700 = vmatprep.subr.mxu0 0.0
  %v8701 = vand.u32 %v7369, 4294901760
  %8702 = vmatpush1.msra.mxu0 %v8701
  %8703 = vmatprep.subr.mxu0 0.0
  %8704 = vmatpush1.msra.mxu0 0.0
  %8705 = vmatprep.subr.mxu0 0.0
  %8706 = vmatpush1.msra.mxu0 0.0
  %8707 = vmatprep.subr.mxu0 0.0
  %8708 = vmatpush1.msra.mxu0 0.0
  %8709 = vmatprep.subr.mxu0 0.0
  %8710 = vmatpush1.msra.mxu0 0.0
  %8711 = vmatprep.subr.mxu0 0.0
  %8712 = vmatpush1.msra.mxu0 0.0
  %8713 = vmatprep.subr.mxu0 0.0
  %8714 = vmatpush1.msra.mxu0 0.0
  %8715 = vmatprep.subr.mxu0 0.0
  %8716 = vmatpush1.msra.mxu0 0.0
  %8717 = vmatprep.subr.mxu0 0.0
  %8718 = vmatpush1.msra.mxu0 0.0
  %8719 = vmatprep.subr.mxu0 0.0
  %8720 = vmatpush1.msra.mxu0 0.0
  %8721 = vmatprep.subr.mxu0 0.0
  %8722 = vmatpush1.msra.mxu0 0.0
  %8723 = vmatprep.subr.mxu0 0.0
  %8724 = vmatpush1.msra.mxu0 0.0
  %8725 = vmatprep.subr.mxu0 0.0
  %8726 = vmatpush1.msra.mxu0 0.0
  %8727 = vmatprep.subr.mxu0 0.0
  %8728 = vmatpush1.msra.mxu0 0.0
  %8729 = vmatprep.subr.mxu0 0.0
  %8730 = vmatpush1.msra.mxu0 0.0
  %8731 = vmatprep.subr.mxu0 0.0
  %8732 = vmatpush1.msra.mxu0 0.0
  %8733 = vmatprep.subr.mxu0 0.0
  %8734 = vmatpush1.msra.mxu0 0.0
  %8735 = vmatprep.mubr.f32.mxu0 0.0
  %v8736 = vand.u32 %v8062, 4294901760
  %8737 = vmatmul.mubr.f32.gmra.mrb[0].mxu0 %v8736
  %v8738 = vpop.f32.mrb[0].mxu0
  %v8739 = vadd.f32 %v8646, %v8738
  %v8740 = vpop.f32.mrb[0].mxu0
  %8741 = vmatprep.mubr.f32.mxu0 0.0
  %v8742 = vand.u32 %v8063, 4294901760
  %8743 = vmatmul.mubr.f32.gmra.mrb[0].mxu0 %v8742
  %v8744 = vpop.f32.mrb[0].mxu0
  %v8745 = vadd.f32 %v8652, %v8744
  %v8746 = vpop.f32.mrb[0].mxu0
  %8747 = vdwg.mxu0
  %v8748 = vadd.f32 %v8739, %v8745
  %v8749 = vrot.slane %v8748, 4
  %v8750 = vadd.f32 %v8748, %v8749
  %v8751 = vrot.slane %v8750, 2
  %v8752 = vadd.f32 %v8750, %v8751
  %v8753 = vrot.slane %v8752, 1
  %v8754 = vadd.f32 %v8752, %v8753
  %v8755 = vmul.f32 %v8754, %v1161
  %v8756 = vmul.f32 %v8061, %v8061
  %v8757 = vsub.f32 %v8755, %v8756
  %v8758 = vmax.f32 %v8757, 0.0
  %s8759 = scalar_lea.vmem %s4, 8
  %v8760 = vld [vmem:[%s8759] sm:$0x3]
  %v8761 = vsub.f32 %v7347, %v8061
  %v8762 = vsub.f32 %v7350, %v8061
  %v8763 = vadd.f32 %v8758, 1e-05
  %v8764 = vrsqrt.pop %v8763
  %v8765 = vmul.f32 %v8761, %v8764
  %v8766 = vmul.f32 %v8762, %v8764
  %v8767 = vlaneseq
  %v8768 = vshrl.u32 %v8767, 7
  %v8769 = vsub.s32 0, %v8768
  %v8770 = vrot.slane %v8760, %v8769
  %v8771 = vmul.f32 %v8765, %v8770
  %v8772 = vmul.f32 %v8766, %v8770
  %v8773 = vlaneseq
  %v8774 = vshrl.u32 %v8773, 7
  %v8775 = vsub.s32 1, %v8774
  %v8776 = vrot.slane %v8760, %v8775
  %v8777 = vadd.f32 %v8771, %v8776
  %v8778 = vadd.f32 %v8772, %v8776
  %v8779 = vmax.f32 %v8777, 0.0
  %v8780 = vmax.f32 %v8778, 0.0
  %v8781 = vpack.c.bf16 %v8780, %v8779
  %s8782 = scalar_lea.vmem %s2, 1280
  %v8783 = vld [vmem:[%s8782] sm:$0xff]
  %v8784 = vld [vmem:[%s8782 + $0x8] sm:$0xff]
  %v8785 = vld [vmem:[%s8782 + $0x10] sm:$0xff]
  %v8786 = vld [vmem:[%s8782 + $0x18] sm:$0xff]
  %v8787 = vld [vmem:[%s8782 + $0x20] sm:$0xff]
  %v8788 = vld [vmem:[%s8782 + $0x28] sm:$0xff]
  %v8789 = vld [vmem:[%s8782 + $0x30] sm:$0xff]
  %v8790 = vld [vmem:[%s8782 + $0x38] sm:$0xff]
  %v8791 = vld [vmem:[%s8782 + $0x40] sm:$0xff]
  %v8792 = vld [vmem:[%s8782 + $0x48] sm:$0xff]
  %v8793 = vld [vmem:[%s8782 + $0x50] sm:$0xff]
  %v8794 = vld [vmem:[%s8782 + $0x58] sm:$0xff]
  %v8795 = vld [vmem:[%s8782 + $0x60] sm:$0xff]
  %v8796 = vld [vmem:[%s8782 + $0x68] sm:$0xff]
  %v8797 = vld [vmem:[%s8782 + $0x70] sm:$0xff]
  %v8798 = vld [vmem:[%s8782 + $0x78] sm:$0xff]
  %v8799 = vld [vmem:[%s8782 + $0x80] sm:$0xff]
  %v8800 = vld [vmem:[%s8782 + $0x88] sm:$0xff]
  %v8801 = vld [vmem:[%s8782 + $0x90] sm:$0xff]
  %v8802 = vld [vmem:[%s8782 + $0x98] sm:$0xff]
  %v8803 = vld [vmem:[%s8782 + $0xa0] sm:$0xff]
  %v8804 = vld [vmem:[%s8782 + $0xa8] sm:$0xff]
  %v8805 = vld [vmem:[%s8782 + $0xb0] sm:$0xff]
  %v8806 = vld [vmem:[%s8782 + $0xb8] sm:$0xff]
  %v8807 = vld [vmem:[%s8782 + $0xc0] sm:$0xff]
  %v8808 = vld [vmem:[%s8782 + $0xc8] sm:$0xff]
  %v8809 = vld [vmem:[%s8782 + $0xd0] sm:$0xff]
  %v8810 = vld [vmem:[%s8782 + $0xd8] sm:$0xff]
  %v8811 = vld [vmem:[%s8782 + $0xe0] sm:$0xff]
  %v8812 = vld [vmem:[%s8782 + $0xe8] sm:$0xff]
  %v8813 = vld [vmem:[%s8782 + $0xf0] sm:$0xff]
  %v8814 = vld [vmem:[%s8782 + $0xf8] sm:$0xff]
  %v8847 = vunpack.c.l.b16 %v8783
  %v8848 = vunpack.c.h.b16 %v8783
  %v8849 = vunpack.c.l.b16 %v8784
  %v8850 = vunpack.c.h.b16 %v8784
  %v8851 = vunpack.c.l.b16 %v8785
  %v8852 = vunpack.c.h.b16 %v8785
  %v8853 = vunpack.c.l.b16 %v8786
  %v8854 = vunpack.c.h.b16 %v8786
  %v8855 = vunpack.c.l.b16 %v8787
  %v8856 = vunpack.c.h.b16 %v8787
  %v8857 = vunpack.c.l.b16 %v8788
  %v8858 = vunpack.c.h.b16 %v8788
  %v8859 = vunpack.c.l.b16 %v8789
  %v8860 = vunpack.c.h.b16 %v8789
  %v8861 = vunpack.c.l.b16 %v8790
  %v8862 = vunpack.c.h.b16 %v8790
  %v8863 = vunpack.c.l.b16 %v8791
  %v8864 = vunpack.c.h.b16 %v8791
  %v8865 = vunpack.c.l.b16 %v8792
  %v8866 = vunpack.c.h.b16 %v8792
  %v8867 = vunpack.c.l.b16 %v8793
  %v8868 = vunpack.c.h.b16 %v8793
  %v8869 = vunpack.c.l.b16 %v8794
  %v8870 = vunpack.c.h.b16 %v8794
  %v8871 = vunpack.c.l.b16 %v8795
  %v8872 = vunpack.c.h.b16 %v8795
  %v8873 = vunpack.c.l.b16 %v8796
  %v8874 = vunpack.c.h.b16 %v8796
  %v8875 = vunpack.c.l.b16 %v8797
  %v8876 = vunpack.c.h.b16 %v8797
  %v8877 = vunpack.c.l.b16 %v8798
  %v8878 = vunpack.c.h.b16 %v8798
  %v8879 = vunpack.c.l.b16 %v8799
  %v8880 = vunpack.c.h.b16 %v8799
  %v8881 = vunpack.c.l.b16 %v8800
  %v8882 = vunpack.c.h.b16 %v8800
  %v8883 = vunpack.c.l.b16 %v8801
  %v8884 = vunpack.c.h.b16 %v8801
  %v8885 = vunpack.c.l.b16 %v8802
  %v8886 = vunpack.c.h.b16 %v8802
  %v8887 = vunpack.c.l.b16 %v8803
  %v8888 = vunpack.c.h.b16 %v8803
  %v8889 = vunpack.c.l.b16 %v8804
  %v8890 = vunpack.c.h.b16 %v8804
  %v8891 = vunpack.c.l.b16 %v8805
  %v8892 = vunpack.c.h.b16 %v8805
  %v8893 = vunpack.c.l.b16 %v8806
  %v8894 = vunpack.c.h.b16 %v8806
  %v8895 = vunpack.c.l.b16 %v8807
  %v8896 = vunpack.c.h.b16 %v8807
  %v8897 = vunpack.c.l.b16 %v8808
  %v8898 = vunpack.c.h.b16 %v8808
  %v8899 = vunpack.c.l.b16 %v8809
  %v8900 = vunpack.c.h.b16 %v8809
  %v8901 = vunpack.c.l.b16 %v8810
  %v8902 = vunpack.c.h.b16 %v8810
  %v8903 = vunpack.c.l.b16 %v8811
  %v8904 = vunpack.c.h.b16 %v8811
  %v8905 = vunpack.c.l.b16 %v8812
  %v8906 = vunpack.c.h.b16 %v8812
  %v8907 = vunpack.c.l.b16 %v8813
  %v8908 = vunpack.c.h.b16 %v8813
  %v8909 = vunpack.c.l.b16 %v8814
  %v8910 = vunpack.c.h.b16 %v8814
  %v8911 = vpack.c.b16 %v8851, %v8847
  %v8912 = vpack.c.b16 %v8852, %v8848
  %v8913 = vpack.c.b16 %v8853, %v8849
  %v8914 = vpack.c.b16 %v8854, %v8850
  %v8915 = vpack.c.b16 %v8859, %v8855
  %v8916 = vpack.c.b16 %v8860, %v8856
  %v8917 = vpack.c.b16 %v8861, %v8857
  %v8918 = vpack.c.b16 %v8862, %v8858
  %v8919 = vpack.c.b16 %v8867, %v8863
  %v8920 = vpack.c.b16 %v8868, %v8864
  %v8921 = vpack.c.b16 %v8869, %v8865
  %v8922 = vpack.c.b16 %v8870, %v8866
  %v8923 = vpack.c.b16 %v8875, %v8871
  %v8924 = vpack.c.b16 %v8876, %v8872
  %v8925 = vpack.c.b16 %v8877, %v8873
  %v8926 = vpack.c.b16 %v8878, %v8874
  %v8927 = vpack.c.b16 %v8883, %v8879
  %v8928 = vpack.c.b16 %v8884, %v8880
  %v8929 = vpack.c.b16 %v8885, %v8881
  %v8930 = vpack.c.b16 %v8886, %v8882
  %v8931 = vpack.c.b16 %v8891, %v8887
  %v8932 = vpack.c.b16 %v8892, %v8888
  %v8933 = vpack.c.b16 %v8893, %v8889
  %v8934 = vpack.c.b16 %v8894, %v8890
  %v8935 = vpack.c.b16 %v8899, %v8895
  %v8936 = vpack.c.b16 %v8900, %v8896
  %v8937 = vpack.c.b16 %v8901, %v8897
  %v8938 = vpack.c.b16 %v8902, %v8898
  %v8939 = vpack.c.b16 %v8907, %v8903
  %v8940 = vpack.c.b16 %v8908, %v8904
  %v8941 = vpack.c.b16 %v8909, %v8905
  %v8942 = vpack.c.b16 %v8910, %v8906
  %8975 = vmatprep.subr.bf16.mxu0 %v8912
  %8976 = vmatpush1.bf16.msra.mxu0 %v8911
  %8977 = vmatprep.subr.bf16.mxu0 %v8916
  %8978 = vmatpush1.bf16.msra.mxu0 %v8915
  %8979 = vmatprep.subr.bf16.mxu0 %v8920
  %8980 = vmatpush1.bf16.msra.mxu0 %v8919
  %8981 = vmatprep.subr.bf16.mxu0 %v8924
  %8982 = vmatpush1.bf16.msra.mxu0 %v8923
  %8983 = vmatprep.subr.bf16.mxu0 %v8928
  %8984 = vmatpush1.bf16.msra.mxu0 %v8927
  %8985 = vmatprep.subr.bf16.mxu0 %v8932
  %8986 = vmatpush1.bf16.msra.mxu0 %v8931
  %8987 = vmatprep.subr.bf16.mxu0 %v8936
  %8988 = vmatpush1.bf16.msra.mxu0 %v8935
  %8989 = vmatprep.subr.bf16.mxu0 %v8940
  %8990 = vmatpush1.bf16.msra.mxu0 %v8939
  %8991 = vmatprep.subr.bf16.mxu0 0
  %8992 = vmatpush1.bf16.msra.mxu0 0
  %8993 = vmatprep.subr.bf16.mxu0 0
  %8994 = vmatpush1.bf16.msra.mxu0 0
  %8995 = vmatprep.subr.bf16.mxu0 0
  %8996 = vmatpush1.bf16.msra.mxu0 0
  %8997 = vmatprep.subr.bf16.mxu0 0
  %8998 = vmatpush1.bf16.msra.mxu0 0
  %8999 = vmatprep.subr.bf16.mxu0 0
  %9000 = vmatpush1.bf16.msra.mxu0 0
  %9001 = vmatprep.subr.bf16.mxu0 0
  %9002 = vmatpush1.bf16.msra.mxu0 0
  %9003 = vmatprep.subr.bf16.mxu0 0
  %9004 = vmatpush1.bf16.msra.mxu0 0
  %9005 = vmatprep.subr.bf16.mxu0 0
  %9006 = vmatpush1.bf16.msra.mxu0 0
  %9007 = vmatprep.mubr.bf16.mxu0 0
  %9008 = vmatmul.mubr.bf16.gmra.mrb[0].mxu0 %v8781
  %v9009 = vpop.f32.mrb[0].mxu0
  %v9010 = vadd.f32 0.0, %v9009
  %v9011 = vpop.f32.mrb[0].mxu0
  %v9012 = vadd.f32 0.0, %v9011
  %v9013 = vpop.f32.mrb[0].mxu0
  %v9014 = vadd.f32 0.0, %v9013
  %v9015 = vpop.f32.mrb[0].mxu0
  %v9016 = vadd.f32 0.0, %v9015
  %9017 = vdwg.mxu0
  %9018 = vmatprep.subr.bf16.mxu0 %v8914
  %9019 = vmatpush1.bf16.msra.mxu0 %v8913
  %9020 = vmatprep.subr.bf16.mxu0 %v8918
  %9021 = vmatpush1.bf16.msra.mxu0 %v8917
  %9022 = vmatprep.subr.bf16.mxu0 %v8922
  %9023 = vmatpush1.bf16.msra.mxu0 %v8921
  %9024 = vmatprep.subr.bf16.mxu0 %v8926
  %9025 = vmatpush1.bf16.msra.mxu0 %v8925
  %9026 = vmatprep.subr.bf16.mxu0 %v8930
  %9027 = vmatpush1.bf16.msra.mxu0 %v8929
  %9028 = vmatprep.subr.bf16.mxu0 %v8934
  %9029 = vmatpush1.bf16.msra.mxu0 %v8933
  %9030 = vmatprep.subr.bf16.mxu0 %v8938
  %9031 = vmatpush1.bf16.msra.mxu0 %v8937
  %9032 = vmatprep.subr.bf16.mxu0 %v8942
  %9033 = vmatpush1.bf16.msra.mxu0 %v8941
  %9034 = vmatprep.subr.bf16.mxu0 0
  %9035 = vmatpush1.bf16.msra.mxu0 0
  %9036 = vmatprep.subr.bf16.mxu0 0
  %9037 = vmatpush1.bf16.msra.mxu0 0
  %9038 = vmatprep.subr.bf16.mxu0 0
  %9039 = vmatpush1.bf16.msra.mxu0 0
  %9040 = vmatprep.subr.bf16.mxu0 0
  %9041 = vmatpush1.bf16.msra.mxu0 0
  %9042 = vmatprep.subr.bf16.mxu0 0
  %9043 = vmatpush1.bf16.msra.mxu0 0
  %9044 = vmatprep.subr.bf16.mxu0 0
  %9045 = vmatpush1.bf16.msra.mxu0 0
  %9046 = vmatprep.subr.bf16.mxu0 0
  %9047 = vmatpush1.bf16.msra.mxu0 0
  %9048 = vmatprep.subr.bf16.mxu0 0
  %9049 = vmatpush1.bf16.msra.mxu0 0
  %9050 = vmatprep.mubr.bf16.mxu0 0
  %9051 = vmatmul.mubr.bf16.gmra.mrb[0].mxu0 %v8781
  %v9052 = vpop.f32.mrb[0].mxu0
  %v9053 = vadd.f32 0.0, %v9052
  %v9054 = vpop.f32.mrb[0].mxu0
  %v9055 = vadd.f32 0.0, %v9054
  %v9056 = vpop.f32.mrb[0].mxu0
  %v9057 = vadd.f32 0.0, %v9056
  %v9058 = vpop.f32.mrb[0].mxu0
  %v9059 = vadd.f32 0.0, %v9058
  %9060 = vdwg.mxu0
  %9061 = vst [vmem:[#allocation2] sm:$0xff] %v9010
  %9062 = vst [vmem:[#allocation2 + $0x8] sm:$0xff] %v9014
  %9063 = vst [vmem:[#allocation2 + $0x10] sm:$0xff] %v9012
  %9064 = vst [vmem:[#allocation2 + $0x18] sm:$0xff] %v9016
  %9065 = vst [vmem:[#allocation2 + $0x20] sm:$0xff] %v9053
  %9066 = vst [vmem:[#allocation2 + $0x28] sm:$0xff] %v9057
  %9067 = vst [vmem:[#allocation2 + $0x30] sm:$0xff] %v9055
  %9068 = vst [vmem:[#allocation2 + $0x38] sm:$0xff] %v9059
  %s9069 = scalar_lea.vmem %s1, 80
  %v9070 = vld [vmem:[%s9069] sm:$0xf]
  %v9071 = vld [vmem:[%s9069 + $0x4] sm:$0xf]
  %v9072 = vld [vmem:[%s9069 + $0x8] sm:$0xf]
  %v9073 = vld [vmem:[%s9069 + $0xc] sm:$0xf]
  %v9074 = vld [vmem:[#allocation2] sm:$0xff]
  %v9075 = vld [vmem:[#allocation2 + $0x8] sm:$0xff]
  %v9076 = vld [vmem:[#allocation2 + $0x10] sm:$0xff]
  %v9077 = vld [vmem:[#allocation2 + $0x18] sm:$0xff]
  %v9078 = vld [vmem:[#allocation2 + $0x20] sm:$0xff]
  %v9079 = vld [vmem:[#allocation2 + $0x28] sm:$0xff]
  %v9080 = vld [vmem:[#allocation2 + $0x30] sm:$0xff]
  %v9081 = vld [vmem:[#allocation2 + $0x38] sm:$0xff]
  %v9086 = vunpack.c.l.b16 %v9070
  %v9087 = vunpack.c.l.b16 %v9071
  %v9088 = vunpack.c.l.b16 %v9072
  %v9089 = vunpack.c.l.b16 %v9073
  %v9090 = vpack.c.b16 %v9087, %v9086
  %v9091 = vpack.c.b16 %v9089, %v9088
  %v9093 = vsel %vm2179, %v9090, 0
  %v9096 = vsel %vm2179, %v9091, 0
  %9098 = vmatprep.subr.mxu0 0.0
  %9099 = vmatpush1.msra.mxu0 %v9074
  %9100 = vmatprep.subr.mxu0 0.0
  %9101 = vmatpush1.msra.mxu0 %v9075
  %9102 = vmatprep.subr.mxu0 0.0
  %9103 = vmatpush1.msra.mxu0 %v9076
  %9104 = vmatprep.subr.mxu0 0.0
  %9105 = vmatpush1.msra.mxu0 %v9077
  %9106 = vmatprep.subr.mxu0 0.0
  %9107 = vmatpush1.msra.mxu0 %v9078
  %9108 = vmatprep.subr.mxu0 0.0
  %9109 = vmatpush1.msra.mxu0 %v9079
  %9110 = vmatprep.subr.mxu0 0.0
  %9111 = vmatpush1.msra.mxu0 %v9080
  %9112 = vmatprep.subr.mxu0 0.0
  %9113 = vmatpush1.msra.mxu0 %v9081
  %9114 = vmatprep.subr.mxu0 0.0
  %9115 = vmatpush1.msra.mxu0 0.0
  %9116 = vmatprep.subr.mxu0 0.0
  %9117 = vmatpush1.msra.mxu0 0.0
  %9118 = vmatprep.subr.mxu0 0.0
  %9119 = vmatpush1.msra.mxu0 0.0
  %9120 = vmatprep.subr.mxu0 0.0
  %9121 = vmatpush1.msra.mxu0 0.0
  %9122 = vmatprep.subr.mxu0 0.0
  %9123 = vmatpush1.msra.mxu0 0.0
  %9124 = vmatprep.subr.mxu0 0.0
  %9125 = vmatpush1.msra.mxu0 0.0
  %9126 = vmatprep.subr.mxu0 0.0
  %9127 = vmatpush1.msra.mxu0 0.0
  %9128 = vmatprep.subr.mxu0 0.0
  %9129 = vmatpush1.msra.mxu0 0.0
  %9130 = vmatprep.subr.mxu0 0.0
  %9131 = vmatpush1.msra.mxu0 0.0
  %9132 = vmatprep.subr.mxu0 0.0
  %9133 = vmatpush1.msra.mxu0 0.0
  %9134 = vmatprep.subr.mxu0 0.0
  %9135 = vmatpush1.msra.mxu0 0.0
  %9136 = vmatprep.subr.mxu0 0.0
  %9137 = vmatpush1.msra.mxu0 0.0
  %9138 = vmatprep.subr.mxu0 0.0
  %9139 = vmatpush1.msra.mxu0 0.0
  %9140 = vmatprep.subr.mxu0 0.0
  %9141 = vmatpush1.msra.mxu0 0.0
  %9142 = vmatprep.subr.mxu0 0.0
  %9143 = vmatpush1.msra.mxu0 0.0
  %9144 = vmatprep.subr.mxu0 0.0
  %9145 = vmatpush1.msra.mxu0 0.0
  %9146 = vmatprep.subr.mxu0 0.0
  %9147 = vmatpush1.msra.mxu0 0.0
  %9148 = vmatprep.subr.mxu0 0.0
  %9149 = vmatpush1.msra.mxu0 0.0
  %9150 = vmatprep.subr.mxu0 0.0
  %9151 = vmatpush1.msra.mxu0 0.0
  %9152 = vmatprep.subr.mxu0 0.0
  %9153 = vmatpush1.msra.mxu0 0.0
  %9154 = vmatprep.subr.mxu0 0.0
  %9155 = vmatpush1.msra.mxu0 0.0
  %9156 = vmatprep.subr.mxu0 0.0
  %9157 = vmatpush1.msra.mxu0 0.0
  %9158 = vmatprep.subr.mxu0 0.0
  %9159 = vmatpush1.msra.mxu0 0.0
  %9160 = vmatprep.subr.mxu0 0.0
  %9161 = vmatpush1.msra.mxu0 0.0
  %9162 = vmatprep.mubr.bf16.mxu0 0
  %9163 = vmatmul.mubr.bf16.gmra.mrb[0].mxu0 %v9093
  %v9164 = vpop.f32.mrb[0].mxu0
  %v9165 = vadd.f32 0.0, %v9164
  %v9166 = vpop.f32.mrb[0].mxu0
  %v9167 = vpop.f32.mrb[0].mxu0
  %v9168 = vadd.f32 0.0, %v9167
  %v9169 = vpop.f32.mrb[0].mxu0
  %9170 = vmatprep.mubr.bf16.mxu0 0
  %9171 = vmatmul.mubr.bf16.gmra.mrb[0].mxu0 %v9096
  %v9172 = vpop.f32.mrb[0].mxu0
  %v9173 = vadd.f32 0.0, %v9172
  %v9174 = vpop.f32.mrb[0].mxu0
  %v9175 = vpop.f32.mrb[0].mxu0
  %v9176 = vadd.f32 0.0, %v9175
  %v9177 = vpop.f32.mrb[0].mxu0
  %9178 = vdwg.mxu0
  %s9179 = scalar_lea.vmem %s3, 640
  %v9180 = vld [vmem:[%s9179] sm:$0xff]
  %v9181 = vld [vmem:[%s9179 + $0x8] sm:$0xff]
  %v9182 = vld [vmem:[%s9179 + $0x10] sm:$0xff]
  %v9183 = vld [vmem:[%s9179 + $0x18] sm:$0xff]
  %v9184 = vld [vmem:[%s9179 + $0x20] sm:$0xff]
  %v9185 = vld [vmem:[%s9179 + $0x28] sm:$0xff]
  %v9186 = vld [vmem:[%s9179 + $0x30] sm:$0xff]
  %v9187 = vld [vmem:[%s9179 + $0x38] sm:$0xff]
  %v9188 = vld [vmem:[%s9179 + $0x40] sm:$0xff]
  %v9189 = vld [vmem:[%s9179 + $0x48] sm:$0xff]
  %v9190 = vld [vmem:[%s9179 + $0x50] sm:$0xff]
  %v9191 = vld [vmem:[%s9179 + $0x58] sm:$0xff]
  %v9192 = vld [vmem:[%s9179 + $0x60] sm:$0xff]
  %v9193 = vld [vmem:[%s9179 + $0x68] sm:$0xff]
  %v9194 = vld [vmem:[%s9179 + $0x70] sm:$0xff]
  %v9195 = vld [vmem:[%s9179 + $0x78] sm:$0xff]
  %9196 = vmatprep.subr.mxu0 0.0
  %v9197 = vand.u32 %v9180, 4294901760
  %9198 = vmatpush1.msra.mxu0 %v9197
  %9199 = vmatprep.subr.mxu0 0.0
  %v9200 = vand.u32 %v9181, 4294901760
  %9201 = vmatpush1.msra.mxu0 %v9200
  %9202 = vmatprep.subr.mxu0 0.0
  %v9203 = vand.u32 %v9182, 4294901760
  %9204 = vmatpush1.msra.mxu0 %v9203
  %9205 = vmatprep.subr.mxu0 0.0
  %v9206 = vand.u32 %v9183, 4294901760
  %9207 = vmatpush1.msra.mxu0 %v9206
  %9208 = vmatprep.subr.mxu0 0.0
  %v9209 = vand.u32 %v9184, 4294901760
  %9210 = vmatpush1.msra.mxu0 %v9209
  %9211 = vmatprep.subr.mxu0 0.0
  %v9212 = vand.u32 %v9185, 4294901760
  %9213 = vmatpush1.msra.mxu0 %v9212
  %9214 = vmatprep.subr.mxu0 0.0
  %v9215 = vand.u32 %v9186, 4294901760
  %9216 = vmatpush1.msra.mxu0 %v9215
  %9217 = vmatprep.subr.mxu0 0.0
  %v9218 = vand.u32 %v9187, 4294901760
  %9219 = vmatpush1.msra.mxu0 %v9218
  %9220 = vmatprep.subr.mxu0 0.0
  %v9221 = vand.u32 %v9188, 4294901760
  %9222 = vmatpush1.msra.mxu0 %v9221
  %9223 = vmatprep.subr.mxu0 0.0
  %v9224 = vand.u32 %v9189, 4294901760
  %9225 = vmatpush1.msra.mxu0 %v9224
  %9226 = vmatprep.subr.mxu0 0.0
  %v9227 = vand.u32 %v9190, 4294901760
  %9228 = vmatpush1.msra.mxu0 %v9227
  %9229 = vmatprep.subr.mxu0 0.0
  %v9230 = vand.u32 %v9191, 4294901760
  %9231 = vmatpush1.msra.mxu0 %v9230
  %9232 = vmatprep.subr.mxu0 0.0
  %v9233 = vand.u32 %v9192, 4294901760
  %9234 = vmatpush1.msra.mxu0 %v9233
  %9235 = vmatprep.subr.mxu0 0.0
  %v9236 = vand.u32 %v9193, 4294901760
  %9237 = vmatpush1.msra.mxu0 %v9236
  %9238 = vmatprep.subr.mxu0 0.0
  %v9239 = vand.u32 %v9194, 4294901760
  %9240 = vmatpush1.msra.mxu0 %v9239
  %9241 = vmatprep.subr.mxu0 0.0
  %v9242 = vand.u32 %v9195, 4294901760
  %9243 = vmatpush1.msra.mxu0 %v9242
  %9244 = vmatprep.subr.mxu0 0.0
  %9245 = vmatpush1.msra.mxu0 0.0
  %9246 = vmatprep.subr.mxu0 0.0
  %9247 = vmatpush1.msra.mxu0 0.0
  %9248 = vmatprep.subr.mxu0 0.0
  %9249 = vmatpush1.msra.mxu0 0.0
  %9250 = vmatprep.subr.mxu0 0.0
  %9251 = vmatpush1.msra.mxu0 0.0
  %9252 = vmatprep.subr.mxu0 0.0
  %9253 = vmatpush1.msra.mxu0 0.0
  %9254 = vmatprep.subr.mxu0 0.0
  %9255 = vmatpush1.msra.mxu0 0.0
  %9256 = vmatprep.subr.mxu0 0.0
  %9257 = vmatpush1.msra.mxu0 0.0
  %9258 = vmatprep.subr.mxu0 0.0
  %9259 = vmatpush1.msra.mxu0 0.0
  %9260 = vmatprep.subr.mxu0 0.0
  %9261 = vmatpush1.msra.mxu0 0.0
  %9262 = vmatprep.subr.mxu0 0.0
  %9263 = vmatpush1.msra.mxu0 0.0
  %9264 = vmatprep.subr.mxu0 0.0
  %9265 = vmatpush1.msra.mxu0 0.0
  %9266 = vmatprep.subr.mxu0 0.0
  %9267 = vmatpush1.msra.mxu0 0.0
  %9268 = vmatprep.subr.mxu0 0.0
  %9269 = vmatpush1.msra.mxu0 0.0
  %9270 = vmatprep.subr.mxu0 0.0
  %9271 = vmatpush1.msra.mxu0 0.0
  %9272 = vmatprep.subr.mxu0 0.0
  %9273 = vmatpush1.msra.mxu0 0.0
  %9274 = vmatprep.subr.mxu0 0.0
  %9275 = vmatpush1.msra.mxu0 0.0
  %9276 = vmatprep.mubr.f32.mxu0 0.0
  %v9277 = vand.u32 %v9165, 4294901760
  %v9278 = vsub.f32 %v9165, %v9277
  %v9279 = vand.u32 %v9278, 4294901760
  %v9280 = vsub.f32 %v9278, %v9279
  %v9281 = vand.u32 %v9280, 4294901760
  %9282 = vmatmul.mubr.f32.gmra.mrb[0].mxu0 %v9281
  %v9283 = vpop.f32.mrb[0].mxu0
  %v9284 = vadd.f32 0.0, %v9283
  %v9285 = vpop.f32.mrb[0].mxu0
  %9286 = vmatprep.mubr.f32.mxu0 0.0
  %v9287 = vand.u32 %v9168, 4294901760
  %v9288 = vsub.f32 %v9168, %v9287
  %v9289 = vand.u32 %v9288, 4294901760
  %v9290 = vsub.f32 %v9288, %v9289
  %v9291 = vand.u32 %v9290, 4294901760
  %9292 = vmatmul.mubr.f32.gmra.mrb[0].mxu0 %v9291
  %v9293 = vpop.f32.mrb[0].mxu0
  %v9294 = vadd.f32 0.0, %v9293
  %v9295 = vpop.f32.mrb[0].mxu0
  %9296 = vmatprep.mubr.f32.mxu0 0.0
  %v9297 = vand.u32 %v9173, 4294901760
  %v9298 = vsub.f32 %v9173, %v9297
  %v9299 = vand.u32 %v9298, 4294901760
  %v9300 = vsub.f32 %v9298, %v9299
  %v9301 = vand.u32 %v9300, 4294901760
  %9302 = vmatmul.mubr.f32.gmra.mrb[0].mxu0 %v9301
  %v9303 = vpop.f32.mrb[0].mxu0
  %v9304 = vadd.f32 0.0, %v9303
  %v9305 = vpop.f32.mrb[0].mxu0
  %9306 = vmatprep.mubr.f32.mxu0 0.0
  %v9307 = vand.u32 %v9176, 4294901760
  %v9308 = vsub.f32 %v9176, %v9307
  %v9309 = vand.u32 %v9308, 4294901760
  %v9310 = vsub.f32 %v9308, %v9309
  %v9311 = vand.u32 %v9310, 4294901760
  %9312 = vmatmul.mubr.f32.gmra.mrb[0].mxu0 %v9311
  %v9313 = vpop.f32.mrb[0].mxu0
  %v9314 = vadd.f32 0.0, %v9313
  %v9315 = vpop.f32.mrb[0].mxu0
  %9316 = vdwg.mxu0
  %9317 = vmatprep.subr.mxu0 0.0
  %v9318 = vand.u32 %v9180, 4294901760
  %v9319 = vsub.f32 %v9180, %v9318
  %v9320 = vand.u32 %v9319, 4294901760
  %v9321 = vsub.f32 %v9319, %v9320
  %v9322 = vand.u32 %v9321, 4294901760
  %9323 = vmatpush1.msra.mxu0 %v9322
  %9324 = vmatprep.subr.mxu0 0.0
  %v9325 = vand.u32 %v9181, 4294901760
  %v9326 = vsub.f32 %v9181, %v9325
  %v9327 = vand.u32 %v9326, 4294901760
  %v9328 = vsub.f32 %v9326, %v9327
  %v9329 = vand.u32 %v9328, 4294901760
  %9330 = vmatpush1.msra.mxu0 %v9329
  %9331 = vmatprep.subr.mxu0 0.0
  %v9332 = vand.u32 %v9182, 4294901760
  %v9333 = vsub.f32 %v9182, %v9332
  %v9334 = vand.u32 %v9333, 4294901760
  %v9335 = vsub.f32 %v9333, %v9334
  %v9336 = vand.u32 %v9335, 4294901760
  %9337 = vmatpush1.msra.mxu0 %v9336
  %9338 = vmatprep.subr.mxu0 0.0
  %v9339 = vand.u32 %v9183, 4294901760
  %v9340 = vsub.f32 %v9183, %v9339
  %v9341 = vand.u32 %v9340, 4294901760
  %v9342 = vsub.f32 %v9340, %v9341
  %v9343 = vand.u32 %v9342, 4294901760
  %9344 = vmatpush1.msra.mxu0 %v9343
  %9345 = vmatprep.subr.mxu0 0.0
  %v9346 = vand.u32 %v9184, 4294901760
  %v9347 = vsub.f32 %v9184, %v9346
  %v9348 = vand.u32 %v9347, 4294901760
  %v9349 = vsub.f32 %v9347, %v9348
  %v9350 = vand.u32 %v9349, 4294901760
  %9351 = vmatpush1.msra.mxu0 %v9350
  %9352 = vmatprep.subr.mxu0 0.0
  %v9353 = vand.u32 %v9185, 4294901760
  %v9354 = vsub.f32 %v9185, %v9353
  %v9355 = vand.u32 %v9354, 4294901760
  %v9356 = vsub.f32 %v9354, %v9355
  %v9357 = vand.u32 %v9356, 4294901760
  %9358 = vmatpush1.msra.mxu0 %v9357
  %9359 = vmatprep.subr.mxu0 0.0
  %v9360 = vand.u32 %v9186, 4294901760
  %v9361 = vsub.f32 %v9186, %v9360
  %v9362 = vand.u32 %v9361, 4294901760
  %v9363 = vsub.f32 %v9361, %v9362
  %v9364 = vand.u32 %v9363, 4294901760
  %9365 = vmatpush1.msra.mxu0 %v9364
  %9366 = vmatprep.subr.mxu0 0.0
  %v9367 = vand.u32 %v9187, 4294901760
  %v9368 = vsub.f32 %v9187, %v9367
  %v9369 = vand.u32 %v9368, 4294901760
  %v9370 = vsub.f32 %v9368, %v9369
  %v9371 = vand.u32 %v9370, 4294901760
  %9372 = vmatpush1.msra.mxu0 %v9371
  %9373 = vmatprep.subr.mxu0 0.0
  %v9374 = vand.u32 %v9188, 4294901760
  %v9375 = vsub.f32 %v9188, %v9374
  %v9376 = vand.u32 %v9375, 4294901760
  %v9377 = vsub.f32 %v9375, %v9376
  %v9378 = vand.u32 %v9377, 4294901760
  %9379 = vmatpush1.msra.mxu0 %v9378
  %9380 = vmatprep.subr.mxu0 0.0
  %v9381 = vand.u32 %v9189, 4294901760
  %v9382 = vsub.f32 %v9189, %v9381
  %v9383 = vand.u32 %v9382, 4294901760
  %v9384 = vsub.f32 %v9382, %v9383
  %v9385 = vand.u32 %v9384, 4294901760
  %9386 = vmatpush1.msra.mxu0 %v9385
  %9387 = vmatprep.subr.mxu0 0.0
  %v9388 = vand.u32 %v9190, 4294901760
  %v9389 = vsub.f32 %v9190, %v9388
  %v9390 = vand.u32 %v9389, 4294901760
  %v9391 = vsub.f32 %v9389, %v9390
  %v9392 = vand.u32 %v9391, 4294901760
  %9393 = vmatpush1.msra.mxu0 %v9392
  %9394 = vmatprep.subr.mxu0 0.0
  %v9395 = vand.u32 %v9191, 4294901760
  %v9396 = vsub.f32 %v9191, %v9395
  %v9397 = vand.u32 %v9396, 4294901760
  %v9398 = vsub.f32 %v9396, %v9397
  %v9399 = vand.u32 %v9398, 4294901760
  %9400 = vmatpush1.msra.mxu0 %v9399
  %9401 = vmatprep.subr.mxu0 0.0
  %v9402 = vand.u32 %v9192, 4294901760
  %v9403 = vsub.f32 %v9192, %v9402
  %v9404 = vand.u32 %v9403, 4294901760
  %v9405 = vsub.f32 %v9403, %v9404
  %v9406 = vand.u32 %v9405, 4294901760
  %9407 = vmatpush1.msra.mxu0 %v9406
  %9408 = vmatprep.subr.mxu0 0.0
  %v9409 = vand.u32 %v9193, 4294901760
  %v9410 = vsub.f32 %v9193, %v9409
  %v9411 = vand.u32 %v9410, 4294901760
  %v9412 = vsub.f32 %v9410, %v9411
  %v9413 = vand.u32 %v9412, 4294901760
  %9414 = vmatpush1.msra.mxu0 %v9413
  %9415 = vmatprep.subr.mxu0 0.0
  %v9416 = vand.u32 %v9194, 4294901760
  %v9417 = vsub.f32 %v9194, %v9416
  %v9418 = vand.u32 %v9417, 4294901760
  %v9419 = vsub.f32 %v9417, %v9418
  %v9420 = vand.u32 %v9419, 4294901760
  %9421 = vmatpush1.msra.mxu0 %v9420
  %9422 = vmatprep.subr.mxu0 0.0
  %v9423 = vand.u32 %v9195, 4294901760
  %v9424 = vsub.f32 %v9195, %v9423
  %v9425 = vand.u32 %v9424, 4294901760
  %v9426 = vsub.f32 %v9424, %v9425
  %v9427 = vand.u32 %v9426, 4294901760
  %9428 = vmatpush1.msra.mxu0 %v9427
  %9429 = vmatprep.subr.mxu0 0.0
  %9430 = vmatpush1.msra.mxu0 0.0
  %9431 = vmatprep.subr.mxu0 0.0
  %9432 = vmatpush1.msra.mxu0 0.0
  %9433 = vmatprep.subr.mxu0 0.0
  %9434 = vmatpush1.msra.mxu0 0.0
  %9435 = vmatprep.subr.mxu0 0.0
  %9436 = vmatpush1.msra.mxu0 0.0
  %9437 = vmatprep.subr.mxu0 0.0
  %9438 = vmatpush1.msra.mxu0 0.0
  %9439 = vmatprep.subr.mxu0 0.0
  %9440 = vmatpush1.msra.mxu0 0.0
  %9441 = vmatprep.subr.mxu0 0.0
  %9442 = vmatpush1.msra.mxu0 0.0
  %9443 = vmatprep.subr.mxu0 0.0
  %9444 = vmatpush1.msra.mxu0 0.0
  %9445 = vmatprep.subr.mxu0 0.0
  %9446 = vmatpush1.msra.mxu0 0.0
  %9447 = vmatprep.subr.mxu0 0.0
  %9448 = vmatpush1.msra.mxu0 0.0
  %9449 = vmatprep.subr.mxu0 0.0
  %9450 = vmatpush1.msra.mxu0 0.0
  %9451 = vmatprep.subr.mxu0 0.0
  %9452 = vmatpush1.msra.mxu0 0.0
  %9453 = vmatprep.subr.mxu0 0.0
  %9454 = vmatpush1.msra.mxu0 0.0
  %9455 = vmatprep.subr.mxu0 0.0
  %9456 = vmatpush1.msra.mxu0 0.0
  %9457 = vmatprep.subr.mxu0 0.0
  %9458 = vmatpush1.msra.mxu0 0.0
  %9459 = vmatprep.subr.mxu0 0.0
  %9460 = vmatpush1.msra.mxu0 0.0
  %9461 = vmatprep.mubr.f32.mxu0 0.0
  %v9462 = vand.u32 %v9165, 4294901760
  %9463 = vmatmul.mubr.f32.gmra.mrb[0].mxu0 %v9462
  %v9464 = vpop.f32.mrb[0].mxu0
  %v9465 = vadd.f32 %v9284, %v9464
  %v9466 = vpop.f32.mrb[0].mxu0
  %9467 = vmatprep.mubr.f32.mxu0 0.0
  %v9468 = vand.u32 %v9168, 4294901760
  %9469 = vmatmul.mubr.f32.gmra.mrb[0].mxu0 %v9468
  %v9470 = vpop.f32.mrb[0].mxu0
  %v9471 = vadd.f32 %v9294, %v9470
  %v9472 = vpop.f32.mrb[0].mxu0
  %9473 = vmatprep.mubr.f32.mxu0 0.0
  %v9474 = vand.u32 %v9173, 4294901760
  %9475 = vmatmul.mubr.f32.gmra.mrb[0].mxu0 %v9474
  %v9476 = vpop.f32.mrb[0].mxu0
  %v9477 = vadd.f32 %v9304, %v9476
  %v9478 = vpop.f32.mrb[0].mxu0
  %9479 = vmatprep.mubr.f32.mxu0 0.0
  %v9480 = vand.u32 %v9176, 4294901760
  %9481 = vmatmul.mubr.f32.gmra.mrb[0].mxu0 %v9480
  %v9482 = vpop.f32.mrb[0].mxu0
  %v9483 = vadd.f32 %v9314, %v9482
  %v9484 = vpop.f32.mrb[0].mxu0
  %9485 = vdwg.mxu0
  %9486 = vmatprep.subr.mxu0 0.0
  %v9487 = vand.u32 %v9180, 4294901760
  %v9488 = vsub.f32 %v9180, %v9487
  %9489 = vmatpush1.msra.mxu0 %v9488
  %9490 = vmatprep.subr.mxu0 0.0
  %v9491 = vand.u32 %v9181, 4294901760
  %v9492 = vsub.f32 %v9181, %v9491
  %9493 = vmatpush1.msra.mxu0 %v9492
  %9494 = vmatprep.subr.mxu0 0.0
  %v9495 = vand.u32 %v9182, 4294901760
  %v9496 = vsub.f32 %v9182, %v9495
  %9497 = vmatpush1.msra.mxu0 %v9496
  %9498 = vmatprep.subr.mxu0 0.0
  %v9499 = vand.u32 %v9183, 4294901760
  %v9500 = vsub.f32 %v9183, %v9499
  %9501 = vmatpush1.msra.mxu0 %v9500
  %9502 = vmatprep.subr.mxu0 0.0
  %v9503 = vand.u32 %v9184, 4294901760
  %v9504 = vsub.f32 %v9184, %v9503
  %9505 = vmatpush1.msra.mxu0 %v9504
  %9506 = vmatprep.subr.mxu0 0.0
  %v9507 = vand.u32 %v9185, 4294901760
  %v9508 = vsub.f32 %v9185, %v9507
  %9509 = vmatpush1.msra.mxu0 %v9508
  %9510 = vmatprep.subr.mxu0 0.0
  %v9511 = vand.u32 %v9186, 4294901760
  %v9512 = vsub.f32 %v9186, %v9511
  %9513 = vmatpush1.msra.mxu0 %v9512
  %9514 = vmatprep.subr.mxu0 0.0
  %v9515 = vand.u32 %v9187, 4294901760
  %v9516 = vsub.f32 %v9187, %v9515
  %9517 = vmatpush1.msra.mxu0 %v9516
  %9518 = vmatprep.subr.mxu0 0.0
  %v9519 = vand.u32 %v9188, 4294901760
  %v9520 = vsub.f32 %v9188, %v9519
  %9521 = vmatpush1.msra.mxu0 %v9520
  %9522 = vmatprep.subr.mxu0 0.0
  %v9523 = vand.u32 %v9189, 4294901760
  %v9524 = vsub.f32 %v9189, %v9523
  %9525 = vmatpush1.msra.mxu0 %v9524
  %9526 = vmatprep.subr.mxu0 0.0
  %v9527 = vand.u32 %v9190, 4294901760
  %v9528 = vsub.f32 %v9190, %v9527
  %9529 = vmatpush1.msra.mxu0 %v9528
  %9530 = vmatprep.subr.mxu0 0.0
  %v9531 = vand.u32 %v9191, 4294901760
  %v9532 = vsub.f32 %v9191, %v9531
  %9533 = vmatpush1.msra.mxu0 %v9532
  %9534 = vmatprep.subr.mxu0 0.0
  %v9535 = vand.u32 %v9192, 4294901760
  %v9536 = vsub.f32 %v9192, %v9535
  %9537 = vmatpush1.msra.mxu0 %v9536
  %9538 = vmatprep.subr.mxu0 0.0
  %v9539 = vand.u32 %v9193, 4294901760
  %v9540 = vsub.f32 %v9193, %v9539
  %9541 = vmatpush1.msra.mxu0 %v9540
  %9542 = vmatprep.subr.mxu0 0.0
  %v9543 = vand.u32 %v9194, 4294901760
  %v9544 = vsub.f32 %v9194, %v9543
  %9545 = vmatpush1.msra.mxu0 %v9544
  %9546 = vmatprep.subr.mxu0 0.0
  %v9547 = vand.u32 %v9195, 4294901760
  %v9548 = vsub.f32 %v9195, %v9547
  %9549 = vmatpush1.msra.mxu0 %v9548
  %9550 = vmatprep.subr.mxu0 0.0
  %9551 = vmatpush1.msra.mxu0 0.0
  %9552 = vmatprep.subr.mxu0 0.0
  %9553 = vmatpush1.msra.mxu0 0.0
  %9554 = vmatprep.subr.mxu0 0.0
  %9555 = vmatpush1.msra.mxu0 0.0
  %9556 = vmatprep.subr.mxu0 0.0
  %9557 = vmatpush1.msra.mxu0 0.0
  %9558 = vmatprep.subr.mxu0 0.0
  %9559 = vmatpush1.msra.mxu0 0.0
  %9560 = vmatprep.subr.mxu0 0.0
  %9561 = vmatpush1.msra.mxu0 0.0
  %9562 = vmatprep.subr.mxu0 0.0
  %9563 = vmatpush1.msra.mxu0 0.0
  %9564 = vmatprep.subr.mxu0 0.0
  %9565 = vmatpush1.msra.mxu0 0.0
  %9566 = vmatprep.subr.mxu0 0.0
  %9567 = vmatpush1.msra.mxu0 0.0
  %9568 = vmatprep.subr.mxu0 0.0
  %9569 = vmatpush1.msra.mxu0 0.0
  %9570 = vmatprep.subr.mxu0 0.0
  %9571 = vmatpush1.msra.mxu0 0.0
  %9572 = vmatprep.subr.mxu0 0.0
  %9573 = vmatpush1.msra.mxu0 0.0
  %9574 = vmatprep.subr.mxu0 0.0
  %9575 = vmatpush1.msra.mxu0 0.0
  %9576 = vmatprep.subr.mxu0 0.0
  %9577 = vmatpush1.msra.mxu0 0.0
  %9578 = vmatprep.subr.mxu0 0.0
  %9579 = vmatpush1.msra.mxu0 0.0
  %9580 = vmatprep.subr.mxu0 0.0
  %9581 = vmatpush1.msra.mxu0 0.0
  %9582 = vmatprep.mubr.f32.mxu0 0.0
  %v9583 = vand.u32 %v9165, 4294901760
  %v9584 = vsub.f32 %v9165, %v9583
  %9585 = vmatmul.mubr.f32.gmra.mrb[0].mxu0 %v9584
  %v9586 = vpop.f32.mrb[0].mxu0
  %v9587 = vadd.f32 %v9465, %v9586
  %v9588 = vpop.f32.mrb[0].mxu0
  %9589 = vmatprep.mubr.f32.mxu0 0.0
  %v9590 = vand.u32 %v9168, 4294901760
  %v9591 = vsub.f32 %v9168, %v9590
  %9592 = vmatmul.mubr.f32.gmra.mrb[0].mxu0 %v9591
  %v9593 = vpop.f32.mrb[0].mxu0
  %v9594 = vadd.f32 %v9471, %v9593
  %v9595 = vpop.f32.mrb[0].mxu0
  %9596 = vmatprep.mubr.f32.mxu0 0.0
  %v9597 = vand.u32 %v9173, 4294901760
  %v9598 = vsub.f32 %v9173, %v9597
  %9599 = vmatmul.mubr.f32.gmra.mrb[0].mxu0 %v9598
  %v9600 = vpop.f32.mrb[0].mxu0
  %v9601 = vadd.f32 %v9477, %v9600
  %v9602 = vpop.f32.mrb[0].mxu0
  %9603 = vmatprep.mubr.f32.mxu0 0.0
  %v9604 = vand.u32 %v9176, 4294901760
  %v9605 = vsub.f32 %v9176, %v9604
  %9606 = vmatmul.mubr.f32.gmra.mrb[0].mxu0 %v9605
  %v9607 = vpop.f32.mrb[0].mxu0
  %v9608 = vadd.f32 %v9483, %v9607
  %v9609 = vpop.f32.mrb[0].mxu0
  %9610 = vdwg.mxu0
  %9611 = vmatprep.subr.mxu0 0.0
  %v9612 = vand.u32 %v9180, 4294901760
  %9613 = vmatpush1.msra.mxu0 %v9612
  %9614 = vmatprep.subr.mxu0 0.0
  %v9615 = vand.u32 %v9181, 4294901760
  %9616 = vmatpush1.msra.mxu0 %v9615
  %9617 = vmatprep.subr.mxu0 0.0
  %v9618 = vand.u32 %v9182, 4294901760
  %9619 = vmatpush1.msra.mxu0 %v9618
  %9620 = vmatprep.subr.mxu0 0.0
  %v9621 = vand.u32 %v9183, 4294901760
  %9622 = vmatpush1.msra.mxu0 %v9621
  %9623 = vmatprep.subr.mxu0 0.0
  %v9624 = vand.u32 %v9184, 4294901760
  %9625 = vmatpush1.msra.mxu0 %v9624
  %9626 = vmatprep.subr.mxu0 0.0
  %v9627 = vand.u32 %v9185, 4294901760
  %9628 = vmatpush1.msra.mxu0 %v9627
  %9629 = vmatprep.subr.mxu0 0.0
  %v9630 = vand.u32 %v9186, 4294901760
  %9631 = vmatpush1.msra.mxu0 %v9630
  %9632 = vmatprep.subr.mxu0 0.0
  %v9633 = vand.u32 %v9187, 4294901760
  %9634 = vmatpush1.msra.mxu0 %v9633
  %9635 = vmatprep.subr.mxu0 0.0
  %v9636 = vand.u32 %v9188, 4294901760
  %9637 = vmatpush1.msra.mxu0 %v9636
  %9638 = vmatprep.subr.mxu0 0.0
  %v9639 = vand.u32 %v9189, 4294901760
  %9640 = vmatpush1.msra.mxu0 %v9639
  %9641 = vmatprep.subr.mxu0 0.0
  %v9642 = vand.u32 %v9190, 4294901760
  %9643 = vmatpush1.msra.mxu0 %v9642
  %9644 = vmatprep.subr.mxu0 0.0
  %v9645 = vand.u32 %v9191, 4294901760
  %9646 = vmatpush1.msra.mxu0 %v9645
  %9647 = vmatprep.subr.mxu0 0.0
  %v9648 = vand.u32 %v9192, 4294901760
  %9649 = vmatpush1.msra.mxu0 %v9648
  %9650 = vmatprep.subr.mxu0 0.0
  %v9651 = vand.u32 %v9193, 4294901760
  %9652 = vmatpush1.msra.mxu0 %v9651
  %9653 = vmatprep.subr.mxu0 0.0
  %v9654 = vand.u32 %v9194, 4294901760
  %9655 = vmatpush1.msra.mxu0 %v9654
  %9656 = vmatprep.subr.mxu0 0.0
  %v9657 = vand.u32 %v9195, 4294901760
  %9658 = vmatpush1.msra.mxu0 %v9657
  %9659 = vmatprep.subr.mxu0 0.0
  %9660 = vmatpush1.msra.mxu0 0.0
  %9661 = vmatprep.subr.mxu0 0.0
  %9662 = vmatpush1.msra.mxu0 0.0
  %9663 = vmatprep.subr.mxu0 0.0
  %9664 = vmatpush1.msra.mxu0 0.0
  %9665 = vmatprep.subr.mxu0 0.0
  %9666 = vmatpush1.msra.mxu0 0.0
  %9667 = vmatprep.subr.mxu0 0.0
  %9668 = vmatpush1.msra.mxu0 0.0
  %9669 = vmatprep.subr.mxu0 0.0
  %9670 = vmatpush1.msra.mxu0 0.0
  %9671 = vmatprep.subr.mxu0 0.0
  %9672 = vmatpush1.msra.mxu0 0.0
  %9673 = vmatprep.subr.mxu0 0.0
  %9674 = vmatpush1.msra.mxu0 0.0
  %9675 = vmatprep.subr.mxu0 0.0
  %9676 = vmatpush1.msra.mxu0 0.0
  %9677 = vmatprep.subr.mxu0 0.0
  %9678 = vmatpush1.msra.mxu0 0.0
  %9679 = vmatprep.subr.mxu0 0.0
  %9680 = vmatpush1.msra.mxu0 0.0
  %9681 = vmatprep.subr.mxu0 0.0
  %9682 = vmatpush1.msra.mxu0 0.0
  %9683 = vmatprep.subr.mxu0 0.0
  %9684 = vmatpush1.msra.mxu0 0.0
  %9685 = vmatprep.subr.mxu0 0.0
  %9686 = vmatpush1.msra.mxu0 0.0
  %9687 = vmatprep.subr.mxu0 0.0
  %9688 = vmatpush1.msra.mxu0 0.0
  %9689 = vmatprep.subr.mxu0 0.0
  %9690 = vmatpush1.msra.mxu0 0.0
  %9691 = vmatprep.mubr.f32.mxu0 0.0
  %v9692 = vand.u32 %v9165, 4294901760
  %v9693 = vsub.f32 %v9165, %v9692
  %v9694 = vand.u32 %v9693, 4294901760
  %9695 = vmatmul.mubr.f32.gmra.mrb[0].mxu0 %v9694
  %v9696 = vpop.f32.mrb[0].mxu0
  %v9697 = vadd.f32 %v9587, %v9696
  %v9698 = vpop.f32.mrb[0].mxu0
  %9699 = vmatprep.mubr.f32.mxu0 0.0
  %v9700 = vand.u32 %v9168, 4294901760
  %v9701 = vsub.f32 %v9168, %v9700
  %v9702 = vand.u32 %v9701, 4294901760
  %9703 = vmatmul.mubr.f32.gmra.mrb[0].mxu0 %v9702
  %v9704 = vpop.f32.mrb[0].mxu0
  %v9705 = vadd.f32 %v9594, %v9704
  %v9706 = vpop.f32.mrb[0].mxu0
  %9707 = vmatprep.mubr.f32.mxu0 0.0
  %v9708 = vand.u32 %v9173, 4294901760
  %v9709 = vsub.f32 %v9173, %v9708
  %v9710 = vand.u32 %v9709, 4294901760
  %9711 = vmatmul.mubr.f32.gmra.mrb[0].mxu0 %v9710
  %v9712 = vpop.f32.mrb[0].mxu0
  %v9713 = vadd.f32 %v9601, %v9712
  %v9714 = vpop.f32.mrb[0].mxu0
  %9715 = vmatprep.mubr.f32.mxu0 0.0
  %v9716 = vand.u32 %v9176, 4294901760
  %v9717 = vsub.f32 %v9176, %v9716
  %v9718 = vand.u32 %v9717, 4294901760
  %9719 = vmatmul.mubr.f32.gmra.mrb[0].mxu0 %v9718
  %v9720 = vpop.f32.mrb[0].mxu0
  %v9721 = vadd.f32 %v9608, %v9720
  %v9722 = vpop.f32.mrb[0].mxu0
  %9723 = vdwg.mxu0
  %9724 = vmatprep.subr.mxu0 0.0
  %v9725 = vand.u32 %v9180, 4294901760
  %v9726 = vsub.f32 %v9180, %v9725
  %v9727 = vand.u32 %v9726, 4294901760
  %9728 = vmatpush1.msra.mxu0 %v9727
  %9729 = vmatprep.subr.mxu0 0.0
  %v9730 = vand.u32 %v9181, 4294901760
  %v9731 = vsub.f32 %v9181, %v9730
  %v9732 = vand.u32 %v9731, 4294901760
  %9733 = vmatpush1.msra.mxu0 %v9732
  %9734 = vmatprep.subr.mxu0 0.0
  %v9735 = vand.u32 %v9182, 4294901760
  %v9736 = vsub.f32 %v9182, %v9735
  %v9737 = vand.u32 %v9736, 4294901760
  %9738 = vmatpush1.msra.mxu0 %v9737
  %9739 = vmatprep.subr.mxu0 0.0
  %v9740 = vand.u32 %v9183, 4294901760
  %v9741 = vsub.f32 %v9183, %v9740
  %v9742 = vand.u32 %v9741, 4294901760
  %9743 = vmatpush1.msra.mxu0 %v9742
  %9744 = vmatprep.subr.mxu0 0.0
  %v9745 = vand.u32 %v9184, 4294901760
  %v9746 = vsub.f32 %v9184, %v9745
  %v9747 = vand.u32 %v9746, 4294901760
  %9748 = vmatpush1.msra.mxu0 %v9747
  %9749 = vmatprep.subr.mxu0 0.0
  %v9750 = vand.u32 %v9185, 4294901760
  %v9751 = vsub.f32 %v9185, %v9750
  %v9752 = vand.u32 %v9751, 4294901760
  %9753 = vmatpush1.msra.mxu0 %v9752
  %9754 = vmatprep.subr.mxu0 0.0
  %v9755 = vand.u32 %v9186, 4294901760
  %v9756 = vsub.f32 %v9186, %v9755
  %v9757 = vand.u32 %v9756, 4294901760
  %9758 = vmatpush1.msra.mxu0 %v9757
  %9759 = vmatprep.subr.mxu0 0.0
  %v9760 = vand.u32 %v9187, 4294901760
  %v9761 = vsub.f32 %v9187, %v9760
  %v9762 = vand.u32 %v9761, 4294901760
  %9763 = vmatpush1.msra.mxu0 %v9762
  %9764 = vmatprep.subr.mxu0 0.0
  %v9765 = vand.u32 %v9188, 4294901760
  %v9766 = vsub.f32 %v9188, %v9765
  %v9767 = vand.u32 %v9766, 4294901760
  %9768 = vmatpush1.msra.mxu0 %v9767
  %9769 = vmatprep.subr.mxu0 0.0
  %v9770 = vand.u32 %v9189, 4294901760
  %v9771 = vsub.f32 %v9189, %v9770
  %v9772 = vand.u32 %v9771, 4294901760
  %9773 = vmatpush1.msra.mxu0 %v9772
  %9774 = vmatprep.subr.mxu0 0.0
  %v9775 = vand.u32 %v9190, 4294901760
  %v9776 = vsub.f32 %v9190, %v9775
  %v9777 = vand.u32 %v9776, 4294901760
  %9778 = vmatpush1.msra.mxu0 %v9777
  %9779 = vmatprep.subr.mxu0 0.0
  %v9780 = vand.u32 %v9191, 4294901760
  %v9781 = vsub.f32 %v9191, %v9780
  %v9782 = vand.u32 %v9781, 4294901760
  %9783 = vmatpush1.msra.mxu0 %v9782
  %9784 = vmatprep.subr.mxu0 0.0
  %v9785 = vand.u32 %v9192, 4294901760
  %v9786 = vsub.f32 %v9192, %v9785
  %v9787 = vand.u32 %v9786, 4294901760
  %9788 = vmatpush1.msra.mxu0 %v9787
  %9789 = vmatprep.subr.mxu0 0.0
  %v9790 = vand.u32 %v9193, 4294901760
  %v9791 = vsub.f32 %v9193, %v9790
  %v9792 = vand.u32 %v9791, 4294901760
  %9793 = vmatpush1.msra.mxu0 %v9792
  %9794 = vmatprep.subr.mxu0 0.0
  %v9795 = vand.u32 %v9194, 4294901760
  %v9796 = vsub.f32 %v9194, %v9795
  %v9797 = vand.u32 %v9796, 4294901760
  %9798 = vmatpush1.msra.mxu0 %v9797
  %9799 = vmatprep.subr.mxu0 0.0
  %v9800 = vand.u32 %v9195, 4294901760
  %v9801 = vsub.f32 %v9195, %v9800
  %v9802 = vand.u32 %v9801, 4294901760
  %9803 = vmatpush1.msra.mxu0 %v9802
  %9804 = vmatprep.subr.mxu0 0.0
  %9805 = vmatpush1.msra.mxu0 0.0
  %9806 = vmatprep.subr.mxu0 0.0
  %9807 = vmatpush1.msra.mxu0 0.0
  %9808 = vmatprep.subr.mxu0 0.0
  %9809 = vmatpush1.msra.mxu0 0.0
  %9810 = vmatprep.subr.mxu0 0.0
  %9811 = vmatpush1.msra.mxu0 0.0
  %9812 = vmatprep.subr.mxu0 0.0
  %9813 = vmatpush1.msra.mxu0 0.0
  %9814 = vmatprep.subr.mxu0 0.0
  %9815 = vmatpush1.msra.mxu0 0.0
  %9816 = vmatprep.subr.mxu0 0.0
  %9817 = vmatpush1.msra.mxu0 0.0
  %9818 = vmatprep.subr.mxu0 0.0
  %9819 = vmatpush1.msra.mxu0 0.0
  %9820 = vmatprep.subr.mxu0 0.0
  %9821 = vmatpush1.msra.mxu0 0.0
  %9822 = vmatprep.subr.mxu0 0.0
  %9823 = vmatpush1.msra.mxu0 0.0
  %9824 = vmatprep.subr.mxu0 0.0
  %9825 = vmatpush1.msra.mxu0 0.0
  %9826 = vmatprep.subr.mxu0 0.0
  %9827 = vmatpush1.msra.mxu0 0.0
  %9828 = vmatprep.subr.mxu0 0.0
  %9829 = vmatpush1.msra.mxu0 0.0
  %9830 = vmatprep.subr.mxu0 0.0
  %9831 = vmatpush1.msra.mxu0 0.0
  %9832 = vmatprep.subr.mxu0 0.0
  %9833 = vmatpush1.msra.mxu0 0.0
  %9834 = vmatprep.subr.mxu0 0.0
  %9835 = vmatpush1.msra.mxu0 0.0
  %9836 = vmatprep.mubr.f32.mxu0 0.0
  %v9837 = vand.u32 %v9165, 4294901760
  %9838 = vmatmul.mubr.f32.gmra.mrb[0].mxu0 %v9837
  %v9839 = vpop.f32.mrb[0].mxu0
  %v9840 = vadd.f32 %v9697, %v9839
  %v9841 = vpop.f32.mrb[0].mxu0
  %9842 = vmatprep.mubr.f32.mxu0 0.0
  %v9843 = vand.u32 %v9168, 4294901760
  %9844 = vmatmul.mubr.f32.gmra.mrb[0].mxu0 %v9843
  %v9845 = vpop.f32.mrb[0].mxu0
  %v9846 = vadd.f32 %v9705, %v9845
  %v9847 = vpop.f32.mrb[0].mxu0
  %9848 = vmatprep.mubr.f32.mxu0 0.0
  %v9849 = vand.u32 %v9173, 4294901760
  %9850 = vmatmul.mubr.f32.gmra.mrb[0].mxu0 %v9849
  %v9851 = vpop.f32.mrb[0].mxu0
  %v9852 = vadd.f32 %v9713, %v9851
  %v9853 = vpop.f32.mrb[0].mxu0
  %9854 = vmatprep.mubr.f32.mxu0 0.0
  %v9855 = vand.u32 %v9176, 4294901760
  %9856 = vmatmul.mubr.f32.gmra.mrb[0].mxu0 %v9855
  %v9857 = vpop.f32.mrb[0].mxu0
  %v9858 = vadd.f32 %v9721, %v9857
  %v9859 = vpop.f32.mrb[0].mxu0
  %9860 = vdwg.mxu0
  %9861 = vmatprep.subr.mxu0 0.0
  %v9862 = vand.u32 %v9180, 4294901760
  %9863 = vmatpush1.msra.mxu0 %v9862
  %9864 = vmatprep.subr.mxu0 0.0
  %v9865 = vand.u32 %v9181, 4294901760
  %9866 = vmatpush1.msra.mxu0 %v9865
  %9867 = vmatprep.subr.mxu0 0.0
  %v9868 = vand.u32 %v9182, 4294901760
  %9869 = vmatpush1.msra.mxu0 %v9868
  %9870 = vmatprep.subr.mxu0 0.0
  %v9871 = vand.u32 %v9183, 4294901760
  %9872 = vmatpush1.msra.mxu0 %v9871
  %9873 = vmatprep.subr.mxu0 0.0
  %v9874 = vand.u32 %v9184, 4294901760
  %9875 = vmatpush1.msra.mxu0 %v9874
  %9876 = vmatprep.subr.mxu0 0.0
  %v9877 = vand.u32 %v9185, 4294901760
  %9878 = vmatpush1.msra.mxu0 %v9877
  %9879 = vmatprep.subr.mxu0 0.0
  %v9880 = vand.u32 %v9186, 4294901760
  %9881 = vmatpush1.msra.mxu0 %v9880
  %9882 = vmatprep.subr.mxu0 0.0
  %v9883 = vand.u32 %v9187, 4294901760
  %9884 = vmatpush1.msra.mxu0 %v9883
  %9885 = vmatprep.subr.mxu0 0.0
  %v9886 = vand.u32 %v9188, 4294901760
  %9887 = vmatpush1.msra.mxu0 %v9886
  %9888 = vmatprep.subr.mxu0 0.0
  %v9889 = vand.u32 %v9189, 4294901760
  %9890 = vmatpush1.msra.mxu0 %v9889
  %9891 = vmatprep.subr.mxu0 0.0
  %v9892 = vand.u32 %v9190, 4294901760
  %9893 = vmatpush1.msra.mxu0 %v9892
  %9894 = vmatprep.subr.mxu0 0.0
  %v9895 = vand.u32 %v9191, 4294901760
  %9896 = vmatpush1.msra.mxu0 %v9895
  %9897 = vmatprep.subr.mxu0 0.0
  %v9898 = vand.u32 %v9192, 4294901760
  %9899 = vmatpush1.msra.mxu0 %v9898
  %9900 = vmatprep.subr.mxu0 0.0
  %v9901 = vand.u32 %v9193, 4294901760
  %9902 = vmatpush1.msra.mxu0 %v9901
  %9903 = vmatprep.subr.mxu0 0.0
  %v9904 = vand.u32 %v9194, 4294901760
  %9905 = vmatpush1.msra.mxu0 %v9904
  %9906 = vmatprep.subr.mxu0 0.0
  %v9907 = vand.u32 %v9195, 4294901760
  %9908 = vmatpush1.msra.mxu0 %v9907
  %9909 = vmatprep.subr.mxu0 0.0
  %9910 = vmatpush1.msra.mxu0 0.0
  %9911 = vmatprep.subr.mxu0 0.0
  %9912 = vmatpush1.msra.mxu0 0.0
  %9913 = vmatprep.subr.mxu0 0.0
  %9914 = vmatpush1.msra.mxu0 0.0
  %9915 = vmatprep.subr.mxu0 0.0
  %9916 = vmatpush1.msra.mxu0 0.0
  %9917 = vmatprep.subr.mxu0 0.0
  %9918 = vmatpush1.msra.mxu0 0.0
  %9919 = vmatprep.subr.mxu0 0.0
  %9920 = vmatpush1.msra.mxu0 0.0
  %9921 = vmatprep.subr.mxu0 0.0
  %9922 = vmatpush1.msra.mxu0 0.0
  %9923 = vmatprep.subr.mxu0 0.0
  %9924 = vmatpush1.msra.mxu0 0.0
  %9925 = vmatprep.subr.mxu0 0.0
  %9926 = vmatpush1.msra.mxu0 0.0
  %9927 = vmatprep.subr.mxu0 0.0
  %9928 = vmatpush1.msra.mxu0 0.0
  %9929 = vmatprep.subr.mxu0 0.0
  %9930 = vmatpush1.msra.mxu0 0.0
  %9931 = vmatprep.subr.mxu0 0.0
  %9932 = vmatpush1.msra.mxu0 0.0
  %9933 = vmatprep.subr.mxu0 0.0
  %9934 = vmatpush1.msra.mxu0 0.0
  %9935 = vmatprep.subr.mxu0 0.0
  %9936 = vmatpush1.msra.mxu0 0.0
  %9937 = vmatprep.subr.mxu0 0.0
  %9938 = vmatpush1.msra.mxu0 0.0
  %9939 = vmatprep.subr.mxu0 0.0
  %9940 = vmatpush1.msra.mxu0 0.0
  %9941 = vmatprep.mubr.f32.mxu0 0.0
  %v9942 = vand.u32 %v9165, 4294901760
  %9943 = vmatmul.mubr.f32.gmra.mrb[0].mxu0 %v9942
  %v9944 = vpop.f32.mrb[0].mxu0
  %v9945 = vadd.f32 %v9840, %v9944
  %v9946 = vpop.f32.mrb[0].mxu0
  %9947 = vmatprep.mubr.f32.mxu0 0.0
  %v9948 = vand.u32 %v9168, 4294901760
  %9949 = vmatmul.mubr.f32.gmra.mrb[0].mxu0 %v9948
  %v9950 = vpop.f32.mrb[0].mxu0
  %v9951 = vadd.f32 %v9846, %v9950
  %v9952 = vpop.f32.mrb[0].mxu0
  %9953 = vmatprep.mubr.f32.mxu0 0.0
  %v9954 = vand.u32 %v9173, 4294901760
  %9955 = vmatmul.mubr.f32.gmra.mrb[0].mxu0 %v9954
  %v9956 = vpop.f32.mrb[0].mxu0
  %v9957 = vadd.f32 %v9852, %v9956
  %v9958 = vpop.f32.mrb[0].mxu0
  %9959 = vmatprep.mubr.f32.mxu0 0.0
  %v9960 = vand.u32 %v9176, 4294901760
  %9961 = vmatmul.mubr.f32.gmra.mrb[0].mxu0 %v9960
  %v9962 = vpop.f32.mrb[0].mxu0
  %v9963 = vadd.f32 %v9858, %v9962
  %v9964 = vpop.f32.mrb[0].mxu0
  %9965 = vdwg.mxu0
  %v9966 = vadd.f32 %v9945, %v9951
  %v9967 = vadd.f32 %v9966, %v9957
  %v9968 = vadd.f32 %v9967, %v9963
  %v9969 = vrot.slane %v9968, 4
  %v9970 = vadd.f32 %v9968, %v9969
  %v9971 = vrot.slane %v9970, 2
  %v9972 = vadd.f32 %v9970, %v9971
  %v9973 = vrot.slane %v9972, 1
  %v9974 = vadd.f32 %v9972, %v9973
  %v9975 = vrcp.pop 32.0
  %v9976 = vmul.f32 %v9974, %v9975
  %v9977 = vmul.f32 %v9165, %v9165
  %v9978 = vmul.f32 %v9168, %v9168
  %v9979 = vmul.f32 %v9173, %v9173
  %v9980 = vmul.f32 %v9176, %v9176
  %9981 = vmatprep.subr.mxu0 0.0
  %v9982 = vand.u32 %v9180, 4294901760
  %9983 = vmatpush1.msra.mxu0 %v9982
  %9984 = vmatprep.subr.mxu0 0.0
  %v9985 = vand.u32 %v9181, 4294901760
  %9986 = vmatpush1.msra.mxu0 %v9985
  %9987 = vmatprep.subr.mxu0 0.0
  %v9988 = vand.u32 %v9182, 4294901760
  %9989 = vmatpush1.msra.mxu0 %v9988
  %9990 = vmatprep.subr.mxu0 0.0
  %v9991 = vand.u32 %v9183, 4294901760
  %9992 = vmatpush1.msra.mxu0 %v9991
  %9993 = vmatprep.subr.mxu0 0.0
  %v9994 = vand.u32 %v9184, 4294901760
  %9995 = vmatpush1.msra.mxu0 %v9994
  %9996 = vmatprep.subr.mxu0 0.0
  %v9997 = vand.u32 %v9185, 4294901760
  %9998 = vmatpush1.msra.mxu0 %v9997
  %9999 = vmatprep.subr.mxu0 0.0
  %v10000 = vand.u32 %v9186, 4294901760
  %10001 = vmatpush1.msra.mxu0 %v10000
  %10002 = vmatprep.subr.mxu0 0.0
  %v10003 = vand.u32 %v9187, 4294901760
  %10004 = vmatpush1.msra.mxu0 %v10003
  %10005 = vmatprep.subr.mxu0 0.0
  %v10006 = vand.u32 %v9188, 4294901760
  %10007 = vmatpush1.msra.mxu0 %v10006
  %10008 = vmatprep.subr.mxu0 0.0
  %v10009 = vand.u32 %v9189, 4294901760
  %10010 = vmatpush1.msra.mxu0 %v10009
  %10011 = vmatprep.subr.mxu0 0.0
  %v10012 = vand.u32 %v9190, 4294901760
  %10013 = vmatpush1.msra.mxu0 %v10012
  %10014 = vmatprep.subr.mxu0 0.0
  %v10015 = vand.u32 %v9191, 4294901760
  %10016 = vmatpush1.msra.mxu0 %v10015
  %10017 = vmatprep.subr.mxu0 0.0
  %v10018 = vand.u32 %v9192, 4294901760
  %10019 = vmatpush1.msra.mxu0 %v10018
  %10020 = vmatprep.subr.mxu0 0.0
  %v10021 = vand.u32 %v9193, 4294901760
  %10022 = vmatpush1.msra.mxu0 %v10021
  %10023 = vmatprep.subr.mxu0 0.0
  %v10024 = vand.u32 %v9194, 4294901760
  %10025 = vmatpush1.msra.mxu0 %v10024
  %10026 = vmatprep.subr.mxu0 0.0
  %v10027 = vand.u32 %v9195, 4294901760
  %10028 = vmatpush1.msra.mxu0 %v10027
  %10029 = vmatprep.subr.mxu0 0.0
  %10030 = vmatpush1.msra.mxu0 0.0
  %10031 = vmatprep.subr.mxu0 0.0
  %10032 = vmatpush1.msra.mxu0 0.0
  %10033 = vmatprep.subr.mxu0 0.0
  %10034 = vmatpush1.msra.mxu0 0.0
  %10035 = vmatprep.subr.mxu0 0.0
  %10036 = vmatpush1.msra.mxu0 0.0
  %10037 = vmatprep.subr.mxu0 0.0
  %10038 = vmatpush1.msra.mxu0 0.0
  %10039 = vmatprep.subr.mxu0 0.0
  %10040 = vmatpush1.msra.mxu0 0.0
  %10041 = vmatprep.subr.mxu0 0.0
  %10042 = vmatpush1.msra.mxu0 0.0
  %10043 = vmatprep.subr.mxu0 0.0
  %10044 = vmatpush1.msra.mxu0 0.0
  %10045 = vmatprep.subr.mxu0 0.0
  %10046 = vmatpush1.msra.mxu0 0.0
  %10047 = vmatprep.subr.mxu0 0.0
  %10048 = vmatpush1.msra.mxu0 0.0
  %10049 = vmatprep.subr.mxu0 0.0
  %10050 = vmatpush1.msra.mxu0 0.0
  %10051 = vmatprep.subr.mxu0 0.0
  %10052 = vmatpush1.msra.mxu0 0.0
  %10053 = vmatprep.subr.mxu0 0.0
  %10054 = vmatpush1.msra.mxu0 0.0
  %10055 = vmatprep.subr.mxu0 0.0
  %10056 = vmatpush1.msra.mxu0 0.0
  %10057 = vmatprep.subr.mxu0 0.0
  %10058 = vmatpush1.msra.mxu0 0.0
  %10059 = vmatprep.subr.mxu0 0.0
  %10060 = vmatpush1.msra.mxu0 0.0
  %10061 = vmatprep.mubr.f32.mxu0 0.0
  %v10062 = vand.u32 %v9977, 4294901760
  %v10063 = vsub.f32 %v9977, %v10062
  %v10064 = vand.u32 %v10063, 4294901760
  %v10065 = vsub.f32 %v10063, %v10064
  %v10066 = vand.u32 %v10065, 4294901760
  %10067 = vmatmul.mubr.f32.gmra.mrb[0].mxu0 %v10066
  %v10068 = vpop.f32.mrb[0].mxu0
  %v10069 = vadd.f32 0.0, %v10068
  %v10070 = vpop.f32.mrb[0].mxu0
  %10071 = vmatprep.mubr.f32.mxu0 0.0
  %v10072 = vand.u32 %v9978, 4294901760
  %v10073 = vsub.f32 %v9978, %v10072
  %v10074 = vand.u32 %v10073, 4294901760
  %v10075 = vsub.f32 %v10073, %v10074
  %v10076 = vand.u32 %v10075, 4294901760
  %10077 = vmatmul.mubr.f32.gmra.mrb[0].mxu0 %v10076
  %v10078 = vpop.f32.mrb[0].mxu0
  %v10079 = vadd.f32 0.0, %v10078
  %v10080 = vpop.f32.mrb[0].mxu0
  %10081 = vmatprep.mubr.f32.mxu0 0.0
  %v10082 = vand.u32 %v9979, 4294901760
  %v10083 = vsub.f32 %v9979, %v10082
  %v10084 = vand.u32 %v10083, 4294901760
  %v10085 = vsub.f32 %v10083, %v10084
  %v10086 = vand.u32 %v10085, 4294901760
  %10087 = vmatmul.mubr.f32.gmra.mrb[0].mxu0 %v10086
  %v10088 = vpop.f32.mrb[0].mxu0
  %v10089 = vadd.f32 0.0, %v10088
  %v10090 = vpop.f32.mrb[0].mxu0
  %10091 = vmatprep.mubr.f32.mxu0 0.0
  %v10092 = vand.u32 %v9980, 4294901760
  %v10093 = vsub.f32 %v9980, %v10092
  %v10094 = vand.u32 %v10093, 4294901760
  %v10095 = vsub.f32 %v10093, %v10094
  %v10096 = vand.u32 %v10095, 4294901760
  %10097 = vmatmul.mubr.f32.gmra.mrb[0].mxu0 %v10096
  %v10098 = vpop.f32.mrb[0].mxu0
  %v10099 = vadd.f32 0.0, %v10098
  %v10100 = vpop.f32.mrb[0].mxu0
  %10101 = vdwg.mxu0
  %10102 = vmatprep.subr.mxu0 0.0
  %v10103 = vand.u32 %v9180, 4294901760
  %v10104 = vsub.f32 %v9180, %v10103
  %v10105 = vand.u32 %v10104, 4294901760
  %v10106 = vsub.f32 %v10104, %v10105
  %v10107 = vand.u32 %v10106, 4294901760
  %10108 = vmatpush1.msra.mxu0 %v10107
  %10109 = vmatprep.subr.mxu0 0.0
  %v10110 = vand.u32 %v9181, 4294901760
  %v10111 = vsub.f32 %v9181, %v10110
  %v10112 = vand.u32 %v10111, 4294901760
  %v10113 = vsub.f32 %v10111, %v10112
  %v10114 = vand.u32 %v10113, 4294901760
  %10115 = vmatpush1.msra.mxu0 %v10114
  %10116 = vmatprep.subr.mxu0 0.0
  %v10117 = vand.u32 %v9182, 4294901760
  %v10118 = vsub.f32 %v9182, %v10117
  %v10119 = vand.u32 %v10118, 4294901760
  %v10120 = vsub.f32 %v10118, %v10119
  %v10121 = vand.u32 %v10120, 4294901760
  %10122 = vmatpush1.msra.mxu0 %v10121
  %10123 = vmatprep.subr.mxu0 0.0
  %v10124 = vand.u32 %v9183, 4294901760
  %v10125 = vsub.f32 %v9183, %v10124
  %v10126 = vand.u32 %v10125, 4294901760
  %v10127 = vsub.f32 %v10125, %v10126
  %v10128 = vand.u32 %v10127, 4294901760
  %10129 = vmatpush1.msra.mxu0 %v10128
  %10130 = vmatprep.subr.mxu0 0.0
  %v10131 = vand.u32 %v9184, 4294901760
  %v10132 = vsub.f32 %v9184, %v10131
  %v10133 = vand.u32 %v10132, 4294901760
  %v10134 = vsub.f32 %v10132, %v10133
  %v10135 = vand.u32 %v10134, 4294901760
  %10136 = vmatpush1.msra.mxu0 %v10135
  %10137 = vmatprep.subr.mxu0 0.0
  %v10138 = vand.u32 %v9185, 4294901760
  %v10139 = vsub.f32 %v9185, %v10138
  %v10140 = vand.u32 %v10139, 4294901760
  %v10141 = vsub.f32 %v10139, %v10140
  %v10142 = vand.u32 %v10141, 4294901760
  %10143 = vmatpush1.msra.mxu0 %v10142
  %10144 = vmatprep.subr.mxu0 0.0
  %v10145 = vand.u32 %v9186, 4294901760
  %v10146 = vsub.f32 %v9186, %v10145
  %v10147 = vand.u32 %v10146, 4294901760
  %v10148 = vsub.f32 %v10146, %v10147
  %v10149 = vand.u32 %v10148, 4294901760
  %10150 = vmatpush1.msra.mxu0 %v10149
  %10151 = vmatprep.subr.mxu0 0.0
  %v10152 = vand.u32 %v9187, 4294901760
  %v10153 = vsub.f32 %v9187, %v10152
  %v10154 = vand.u32 %v10153, 4294901760
  %v10155 = vsub.f32 %v10153, %v10154
  %v10156 = vand.u32 %v10155, 4294901760
  %10157 = vmatpush1.msra.mxu0 %v10156
  %10158 = vmatprep.subr.mxu0 0.0
  %v10159 = vand.u32 %v9188, 4294901760
  %v10160 = vsub.f32 %v9188, %v10159
  %v10161 = vand.u32 %v10160, 4294901760
  %v10162 = vsub.f32 %v10160, %v10161
  %v10163 = vand.u32 %v10162, 4294901760
  %10164 = vmatpush1.msra.mxu0 %v10163
  %10165 = vmatprep.subr.mxu0 0.0
  %v10166 = vand.u32 %v9189, 4294901760
  %v10167 = vsub.f32 %v9189, %v10166
  %v10168 = vand.u32 %v10167, 4294901760
  %v10169 = vsub.f32 %v10167, %v10168
  %v10170 = vand.u32 %v10169, 4294901760
  %10171 = vmatpush1.msra.mxu0 %v10170
  %10172 = vmatprep.subr.mxu0 0.0
  %v10173 = vand.u32 %v9190, 4294901760
  %v10174 = vsub.f32 %v9190, %v10173
  %v10175 = vand.u32 %v10174, 4294901760
  %v10176 = vsub.f32 %v10174, %v10175
  %v10177 = vand.u32 %v10176, 4294901760
  %10178 = vmatpush1.msra.mxu0 %v10177
  %10179 = vmatprep.subr.mxu0 0.0
  %v10180 = vand.u32 %v9191, 4294901760
  %v10181 = vsub.f32 %v9191, %v10180
  %v10182 = vand.u32 %v10181, 4294901760
  %v10183 = vsub.f32 %v10181, %v10182
  %v10184 = vand.u32 %v10183, 4294901760
  %10185 = vmatpush1.msra.mxu0 %v10184
  %10186 = vmatprep.subr.mxu0 0.0
  %v10187 = vand.u32 %v9192, 4294901760
  %v10188 = vsub.f32 %v9192, %v10187
  %v10189 = vand.u32 %v10188, 4294901760
  %v10190 = vsub.f32 %v10188, %v10189
  %v10191 = vand.u32 %v10190, 4294901760
  %10192 = vmatpush1.msra.mxu0 %v10191
  %10193 = vmatprep.subr.mxu0 0.0
  %v10194 = vand.u32 %v9193, 4294901760
  %v10195 = vsub.f32 %v9193, %v10194
  %v10196 = vand.u32 %v10195, 4294901760
  %v10197 = vsub.f32 %v10195, %v10196
  %v10198 = vand.u32 %v10197, 4294901760
  %10199 = vmatpush1.msra.mxu0 %v10198
  %10200 = vmatprep.subr.mxu0 0.0
  %v10201 = vand.u32 %v9194, 4294901760
  %v10202 = vsub.f32 %v9194, %v10201
  %v10203 = vand.u32 %v10202, 4294901760
  %v10204 = vsub.f32 %v10202, %v10203
  %v10205 = vand.u32 %v10204, 4294901760
  %10206 = vmatpush1.msra.mxu0 %v10205
  %10207 = vmatprep.subr.mxu0 0.0
  %v10208 = vand.u32 %v9195, 4294901760
  %v10209 = vsub.f32 %v9195, %v10208
  %v10210 = vand.u32 %v10209, 4294901760
  %v10211 = vsub.f32 %v10209, %v10210
  %v10212 = vand.u32 %v10211, 4294901760
  %10213 = vmatpush1.msra.mxu0 %v10212
  %10214 = vmatprep.subr.mxu0 0.0
  %10215 = vmatpush1.msra.mxu0 0.0
  %10216 = vmatprep.subr.mxu0 0.0
  %10217 = vmatpush1.msra.mxu0 0.0
  %10218 = vmatprep.subr.mxu0 0.0
  %10219 = vmatpush1.msra.mxu0 0.0
  %10220 = vmatprep.subr.mxu0 0.0
  %10221 = vmatpush1.msra.mxu0 0.0
  %10222 = vmatprep.subr.mxu0 0.0
  %10223 = vmatpush1.msra.mxu0 0.0
  %10224 = vmatprep.subr.mxu0 0.0
  %10225 = vmatpush1.msra.mxu0 0.0
  %10226 = vmatprep.subr.mxu0 0.0
  %10227 = vmatpush1.msra.mxu0 0.0
  %10228 = vmatprep.subr.mxu0 0.0
  %10229 = vmatpush1.msra.mxu0 0.0
  %10230 = vmatprep.subr.mxu0 0.0
  %10231 = vmatpush1.msra.mxu0 0.0
  %10232 = vmatprep.subr.mxu0 0.0
  %10233 = vmatpush1.msra.mxu0 0.0
  %10234 = vmatprep.subr.mxu0 0.0
  %10235 = vmatpush1.msra.mxu0 0.0
  %10236 = vmatprep.subr.mxu0 0.0
  %10237 = vmatpush1.msra.mxu0 0.0
  %10238 = vmatprep.subr.mxu0 0.0
  %10239 = vmatpush1.msra.mxu0 0.0
  %10240 = vmatprep.subr.mxu0 0.0
  %10241 = vmatpush1.msra.mxu0 0.0
  %10242 = vmatprep.subr.mxu0 0.0
  %10243 = vmatpush1.msra.mxu0 0.0
  %10244 = vmatprep.subr.mxu0 0.0
  %10245 = vmatpush1.msra.mxu0 0.0
  %10246 = vmatprep.mubr.f32.mxu0 0.0
  %v10247 = vand.u32 %v9977, 4294901760
  %10248 = vmatmul.mubr.f32.gmra.mrb[0].mxu0 %v10247
  %v10249 = vpop.f32.mrb[0].mxu0
  %v10250 = vadd.f32 %v10069, %v10249
  %v10251 = vpop.f32.mrb[0].mxu0
  %10252 = vmatprep.mubr.f32.mxu0 0.0
  %v10253 = vand.u32 %v9978, 4294901760
  %10254 = vmatmul.mubr.f32.gmra.mrb[0].mxu0 %v10253
  %v10255 = vpop.f32.mrb[0].mxu0
  %v10256 = vadd.f32 %v10079, %v10255
  %v10257 = vpop.f32.mrb[0].mxu0
  %10258 = vmatprep.mubr.f32.mxu0 0.0
  %v10259 = vand.u32 %v9979, 4294901760
  %10260 = vmatmul.mubr.f32.gmra.mrb[0].mxu0 %v10259
  %v10261 = vpop.f32.mrb[0].mxu0
  %v10262 = vadd.f32 %v10089, %v10261
  %v10263 = vpop.f32.mrb[0].mxu0
  %10264 = vmatprep.mubr.f32.mxu0 0.0
  %v10265 = vand.u32 %v9980, 4294901760
  %10266 = vmatmul.mubr.f32.gmra.mrb[0].mxu0 %v10265
  %v10267 = vpop.f32.mrb[0].mxu0
  %v10268 = vadd.f32 %v10099, %v10267
  %v10269 = vpop.f32.mrb[0].mxu0
  %10270 = vdwg.mxu0
  %10271 = vmatprep.subr.mxu0 0.0
  %v10272 = vand.u32 %v9180, 4294901760
  %v10273 = vsub.f32 %v9180, %v10272
  %10274 = vmatpush1.msra.mxu0 %v10273
  %10275 = vmatprep.subr.mxu0 0.0
  %v10276 = vand.u32 %v9181, 4294901760
  %v10277 = vsub.f32 %v9181, %v10276
  %10278 = vmatpush1.msra.mxu0 %v10277
  %10279 = vmatprep.subr.mxu0 0.0
  %v10280 = vand.u32 %v9182, 4294901760
  %v10281 = vsub.f32 %v9182, %v10280
  %10282 = vmatpush1.msra.mxu0 %v10281
  %10283 = vmatprep.subr.mxu0 0.0
  %v10284 = vand.u32 %v9183, 4294901760
  %v10285 = vsub.f32 %v9183, %v10284
  %10286 = vmatpush1.msra.mxu0 %v10285
  %10287 = vmatprep.subr.mxu0 0.0
  %v10288 = vand.u32 %v9184, 4294901760
  %v10289 = vsub.f32 %v9184, %v10288
  %10290 = vmatpush1.msra.mxu0 %v10289
  %10291 = vmatprep.subr.mxu0 0.0
  %v10292 = vand.u32 %v9185, 4294901760
  %v10293 = vsub.f32 %v9185, %v10292
  %10294 = vmatpush1.msra.mxu0 %v10293
  %10295 = vmatprep.subr.mxu0 0.0
  %v10296 = vand.u32 %v9186, 4294901760
  %v10297 = vsub.f32 %v9186, %v10296
  %10298 = vmatpush1.msra.mxu0 %v10297
  %10299 = vmatprep.subr.mxu0 0.0
  %v10300 = vand.u32 %v9187, 4294901760
  %v10301 = vsub.f32 %v9187, %v10300
  %10302 = vmatpush1.msra.mxu0 %v10301
  %10303 = vmatprep.subr.mxu0 0.0
  %v10304 = vand.u32 %v9188, 4294901760
  %v10305 = vsub.f32 %v9188, %v10304
  %10306 = vmatpush1.msra.mxu0 %v10305
  %10307 = vmatprep.subr.mxu0 0.0
  %v10308 = vand.u32 %v9189, 4294901760
  %v10309 = vsub.f32 %v9189, %v10308
  %10310 = vmatpush1.msra.mxu0 %v10309
  %10311 = vmatprep.subr.mxu0 0.0
  %v10312 = vand.u32 %v9190, 4294901760
  %v10313 = vsub.f32 %v9190, %v10312
  %10314 = vmatpush1.msra.mxu0 %v10313
  %10315 = vmatprep.subr.mxu0 0.0
  %v10316 = vand.u32 %v9191, 4294901760
  %v10317 = vsub.f32 %v9191, %v10316
  %10318 = vmatpush1.msra.mxu0 %v10317
  %10319 = vmatprep.subr.mxu0 0.0
  %v10320 = vand.u32 %v9192, 4294901760
  %v10321 = vsub.f32 %v9192, %v10320
  %10322 = vmatpush1.msra.mxu0 %v10321
  %10323 = vmatprep.subr.mxu0 0.0
  %v10324 = vand.u32 %v9193, 4294901760
  %v10325 = vsub.f32 %v9193, %v10324
  %10326 = vmatpush1.msra.mxu0 %v10325
  %10327 = vmatprep.subr.mxu0 0.0
  %v10328 = vand.u32 %v9194, 4294901760
  %v10329 = vsub.f32 %v9194, %v10328
  %10330 = vmatpush1.msra.mxu0 %v10329
  %10331 = vmatprep.subr.mxu0 0.0
  %v10332 = vand.u32 %v9195, 4294901760
  %v10333 = vsub.f32 %v9195, %v10332
  %10334 = vmatpush1.msra.mxu0 %v10333
  %10335 = vmatprep.subr.mxu0 0.0
  %10336 = vmatpush1.msra.mxu0 0.0
  %10337 = vmatprep.subr.mxu0 0.0
  %10338 = vmatpush1.msra.mxu0 0.0
  %10339 = vmatprep.subr.mxu0 0.0
  %10340 = vmatpush1.msra.mxu0 0.0
  %10341 = vmatprep.subr.mxu0 0.0
  %10342 = vmatpush1.msra.mxu0 0.0
  %10343 = vmatprep.subr.mxu0 0.0
  %10344 = vmatpush1.msra.mxu0 0.0
  %10345 = vmatprep.subr.mxu0 0.0
  %10346 = vmatpush1.msra.mxu0 0.0
  %10347 = vmatprep.subr.mxu0 0.0
  %10348 = vmatpush1.msra.mxu0 0.0
  %10349 = vmatprep.subr.mxu0 0.0
  %10350 = vmatpush1.msra.mxu0 0.0
  %10351 = vmatprep.subr.mxu0 0.0
  %10352 = vmatpush1.msra.mxu0 0.0
  %10353 = vmatprep.subr.mxu0 0.0
  %10354 = vmatpush1.msra.mxu0 0.0
  %10355 = vmatprep.subr.mxu0 0.0
  %10356 = vmatpush1.msra.mxu0 0.0
  %10357 = vmatprep.subr.mxu0 0.0
  %10358 = vmatpush1.msra.mxu0 0.0
  %10359 = vmatprep.subr.mxu0 0.0
  %10360 = vmatpush1.msra.mxu0 0.0
  %10361 = vmatprep.subr.mxu0 0.0
  %10362 = vmatpush1.msra.mxu0 0.0
  %10363 = vmatprep.subr.mxu0 0.0
  %10364 = vmatpush1.msra.mxu0 0.0
  %10365 = vmatprep.subr.mxu0 0.0
  %10366 = vmatpush1.msra.mxu0 0.0
  %10367 = vmatprep.mubr.f32.mxu0 0.0
  %v10368 = vand.u32 %v9977, 4294901760
  %v10369 = vsub.f32 %v9977, %v10368
  %10370 = vmatmul.mubr.f32.gmra.mrb[0].mxu0 %v10369
  %v10371 = vpop.f32.mrb[0].mxu0
  %v10372 = vadd.f32 %v10250, %v10371
  %v10373 = vpop.f32.mrb[0].mxu0
  %10374 = vmatprep.mubr.f32.mxu0 0.0
  %v10375 = vand.u32 %v9978, 4294901760
  %v10376 = vsub.f32 %v9978, %v10375
  %10377 = vmatmul.mubr.f32.gmra.mrb[0].mxu0 %v10376
  %v10378 = vpop.f32.mrb[0].mxu0
  %v10379 = vadd.f32 %v10256, %v10378
  %v10380 = vpop.f32.mrb[0].mxu0
  %10381 = vmatprep.mubr.f32.mxu0 0.0
  %v10382 = vand.u32 %v9979, 4294901760
  %v10383 = vsub.f32 %v9979, %v10382
  %10384 = vmatmul.mubr.f32.gmra.mrb[0].mxu0 %v10383
  %v10385 = vpop.f32.mrb[0].mxu0
  %v10386 = vadd.f32 %v10262, %v10385
  %v10387 = vpop.f32.mrb[0].mxu0
  %10388 = vmatprep.mubr.f32.mxu0 0.0
  %v10389 = vand.u32 %v9980, 4294901760
  %v10390 = vsub.f32 %v9980, %v10389
  %10391 = vmatmul.mubr.f32.gmra.mrb[0].mxu0 %v10390
  %v10392 = vpop.f32.mrb[0].mxu0
  %v10393 = vadd.f32 %v10268, %v10392
  %v10394 = vpop.f32.mrb[0].mxu0
  %10395 = vdwg.mxu0
  %10396 = vmatprep.subr.mxu0 0.0
  %v10397 = vand.u32 %v9180, 4294901760
  %10398 = vmatpush1.msra.mxu0 %v10397
  %10399 = vmatprep.subr.mxu0 0.0
  %v10400 = vand.u32 %v9181, 4294901760
  %10401 = vmatpush1.msra.mxu0 %v10400
  %10402 = vmatprep.subr.mxu0 0.0
  %v10403 = vand.u32 %v9182, 4294901760
  %10404 = vmatpush1.msra.mxu0 %v10403
  %10405 = vmatprep.subr.mxu0 0.0
  %v10406 = vand.u32 %v9183, 4294901760
  %10407 = vmatpush1.msra.mxu0 %v10406
  %10408 = vmatprep.subr.mxu0 0.0
  %v10409 = vand.u32 %v9184, 4294901760
  %10410 = vmatpush1.msra.mxu0 %v10409
  %10411 = vmatprep.subr.mxu0 0.0
  %v10412 = vand.u32 %v9185, 4294901760
  %10413 = vmatpush1.msra.mxu0 %v10412
  %10414 = vmatprep.subr.mxu0 0.0
  %v10415 = vand.u32 %v9186, 4294901760
  %10416 = vmatpush1.msra.mxu0 %v10415
  %10417 = vmatprep.subr.mxu0 0.0
  %v10418 = vand.u32 %v9187, 4294901760
  %10419 = vmatpush1.msra.mxu0 %v10418
  %10420 = vmatprep.subr.mxu0 0.0
  %v10421 = vand.u32 %v9188, 4294901760
  %10422 = vmatpush1.msra.mxu0 %v10421
  %10423 = vmatprep.subr.mxu0 0.0
  %v10424 = vand.u32 %v9189, 4294901760
  %10425 = vmatpush1.msra.mxu0 %v10424
  %10426 = vmatprep.subr.mxu0 0.0
  %v10427 = vand.u32 %v9190, 4294901760
  %10428 = vmatpush1.msra.mxu0 %v10427
  %10429 = vmatprep.subr.mxu0 0.0
  %v10430 = vand.u32 %v9191, 4294901760
  %10431 = vmatpush1.msra.mxu0 %v10430
  %10432 = vmatprep.subr.mxu0 0.0
  %v10433 = vand.u32 %v9192, 4294901760
  %10434 = vmatpush1.msra.mxu0 %v10433
  %10435 = vmatprep.subr.mxu0 0.0
  %v10436 = vand.u32 %v9193, 4294901760
  %10437 = vmatpush1.msra.mxu0 %v10436
  %10438 = vmatprep.subr.mxu0 0.0
  %v10439 = vand.u32 %v9194, 4294901760
  %10440 = vmatpush1.msra.mxu0 %v10439
  %10441 = vmatprep.subr.mxu0 0.0
  %v10442 = vand.u32 %v9195, 4294901760
  %10443 = vmatpush1.msra.mxu0 %v10442
  %10444 = vmatprep.subr.mxu0 0.0
  %10445 = vmatpush1.msra.mxu0 0.0
  %10446 = vmatprep.subr.mxu0 0.0
  %10447 = vmatpush1.msra.mxu0 0.0
  %10448 = vmatprep.subr.mxu0 0.0
  %10449 = vmatpush1.msra.mxu0 0.0
  %10450 = vmatprep.subr.mxu0 0.0
  %10451 = vmatpush1.msra.mxu0 0.0
  %10452 = vmatprep.subr.mxu0 0.0
  %10453 = vmatpush1.msra.mxu0 0.0
  %10454 = vmatprep.subr.mxu0 0.0
  %10455 = vmatpush1.msra.mxu0 0.0
  %10456 = vmatprep.subr.mxu0 0.0
  %10457 = vmatpush1.msra.mxu0 0.0
  %10458 = vmatprep.subr.mxu0 0.0
  %10459 = vmatpush1.msra.mxu0 0.0
  %10460 = vmatprep.subr.mxu0 0.0
  %10461 = vmatpush1.msra.mxu0 0.0
  %10462 = vmatprep.subr.mxu0 0.0
  %10463 = vmatpush1.msra.mxu0 0.0
  %10464 = vmatprep.subr.mxu0 0.0
  %10465 = vmatpush1.msra.mxu0 0.0
  %10466 = vmatprep.subr.mxu0 0.0
  %10467 = vmatpush1.msra.mxu0 0.0
  %10468 = vmatprep.subr.mxu0 0.0
  %10469 = vmatpush1.msra.mxu0 0.0
  %10470 = vmatprep.subr.mxu0 0.0
  %10471 = vmatpush1.msra.mxu0 0.0
  %10472 = vmatprep.subr.mxu0 0.0
  %10473 = vmatpush1.msra.mxu0 0.0
  %10474 = vmatprep.subr.mxu0 0.0
  %10475 = vmatpush1.msra.mxu0 0.0
  %10476 = vmatprep.mubr.f32.mxu0 0.0
  %v10477 = vand.u32 %v9977, 4294901760
  %v10478 = vsub.f32 %v9977, %v10477
  %v10479 = vand.u32 %v10478, 4294901760
  %10480 = vmatmul.mubr.f32.gmra.mrb[0].mxu0 %v10479
  %v10481 = vpop.f32.mrb[0].mxu0
  %v10482 = vadd.f32 %v10372, %v10481
  %v10483 = vpop.f32.mrb[0].mxu0
  %10484 = vmatprep.mubr.f32.mxu0 0.0
  %v10485 = vand.u32 %v9978, 4294901760
  %v10486 = vsub.f32 %v9978, %v10485
  %v10487 = vand.u32 %v10486, 4294901760
  %10488 = vmatmul.mubr.f32.gmra.mrb[0].mxu0 %v10487
  %v10489 = vpop.f32.mrb[0].mxu0
  %v10490 = vadd.f32 %v10379, %v10489
  %v10491 = vpop.f32.mrb[0].mxu0
  %10492 = vmatprep.mubr.f32.mxu0 0.0
  %v10493 = vand.u32 %v9979, 4294901760
  %v10494 = vsub.f32 %v9979, %v10493
  %v10495 = vand.u32 %v10494, 4294901760
  %10496 = vmatmul.mubr.f32.gmra.mrb[0].mxu0 %v10495
  %v10497 = vpop.f32.mrb[0].mxu0
  %v10498 = vadd.f32 %v10386, %v10497
  %v10499 = vpop.f32.mrb[0].mxu0
  %10500 = vmatprep.mubr.f32.mxu0 0.0
  %v10501 = vand.u32 %v9980, 4294901760
  %v10502 = vsub.f32 %v9980, %v10501
  %v10503 = vand.u32 %v10502, 4294901760
  %10504 = vmatmul.mubr.f32.gmra.mrb[0].mxu0 %v10503
  %v10505 = vpop.f32.mrb[0].mxu0
  %v10506 = vadd.f32 %v10393, %v10505
  %v10507 = vpop.f32.mrb[0].mxu0
  %10508 = vdwg.mxu0
  %10509 = vmatprep.subr.mxu0 0.0
  %v10510 = vand.u32 %v9180, 4294901760
  %v10511 = vsub.f32 %v9180, %v10510
  %v10512 = vand.u32 %v10511, 4294901760
  %10513 = vmatpush1.msra.mxu0 %v10512
  %10514 = vmatprep.subr.mxu0 0.0
  %v10515 = vand.u32 %v9181, 4294901760
  %v10516 = vsub.f32 %v9181, %v10515
  %v10517 = vand.u32 %v10516, 4294901760
  %10518 = vmatpush1.msra.mxu0 %v10517
  %10519 = vmatprep.subr.mxu0 0.0
  %v10520 = vand.u32 %v9182, 4294901760
  %v10521 = vsub.f32 %v9182, %v10520
  %v10522 = vand.u32 %v10521, 4294901760
  %10523 = vmatpush1.msra.mxu0 %v10522
  %10524 = vmatprep.subr.mxu0 0.0
  %v10525 = vand.u32 %v9183, 4294901760
  %v10526 = vsub.f32 %v9183, %v10525
  %v10527 = vand.u32 %v10526, 4294901760
  %10528 = vmatpush1.msra.mxu0 %v10527
  %10529 = vmatprep.subr.mxu0 0.0
  %v10530 = vand.u32 %v9184, 4294901760
  %v10531 = vsub.f32 %v9184, %v10530
  %v10532 = vand.u32 %v10531, 4294901760
  %10533 = vmatpush1.msra.mxu0 %v10532
  %10534 = vmatprep.subr.mxu0 0.0
  %v10535 = vand.u32 %v9185, 4294901760
  %v10536 = vsub.f32 %v9185, %v10535
  %v10537 = vand.u32 %v10536, 4294901760
  %10538 = vmatpush1.msra.mxu0 %v10537
  %10539 = vmatprep.subr.mxu0 0.0
  %v10540 = vand.u32 %v9186, 4294901760
  %v10541 = vsub.f32 %v9186, %v10540
  %v10542 = vand.u32 %v10541, 4294901760
  %10543 = vmatpush1.msra.mxu0 %v10542
  %10544 = vmatprep.subr.mxu0 0.0
  %v10545 = vand.u32 %v9187, 4294901760
  %v10546 = vsub.f32 %v9187, %v10545
  %v10547 = vand.u32 %v10546, 4294901760
  %10548 = vmatpush1.msra.mxu0 %v10547
  %10549 = vmatprep.subr.mxu0 0.0
  %v10550 = vand.u32 %v9188, 4294901760
  %v10551 = vsub.f32 %v9188, %v10550
  %v10552 = vand.u32 %v10551, 4294901760
  %10553 = vmatpush1.msra.mxu0 %v10552
  %10554 = vmatprep.subr.mxu0 0.0
  %v10555 = vand.u32 %v9189, 4294901760
  %v10556 = vsub.f32 %v9189, %v10555
  %v10557 = vand.u32 %v10556, 4294901760
  %10558 = vmatpush1.msra.mxu0 %v10557
  %10559 = vmatprep.subr.mxu0 0.0
  %v10560 = vand.u32 %v9190, 4294901760
  %v10561 = vsub.f32 %v9190, %v10560
  %v10562 = vand.u32 %v10561, 4294901760
  %10563 = vmatpush1.msra.mxu0 %v10562
  %10564 = vmatprep.subr.mxu0 0.0
  %v10565 = vand.u32 %v9191, 4294901760
  %v10566 = vsub.f32 %v9191, %v10565
  %v10567 = vand.u32 %v10566, 4294901760
  %10568 = vmatpush1.msra.mxu0 %v10567
  %10569 = vmatprep.subr.mxu0 0.0
  %v10570 = vand.u32 %v9192, 4294901760
  %v10571 = vsub.f32 %v9192, %v10570
  %v10572 = vand.u32 %v10571, 4294901760
  %10573 = vmatpush1.msra.mxu0 %v10572
  %10574 = vmatprep.subr.mxu0 0.0
  %v10575 = vand.u32 %v9193, 4294901760
  %v10576 = vsub.f32 %v9193, %v10575
  %v10577 = vand.u32 %v10576, 4294901760
  %10578 = vmatpush1.msra.mxu0 %v10577
  %10579 = vmatprep.subr.mxu0 0.0
  %v10580 = vand.u32 %v9194, 4294901760
  %v10581 = vsub.f32 %v9194, %v10580
  %v10582 = vand.u32 %v10581, 4294901760
  %10583 = vmatpush1.msra.mxu0 %v10582
  %10584 = vmatprep.subr.mxu0 0.0
  %v10585 = vand.u32 %v9195, 4294901760
  %v10586 = vsub.f32 %v9195, %v10585
  %v10587 = vand.u32 %v10586, 4294901760
  %10588 = vmatpush1.msra.mxu0 %v10587
  %10589 = vmatprep.subr.mxu0 0.0
  %10590 = vmatpush1.msra.mxu0 0.0
  %10591 = vmatprep.subr.mxu0 0.0
  %10592 = vmatpush1.msra.mxu0 0.0
  %10593 = vmatprep.subr.mxu0 0.0
  %10594 = vmatpush1.msra.mxu0 0.0
  %10595 = vmatprep.subr.mxu0 0.0
  %10596 = vmatpush1.msra.mxu0 0.0
  %10597 = vmatprep.subr.mxu0 0.0
  %10598 = vmatpush1.msra.mxu0 0.0
  %10599 = vmatprep.subr.mxu0 0.0
  %10600 = vmatpush1.msra.mxu0 0.0
  %10601 = vmatprep.subr.mxu0 0.0
  %10602 = vmatpush1.msra.mxu0 0.0
  %10603 = vmatprep.subr.mxu0 0.0
  %10604 = vmatpush1.msra.mxu0 0.0
  %10605 = vmatprep.subr.mxu0 0.0
  %10606 = vmatpush1.msra.mxu0 0.0
  %10607 = vmatprep.subr.mxu0 0.0
  %10608 = vmatpush1.msra.mxu0 0.0
  %10609 = vmatprep.subr.mxu0 0.0
  %10610 = vmatpush1.msra.mxu0 0.0
  %10611 = vmatprep.subr.mxu0 0.0
  %10612 = vmatpush1.msra.mxu0 0.0
  %10613 = vmatprep.subr.mxu0 0.0
  %10614 = vmatpush1.msra.mxu0 0.0
  %10615 = vmatprep.subr.mxu0 0.0
  %10616 = vmatpush1.msra.mxu0 0.0
  %10617 = vmatprep.subr.mxu0 0.0
  %10618 = vmatpush1.msra.mxu0 0.0
  %10619 = vmatprep.subr.mxu0 0.0
  %10620 = vmatpush1.msra.mxu0 0.0
  %10621 = vmatprep.mubr.f32.mxu0 0.0
  %v10622 = vand.u32 %v9977, 4294901760
  %10623 = vmatmul.mubr.f32.gmra.mrb[0].mxu0 %v10622
  %v10624 = vpop.f32.mrb[0].mxu0
  %v10625 = vadd.f32 %v10482, %v10624
  %v10626 = vpop.f32.mrb[0].mxu0
  %10627 = vmatprep.mubr.f32.mxu0 0.0
  %v10628 = vand.u32 %v9978, 4294901760
  %10629 = vmatmul.mubr.f32.gmra.mrb[0].mxu0 %v10628
  %v10630 = vpop.f32.mrb[0].mxu0
  %v10631 = vadd.f32 %v10490, %v10630
  %v10632 = vpop.f32.mrb[0].mxu0
  %10633 = vmatprep.mubr.f32.mxu0 0.0
  %v10634 = vand.u32 %v9979, 4294901760
  %10635 = vmatmul.mubr.f32.gmra.mrb[0].mxu0 %v10634
  %v10636 = vpop.f32.mrb[0].mxu0
  %v10637 = vadd.f32 %v10498, %v10636
  %v10638 = vpop.f32.mrb[0].mxu0
  %10639 = vmatprep.mubr.f32.mxu0 0.0
  %v10640 = vand.u32 %v9980, 4294901760
  %10641 = vmatmul.mubr.f32.gmra.mrb[0].mxu0 %v10640
  %v10642 = vpop.f32.mrb[0].mxu0
  %v10643 = vadd.f32 %v10506, %v10642
  %v10644 = vpop.f32.mrb[0].mxu0
  %10645 = vdwg.mxu0
  %10646 = vmatprep.subr.mxu0 0.0
  %v10647 = vand.u32 %v9180, 4294901760
  %10648 = vmatpush1.msra.mxu0 %v10647
  %10649 = vmatprep.subr.mxu0 0.0
  %v10650 = vand.u32 %v9181, 4294901760
  %10651 = vmatpush1.msra.mxu0 %v10650
  %10652 = vmatprep.subr.mxu0 0.0
  %v10653 = vand.u32 %v9182, 4294901760
  %10654 = vmatpush1.msra.mxu0 %v10653
  %10655 = vmatprep.subr.mxu0 0.0
  %v10656 = vand.u32 %v9183, 4294901760
  %10657 = vmatpush1.msra.mxu0 %v10656
  %10658 = vmatprep.subr.mxu0 0.0
  %v10659 = vand.u32 %v9184, 4294901760
  %10660 = vmatpush1.msra.mxu0 %v10659
  %10661 = vmatprep.subr.mxu0 0.0
  %v10662 = vand.u32 %v9185, 4294901760
  %10663 = vmatpush1.msra.mxu0 %v10662
  %10664 = vmatprep.subr.mxu0 0.0
  %v10665 = vand.u32 %v9186, 4294901760
  %10666 = vmatpush1.msra.mxu0 %v10665
  %10667 = vmatprep.subr.mxu0 0.0
  %v10668 = vand.u32 %v9187, 4294901760
  %10669 = vmatpush1.msra.mxu0 %v10668
  %10670 = vmatprep.subr.mxu0 0.0
  %v10671 = vand.u32 %v9188, 4294901760
  %10672 = vmatpush1.msra.mxu0 %v10671
  %10673 = vmatprep.subr.mxu0 0.0
  %v10674 = vand.u32 %v9189, 4294901760
  %10675 = vmatpush1.msra.mxu0 %v10674
  %10676 = vmatprep.subr.mxu0 0.0
  %v10677 = vand.u32 %v9190, 4294901760
  %10678 = vmatpush1.msra.mxu0 %v10677
  %10679 = vmatprep.subr.mxu0 0.0
  %v10680 = vand.u32 %v9191, 4294901760
  %10681 = vmatpush1.msra.mxu0 %v10680
  %10682 = vmatprep.subr.mxu0 0.0
  %v10683 = vand.u32 %v9192, 4294901760
  %10684 = vmatpush1.msra.mxu0 %v10683
  %10685 = vmatprep.subr.mxu0 0.0
  %v10686 = vand.u32 %v9193, 4294901760
  %10687 = vmatpush1.msra.mxu0 %v10686
  %10688 = vmatprep.subr.mxu0 0.0
  %v10689 = vand.u32 %v9194, 4294901760
  %10690 = vmatpush1.msra.mxu0 %v10689
  %10691 = vmatprep.subr.mxu0 0.0
  %v10692 = vand.u32 %v9195, 4294901760
  %10693 = vmatpush1.msra.mxu0 %v10692
  %10694 = vmatprep.subr.mxu0 0.0
  %10695 = vmatpush1.msra.mxu0 0.0
  %10696 = vmatprep.subr.mxu0 0.0
  %10697 = vmatpush1.msra.mxu0 0.0
  %10698 = vmatprep.subr.mxu0 0.0
  %10699 = vmatpush1.msra.mxu0 0.0
  %10700 = vmatprep.subr.mxu0 0.0
  %10701 = vmatpush1.msra.mxu0 0.0
  %10702 = vmatprep.subr.mxu0 0.0
  %10703 = vmatpush1.msra.mxu0 0.0
  %10704 = vmatprep.subr.mxu0 0.0
  %10705 = vmatpush1.msra.mxu0 0.0
  %10706 = vmatprep.subr.mxu0 0.0
  %10707 = vmatpush1.msra.mxu0 0.0
  %10708 = vmatprep.subr.mxu0 0.0
  %10709 = vmatpush1.msra.mxu0 0.0
  %10710 = vmatprep.subr.mxu0 0.0
  %10711 = vmatpush1.msra.mxu0 0.0
  %10712 = vmatprep.subr.mxu0 0.0
  %10713 = vmatpush1.msra.mxu0 0.0
  %10714 = vmatprep.subr.mxu0 0.0
  %10715 = vmatpush1.msra.mxu0 0.0
  %10716 = vmatprep.subr.mxu0 0.0
  %10717 = vmatpush1.msra.mxu0 0.0
  %10718 = vmatprep.subr.mxu0 0.0
  %10719 = vmatpush1.msra.mxu0 0.0
  %10720 = vmatprep.subr.mxu0 0.0
  %10721 = vmatpush1.msra.mxu0 0.0
  %10722 = vmatprep.subr.mxu0 0.0
  %10723 = vmatpush1.msra.mxu0 0.0
  %10724 = vmatprep.subr.mxu0 0.0
  %10725 = vmatpush1.msra.mxu0 0.0
  %10726 = vmatprep.mubr.f32.mxu0 0.0
  %v10727 = vand.u32 %v9977, 4294901760
  %10728 = vmatmul.mubr.f32.gmra.mrb[0].mxu0 %v10727
  %v10729 = vpop.f32.mrb[0].mxu0
  %v10730 = vadd.f32 %v10625, %v10729
  %v10731 = vpop.f32.mrb[0].mxu0
  %10732 = vmatprep.mubr.f32.mxu0 0.0
  %v10733 = vand.u32 %v9978, 4294901760
  %10734 = vmatmul.mubr.f32.gmra.mrb[0].mxu0 %v10733
  %v10735 = vpop.f32.mrb[0].mxu0
  %v10736 = vadd.f32 %v10631, %v10735
  %v10737 = vpop.f32.mrb[0].mxu0
  %10738 = vmatprep.mubr.f32.mxu0 0.0
  %v10739 = vand.u32 %v9979, 4294901760
  %10740 = vmatmul.mubr.f32.gmra.mrb[0].mxu0 %v10739
  %v10741 = vpop.f32.mrb[0].mxu0
  %v10742 = vadd.f32 %v10637, %v10741
  %v10743 = vpop.f32.mrb[0].mxu0
  %10744 = vmatprep.mubr.f32.mxu0 0.0
  %v10745 = vand.u32 %v9980, 4294901760
  %10746 = vmatmul.mubr.f32.gmra.mrb[0].mxu0 %v10745
  %v10747 = vpop.f32.mrb[0].mxu0
  %v10748 = vadd.f32 %v10643, %v10747
  %v10749 = vpop.f32.mrb[0].mxu0
  %10750 = vdwg.mxu0
  %v10751 = vadd.f32 %v10730, %v10736
  %v10752 = vadd.f32 %v10751, %v10742
  %v10753 = vadd.f32 %v10752, %v10748
  %v10754 = vrot.slane %v10753, 4
  %v10755 = vadd.f32 %v10753, %v10754
  %v10756 = vrot.slane %v10755, 2
  %v10757 = vadd.f32 %v10755, %v10756
  %v10758 = vrot.slane %v10757, 1
  %v10759 = vadd.f32 %v10757, %v10758
  %v10760 = vmul.f32 %v10759, %v9975
  %v10761 = vmul.f32 %v9976, %v9976
  %v10762 = vsub.f32 %v10760, %v10761
  %v10763 = vmax.f32 %v10762, 0.0
  %s10764 = scalar_lea.vmem %s4, 10
  %v10765 = vld [vmem:[%s10764] sm:$0x3]
  %v10766 = vsub.f32 %v9165, %v9976
  %v10767 = vsub.f32 %v9168, %v9976
  %v10768 = vsub.f32 %v9173, %v9976
  %v10769 = vsub.f32 %v9176, %v9976
  %v10770 = vadd.f32 %v10763, 1e-05
  %v10771 = vrsqrt.pop %v10770
  %v10772 = vmul.f32 %v10766, %v10771
  %v10773 = vmul.f32 %v10767, %v10771
  %v10774 = vmul.f32 %v10768, %v10771
  %v10775 = vmul.f32 %v10769, %v10771
  %v10776 = vlaneseq
  %v10777 = vshrl.u32 %v10776, 7
  %v10778 = vsub.s32 0, %v10777
  %v10779 = vrot.slane %v10765, %v10778
  %v10780 = vmul.f32 %v10772, %v10779
  %v10781 = vmul.f32 %v10773, %v10779
  %v10782 = vmul.f32 %v10774, %v10779
  %v10783 = vmul.f32 %v10775, %v10779
  %v10784 = vlaneseq
  %v10785 = vshrl.u32 %v10784, 7
  %v10786 = vsub.s32 1, %v10785
  %v10787 = vrot.slane %v10765, %v10786
  %v10788 = vadd.f32 %v10780, %v10787
  %v10789 = vadd.f32 %v10781, %v10787
  %v10790 = vadd.f32 %v10782, %v10787
  %v10791 = vadd.f32 %v10783, %v10787
  %v10792 = vtanh.pop %v10788
  %v10793 = vtanh.pop %v10789
  %v10794 = vtanh.pop %v10790
  %v10795 = vtanh.pop %v10791
  %10796 = vst [vmem:[%s5] sm:$0xff] %v10792
  %10797 = vst [vmem:[%s5 + $0x8] sm:$0xff] %v10793
  %10798 = vst [vmem:[%s5 + $0x10] sm:$0xff] %v10794
  %10799 = vst [vmem:[%s5 + $0x18] sm:$0xff] %v10795
  // Predicated region
  $region22: #{_lambda_.1} parent=0 // pred_check
    _
  $region23: #{_lambda_.1} parent=0 // pred_check_branch
    %10801 = sbr.rel (0) target = $region25
  $region24: #{_lambda_.1} parent=0 // pred_region
    _
  $region25: #{_lambda_.1} parent=0 // pred_fallthru
    _
  // Predicated region
  $region26: #{_lambda_.1} parent=0 // pred_check
    _
  $region27: #{_lambda_.1} parent=0 // pred_check_branch
    %10803 = sbr.rel (0) target = $region29
  $region28: #{_lambda_.1} parent=0 // pred_region
    _
  $region29: #{_lambda_.1} parent=0 // pred_fallthru
    _

</llo_original>
